<compile_context>
chip_gen: v7x
topology: tpu7x:2x2x1
jax: 0.10.0
libtpu: 0.0.40
codegen_flags: <defaults>
</compile_context>

<pallas_src>
import functools

import jax
import jax.numpy as jnp
from jax.experimental import pallas as pl
from jax.experimental.pallas import tpu as pltpu


_WPAD = 8  # left halo on the W axis so interior writes into the padded tile are sublane-aligned


def _vmem_limit_bytes():
    # ~half of physical VMEM, clamped to [32 MiB, 96 MiB]: v5e/v6e (128 MiB) -> 64 MiB, v7x -> 32 MiB.
    try:
        phys = pltpu.get_tpu_info().vmem_capacity_bytes
        return int(min(96 * 2**20, max(32 * 2**20, phys // 2)))
    except Exception:
        return 64 * 2**20


def _silu_f32(x):
    # Stable SiLU on the f32 accumulator (sigmoid lowers to the EUP/logistic path).
    return x * jax.nn.sigmoid(x)


def _pick_row_tile(m):
    """Largest row tile dividing m, preferring >=2 grid steps (DMA pipelining / both TensorCores)."""
    for t in (2048, 1024, 512, 256, 128, 64, 32, 16, 8):
        if m % t == 0 and m // t >= 2:
            return t
    for t in (2048, 1024, 512, 256, 128, 64, 32, 16, 8):
        if m % t == 0:
            return t
    return m


# ---------------------------------------------------------------------------
# Pallas kernels
# ---------------------------------------------------------------------------

def _cv1_kernel(x_ref, w_ref, b_ref, y0_ref, y1_ref):
    # 1x1 conv + folded-BN bias + SiLU; output split into the two C2f chunks so downstream
    # kernels DMA exactly the channels they need (the chunk happens at the out_spec, not in HBM).
    acc = jnp.dot(x_ref[...], w_ref[...], preferred_element_type=jnp.float32)
    y = _silu_f32(acc + b_ref[...].astype(jnp.float32))
    c = y0_ref.shape[-1]
    y0_ref[...] = y[:, :c].astype(y0_ref.dtype)
    y1_ref[...] = y[:, c:].astype(y1_ref.dtype)


def _make_cv2_kernel(n_branches):
    # Fused concat((2+n) branches) + 1x1 conv + SiLU. Branches are staged into one VMEM buffer so
    # the conv is a single matmul with contraction depth (2+n)c (fills the MXU, one result pop).
    def kernel(*refs):
        branch_refs = refs[:n_branches]
        w_ref, b_ref, o_ref, cat_ref = refs[n_branches:]
        c = branch_refs[0].shape[-1]
        for i, br in enumerate(branch_refs):
            cat_ref[:, i * c:(i + 1) * c] = br[...]
        acc = jnp.dot(cat_ref[...], w_ref[...], preferred_element_type=jnp.float32)
        o_ref[...] = _silu_f32(acc + b_ref[...].astype(jnp.float32)).astype(o_ref.dtype)
    return kernel


def _bottleneck_kernel(x_ref, w1_ref, b1_ref, w2_ref, b2_ref, o_ref,
                       xp_ref, col_ref, *, H, W, c, shortcut):
    # Fused Bottleneck: 3x3 conv + SiLU -> 3x3 conv + SiLU (+ residual), one image per grid step.
    #   x_ref   : (H*W, c)   flattened image (exactly the branch channels, DMA'd by BlockSpec)
    #   w*_ref  : (9c, c)    HWIO taps flattened into the contraction dim; b*_ref: (1, c)
    #   xp_ref  : (H+2, _WPAD+W+1, c) zero-padded tile (compute dtype) — reused for both convs
    #   col_ref : (H, W, 9c) im2col staging buffer (compute dtype)
    HW = H * W
    Wp = xp_ref.shape[1]
    cdt = xp_ref.dtype

    x = x_ref[...]                                                  # (HW, c)

    # Zero ONLY the halo border; the interior is fully overwritten below and the halo stays zero
    # for the second conv. Done every grid step (scratch persists per-core and starts
    # uninitialized; with "parallel" semantics either TensorCore may run any step).
    xp_ref[0:1, :, :] = jnp.zeros((1, Wp, c), cdt)
    xp_ref[H + 1:H + 2, :, :] = jnp.zeros((1, Wp, c), cdt)
    xp_ref[1:H + 1, _WPAD - 1:_WPAD, :] = jnp.zeros((H, 1, c), cdt)
    xp_ref[1:H + 1, _WPAD + W:_WPAD + W + 1, :] = jnp.zeros((H, 1, c), cdt)

    def conv3x3(w_ref, b_ref):
        # Stage the 9 shifted taps into ONE im2col buffer -> ONE matmul with K = 9c.
        for kh in range(3):
            for kw in range(3):
                t = 3 * kh + kw
                col_ref[:, :, t * c:(t + 1) * c] = (
                    xp_ref[kh:kh + H, _WPAD - 1 + kw:_WPAD - 1 + kw + W, :])
            # (reads may be sublane-misaligned; interior *stores* above stay aligned via _WPAD)
        col = col_ref[...].reshape(HW, 9 * c)
        acc = jnp.dot(col, w_ref[...], preferred_element_type=jnp.float32)
        return _silu_f32(acc + b_ref[...].astype(jnp.float32))     # (HW, c) f32

    # cv1: interior <- x (sublane-aligned unmasked stores).
    xp_ref[1:H + 1, _WPAD:_WPAD + W, :] = x.reshape(H, W, c).astype(cdt)
    h = conv3x3(w1_ref, b1_ref)

    # cv2: the intermediate activation never leaves VMEM — reuse the same padded scratch.
    xp_ref[1:H + 1, _WPAD:_WPAD + W, :] = h.reshape(H, W, c).astype(cdt)
    out = conv3x3(w2_ref, b2_ref)

    if shortcut:
        out = out + x.astype(jnp.float32)
    o_ref[...] = out.astype(o_ref.dtype)


# ---------------------------------------------------------------------------
# Wrappers
# ---------------------------------------------------------------------------

def cv1_pw_silu_split(x_flat, w, b, c):
    """1x1 conv + SiLU producing the two C2f chunks. x_flat: (M, Cin), w: (Cin, 2c), b: (2c,)."""
    M, cin = x_flat.shape
    tm = _pick_row_tile(M)
    return pl.pallas_call(
        _cv1_kernel,
        out_shape=(jax.ShapeDtypeStruct((M, c), x_flat.dtype),
                   jax.ShapeDtypeStruct((M, c), x_flat.dtype)),
        grid=(M // tm,),
        in_specs=[
            pl.BlockSpec((tm, cin), lambda i: (i, 0)),
            pl.BlockSpec((cin, 2 * c), lambda i: (0, 0)),
            pl.BlockSpec((1, 2 * c), lambda i: (0, 0)),
        ],
        out_specs=(pl.BlockSpec((tm, c), lambda i: (i, 0)),
                   pl.BlockSpec((tm, c), lambda i: (i, 0))),
        compiler_params=pltpu.CompilerParams(
            dimension_semantics=("parallel",), vmem_limit_bytes=_vmem_limit_bytes()),
    )(x_flat, w, b.reshape(1, 2 * c))


def cv2_concat_pw_silu(branches, w, b):
    """Fused concat + cv2 (1x1 conv + SiLU). branches: list of (M, c); w: ((2+n)c, Cout)."""
    M, c = branches[0].shape
    cout = w.shape[1]
    nb = len(branches)
    tm = _pick_row_tile(M)
    in_specs = [pl.BlockSpec((tm, c), lambda i: (i, 0)) for _ in range(nb)]
    in_specs += [pl.BlockSpec((nb * c, cout), lambda i: (0, 0)),
                 pl.BlockSpec((1, cout), lambda i: (0, 0))]
    return pl.pallas_call(
        _make_cv2_kernel(nb),
        out_shape=jax.ShapeDtypeStruct((M, cout), branches[0].dtype),
        grid=(M // tm,),
        in_specs=in_specs,
        out_specs=pl.BlockSpec((tm, cout), lambda i: (i, 0)),
        scratch_shapes=[pltpu.VMEM((tm, nb * c), branches[0].dtype)],
        compiler_params=pltpu.CompilerParams(
            dimension_semantics=("parallel",), vmem_limit_bytes=_vmem_limit_bytes()),
    )(*branches, w, b.reshape(1, cout))


def bottleneck3x3_fused(x_flat, w1, b1, w2, b2, *, N, H, W, c, shortcut):
    """Fused Bottleneck (two 3x3 convs + SiLU + optional residual), one image per grid step."""
    M = x_flat.shape[0]
    HW = H * W
    kernel = functools.partial(_bottleneck_kernel, H=H, W=W, c=c, shortcut=shortcut)
    # HWIO (3,3,c,c) -> (9c, c): contraction index = (kh*3+kw)*c + cin, matching the in-kernel
    # im2col channel layout.
    w1f = w1.reshape(9 * c, c)
    w2f = w2.reshape(9 * c, c)
    return pl.pallas_call(
        kernel,
        out_shape=jax.ShapeDtypeStruct((M, c), x_flat.dtype),
        grid=(N,),
        in_specs=[
            pl.BlockSpec((HW, c), lambda b: (b, 0)),
            pl.BlockSpec((9 * c, c), lambda b: (0, 0)),
            pl.BlockSpec((1, c), lambda b: (0, 0)),
            pl.BlockSpec((9 * c, c), lambda b: (0, 0)),
            pl.BlockSpec((1, c), lambda b: (0, 0)),
        ],
        out_specs=pl.BlockSpec((HW, c), lambda b: (b, 0)),
        scratch_shapes=[
            pltpu.VMEM((H + 2, _WPAD + W + 1, c), x_flat.dtype),   # padded tile (reused)
            pltpu.VMEM((H, W, 9 * c), x_flat.dtype),               # im2col staging buffer
        ],
        compiler_params=pltpu.CompilerParams(
            dimension_semantics=("parallel",), vmem_limit_bytes=_vmem_limit_bytes()),
    )(x_flat, w1f, b1.reshape(1, c), w2f, b2.reshape(1, c))


# ---------------------------------------------------------------------------
# C2f forward (Pallas) and pure-JAX reference
# ---------------------------------------------------------------------------

def c2f_forward_nhwc(x_nhwc, params, n=1, shortcut=False, compute_dtype=None):
    """NHWC-native C2f forward (preferred entry point: no NCHW<->NHWC HBM transposes)."""
    if compute_dtype is not None:
        x_nhwc = x_nhwc.astype(compute_dtype)
        params = jax.tree_util.tree_map(lambda t: t.astype(compute_dtype), params)

    N, H, W, C1 = x_nhwc.shape
    x = x_nhwc.reshape(N * H * W, C1)                     # contiguous reshape: free in XLA
    c = params["cv1_w"].shape[1] // 2

    y0, y1 = cv1_pw_silu_split(x, params["cv1_w"], params["cv1_b"], c)
    branches = [y0, y1]
    prev = y1
    for i in range(n):
        p = params["m"][i]
        prev = bottleneck3x3_fused(prev, p["cv1_w"], p["cv1_b"], p["cv2_w"], p["cv2_b"],
                                   N=N, H=H, W=W, c=c, shortcut=shortcut)
        branches.append(prev)

    out = cv2_concat_pw_silu(branches, params["cv2_w"], params["cv2_b"])   # (M, c2)
    return out.reshape(N, H, W, -1)


def c2f_forward(x_nchw, params, n=1, shortcut=False, compute_dtype=None):
    """PyTorch-layout (NCHW) wrapper; prefer c2f_forward_nhwc to avoid the edge transposes."""
    x_nhwc = jnp.transpose(x_nchw, (0, 2, 3, 1))
    out = c2f_forward_nhwc(x_nhwc, params, n=n, shortcut=shortcut, compute_dtype=compute_dtype)
    return jnp.transpose(out, (0, 3, 1, 2))


def _ref_conv(x, w, b, k):
    w4 = w.reshape(1, 1, *w.shape) if k == 1 else w
    y = jax.lax.conv_general_dilated(
        x, w4, window_strides=(1, 1), padding="SAME",
        dimension_numbers=("NHWC", "HWIO", "NHWC"))
    y = y + b
    return y * jax.nn.sigmoid(y)


def c2f_ref(x_nchw, params, n=1, shortcut=False):
    x = jnp.transpose(x_nchw, (0, 2, 3, 1))
    y01 = _ref_conv(x, params["cv1_w"], params["cv1_b"], 1)
    c = y01.shape[-1] // 2
    ys = [y01[..., :c], y01[..., c:]]
    for i in range(n):
        p = params["m"][i]
        h = _ref_conv(ys[-1], p["cv1_w"], p["cv1_b"], 3)
        h = _ref_conv(h, p["cv2_w"], p["cv2_b"], 3)
        if shortcut:
            h = ys[-1] + h
        ys.append(h)
    out = _ref_conv(jnp.concatenate(ys, -1), params["cv2_w"], params["cv2_b"], 1)
    return jnp.transpose(out, (0, 3, 1, 2))


# ---------------------------------------------------------------------------
# Deterministic parameter construction (Conv2d weight + BN folded, eval mode)
# ---------------------------------------------------------------------------

def make_conv_params(key, cin, cout, k):
    k1, k2, k3, k4, k5 = jax.random.split(key, 5)
    w = jax.random.normal(k1, (k, k, cin, cout), jnp.float32) * 0.1     # HWIO
    gamma = jax.random.uniform(k2, (cout,), jnp.float32, 0.5, 1.5)
    beta = jax.random.normal(k3, (cout,), jnp.float32) * 0.1
    mean = jax.random.normal(k4, (cout,), jnp.float32) * 0.1
    var = jax.random.uniform(k5, (cout,), jnp.float32, 0.5, 1.5)
    scale = gamma / jnp.sqrt(var + 1e-5)
    w_f = w * scale
    b_f = beta - mean * scale
    if k == 1:
        w_f = w_f.reshape(cin, cout)
    return w_f, b_f


def make_c2f_params(key, c1, c2, n, e=0.5):
    c = int(c2 * e)
    keys = jax.random.split(key, 2 + 2 * n)
    params = {}
    params["cv1_w"], params["cv1_b"] = make_conv_params(keys[0], c1, 2 * c, 1)
    params["cv2_w"], params["cv2_b"] = make_conv_params(keys[1], (2 + n) * c, c2, 1)
    params["m"] = []
    for i in range(n):
        w1, b1 = make_conv_params(keys[2 + 2 * i], c, c, 3)
        w2, b2 = make_conv_params(keys[3 + 2 * i], c, c, 3)
        params["m"].append({"cv1_w": w1, "cv1_b": b1, "cv2_w": w2, "cv2_b": b2})
    return params


if __name__ == "__main__":
    root = jax.random.PRNGKey(0)
    kp1, kp2, kx = jax.random.split(root, 3)

    # Config A: C2f(c1=4, c2=4, n=1, shortcut=False, e=0.5) -> hidden c = 2
    c1, c2, n1, sc1 = 4, 4, 1, False
    params1 = make_c2f_params(kp1, c1, c2, n1)
    x = jax.random.normal(kx, (2, c1, 16, 16), jnp.float32)   # NCHW input

    fwd1 = jax.jit(functools.partial(c2f_forward, n=n1, shortcut=sc1))
    out1 = jax.block_until_ready(fwd1(x, params1))
    ref1 = jax.block_until_ready(c2f_ref(x, params1, n=n1, shortcut=sc1))
    assert out1.shape == (2, c2, 16, 16), out1.shape
    assert jnp.allclose(out1, ref1, atol=1e-3, rtol=1e-3), float(jnp.max(jnp.abs(out1 - ref1)))

    # Same config in bf16 compute dtype (f32 accumulation) — looser tolerance.
    fwd1_bf16 = jax.jit(functools.partial(c2f_forward, n=n1, shortcut=sc1,
                                          compute_dtype=jnp.bfloat16))
    out1b = jax.block_until_ready(fwd1_bf16(x, params1)).astype(jnp.float32)
    assert jnp.allclose(out1b, ref1, atol=5e-2, rtol=5e-2), float(jnp.max(jnp.abs(out1b - ref1)))

    # Config B: n=2 with shortcut=True (exercises the residual path and >1 bottleneck).
    n2, sc2 = 2, True
    params2 = make_c2f_params(kp2, c1, c2, n2)
    fwd2 = jax.jit(functools.partial(c2f_forward, n=n2, shortcut=sc2))
    out2 = jax.block_until_ready(fwd2(x, params2))
    ref2 = jax.block_until_ready(c2f_ref(x, params2, n=n2, shortcut=sc2))
    assert out2.shape == (2, c2, 16, 16), out2.shape
    assert jnp.allclose(out2, ref2, atol=1e-3, rtol=1e-3), float(jnp.max(jnp.abs(out2 - ref2)))

    print("KERNEL_OK")
</pallas_src>

<mosaic_0001>
module attributes {stable_mosaic.version = 11 : i64} {
  func.func @kernel(%arg0: i32, %arg1: memref<256x2xf32, #tpu.memory_space<vmem>>, %arg2: memref<256x2xf32, #tpu.memory_space<vmem>>, %arg3: memref<256x2xf32, #tpu.memory_space<vmem>>, %arg4: memref<6x4xf32, #tpu.memory_space<vmem>>, %arg5: memref<1x4xf32, #tpu.memory_space<vmem>>, %arg6: memref<256x4xf32, #tpu.memory_space<vmem>>, %arg7: memref<256x6xf32, #tpu.memory_space<vmem>>) attributes {dimension_semantics = [#tpu.dimension_semantics<parallel>], iteration_bounds = array<i64: 2>, scalar_prefetch = 0 : i64, scratch_operands = 1 : i64, tpu.core_type = #tpu.core_type<tc>, window_params = [{transform_indices = @transform_0, window_bounds = array<i64: 256, 2>}, {transform_indices = @transform_1, window_bounds = array<i64: 256, 2>}, {transform_indices = @transform_2, window_bounds = array<i64: 256, 2>}, {pipeline_mode = #tpu.pipeline_mode<synchronous>, transform_indices = @transform_3, window_bounds = array<i64: 6, 4>}, {pipeline_mode = #tpu.pipeline_mode<synchronous>, transform_indices = @transform_4, window_bounds = array<i64: 1, 4>}, {transform_indices = @transform_5, window_bounds = array<i64: 256, 4>}]} {
    %c0 = arith.constant 0 : index
    %c0_0 = arith.constant 0 : index
    %0 = vector.load %arg1[%c0, %c0_0] : memref<256x2xf32, #tpu.memory_space<vmem>>, vector<256x2xf32>
    %c0_1 = arith.constant 0 : index
    %c0_2 = arith.constant 0 : index
    %1 = vector.load %arg7[%c0_1, %c0_2] : memref<256x6xf32, #tpu.memory_space<vmem>>, vector<256x2xf32>
    tpu.vector_store %arg7[%c0_1, %c0_2], %0 {strides = array<i32>} : memref<256x6xf32, #tpu.memory_space<vmem>>, vector<256x2xf32>,
    %c0_3 = arith.constant 0 : index
    %c0_4 = arith.constant 0 : index
    %2 = vector.load %arg2[%c0_3, %c0_4] : memref<256x2xf32, #tpu.memory_space<vmem>>, vector<256x2xf32>
    %c0_5 = arith.constant 0 : index
    %c2 = arith.constant 2 : index
    %3 = vector.load %arg7[%c0_5, %c2] : memref<256x6xf32, #tpu.memory_space<vmem>>, vector<256x2xf32>
    tpu.vector_store %arg7[%c0_5, %c2], %2 {strides = array<i32>} : memref<256x6xf32, #tpu.memory_space<vmem>>, vector<256x2xf32>,
    %c0_6 = arith.constant 0 : index
    %c0_7 = arith.constant 0 : index
    %4 = vector.load %arg3[%c0_6, %c0_7] : memref<256x2xf32, #tpu.memory_space<vmem>>, vector<256x2xf32>
    %c0_8 = arith.constant 0 : index
    %c4 = arith.constant 4 : index
    %5 = vector.load %arg7[%c0_8, %c4] : memref<256x6xf32, #tpu.memory_space<vmem>>, vector<256x2xf32>
    tpu.vector_store %arg7[%c0_8, %c4], %4 {strides = array<i32>} : memref<256x6xf32, #tpu.memory_space<vmem>>, vector<256x2xf32>,
    %c0_9 = arith.constant 0 : index
    %c0_10 = arith.constant 0 : index
    %6 = vector.load %arg7[%c0_9, %c0_10] : memref<256x6xf32, #tpu.memory_space<vmem>>, vector<256x6xf32>
    %c0_11 = arith.constant 0 : index
    %c0_12 = arith.constant 0 : index
    %7 = vector.load %arg4[%c0_11, %c0_12] : memref<6x4xf32, #tpu.memory_space<vmem>>, vector<6x4xf32>
    %cst = arith.constant dense<0.000000e+00> : vector<256x4xf32>
    %8 = tpu.matmul %6, %7, %cst {dimension_numbers = #tpu.dot_dimension_numbers<[1], [0], [0], [1], [0, 0, 1, 1], [], []>} : vector<256x6xf32>, vector<6x4xf32>, vector<256x4xf32> -> vector<256x4xf32>
    %c0_13 = arith.constant 0 : index
    %c0_14 = arith.constant 0 : index
    %9 = vector.load %arg5[%c0_13, %c0_14] : memref<1x4xf32, #tpu.memory_space<vmem>>, vector<1x4xf32>
    %10 = vector.broadcast %9 : vector<1x4xf32> to vector<256x4xf32>
    %11 = arith.addf %8, %10 : vector<256x4xf32>
    %12 = arith.negf %11 : vector<256x4xf32>
    %13 = math.exp %12 : vector<256x4xf32>
    %cst_15 = arith.constant 1.000000e+00 : f32
    %14 = vector.broadcast %cst_15 : f32 to vector<256x4xf32>
    %15 = arith.addf %14, %13 : vector<256x4xf32>
    %16 = arith.divf %14, %15 : vector<256x4xf32>
    %17 = arith.mulf %11, %16 : vector<256x4xf32>
    %c0_16 = arith.constant 0 : index
    %c0_17 = arith.constant 0 : index
    %18 = vector.load %arg6[%c0_16, %c0_17] : memref<256x4xf32, #tpu.memory_space<vmem>>, vector<256x4xf32>
    tpu.vector_store %arg6[%c0_16, %c0_17], %17 {strides = array<i32>} : memref<256x4xf32, #tpu.memory_space<vmem>>, vector<256x4xf32>,
    return
  }
  func.func @transform_0(%arg0: i32) -> (i32, i32) {
    %c0_i32 = arith.constant 0 : i32
    %c0_i32_0 = arith.constant 0 : i32
    return %arg0, %c0_i32 : i32, i32
  }
  func.func @transform_1(%arg0: i32) -> (i32, i32) {
    %c0_i32 = arith.constant 0 : i32
    %c0_i32_0 = arith.constant 0 : i32
    return %arg0, %c0_i32 : i32, i32
  }
  func.func @transform_2(%arg0: i32) -> (i32, i32) {
    %c0_i32 = arith.constant 0 : i32
    %c0_i32_0 = arith.constant 0 : i32
    return %arg0, %c0_i32 : i32, i32
  }
  func.func @transform_3(%arg0: i32) -> (i32, i32) {
    %c0_i32 = arith.constant 0 : i32
    %c0_i32_0 = arith.constant 0 : i32
    %c0_i32_1 = arith.constant 0 : i32
    return %c0_i32, %c0_i32_0 : i32, i32
  }
  func.func @transform_4(%arg0: i32) -> (i32, i32) {
    %c0_i32 = arith.constant 0 : i32
    %c0_i32_0 = arith.constant 0 : i32
    %c0_i32_1 = arith.constant 0 : i32
    return %c0_i32, %c0_i32_0 : i32, i32
  }
  func.func @transform_5(%arg0: i32) -> (i32, i32) {
    %c0_i32 = arith.constant 0 : i32
    %c0_i32_0 = arith.constant 0 : i32
    return %arg0, %c0_i32 : i32, i32
  }
}

module attributes {stable_mosaic.version = 11 : i64} {
  func.func @_cv1_kernel(%arg0: i32, %arg1: memref<256x4xf32, #tpu.memory_space<vmem>>, %arg2: memref<4x4xf32, #tpu.memory_space<vmem>>, %arg3: memref<1x4xf32, #tpu.memory_space<vmem>>, %arg4: memref<256x2xf32, #tpu.memory_space<vmem>>, %arg5: memref<256x2xf32, #tpu.memory_space<vmem>>) attributes {dimension_semantics = [#tpu.dimension_semantics<parallel>], iteration_bounds = array<i64: 2>, scalar_prefetch = 0 : i64, scratch_operands = 0 : i64, tpu.core_type = #tpu.core_type<tc>, window_params = [{transform_indices = @transform_0, window_bounds = array<i64: 256, 4>}, {pipeline_mode = #tpu.pipeline_mode<synchronous>, transform_indices = @transform_1, window_bounds = array<i64: 4, 4>}, {pipeline_mode = #tpu.pipeline_mode<synchronous>, transform_indices = @transform_2, window_bounds = array<i64: 1, 4>}, {transform_indices = @transform_3, window_bounds = array<i64: 256, 2>}, {transform_indices = @transform_4, window_bounds = array<i64: 256, 2>}]} {
    %c0 = arith.constant 0 : index
    %c0_0 = arith.constant 0 : index
    %0 = vector.load %arg1[%c0, %c0_0] : memref<256x4xf32, #tpu.memory_space<vmem>>, vector<256x4xf32>
    %c0_1 = arith.constant 0 : index
    %c0_2 = arith.constant 0 : index
    %1 = vector.load %arg2[%c0_1, %c0_2] : memref<4x4xf32, #tpu.memory_space<vmem>>, vector<4x4xf32>
    %cst = arith.constant dense<0.000000e+00> : vector<256x4xf32>
    %2 = tpu.matmul %0, %1, %cst {dimension_numbers = #tpu.dot_dimension_numbers<[1], [0], [0], [1], [0, 0, 1, 1], [], []>} : vector<256x4xf32>, vector<4x4xf32>, vector<256x4xf32> -> vector<256x4xf32>
    %c0_3 = arith.constant 0 : index
    %c0_4 = arith.constant 0 : index
    %3 = vector.load %arg3[%c0_3, %c0_4] : memref<1x4xf32, #tpu.memory_space<vmem>>, vector<1x4xf32>
    %4 = vector.broadcast %3 : vector<1x4xf32> to vector<256x4xf32>
    %5 = arith.addf %2, %4 : vector<256x4xf32>
    %6 = arith.negf %5 : vector<256x4xf32>
    %7 = math.exp %6 : vector<256x4xf32>
    %cst_5 = arith.constant 1.000000e+00 : f32
    %8 = vector.broadcast %cst_5 : f32 to vector<256x4xf32>
    %9 = arith.addf %8, %7 : vector<256x4xf32>
    %10 = arith.divf %8, %9 : vector<256x4xf32>
    %11 = arith.mulf %5, %10 : vector<256x4xf32>
    %12 = vector.extract_strided_slice %11 {offsets = [0, 0], sizes = [256, 2], strides = [1, 1]} : vector<256x4xf32> to vector<256x2xf32>
    %c0_6 = arith.constant 0 : index
    %c0_7 = arith.constant 0 : index
    %13 = vector.load %arg4[%c0_6, %c0_7] : memref<256x2xf32, #tpu.memory_space<vmem>>, vector<256x2xf32>
    tpu.vector_store %arg4[%c0_6, %c0_7], %12 {strides = array<i32>} : memref<256x2xf32, #tpu.memory_space<vmem>>, vector<256x2xf32>,
    %14 = vector.extract_strided_slice %11 {offsets = [0, 2], sizes = [256, 2], strides = [1, 1]} : vector<256x4xf32> to vector<256x2xf32>
    %c0_8 = arith.constant 0 : index
    %c0_9 = arith.constant 0 : index
    %15 = vector.load %arg5[%c0_8, %c0_9] : memref<256x2xf32, #tpu.memory_space<vmem>>, vector<256x2xf32>
    tpu.vector_store %arg5[%c0_8, %c0_9], %14 {strides = array<i32>} : memref<256x2xf32, #tpu.memory_space<vmem>>, vector<256x2xf32>,
    return
  }
  func.func @transform_0(%arg0: i32) -> (i32, i32) {
    %c0_i32 = arith.constant 0 : i32
    %c0_i32_0 = arith.constant 0 : i32
    return %arg0, %c0_i32 : i32, i32
  }
  func.func @transform_1(%arg0: i32) -> (i32, i32) {
    %c0_i32 = arith.constant 0 : i32
    %c0_i32_0 = arith.constant 0 : i32
    %c0_i32_1 = arith.constant 0 : i32
    return %c0_i32, %c0_i32_0 : i32, i32
  }
  func.func @transform_2(%arg0: i32) -> (i32, i32) {
    %c0_i32 = arith.constant 0 : i32
    %c0_i32_0 = arith.constant 0 : i32
    %c0_i32_1 = arith.constant 0 : i32
    return %c0_i32, %c0_i32_0 : i32, i32
  }
  func.func @transform_3(%arg0: i32) -> (i32, i32) {
    %c0_i32 = arith.constant 0 : i32
    %c0_i32_0 = arith.constant 0 : i32
    return %arg0, %c0_i32 : i32, i32
  }
  func.func @transform_4(%arg0: i32) -> (i32, i32) {
    %c0_i32 = arith.constant 0 : i32
    %c0_i32_0 = arith.constant 0 : i32
    return %arg0, %c0_i32 : i32, i32
  }
}

module attributes {stable_mosaic.version = 11 : i64} {
  func.func @_bottleneck_kernel(%arg0: i32, %arg1: memref<256x2xf32, #tpu.memory_space<vmem>>, %arg2: memref<18x2xf32, #tpu.memory_space<vmem>>, %arg3: memref<1x2xf32, #tpu.memory_space<vmem>>, %arg4: memref<18x2xf32, #tpu.memory_space<vmem>>, %arg5: memref<1x2xf32, #tpu.memory_space<vmem>>, %arg6: memref<256x2xf32, #tpu.memory_space<vmem>>, %arg7: memref<18x25x2xf32, #tpu.memory_space<vmem>>, %arg8: memref<16x16x18xf32, #tpu.memory_space<vmem>>) attributes {dimension_semantics = [#tpu.dimension_semantics<parallel>], iteration_bounds = array<i64: 2>, scalar_prefetch = 0 : i64, scratch_operands = 2 : i64, tpu.core_type = #tpu.core_type<tc>, window_params = [{transform_indices = @transform_0, window_bounds = array<i64: 256, 2>}, {pipeline_mode = #tpu.pipeline_mode<synchronous>, transform_indices = @transform_1, window_bounds = array<i64: 18, 2>}, {pipeline_mode = #tpu.pipeline_mode<synchronous>, transform_indices = @transform_2, window_bounds = array<i64: 1, 2>}, {pipeline_mode = #tpu.pipeline_mode<synchronous>, transform_indices = @transform_3, window_bounds = array<i64: 18, 2>}, {pipeline_mode = #tpu.pipeline_mode<synchronous>, transform_indices = @transform_4, window_bounds = array<i64: 1, 2>}, {transform_indices = @transform_5, window_bounds = array<i64: 256, 2>}]} {
    %c0 = arith.constant 0 : index
    %c0_0 = arith.constant 0 : index
    %0 = vector.load %arg1[%c0, %c0_0] : memref<256x2xf32, #tpu.memory_space<vmem>>, vector<256x2xf32>
    %cst = arith.constant 0.000000e+00 : f32
    %1 = vector.broadcast %cst : f32 to vector<1x25x2xf32>
    %c0_1 = arith.constant 0 : index
    %c0_2 = arith.constant 0 : index
    %c0_3 = arith.constant 0 : index
    %2 = vector.load %arg7[%c0_1, %c0_2, %c0_3] : memref<18x25x2xf32, #tpu.memory_space<vmem>>, vector<1x25x2xf32>
    tpu.vector_store %arg7[%c0_1, %c0_2, %c0_3], %1 {strides = array<i32>} : memref<18x25x2xf32, #tpu.memory_space<vmem>>, vector<1x25x2xf32>,
    %cst_4 = arith.constant 0.000000e+00 : f32
    %3 = vector.broadcast %cst_4 : f32 to vector<1x25x2xf32>
    %c17 = arith.constant 17 : index
    %c0_5 = arith.constant 0 : index
    %c0_6 = arith.constant 0 : index
    %4 = vector.load %arg7[%c17, %c0_5, %c0_6] : memref<18x25x2xf32, #tpu.memory_space<vmem>>, vector<1x25x2xf32>
    tpu.vector_store %arg7[%c17, %c0_5, %c0_6], %3 {strides = array<i32>} : memref<18x25x2xf32, #tpu.memory_space<vmem>>, vector<1x25x2xf32>,
    %cst_7 = arith.constant 0.000000e+00 : f32
    %5 = vector.broadcast %cst_7 : f32 to vector<16x1x2xf32>
    %c1 = arith.constant 1 : index
    %c7 = arith.constant 7 : index
    %c0_8 = arith.constant 0 : index
    %6 = vector.load %arg7[%c1, %c7, %c0_8] : memref<18x25x2xf32, #tpu.memory_space<vmem>>, vector<16x1x2xf32>
    tpu.vector_store %arg7[%c1, %c7, %c0_8], %5 {strides = array<i32>} : memref<18x25x2xf32, #tpu.memory_space<vmem>>, vector<16x1x2xf32>,
    %cst_9 = arith.constant 0.000000e+00 : f32
    %7 = vector.broadcast %cst_9 : f32 to vector<16x1x2xf32>
    %c1_10 = arith.constant 1 : index
    %c24 = arith.constant 24 : index
    %c0_11 = arith.constant 0 : index
    %8 = vector.load %arg7[%c1_10, %c24, %c0_11] : memref<18x25x2xf32, #tpu.memory_space<vmem>>, vector<16x1x2xf32>
    tpu.vector_store %arg7[%c1_10, %c24, %c0_11], %7 {strides = array<i32>} : memref<18x25x2xf32, #tpu.memory_space<vmem>>, vector<16x1x2xf32>,
    %9 = vector.shape_cast %0 : vector<256x2xf32> to vector<16x16x2xf32>
    %c1_12 = arith.constant 1 : index
    %c8 = arith.constant 8 : index
    %c0_13 = arith.constant 0 : index
    %10 = vector.load %arg7[%c1_12, %c8, %c0_13] : memref<18x25x2xf32, #tpu.memory_space<vmem>>, vector<16x16x2xf32>
    tpu.vector_store %arg7[%c1_12, %c8, %c0_13], %9 {strides = array<i32>} : memref<18x25x2xf32, #tpu.memory_space<vmem>>, vector<16x16x2xf32>,
    %c0_14 = arith.constant 0 : index
    %c7_15 = arith.constant 7 : index
    %c0_16 = arith.constant 0 : index
    %11 = vector.load %arg7[%c0_14, %c7_15, %c0_16] : memref<18x25x2xf32, #tpu.memory_space<vmem>>, vector<16x16x2xf32>
    %c0_17 = arith.constant 0 : index
    %c0_18 = arith.constant 0 : index
    %c0_19 = arith.constant 0 : index
    %12 = vector.load %arg8[%c0_17, %c0_18, %c0_19] : memref<16x16x18xf32, #tpu.memory_space<vmem>>, vector<16x16x2xf32>
    tpu.vector_store %arg8[%c0_17, %c0_18, %c0_19], %11 {strides = array<i32>} : memref<16x16x18xf32, #tpu.memory_space<vmem>>, vector<16x16x2xf32>,
    %c0_20 = arith.constant 0 : index
    %c8_21 = arith.constant 8 : index
    %c0_22 = arith.constant 0 : index
    %13 = vector.load %arg7[%c0_20, %c8_21, %c0_22] : memref<18x25x2xf32, #tpu.memory_space<vmem>>, vector<16x16x2xf32>
    %c0_23 = arith.constant 0 : index
    %c0_24 = arith.constant 0 : index
    %c2 = arith.constant 2 : index
    %14 = vector.load %arg8[%c0_23, %c0_24, %c2] : memref<16x16x18xf32, #tpu.memory_space<vmem>>, vector<16x16x2xf32>
    tpu.vector_store %arg8[%c0_23, %c0_24, %c2], %13 {strides = array<i32>} : memref<16x16x18xf32, #tpu.memory_space<vmem>>, vector<16x16x2xf32>,
    %c0_25 = arith.constant 0 : index
    %c9 = arith.constant 9 : index
    %c0_26 = arith.constant 0 : index
    %15 = vector.load %arg7[%c0_25, %c9, %c0_26] : memref<18x25x2xf32, #tpu.memory_space<vmem>>, vector<16x16x2xf32>
    %c0_27 = arith.constant 0 : index
    %c0_28 = arith.constant 0 : index
    %c4 = arith.constant 4 : index
    %16 = vector.load %arg8[%c0_27, %c0_28, %c4] : memref<16x16x18xf32, #tpu.memory_space<vmem>>, vector<16x16x2xf32>
    tpu.vector_store %arg8[%c0_27, %c0_28, %c4], %15 {strides = array<i32>} : memref<16x16x18xf32, #tpu.memory_space<vmem>>, vector<16x16x2xf32>,
    %c1_29 = arith.constant 1 : index
    %c7_30 = arith.constant 7 : index
    %c0_31 = arith.constant 0 : index
    %17 = vector.load %arg7[%c1_29, %c7_30, %c0_31] : memref<18x25x2xf32, #tpu.memory_space<vmem>>, vector<16x16x2xf32>
    %c0_32 = arith.constant 0 : index
    %c0_33 = arith.constant 0 : index
    %c6 = arith.constant 6 : index
    %18 = vector.load %arg8[%c0_32, %c0_33, %c6] : memref<16x16x18xf32, #tpu.memory_space<vmem>>, vector<16x16x2xf32>
    tpu.vector_store %arg8[%c0_32, %c0_33, %c6], %17 {strides = array<i32>} : memref<16x16x18xf32, #tpu.memory_space<vmem>>, vector<16x16x2xf32>,
    %c1_34 = arith.constant 1 : index
    %c8_35 = arith.constant 8 : index
    %c0_36 = arith.constant 0 : index
    %19 = vector.load %arg7[%c1_34, %c8_35, %c0_36] : memref<18x25x2xf32, #tpu.memory_space<vmem>>, vector<16x16x2xf32>
    %c0_37 = arith.constant 0 : index
    %c0_38 = arith.constant 0 : index
    %c8_39 = arith.constant 8 : index
    %20 = vector.load %arg8[%c0_37, %c0_38, %c8_39] : memref<16x16x18xf32, #tpu.memory_space<vmem>>, vector<16x16x2xf32>
    tpu.vector_store %arg8[%c0_37, %c0_38, %c8_39], %19 {strides = array<i32>} : memref<16x16x18xf32, #tpu.memory_space<vmem>>, vector<16x16x2xf32>,
    %c1_40 = arith.constant 1 : index
    %c9_41 = arith.constant 9 : index
    %c0_42 = arith.constant 0 : index
    %21 = vector.load %arg7[%c1_40, %c9_41, %c0_42] : memref<18x25x2xf32, #tpu.memory_space<vmem>>, vector<16x16x2xf32>
    %c0_43 = arith.constant 0 : index
    %c0_44 = arith.constant 0 : index
    %c10 = arith.constant 10 : index
    %22 = vector.load %arg8[%c0_43, %c0_44, %c10] : memref<16x16x18xf32, #tpu.memory_space<vmem>>, vector<16x16x2xf32>
    tpu.vector_store %arg8[%c0_43, %c0_44, %c10], %21 {strides = array<i32>} : memref<16x16x18xf32, #tpu.memory_space<vmem>>, vector<16x16x2xf32>,
    %c2_45 = arith.constant 2 : index
    %c7_46 = arith.constant 7 : index
    %c0_47 = arith.constant 0 : index
    %23 = vector.load %arg7[%c2_45, %c7_46, %c0_47] : memref<18x25x2xf32, #tpu.memory_space<vmem>>, vector<16x16x2xf32>
    %c0_48 = arith.constant 0 : index
    %c0_49 = arith.constant 0 : index
    %c12 = arith.constant 12 : index
    %24 = vector.load %arg8[%c0_48, %c0_49, %c12] : memref<16x16x18xf32, #tpu.memory_space<vmem>>, vector<16x16x2xf32>
    tpu.vector_store %arg8[%c0_48, %c0_49, %c12], %23 {strides = array<i32>} : memref<16x16x18xf32, #tpu.memory_space<vmem>>, vector<16x16x2xf32>,
    %c2_50 = arith.constant 2 : index
    %c8_51 = arith.constant 8 : index
    %c0_52 = arith.constant 0 : index
    %25 = vector.load %arg7[%c2_50, %c8_51, %c0_52] : memref<18x25x2xf32, #tpu.memory_space<vmem>>, vector<16x16x2xf32>
    %c0_53 = arith.constant 0 : index
    %c0_54 = arith.constant 0 : index
    %c14 = arith.constant 14 : index
    %26 = vector.load %arg8[%c0_53, %c0_54, %c14] : memref<16x16x18xf32, #tpu.memory_space<vmem>>, vector<16x16x2xf32>
    tpu.vector_store %arg8[%c0_53, %c0_54, %c14], %25 {strides = array<i32>} : memref<16x16x18xf32, #tpu.memory_space<vmem>>, vector<16x16x2xf32>,
    %c2_55 = arith.constant 2 : index
    %c9_56 = arith.constant 9 : index
    %c0_57 = arith.constant 0 : index
    %27 = vector.load %arg7[%c2_55, %c9_56, %c0_57] : memref<18x25x2xf32, #tpu.memory_space<vmem>>, vector<16x16x2xf32>
    %c0_58 = arith.constant 0 : index
    %c0_59 = arith.constant 0 : index
    %c16 = arith.constant 16 : index
    %28 = vector.load %arg8[%c0_58, %c0_59, %c16] : memref<16x16x18xf32, #tpu.memory_space<vmem>>, vector<16x16x2xf32>
    tpu.vector_store %arg8[%c0_58, %c0_59, %c16], %27 {strides = array<i32>} : memref<16x16x18xf32, #tpu.memory_space<vmem>>, vector<16x16x2xf32>,
    %c0_60 = arith.constant 0 : index
    %c0_61 = arith.constant 0 : index
    %c0_62 = arith.constant 0 : index
    %29 = vector.load %arg8[%c0_60, %c0_61, %c0_62] : memref<16x16x18xf32, #tpu.memory_space<vmem>>, vector<16x16x18xf32>
    %30 = vector.shape_cast %29 : vector<16x16x18xf32> to vector<256x18xf32>
    %c0_63 = arith.constant 0 : index
    %c0_64 = arith.constant 0 : index
    %31 = vector.load %arg2[%c0_63, %c0_64] : memref<18x2xf32, #tpu.memory_space<vmem>>, vector<18x2xf32>
    %cst_65 = arith.constant dense<0.000000e+00> : vector<256x2xf32>
    %32 = tpu.matmul %30, %31, %cst_65 {dimension_numbers = #tpu.dot_dimension_numbers<[1], [0], [0], [1], [0, 0, 1, 1], [], []>} : vector<256x18xf32>, vector<18x2xf32>, vector<256x2xf32> -> vector<256x2xf32>
    %c0_66 = arith.constant 0 : index
    %c0_67 = arith.constant 0 : index
    %33 = vector.load %arg3[%c0_66, %c0_67] : memref<1x2xf32, #tpu.memory_space<vmem>>, vector<1x2xf32>
    %34 = vector.broadcast %33 : vector<1x2xf32> to vector<256x2xf32>
    %35 = arith.addf %32, %34 : vector<256x2xf32>
    %36 = arith.negf %35 : vector<256x2xf32>
    %37 = math.exp %36 : vector<256x2xf32>
    %cst_68 = arith.constant 1.000000e+00 : f32
    %38 = vector.broadcast %cst_68 : f32 to vector<256x2xf32>
    %39 = arith.addf %38, %37 : vector<256x2xf32>
    %40 = arith.divf %38, %39 : vector<256x2xf32>
    %41 = arith.mulf %35, %40 : vector<256x2xf32>
    %42 = vector.shape_cast %41 : vector<256x2xf32> to vector<16x16x2xf32>
    %c1_69 = arith.constant 1 : index
    %c8_70 = arith.constant 8 : index
    %c0_71 = arith.constant 0 : index
    %43 = vector.load %arg7[%c1_69, %c8_70, %c0_71] : memref<18x25x2xf32, #tpu.memory_space<vmem>>, vector<16x16x2xf32>
    tpu.vector_store %arg7[%c1_69, %c8_70, %c0_71], %42 {strides = array<i32>} : memref<18x25x2xf32, #tpu.memory_space<vmem>>, vector<16x16x2xf32>,
    %c0_72 = arith.constant 0 : index
    %c7_73 = arith.constant 7 : index
    %c0_74 = arith.constant 0 : index
    %44 = vector.load %arg7[%c0_72, %c7_73, %c0_74] : memref<18x25x2xf32, #tpu.memory_space<vmem>>, vector<16x16x2xf32>
    %c0_75 = arith.constant 0 : index
    %c0_76 = arith.constant 0 : index
    %c0_77 = arith.constant 0 : index
    %45 = vector.load %arg8[%c0_75, %c0_76, %c0_77] : memref<16x16x18xf32, #tpu.memory_space<vmem>>, vector<16x16x2xf32>
    tpu.vector_store %arg8[%c0_75, %c0_76, %c0_77], %44 {strides = array<i32>} : memref<16x16x18xf32, #tpu.memory_space<vmem>>, vector<16x16x2xf32>,
    %c0_78 = arith.constant 0 : index
    %c8_79 = arith.constant 8 : index
    %c0_80 = arith.constant 0 : index
    %46 = vector.load %arg7[%c0_78, %c8_79, %c0_80] : memref<18x25x2xf32, #tpu.memory_space<vmem>>, vector<16x16x2xf32>
    %c0_81 = arith.constant 0 : index
    %c0_82 = arith.constant 0 : index
    %c2_83 = arith.constant 2 : index
    %47 = vector.load %arg8[%c0_81, %c0_82, %c2_83] : memref<16x16x18xf32, #tpu.memory_space<vmem>>, vector<16x16x2xf32>
    tpu.vector_store %arg8[%c0_81, %c0_82, %c2_83], %46 {strides = array<i32>} : memref<16x16x18xf32, #tpu.memory_space<vmem>>, vector<16x16x2xf32>,
    %c0_84 = arith.constant 0 : index
    %c9_85 = arith.constant 9 : index
    %c0_86 = arith.constant 0 : index
    %48 = vector.load %arg7[%c0_84, %c9_85, %c0_86] : memref<18x25x2xf32, #tpu.memory_space<vmem>>, vector<16x16x2xf32>
    %c0_87 = arith.constant 0 : index
    %c0_88 = arith.constant 0 : index
    %c4_89 = arith.constant 4 : index
    %49 = vector.load %arg8[%c0_87, %c0_88, %c4_89] : memref<16x16x18xf32, #tpu.memory_space<vmem>>, vector<16x16x2xf32>
    tpu.vector_store %arg8[%c0_87, %c0_88, %c4_89], %48 {strides = array<i32>} : memref<16x16x18xf32, #tpu.memory_space<vmem>>, vector<16x16x2xf32>,
    %c1_90 = arith.constant 1 : index
    %c7_91 = arith.constant 7 : index
    %c0_92 = arith.constant 0 : index
    %50 = vector.load %arg7[%c1_90, %c7_91, %c0_92] : memref<18x25x2xf32, #tpu.memory_space<vmem>>, vector<16x16x2xf32>
    %c0_93 = arith.constant 0 : index
    %c0_94 = arith.constant 0 : index
    %c6_95 = arith.constant 6 : index
    %51 = vector.load %arg8[%c0_93, %c0_94, %c6_95] : memref<16x16x18xf32, #tpu.memory_space<vmem>>, vector<16x16x2xf32>
    tpu.vector_store %arg8[%c0_93, %c0_94, %c6_95], %50 {strides = array<i32>} : memref<16x16x18xf32, #tpu.memory_space<vmem>>, vector<16x16x2xf32>,
    %c1_96 = arith.constant 1 : index
    %c8_97 = arith.constant 8 : index
    %c0_98 = arith.constant 0 : index
    %52 = vector.load %arg7[%c1_96, %c8_97, %c0_98] : memref<18x25x2xf32, #tpu.memory_space<vmem>>, vector<16x16x2xf32>
    %c0_99 = arith.constant 0 : index
    %c0_100 = arith.constant 0 : index
    %c8_101 = arith.constant 8 : index
    %53 = vector.load %arg8[%c0_99, %c0_100, %c8_101] : memref<16x16x18xf32, #tpu.memory_space<vmem>>, vector<16x16x2xf32>
    tpu.vector_store %arg8[%c0_99, %c0_100, %c8_101], %52 {strides = array<i32>} : memref<16x16x18xf32, #tpu.memory_space<vmem>>, vector<16x16x2xf32>,
    %c1_102 = arith.constant 1 : index
    %c9_103 = arith.constant 9 : index
    %c0_104 = arith.constant 0 : index
    %54 = vector.load %arg7[%c1_102, %c9_103, %c0_104] : memref<18x25x2xf32, #tpu.memory_space<vmem>>, vector<16x16x2xf32>
    %c0_105 = arith.constant 0 : index
    %c0_106 = arith.constant 0 : index
    %c10_107 = arith.constant 10 : index
    %55 = vector.load %arg8[%c0_105, %c0_106, %c10_107] : memref<16x16x18xf32, #tpu.memory_space<vmem>>, vector<16x16x2xf32>
    tpu.vector_store %arg8[%c0_105, %c0_106, %c10_107], %54 {strides = array<i32>} : memref<16x16x18xf32, #tpu.memory_space<vmem>>, vector<16x16x2xf32>,
    %c2_108 = arith.constant 2 : index
    %c7_109 = arith.constant 7 : index
    %c0_110 = arith.constant 0 : index
    %56 = vector.load %arg7[%c2_108, %c7_109, %c0_110] : memref<18x25x2xf32, #tpu.memory_space<vmem>>, vector<16x16x2xf32>
    %c0_111 = arith.constant 0 : index
    %c0_112 = arith.constant 0 : index
    %c12_113 = arith.constant 12 : index
    %57 = vector.load %arg8[%c0_111, %c0_112, %c12_113] : memref<16x16x18xf32, #tpu.memory_space<vmem>>, vector<16x16x2xf32>
    tpu.vector_store %arg8[%c0_111, %c0_112, %c12_113], %56 {strides = array<i32>} : memref<16x16x18xf32, #tpu.memory_space<vmem>>, vector<16x16x2xf32>,
    %c2_114 = arith.constant 2 : index
    %c8_115 = arith.constant 8 : index
    %c0_116 = arith.constant 0 : index
    %58 = vector.load %arg7[%c2_114, %c8_115, %c0_116] : memref<18x25x2xf32, #tpu.memory_space<vmem>>, vector<16x16x2xf32>
    %c0_117 = arith.constant 0 : index
    %c0_118 = arith.constant 0 : index
    %c14_119 = arith.constant 14 : index
    %59 = vector.load %arg8[%c0_117, %c0_118, %c14_119] : memref<16x16x18xf32, #tpu.memory_space<vmem>>, vector<16x16x2xf32>
    tpu.vector_store %arg8[%c0_117, %c0_118, %c14_119], %58 {strides = array<i32>} : memref<16x16x18xf32, #tpu.memory_space<vmem>>, vector<16x16x2xf32>,
    %c2_120 = arith.constant 2 : index
    %c9_121 = arith.constant 9 : index
    %c0_122 = arith.constant 0 : index
    %60 = vector.load %arg7[%c2_120, %c9_121, %c0_122] : memref<18x25x2xf32, #tpu.memory_space<vmem>>, vector<16x16x2xf32>
    %c0_123 = arith.constant 0 : index
    %c0_124 = arith.constant 0 : index
    %c16_125 = arith.constant 16 : index
    %61 = vector.load %arg8[%c0_123, %c0_124, %c16_125] : memref<16x16x18xf32, #tpu.memory_space<vmem>>, vector<16x16x2xf32>
    tpu.vector_store %arg8[%c0_123, %c0_124, %c16_125], %60 {strides = array<i32>} : memref<16x16x18xf32, #tpu.memory_space<vmem>>, vector<16x16x2xf32>,
    %c0_126 = arith.constant 0 : index
    %c0_127 = arith.constant 0 : index
    %c0_128 = arith.constant 0 : index
    %62 = vector.load %arg8[%c0_126, %c0_127, %c0_128] : memref<16x16x18xf32, #tpu.memory_space<vmem>>, vector<16x16x18xf32>
    %63 = vector.shape_cast %62 : vector<16x16x18xf32> to vector<256x18xf32>
    %c0_129 = arith.constant 0 : index
    %c0_130 = arith.constant 0 : index
    %64 = vector.load %arg4[%c0_129, %c0_130] : memref<18x2xf32, #tpu.memory_space<vmem>>, vector<18x2xf32>
    %cst_131 = arith.constant dense<0.000000e+00> : vector<256x2xf32>
    %65 = tpu.matmul %63, %64, %cst_131 {dimension_numbers = #tpu.dot_dimension_numbers<[1], [0], [0], [1], [0, 0, 1, 1], [], []>} : vector<256x18xf32>, vector<18x2xf32>, vector<256x2xf32> -> vector<256x2xf32>
    %c0_132 = arith.constant 0 : index
    %c0_133 = arith.constant 0 : index
    %66 = vector.load %arg5[%c0_132, %c0_133] : memref<1x2xf32, #tpu.memory_space<vmem>>, vector<1x2xf32>
    %67 = vector.broadcast %66 : vector<1x2xf32> to vector<256x2xf32>
    %68 = arith.addf %65, %67 : vector<256x2xf32>
    %69 = arith.negf %68 : vector<256x2xf32>
    %70 = math.exp %69 : vector<256x2xf32>
    %cst_134 = arith.constant 1.000000e+00 : f32
    %71 = vector.broadcast %cst_134 : f32 to vector<256x2xf32>
    %72 = arith.addf %71, %70 : vector<256x2xf32>
    %73 = arith.divf %71, %72 : vector<256x2xf32>
    %74 = arith.mulf %68, %73 : vector<256x2xf32>
    %c0_135 = arith.constant 0 : index
    %c0_136 = arith.constant 0 : index
    %75 = vector.load %arg6[%c0_135, %c0_136] : memref<256x2xf32, #tpu.memory_space<vmem>>, vector<256x2xf32>
    tpu.vector_store %arg6[%c0_135, %c0_136], %74 {strides = array<i32>} : memref<256x2xf32, #tpu.memory_space<vmem>>, vector<256x2xf32>,
    return
  }
  func.func @transform_0(%arg0: i32) -> (i32, i32) {
    %c0_i32 = arith.constant 0 : i32
    %c0_i32_0 = arith.constant 0 : i32
    return %arg0, %c0_i32 : i32, i32
  }
  func.func @transform_1(%arg0: i32) -> (i32, i32) {
    %c0_i32 = arith.constant 0 : i32
    %c0_i32_0 = arith.constant 0 : i32
    %c0_i32_1 = arith.constant 0 : i32
    return %c0_i32, %c0_i32_0 : i32, i32
  }
  func.func @transform_2(%arg0: i32) -> (i32, i32) {
    %c0_i32 = arith.constant 0 : i32
    %c0_i32_0 = arith.constant 0 : i32
    %c0_i32_1 = arith.constant 0 : i32
    return %c0_i32, %c0_i32_0 : i32, i32
  }
  func.func @transform_3(%arg0: i32) -> (i32, i32) {
    %c0_i32 = arith.constant 0 : i32
    %c0_i32_0 = arith.constant 0 : i32
    %c0_i32_1 = arith.constant 0 : i32
    return %c0_i32, %c0_i32_0 : i32, i32
  }
  func.func @transform_4(%arg0: i32) -> (i32, i32) {
    %c0_i32 = arith.constant 0 : i32
    %c0_i32_0 = arith.constant 0 : i32
    %c0_i32_1 = arith.constant 0 : i32
    return %c0_i32, %c0_i32_0 : i32, i32
  }
  func.func @transform_5(%arg0: i32) -> (i32, i32) {
    %c0_i32 = arith.constant 0 : i32
    %c0_i32_0 = arith.constant 0 : i32
    return %arg0, %c0_i32 : i32, i32
  }
}

</mosaic_0001>

<llo_original>
// kernel: c2f_forward.3
$region0: #{c2f_forward.3}
  #allocation0 [shape = 'u32[]', space=smem, size = 0x4, offset = 0x4, fixed_abs, tag = 'smem constant byte address 0x4 - core index']
  #allocation1 [shape = 'u32[144,128]{1,0:T(1,128)}', space=vmem, size = 0x12000, scoped, tag = 'internal scratch']
  %s0 = inlined_call_operand.hbm [shape: f32[512,4], index: 0, kind: input, shape index: {}]
  %s1 = inlined_call_operand.hbm [shape: f32[4,4], index: 1, kind: input, shape index: {}]
  %s2 = inlined_call_operand.hbm [shape: f32[1,4], index: 2, kind: input, shape index: {}]
  %s3 = inlined_call_operand.hbm [shape: f32[512,2], index: 3, kind: output, shape index: {0}]
  %s4 = inlined_call_operand.hbm [shape: f32[512,2], index: 4, kind: output, shape index: {1}]
  %5 = xla_tuple %s3, %s4
  %s6 = sld [smem:[#allocation0]]
  $region65: #{c2f_forward.3} parent=0
    _
  %s8 = ssub.s32 1, %s6
  %s9 = scalar_select 0, %s8, %s6
  $region1: #{c2f_forward.3} parent=0
    #allocation2 [shape = 'u8[262144]{0}', space=vmem, size = 0x40000, scoped, tag = 'input window, operand 0']
    #allocation3 [shape = 's32[2]{0}', space=sflag, size = 0x8, scoped, tag = 'scoped memory for c2f_forward.3']
    #allocation4 [shape = 's32[2]{0}', space=sflag, size = 0x8, scoped, tag = 'scoped memory for c2f_forward.3']
    #allocation5 [shape = 'u8[2048]{0}', space=vmem, size = 0x800, scoped, tag = 'input window, operand 1, single buffered']
    #allocation6 [shape = 's32[1]{0}', space=sflag, size = 0x4, scoped, tag = 'scoped memory for c2f_forward.3']
    #allocation7 [shape = 'u8[512]{0}', space=vmem, size = 0x400, scoped, tag = 'input window, operand 2, single buffered']
    #allocation8 [shape = 'u8[262144]{0}', space=vmem, size = 0x40000, scoped, tag = 'output window, operand 0']
    #allocation9 [shape = 'u8[262144]{0}', space=vmem, size = 0x40000, scoped, tag = 'output window, operand 1']
    #allocation10 [shape = 's32[2]{0}', space=sflag, size = 0x8, scoped, tag = 'scoped memory for c2f_forward.3']
    %10 = vsyncpa [#allocation3], 0
    %s11 = scalar_lea.sflag [#allocation3], 1
    %12 = vsyncpa %s11, 0
    %13 = vsyncpa [#allocation6], 0
    %14 = vsyncpa [#allocation4], 0
    %s15 = scalar_lea.sflag [#allocation4], 1
    %16 = vsyncpa %s15, 0
    %17 = vsyncpa [#allocation10], 0
    %s18 = scalar_lea.sflag [#allocation10], 1
    %19 = vsyncpa %s18, 0
    loop: start=0, step=1, limit=4
    $region2: #{c2f_forward.3} parent=1 // loop_pre_header
      _
    $region3: #{c2f_forward.3} parent=1 // loop_header
      %s21 = sphi 0, %s25
      %p22 = scmp.ge.s32.totalorder %s21, 4
      %s31 = sphi 0, %s33
      %s34 = sphi 0, %s31
      %s35 = sphi 0, %s34
      %s51 = sphi 0, %s35
      %s55 = sphi 0, %s55
      %s57 = sphi 0, %s55
      %s58 = sphi 0, %s57
      %s72 = sphi 0, %s58
      %s76 = sphi 0, %s76
      %s78 = sphi 0, %s76
      %s79 = sphi 0, %s78
      %s93 = sphi 0, %s79
      %s99 = sphi 0, %s101
      %s102 = sphi 0, %s99
      %s103 = sphi 0, %s102
      %s119 = sphi 0, %s103
      %s125 = sphi 0, %s127
      %s128 = sphi 0, %s125
      %s129 = sphi 0, %s128
      %s145 = sphi 0, %s129
    $region4: #{c2f_forward.3} parent=1 // loop_header_branch
      %24 = sbr.rel (%p22) target = $region8
    $region5: #{c2f_forward.3} parent=1 // loop_body
      %s26 = ssub.s32 %s21, 1
      %s27 = ssub.s32 %s21, 2
      %s28 = sadd.s32 %s21, 1
      %s29 = ssub.s32 %s21, %s28
      %p30 = scmp.eq.s32.totalorder %s29, 0
      %s32 = sadd.s32 %s31, 1
      %s33 = scalar_select %p30, %s31, %s32
      %p36 = pneg %p30
      %p37 = scmp.eq.s32.totalorder %s21, 1
      %p38 = por %p36, %p37
      %p39 = scmp.ne.s32.totalorder %s31, %s34
      %p40 = scmp.eq.s32.totalorder %s21, 0
      %p41 = por %p39, %p40
      %p42 = scmp.ne.s32.totalorder %s31, %s34
      %p43 = scmp.eq.s32.totalorder %s26, 1
      %p44 = por %p42, %p43
      %p45 = scmp.ne.s32.totalorder %s34, %s35
      %p46 = scmp.eq.s32.totalorder %s26, 0
      %p47 = por %p45, %p46
      %p48 = scmp.ne.s32.totalorder %s34, %s35
      %p49 = scmp.eq.s32.totalorder %s27, 1
      %p50 = por %p48, %p49
      %p52 = scmp.ne.s32.totalorder %s35, %s51
      %p53 = scmp.eq.s32.totalorder %s27, 0
      %p54 = por %p52, %p53
      %s56 = sadd.s32 %s55, 1
      %p59 = scmp.eq.s32.totalorder %s21, 1
      %p60 = scmp.ne.s32.totalorder %s55, %s57
      %p61 = scmp.eq.s32.totalorder %s21, 0
      %p62 = por %p60, %p61
      %p63 = scmp.ne.s32.totalorder %s55, %s57
      %p64 = scmp.eq.s32.totalorder %s26, 1
      %p65 = por %p63, %p64
      %p66 = scmp.ne.s32.totalorder %s57, %s58
      %p67 = scmp.eq.s32.totalorder %s26, 0
      %p68 = por %p66, %p67
      %p69 = scmp.ne.s32.totalorder %s57, %s58
      %p70 = scmp.eq.s32.totalorder %s27, 1
      %p71 = por %p69, %p70
      %p73 = scmp.ne.s32.totalorder %s58, %s72
      %p74 = scmp.eq.s32.totalorder %s27, 0
      %p75 = por %p73, %p74
      %s77 = sadd.s32 %s76, 1
      %p80 = scmp.eq.s32.totalorder %s21, 1
      %p81 = scmp.ne.s32.totalorder %s76, %s78
      %p82 = scmp.eq.s32.totalorder %s21, 0
      %p83 = por %p81, %p82
      %p84 = scmp.ne.s32.totalorder %s76, %s78
      %p85 = scmp.eq.s32.totalorder %s26, 1
      %p86 = por %p84, %p85
      %p87 = scmp.ne.s32.totalorder %s78, %s79
      %p88 = scmp.eq.s32.totalorder %s26, 0
      %p89 = por %p87, %p88
      %p90 = scmp.ne.s32.totalorder %s78, %s79
      %p91 = scmp.eq.s32.totalorder %s27, 1
      %p92 = por %p90, %p91
      %p94 = scmp.ne.s32.totalorder %s79, %s93
      %p95 = scmp.eq.s32.totalorder %s27, 0
      %p96 = por %p94, %p95
      %s97 = ssub.s32 %s21, %s28
      %p98 = scmp.eq.s32.totalorder %s97, 0
      %s100 = sadd.s32 %s99, 1
      %s101 = scalar_select %p98, %s99, %s100
      %p104 = pneg %p98
      %p105 = scmp.eq.s32.totalorder %s21, 1
      %p106 = por %p104, %p105
      %p107 = scmp.ne.s32.totalorder %s99, %s102
      %p108 = scmp.eq.s32.totalorder %s21, 0
      %p109 = por %p107, %p108
      %p110 = scmp.ne.s32.totalorder %s99, %s102
      %p111 = scmp.eq.s32.totalorder %s26, 1
      %p112 = por %p110, %p111
      %p113 = scmp.ne.s32.totalorder %s102, %s103
      %p114 = scmp.eq.s32.totalorder %s26, 0
      %p115 = por %p113, %p114
      %p116 = scmp.ne.s32.totalorder %s102, %s103
      %p117 = scmp.eq.s32.totalorder %s27, 1
      %p118 = por %p116, %p117
      %p120 = scmp.ne.s32.totalorder %s103, %s119
      %p121 = scmp.eq.s32.totalorder %s27, 0
      %p122 = por %p120, %p121
      %s123 = ssub.s32 %s21, %s28
      %p124 = scmp.eq.s32.totalorder %s123, 0
      %s126 = sadd.s32 %s125, 1
      %s127 = scalar_select %p124, %s125, %s126
      %p130 = pneg %p124
      %p131 = scmp.eq.s32.totalorder %s21, 1
      %p132 = por %p130, %p131
      %p133 = scmp.ne.s32.totalorder %s125, %s128
      %p134 = scmp.eq.s32.totalorder %s21, 0
      %p135 = por %p133, %p134
      %p136 = scmp.ne.s32.totalorder %s125, %s128
      %p137 = scmp.eq.s32.totalorder %s26, 1
      %p138 = por %p136, %p137
      %p139 = scmp.ne.s32.totalorder %s128, %s129
      %p140 = scmp.eq.s32.totalorder %s26, 0
      %p141 = por %p139, %p140
      %p142 = scmp.ne.s32.totalorder %s128, %s129
      %p143 = scmp.eq.s32.totalorder %s27, 1
      %p144 = por %p142, %p143
      %p146 = scmp.ne.s32.totalorder %s129, %s145
      %p147 = scmp.eq.s32.totalorder %s27, 0
      %p148 = por %p146, %p147
      %p149 = scmp.le.s32.totalorder 1, %s21
      %p150 = scmp.lt.s32.totalorder %s21, 3
      %p151 = pnand %p149, %p150
      %p152 = pneg %p151
      // Predicated region
      $region9: #{c2f_forward.3} parent=5 // pred_check
        _
      $region10: #{c2f_forward.3} parent=5 // pred_check_branch
        %154 = sbr.rel (%p151) target = $region12
      $region11: #{c2f_forward.3} parent=5 // pred_region
        %s155 = ssub.s32 %s21, 1
        // Predicated region
        $region13: #{c2f_forward.3} parent=11 // pred_check
          %p156 = pneg %p68
        $region14: #{c2f_forward.3} parent=11 // pred_check_branch
          %158 = sbr.rel (%p156) target = $region16
        $region15: #{c2f_forward.3} parent=11 // pred_region
          %s160 = ssub.s32 64, 64
          %161 = vsyncadd [#allocation6], %s160
          %s163 = sshll.u32 [#allocation5], 4
          %s164 = int_to_ptr.vmem [resolvable:$true] %s163
          %166 = dma.hbm_to_vmem [thread:$0]  %s1, 64, %s164, [#allocation6]
        $region16: #{c2f_forward.3} parent=11 // pred_fallthru
          _
        // Predicated region
        $region17: #{c2f_forward.3} parent=11 // pred_check
          %p167 = pneg %p89
        $region18: #{c2f_forward.3} parent=11 // pred_check_branch
          %169 = sbr.rel (%p167) target = $region20
        $region19: #{c2f_forward.3} parent=11 // pred_region
          %s171 = ssub.s32 16, 16
          %172 = vsyncadd [#allocation6], %s171
          %s174 = sshll.u32 [#allocation7], 4
          %s175 = int_to_ptr.vmem [resolvable:$true] %s174
          %177 = dma.hbm_to_vmem [thread:$0]  %s2, 16, %s175, [#allocation6]
        $region20: #{c2f_forward.3} parent=11 // pred_fallthru
          _
      $region12: #{c2f_forward.3} parent=5 // pred_fallthru
        _
      %p178 = scmp.lt.s32.totalorder %s21, 2
      // Predicated region
      $region21: #{c2f_forward.3} parent=5 // pred_check
        %p179 = pneg %p178
      $region22: #{c2f_forward.3} parent=5 // pred_check_branch
        %181 = sbr.rel (%p179) target = $region24
      $region23: #{c2f_forward.3} parent=5 // pred_region
        // Predicated region
        $region25: #{c2f_forward.3} parent=23 // pred_check
          %p182 = pneg %p41
        $region26: #{c2f_forward.3} parent=23 // pred_check_branch
          %184 = sbr.rel (%p182) target = $region28
        $region27: #{c2f_forward.3} parent=23 // pred_region
          %s185 = sand.u32 %s31, 1
          %s186 = scalar_lea.sflag [#allocation3], %s185
          %s187 = sand.u32 %s31, 1
          %s188 = smul.addr %s187, 256
          %s189 = scalar_lea.vmem [#allocation2], %s188
          %s190 = smul.u32 32, %s21
          %s192 = ssub.s32 4096, 4096
          %193 = vsyncadd %s186, %s192
          %s194 = smul.addr %s190, 128
          %s195 = scalar_lea.hbm %s0, %s194
          %s196 = sshll.u32 %s189, 4
          %s197 = int_to_ptr.vmem [resolvable:$true] %s196
          %202 = dma.hbm_to_vmem [thread:$0]  %s195, 4096, %s197, %s186, 128, 128, 8
        $region28: #{c2f_forward.3} parent=23 // pred_fallthru
          _
      $region24: #{c2f_forward.3} parent=5 // pred_fallthru
        _
      %p203 = scmp.le.s32.totalorder 1, %s21
      %p204 = scmp.lt.s32.totalorder %s21, 3
      %p205 = pnand %p203, %p204
      %p206 = pneg %p205
      // Predicated region
      $region29: #{c2f_forward.3} parent=5 // pred_check
        _
      $region30: #{c2f_forward.3} parent=5 // pred_check_branch
        %208 = sbr.rel (%p205) target = $region32
      $region31: #{c2f_forward.3} parent=5 // pred_region
        %s209 = ssub.s32 %s21, 1
        %s210 = sand.u32 %s34, 1
        %s211 = scalar_lea.sflag [#allocation3], %s210
        %s212 = sand.u32 %s34, 1
        %s213 = smul.addr %s212, 256
        %s214 = scalar_lea.vmem [#allocation2], %s213
        // Predicated region
        $region33: #{c2f_forward.3} parent=31 // pred_check
          %p215 = pneg %p47
        $region34: #{c2f_forward.3} parent=31 // pred_check_branch
          %217 = sbr.rel (%p215) target = $region36
        $region35: #{c2f_forward.3} parent=31 // pred_region
          %218 = dma.done %s211, 4096
        $region36: #{c2f_forward.3} parent=31 // pred_fallthru
          _
        // Predicated region
        $region37: #{c2f_forward.3} parent=31 // pred_check
          %p219 = pneg %p68
        $region38: #{c2f_forward.3} parent=31 // pred_check_branch
          %221 = sbr.rel (%p219) target = $region40
        $region39: #{c2f_forward.3} parent=31 // pred_region
          %222 = dma.done [#allocation6], 64
        $region40: #{c2f_forward.3} parent=31 // pred_fallthru
          _
        // Predicated region
        $region41: #{c2f_forward.3} parent=31 // pred_check
          %p223 = pneg %p89
        $region42: #{c2f_forward.3} parent=31 // pred_check_branch
          %225 = sbr.rel (%p223) target = $region44
        $region43: #{c2f_forward.3} parent=31 // pred_region
          %226 = dma.done [#allocation6], 16
        $region44: #{c2f_forward.3} parent=31 // pred_fallthru
          _
        %s227 = sand.u32 %s34, 1
        %s228 = scalar_lea.sflag [#allocation3], %s227
        %s229 = sand.u32 %s34, 1
        %s230 = smul.addr %s229, 256
        %s231 = scalar_lea.vmem [#allocation2], %s230
        %p232 = pneg %p47
        %p233 = pneg %p44
        %p234 = pneg %p68
        %p235 = pneg %p65
        %p236 = pneg %p89
        %p237 = pneg %p86
        %p238 = pneg %p115
        %p239 = pneg %p112
        %s240 = sand.u32 %s102, 1
        %s241 = scalar_lea.sflag [#allocation4], %s240
        %s242 = sand.u32 %s102, 1
        %s243 = smul.addr %s242, 256
        %s244 = scalar_lea.vmem [#allocation8], %s243
        %p245 = pneg %p141
        %p246 = pneg %p138
        %s247 = sand.u32 %s128, 1
        %s248 = scalar_lea.sflag [#allocation10], %s247
        %s249 = sand.u32 %s128, 1
        %s250 = smul.addr %s249, 256
        %s251 = scalar_lea.vmem [#allocation9], %s250
        %s252 = smul.u32 32, %s26
        %s253 = smul.u32 32, %s26
        %s254 = smul.u32 32, %s26
        %v255 = vld [vmem:[%s214] sm:$0xff]
        %v256 = vld [vmem:[%s214 + $0x8] sm:$0xff]
        %v257 = vld [vmem:[%s214 + $0x10] sm:$0xff]
        %v258 = vld [vmem:[%s214 + $0x18] sm:$0xff]
        %v259 = vld [vmem:[%s214 + $0x20] sm:$0xff]
        %v260 = vld [vmem:[%s214 + $0x28] sm:$0xff]
        %v261 = vld [vmem:[%s214 + $0x30] sm:$0xff]
        %v262 = vld [vmem:[%s214 + $0x38] sm:$0xff]
        %v263 = vld [vmem:[%s214 + $0x40] sm:$0xff]
        %v264 = vld [vmem:[%s214 + $0x48] sm:$0xff]
        %v265 = vld [vmem:[%s214 + $0x50] sm:$0xff]
        %v266 = vld [vmem:[%s214 + $0x58] sm:$0xff]
        %v267 = vld [vmem:[%s214 + $0x60] sm:$0xff]
        %v268 = vld [vmem:[%s214 + $0x68] sm:$0xff]
        %v269 = vld [vmem:[%s214 + $0x70] sm:$0xff]
        %v270 = vld [vmem:[%s214 + $0x78] sm:$0xff]
        %v271 = vld [vmem:[%s214 + $0x80] sm:$0xff]
        %v272 = vld [vmem:[%s214 + $0x88] sm:$0xff]
        %v273 = vld [vmem:[%s214 + $0x90] sm:$0xff]
        %v274 = vld [vmem:[%s214 + $0x98] sm:$0xff]
        %v275 = vld [vmem:[%s214 + $0xa0] sm:$0xff]
        %v276 = vld [vmem:[%s214 + $0xa8] sm:$0xff]
        %v277 = vld [vmem:[%s214 + $0xb0] sm:$0xff]
        %v278 = vld [vmem:[%s214 + $0xb8] sm:$0xff]
        %v279 = vld [vmem:[%s214 + $0xc0] sm:$0xff]
        %v280 = vld [vmem:[%s214 + $0xc8] sm:$0xff]
        %v281 = vld [vmem:[%s214 + $0xd0] sm:$0xff]
        %v282 = vld [vmem:[%s214 + $0xd8] sm:$0xff]
        %v283 = vld [vmem:[%s214 + $0xe0] sm:$0xff]
        %v284 = vld [vmem:[%s214 + $0xe8] sm:$0xff]
        %v285 = vld [vmem:[%s214 + $0xf0] sm:$0xff]
        %v286 = vld [vmem:[%s214 + $0xf8] sm:$0xff]
        %v287 = vld [vmem:[#allocation5] sm:$0xf]
        %v288 = vld [vmem:[#allocation7] sm:$0x1]
        %v290 = vlaneseq
        %v291 = vshrl.u32 %v290, 7
        %v292 = vsub.s32 0, %v291
        %v293 = vrot.slane %v288, %v292
        %vm295 = vcmask 31744
        %v297 = vsel %vm295, %v255, 0
        %v300 = vsel %vm295, %v256, 0
        %v303 = vsel %vm295, %v257, 0
        %v306 = vsel %vm295, %v258, 0
        %v309 = vsel %vm295, %v259, 0
        %v312 = vsel %vm295, %v260, 0
        %v315 = vsel %vm295, %v261, 0
        %v318 = vsel %vm295, %v262, 0
        %v321 = vsel %vm295, %v263, 0
        %v324 = vsel %vm295, %v264, 0
        %v327 = vsel %vm295, %v265, 0
        %v330 = vsel %vm295, %v266, 0
        %v333 = vsel %vm295, %v267, 0
        %v336 = vsel %vm295, %v268, 0
        %v339 = vsel %vm295, %v269, 0
        %v342 = vsel %vm295, %v270, 0
        %v345 = vsel %vm295, %v271, 0
        %v348 = vsel %vm295, %v272, 0
        %v351 = vsel %vm295, %v273, 0
        %v354 = vsel %vm295, %v274, 0
        %v357 = vsel %vm295, %v275, 0
        %v360 = vsel %vm295, %v276, 0
        %v363 = vsel %vm295, %v277, 0
        %v366 = vsel %vm295, %v278, 0
        %v369 = vsel %vm295, %v279, 0
        %v372 = vsel %vm295, %v280, 0
        %v375 = vsel %vm295, %v281, 0
        %v378 = vsel %vm295, %v282, 0
        %v381 = vsel %vm295, %v283, 0
        %v384 = vsel %vm295, %v284, 0
        %v387 = vsel %vm295, %v285, 0
        %v390 = vsel %vm295, %v286, 0
        %vm392 = vcmask 1043456
        %v394 = vsel %vm392, %v287, 0
        %396 = vmatprep.subr.mxu0 0.0
        %397 = vmatpush1.msra.mxu0 %v394
        %398 = vmatprep.subr.mxu0 0.0
        %399 = vmatpush1.msra.mxu0 0.0
        %400 = vmatprep.subr.mxu0 0.0
        %401 = vmatpush1.msra.mxu0 0.0
        %402 = vmatprep.subr.mxu0 0.0
        %403 = vmatpush1.msra.mxu0 0.0
        %404 = vmatprep.subr.mxu0 0.0
        %405 = vmatpush1.msra.mxu0 0.0
        %406 = vmatprep.subr.mxu0 0.0
        %407 = vmatpush1.msra.mxu0 0.0
        %408 = vmatprep.subr.mxu0 0.0
        %409 = vmatpush1.msra.mxu0 0.0
        %410 = vmatprep.subr.mxu0 0.0
        %411 = vmatpush1.msra.mxu0 0.0
        %412 = vmatprep.subr.mxu0 0.0
        %413 = vmatpush1.msra.mxu0 0.0
        %414 = vmatprep.subr.mxu0 0.0
        %415 = vmatpush1.msra.mxu0 0.0
        %416 = vmatprep.subr.mxu0 0.0
        %417 = vmatpush1.msra.mxu0 0.0
        %418 = vmatprep.subr.mxu0 0.0
        %419 = vmatpush1.msra.mxu0 0.0
        %420 = vmatprep.subr.mxu0 0.0
        %421 = vmatpush1.msra.mxu0 0.0
        %422 = vmatprep.subr.mxu0 0.0
        %423 = vmatpush1.msra.mxu0 0.0
        %424 = vmatprep.subr.mxu0 0.0
        %425 = vmatpush1.msra.mxu0 0.0
        %426 = vmatprep.subr.mxu0 0.0
        %427 = vmatpush1.msra.mxu0 0.0
        %428 = vmatprep.subr.mxu0 0.0
        %429 = vmatpush1.msra.mxu0 0.0
        %430 = vmatprep.subr.mxu0 0.0
        %431 = vmatpush1.msra.mxu0 0.0
        %432 = vmatprep.subr.mxu0 0.0
        %433 = vmatpush1.msra.mxu0 0.0
        %434 = vmatprep.subr.mxu0 0.0
        %435 = vmatpush1.msra.mxu0 0.0
        %436 = vmatprep.subr.mxu0 0.0
        %437 = vmatpush1.msra.mxu0 0.0
        %438 = vmatprep.subr.mxu0 0.0
        %439 = vmatpush1.msra.mxu0 0.0
        %440 = vmatprep.subr.mxu0 0.0
        %441 = vmatpush1.msra.mxu0 0.0
        %442 = vmatprep.subr.mxu0 0.0
        %443 = vmatpush1.msra.mxu0 0.0
        %444 = vmatprep.subr.mxu0 0.0
        %445 = vmatpush1.msra.mxu0 0.0
        %446 = vmatprep.subr.mxu0 0.0
        %447 = vmatpush1.msra.mxu0 0.0
        %448 = vmatprep.subr.mxu0 0.0
        %449 = vmatpush1.msra.mxu0 0.0
        %450 = vmatprep.subr.mxu0 0.0
        %451 = vmatpush1.msra.mxu0 0.0
        %452 = vmatprep.subr.mxu0 0.0
        %453 = vmatpush1.msra.mxu0 0.0
        %454 = vmatprep.subr.mxu0 0.0
        %455 = vmatpush1.msra.mxu0 0.0
        %456 = vmatprep.subr.mxu0 0.0
        %457 = vmatpush1.msra.mxu0 0.0
        %458 = vmatprep.subr.mxu0 0.0
        %459 = vmatpush1.msra.mxu0 0.0
        %460 = vmatprep.mubr.f32.mxu0 0.0
        %461 = vmatmul.mubr.f32.gmra.mrb[0].mxu0 %v297
        %v462 = vpop.f32.mrb[0].mxu0
        %v463 = vadd.f32 %v293, %v462
        %v464 = vpop.f32.mrb[0].mxu0
        %465 = vmatprep.mubr.f32.mxu0 0.0
        %466 = vmatmul.mubr.f32.gmra.mrb[0].mxu0 %v300
        %v467 = vpop.f32.mrb[0].mxu0
        %v468 = vadd.f32 %v293, %v467
        %v469 = vpop.f32.mrb[0].mxu0
        %470 = vmatprep.mubr.f32.mxu0 0.0
        %471 = vmatmul.mubr.f32.gmra.mrb[0].mxu0 %v303
        %v472 = vpop.f32.mrb[0].mxu0
        %v473 = vadd.f32 %v293, %v472
        %v474 = vpop.f32.mrb[0].mxu0
        %475 = vmatprep.mubr.f32.mxu0 0.0
        %476 = vmatmul.mubr.f32.gmra.mrb[0].mxu0 %v306
        %v477 = vpop.f32.mrb[0].mxu0
        %v478 = vadd.f32 %v293, %v477
        %v479 = vpop.f32.mrb[0].mxu0
        %480 = vmatprep.mubr.f32.mxu0 0.0
        %481 = vmatmul.mubr.f32.gmra.mrb[0].mxu0 %v309
        %v482 = vpop.f32.mrb[0].mxu0
        %v483 = vadd.f32 %v293, %v482
        %v484 = vpop.f32.mrb[0].mxu0
        %485 = vmatprep.mubr.f32.mxu0 0.0
        %486 = vmatmul.mubr.f32.gmra.mrb[0].mxu0 %v312
        %v487 = vpop.f32.mrb[0].mxu0
        %v488 = vadd.f32 %v293, %v487
        %v489 = vpop.f32.mrb[0].mxu0
        %490 = vmatprep.mubr.f32.mxu0 0.0
        %491 = vmatmul.mubr.f32.gmra.mrb[0].mxu0 %v315
        %v492 = vpop.f32.mrb[0].mxu0
        %v493 = vadd.f32 %v293, %v492
        %v494 = vpop.f32.mrb[0].mxu0
        %495 = vmatprep.mubr.f32.mxu0 0.0
        %496 = vmatmul.mubr.f32.gmra.mrb[0].mxu0 %v318
        %v497 = vpop.f32.mrb[0].mxu0
        %v498 = vadd.f32 %v293, %v497
        %v499 = vpop.f32.mrb[0].mxu0
        %500 = vmatprep.mubr.f32.mxu0 0.0
        %501 = vmatmul.mubr.f32.gmra.mrb[0].mxu0 %v321
        %v502 = vpop.f32.mrb[0].mxu0
        %v503 = vadd.f32 %v293, %v502
        %v504 = vpop.f32.mrb[0].mxu0
        %505 = vmatprep.mubr.f32.mxu0 0.0
        %506 = vmatmul.mubr.f32.gmra.mrb[0].mxu0 %v324
        %v507 = vpop.f32.mrb[0].mxu0
        %v508 = vadd.f32 %v293, %v507
        %v509 = vpop.f32.mrb[0].mxu0
        %510 = vmatprep.mubr.f32.mxu0 0.0
        %511 = vmatmul.mubr.f32.gmra.mrb[0].mxu0 %v327
        %v512 = vpop.f32.mrb[0].mxu0
        %v513 = vadd.f32 %v293, %v512
        %v514 = vpop.f32.mrb[0].mxu0
        %515 = vmatprep.mubr.f32.mxu0 0.0
        %516 = vmatmul.mubr.f32.gmra.mrb[0].mxu0 %v330
        %v517 = vpop.f32.mrb[0].mxu0
        %v518 = vadd.f32 %v293, %v517
        %v519 = vpop.f32.mrb[0].mxu0
        %520 = vmatprep.mubr.f32.mxu0 0.0
        %521 = vmatmul.mubr.f32.gmra.mrb[0].mxu0 %v333
        %v522 = vpop.f32.mrb[0].mxu0
        %v523 = vadd.f32 %v293, %v522
        %v524 = vpop.f32.mrb[0].mxu0
        %525 = vmatprep.mubr.f32.mxu0 0.0
        %526 = vmatmul.mubr.f32.gmra.mrb[0].mxu0 %v336
        %v527 = vpop.f32.mrb[0].mxu0
        %v528 = vadd.f32 %v293, %v527
        %v529 = vpop.f32.mrb[0].mxu0
        %530 = vmatprep.mubr.f32.mxu0 0.0
        %531 = vmatmul.mubr.f32.gmra.mrb[0].mxu0 %v339
        %v532 = vpop.f32.mrb[0].mxu0
        %v533 = vadd.f32 %v293, %v532
        %v534 = vpop.f32.mrb[0].mxu0
        %535 = vmatprep.mubr.f32.mxu0 0.0
        %536 = vmatmul.mubr.f32.gmra.mrb[0].mxu0 %v342
        %v537 = vpop.f32.mrb[0].mxu0
        %v538 = vadd.f32 %v293, %v537
        %v539 = vpop.f32.mrb[0].mxu0
        %540 = vmatprep.mubr.f32.mxu0 0.0
        %541 = vmatmul.mubr.f32.gmra.mrb[0].mxu0 %v345
        %v542 = vpop.f32.mrb[0].mxu0
        %v543 = vadd.f32 %v293, %v542
        %v544 = vpop.f32.mrb[0].mxu0
        %545 = vmatprep.mubr.f32.mxu0 0.0
        %546 = vmatmul.mubr.f32.gmra.mrb[0].mxu0 %v348
        %v547 = vpop.f32.mrb[0].mxu0
        %v548 = vadd.f32 %v293, %v547
        %v549 = vpop.f32.mrb[0].mxu0
        %550 = vmatprep.mubr.f32.mxu0 0.0
        %551 = vmatmul.mubr.f32.gmra.mrb[0].mxu0 %v351
        %v552 = vpop.f32.mrb[0].mxu0
        %v553 = vadd.f32 %v293, %v552
        %v554 = vpop.f32.mrb[0].mxu0
        %555 = vmatprep.mubr.f32.mxu0 0.0
        %556 = vmatmul.mubr.f32.gmra.mrb[0].mxu0 %v354
        %v557 = vpop.f32.mrb[0].mxu0
        %v558 = vadd.f32 %v293, %v557
        %v559 = vpop.f32.mrb[0].mxu0
        %560 = vmatprep.mubr.f32.mxu0 0.0
        %561 = vmatmul.mubr.f32.gmra.mrb[0].mxu0 %v357
        %v562 = vpop.f32.mrb[0].mxu0
        %v563 = vadd.f32 %v293, %v562
        %v564 = vpop.f32.mrb[0].mxu0
        %565 = vmatprep.mubr.f32.mxu0 0.0
        %566 = vmatmul.mubr.f32.gmra.mrb[0].mxu0 %v360
        %v567 = vpop.f32.mrb[0].mxu0
        %v568 = vadd.f32 %v293, %v567
        %v569 = vpop.f32.mrb[0].mxu0
        %570 = vmatprep.mubr.f32.mxu0 0.0
        %571 = vmatmul.mubr.f32.gmra.mrb[0].mxu0 %v363
        %v572 = vpop.f32.mrb[0].mxu0
        %v573 = vadd.f32 %v293, %v572
        %v574 = vpop.f32.mrb[0].mxu0
        %575 = vmatprep.mubr.f32.mxu0 0.0
        %576 = vmatmul.mubr.f32.gmra.mrb[0].mxu0 %v366
        %v577 = vpop.f32.mrb[0].mxu0
        %v578 = vadd.f32 %v293, %v577
        %v579 = vpop.f32.mrb[0].mxu0
        %580 = vmatprep.mubr.f32.mxu0 0.0
        %581 = vmatmul.mubr.f32.gmra.mrb[0].mxu0 %v369
        %v582 = vpop.f32.mrb[0].mxu0
        %v583 = vadd.f32 %v293, %v582
        %v584 = vpop.f32.mrb[0].mxu0
        %585 = vmatprep.mubr.f32.mxu0 0.0
        %586 = vmatmul.mubr.f32.gmra.mrb[0].mxu0 %v372
        %v587 = vpop.f32.mrb[0].mxu0
        %v588 = vadd.f32 %v293, %v587
        %v589 = vpop.f32.mrb[0].mxu0
        %590 = vmatprep.mubr.f32.mxu0 0.0
        %591 = vmatmul.mubr.f32.gmra.mrb[0].mxu0 %v375
        %v592 = vpop.f32.mrb[0].mxu0
        %v593 = vadd.f32 %v293, %v592
        %v594 = vpop.f32.mrb[0].mxu0
        %595 = vmatprep.mubr.f32.mxu0 0.0
        %596 = vmatmul.mubr.f32.gmra.mrb[0].mxu0 %v378
        %v597 = vpop.f32.mrb[0].mxu0
        %v598 = vadd.f32 %v293, %v597
        %v599 = vpop.f32.mrb[0].mxu0
        %600 = vmatprep.mubr.f32.mxu0 0.0
        %601 = vmatmul.mubr.f32.gmra.mrb[0].mxu0 %v381
        %v602 = vpop.f32.mrb[0].mxu0
        %v603 = vadd.f32 %v293, %v602
        %v604 = vpop.f32.mrb[0].mxu0
        %605 = vmatprep.mubr.f32.mxu0 0.0
        %606 = vmatmul.mubr.f32.gmra.mrb[0].mxu0 %v384
        %v607 = vpop.f32.mrb[0].mxu0
        %v608 = vadd.f32 %v293, %v607
        %v609 = vpop.f32.mrb[0].mxu0
        %610 = vmatprep.mubr.f32.mxu0 0.0
        %611 = vmatmul.mubr.f32.gmra.mrb[0].mxu0 %v387
        %v612 = vpop.f32.mrb[0].mxu0
        %v613 = vadd.f32 %v293, %v612
        %v614 = vpop.f32.mrb[0].mxu0
        %615 = vmatprep.mubr.f32.mxu0 0.0
        %616 = vmatmul.mubr.f32.gmra.mrb[0].mxu0 %v390
        %v617 = vpop.f32.mrb[0].mxu0
        %v618 = vadd.f32 %v293, %v617
        %v619 = vpop.f32.mrb[0].mxu0
        %620 = vdwg.mxu0
        %v621 = vxor.u32 %v463, 2147483648
        %v622 = vxor.u32 %v468, 2147483648
        %v623 = vxor.u32 %v473, 2147483648
        %v624 = vxor.u32 %v478, 2147483648
        %v625 = vxor.u32 %v483, 2147483648
        %v626 = vxor.u32 %v488, 2147483648
        %v627 = vxor.u32 %v493, 2147483648
        %v628 = vxor.u32 %v498, 2147483648
        %v629 = vxor.u32 %v503, 2147483648
        %v630 = vxor.u32 %v508, 2147483648
        %v631 = vxor.u32 %v513, 2147483648
        %v632 = vxor.u32 %v518, 2147483648
        %v633 = vxor.u32 %v523, 2147483648
        %v634 = vxor.u32 %v528, 2147483648
        %v635 = vxor.u32 %v533, 2147483648
        %v636 = vxor.u32 %v538, 2147483648
        %v637 = vxor.u32 %v543, 2147483648
        %v638 = vxor.u32 %v548, 2147483648
        %v639 = vxor.u32 %v553, 2147483648
        %v640 = vxor.u32 %v558, 2147483648
        %v641 = vxor.u32 %v563, 2147483648
        %v642 = vxor.u32 %v568, 2147483648
        %v643 = vxor.u32 %v573, 2147483648
        %v644 = vxor.u32 %v578, 2147483648
        %v645 = vxor.u32 %v583, 2147483648
        %v646 = vxor.u32 %v588, 2147483648
        %v647 = vxor.u32 %v593, 2147483648
        %v648 = vxor.u32 %v598, 2147483648
        %v649 = vxor.u32 %v603, 2147483648
        %v650 = vxor.u32 %v608, 2147483648
        %v651 = vxor.u32 %v613, 2147483648
        %v652 = vxor.u32 %v618, 2147483648
        %v653 = vmul.f32 %v621, 1.442695
        %v654 = vpow.pop %v653
        %v655 = vmul.f32 %v622, 1.442695
        %v656 = vpow.pop %v655
        %v657 = vmul.f32 %v623, 1.442695
        %v658 = vpow.pop %v657
        %v659 = vmul.f32 %v624, 1.442695
        %v660 = vpow.pop %v659
        %v661 = vmul.f32 %v625, 1.442695
        %v662 = vpow.pop %v661
        %v663 = vmul.f32 %v626, 1.442695
        %v664 = vpow.pop %v663
        %v665 = vmul.f32 %v627, 1.442695
        %v666 = vpow.pop %v665
        %v667 = vmul.f32 %v628, 1.442695
        %v668 = vpow.pop %v667
        %v669 = vmul.f32 %v629, 1.442695
        %v670 = vpow.pop %v669
        %v671 = vmul.f32 %v630, 1.442695
        %v672 = vpow.pop %v671
        %v673 = vmul.f32 %v631, 1.442695
        %v674 = vpow.pop %v673
        %v675 = vmul.f32 %v632, 1.442695
        %v676 = vpow.pop %v675
        %v677 = vmul.f32 %v633, 1.442695
        %v678 = vpow.pop %v677
        %v679 = vmul.f32 %v634, 1.442695
        %v680 = vpow.pop %v679
        %v681 = vmul.f32 %v635, 1.442695
        %v682 = vpow.pop %v681
        %v683 = vmul.f32 %v636, 1.442695
        %v684 = vpow.pop %v683
        %v685 = vmul.f32 %v637, 1.442695
        %v686 = vpow.pop %v685
        %v687 = vmul.f32 %v638, 1.442695
        %v688 = vpow.pop %v687
        %v689 = vmul.f32 %v639, 1.442695
        %v690 = vpow.pop %v689
        %v691 = vmul.f32 %v640, 1.442695
        %v692 = vpow.pop %v691
        %v693 = vmul.f32 %v641, 1.442695
        %v694 = vpow.pop %v693
        %v695 = vmul.f32 %v642, 1.442695
        %v696 = vpow.pop %v695
        %v697 = vmul.f32 %v643, 1.442695
        %v698 = vpow.pop %v697
        %v699 = vmul.f32 %v644, 1.442695
        %v700 = vpow.pop %v699
        %v701 = vmul.f32 %v645, 1.442695
        %v702 = vpow.pop %v701
        %v703 = vmul.f32 %v646, 1.442695
        %v704 = vpow.pop %v703
        %v705 = vmul.f32 %v647, 1.442695
        %v706 = vpow.pop %v705
        %v707 = vmul.f32 %v648, 1.442695
        %v708 = vpow.pop %v707
        %v709 = vmul.f32 %v649, 1.442695
        %v710 = vpow.pop %v709
        %v711 = vmul.f32 %v650, 1.442695
        %v712 = vpow.pop %v711
        %v713 = vmul.f32 %v651, 1.442695
        %v714 = vpow.pop %v713
        %v715 = vmul.f32 %v652, 1.442695
        %v716 = vpow.pop %v715
        %v717 = vadd.f32 %v654, 1.0
        %v718 = vadd.f32 %v656, 1.0
        %v719 = vadd.f32 %v658, 1.0
        %v720 = vadd.f32 %v660, 1.0
        %v721 = vadd.f32 %v662, 1.0
        %v722 = vadd.f32 %v664, 1.0
        %v723 = vadd.f32 %v666, 1.0
        %v724 = vadd.f32 %v668, 1.0
        %v725 = vadd.f32 %v670, 1.0
        %v726 = vadd.f32 %v672, 1.0
        %v727 = vadd.f32 %v674, 1.0
        %v728 = vadd.f32 %v676, 1.0
        %v729 = vadd.f32 %v678, 1.0
        %v730 = vadd.f32 %v680, 1.0
        %v731 = vadd.f32 %v682, 1.0
        %v732 = vadd.f32 %v684, 1.0
        %v733 = vadd.f32 %v686, 1.0
        %v734 = vadd.f32 %v688, 1.0
        %v735 = vadd.f32 %v690, 1.0
        %v736 = vadd.f32 %v692, 1.0
        %v737 = vadd.f32 %v694, 1.0
        %v738 = vadd.f32 %v696, 1.0
        %v739 = vadd.f32 %v698, 1.0
        %v740 = vadd.f32 %v700, 1.0
        %v741 = vadd.f32 %v702, 1.0
        %v742 = vadd.f32 %v704, 1.0
        %v743 = vadd.f32 %v706, 1.0
        %v744 = vadd.f32 %v708, 1.0
        %v745 = vadd.f32 %v710, 1.0
        %v746 = vadd.f32 %v712, 1.0
        %v747 = vadd.f32 %v714, 1.0
        %v748 = vadd.f32 %v716, 1.0
        %v749 = vrcp.pop %v717
        %v750 = vmul.f32 1.0, %v749
        %v751 = vrcp.pop %v718
        %v752 = vmul.f32 1.0, %v751
        %v753 = vrcp.pop %v719
        %v754 = vmul.f32 1.0, %v753
        %v755 = vrcp.pop %v720
        %v756 = vmul.f32 1.0, %v755
        %v757 = vrcp.pop %v721
        %v758 = vmul.f32 1.0, %v757
        %v759 = vrcp.pop %v722
        %v760 = vmul.f32 1.0, %v759
        %v761 = vrcp.pop %v723
        %v762 = vmul.f32 1.0, %v761
        %v763 = vrcp.pop %v724
        %v764 = vmul.f32 1.0, %v763
        %v765 = vrcp.pop %v725
        %v766 = vmul.f32 1.0, %v765
        %v767 = vrcp.pop %v726
        %v768 = vmul.f32 1.0, %v767
        %v769 = vrcp.pop %v727
        %v770 = vmul.f32 1.0, %v769
        %v771 = vrcp.pop %v728
        %v772 = vmul.f32 1.0, %v771
        %v773 = vrcp.pop %v729
        %v774 = vmul.f32 1.0, %v773
        %v775 = vrcp.pop %v730
        %v776 = vmul.f32 1.0, %v775
        %v777 = vrcp.pop %v731
        %v778 = vmul.f32 1.0, %v777
        %v779 = vrcp.pop %v732
        %v780 = vmul.f32 1.0, %v779
        %v781 = vrcp.pop %v733
        %v782 = vmul.f32 1.0, %v781
        %v783 = vrcp.pop %v734
        %v784 = vmul.f32 1.0, %v783
        %v785 = vrcp.pop %v735
        %v786 = vmul.f32 1.0, %v785
        %v787 = vrcp.pop %v736
        %v788 = vmul.f32 1.0, %v787
        %v789 = vrcp.pop %v737
        %v790 = vmul.f32 1.0, %v789
        %v791 = vrcp.pop %v738
        %v792 = vmul.f32 1.0, %v791
        %v793 = vrcp.pop %v739
        %v794 = vmul.f32 1.0, %v793
        %v795 = vrcp.pop %v740
        %v796 = vmul.f32 1.0, %v795
        %v797 = vrcp.pop %v741
        %v798 = vmul.f32 1.0, %v797
        %v799 = vrcp.pop %v742
        %v800 = vmul.f32 1.0, %v799
        %v801 = vrcp.pop %v743
        %v802 = vmul.f32 1.0, %v801
        %v803 = vrcp.pop %v744
        %v804 = vmul.f32 1.0, %v803
        %v805 = vrcp.pop %v745
        %v806 = vmul.f32 1.0, %v805
        %v807 = vrcp.pop %v746
        %v808 = vmul.f32 1.0, %v807
        %v809 = vrcp.pop %v747
        %v810 = vmul.f32 1.0, %v809
        %v811 = vrcp.pop %v748
        %v812 = vmul.f32 1.0, %v811
        %v813 = vmul.f32 %v463, %v750
        %v814 = vmul.f32 %v468, %v752
        %v815 = vmul.f32 %v473, %v754
        %v816 = vmul.f32 %v478, %v756
        %v817 = vmul.f32 %v483, %v758
        %v818 = vmul.f32 %v488, %v760
        %v819 = vmul.f32 %v493, %v762
        %v820 = vmul.f32 %v498, %v764
        %v821 = vmul.f32 %v503, %v766
        %v822 = vmul.f32 %v508, %v768
        %v823 = vmul.f32 %v513, %v770
        %v824 = vmul.f32 %v518, %v772
        %v825 = vmul.f32 %v523, %v774
        %v826 = vmul.f32 %v528, %v776
        %v827 = vmul.f32 %v533, %v778
        %v828 = vmul.f32 %v538, %v780
        %v829 = vmul.f32 %v543, %v782
        %v830 = vmul.f32 %v548, %v784
        %v831 = vmul.f32 %v553, %v786
        %v832 = vmul.f32 %v558, %v788
        %v833 = vmul.f32 %v563, %v790
        %v834 = vmul.f32 %v568, %v792
        %v835 = vmul.f32 %v573, %v794
        %v836 = vmul.f32 %v578, %v796
        %v837 = vmul.f32 %v583, %v798
        %v838 = vmul.f32 %v588, %v800
        %v839 = vmul.f32 %v593, %v802
        %v840 = vmul.f32 %v598, %v804
        %v841 = vmul.f32 %v603, %v806
        %v842 = vmul.f32 %v608, %v808
        %v843 = vmul.f32 %v613, %v810
        %v844 = vmul.f32 %v618, %v812
        %vm845 = vcmask 15360
        %846 = vst.msk [vmem:[%s244] sm:$0xff] %vm845, %v813
        %847 = vst.msk [vmem:[%s244 + $0x8] sm:$0xff] %vm845, %v814
        %848 = vst.msk [vmem:[%s244 + $0x10] sm:$0xff] %vm845, %v815
        %849 = vst.msk [vmem:[%s244 + $0x18] sm:$0xff] %vm845, %v816
        %850 = vst.msk [vmem:[%s244 + $0x20] sm:$0xff] %vm845, %v817
        %851 = vst.msk [vmem:[%s244 + $0x28] sm:$0xff] %vm845, %v818
        %852 = vst.msk [vmem:[%s244 + $0x30] sm:$0xff] %vm845, %v819
        %853 = vst.msk [vmem:[%s244 + $0x38] sm:$0xff] %vm845, %v820
        %854 = vst.msk [vmem:[%s244 + $0x40] sm:$0xff] %vm845, %v821
        %855 = vst.msk [vmem:[%s244 + $0x48] sm:$0xff] %vm845, %v822
        %856 = vst.msk [vmem:[%s244 + $0x50] sm:$0xff] %vm845, %v823
        %857 = vst.msk [vmem:[%s244 + $0x58] sm:$0xff] %vm845, %v824
        %858 = vst.msk [vmem:[%s244 + $0x60] sm:$0xff] %vm845, %v825
        %859 = vst.msk [vmem:[%s244 + $0x68] sm:$0xff] %vm845, %v826
        %860 = vst.msk [vmem:[%s244 + $0x70] sm:$0xff] %vm845, %v827
        %861 = vst.msk [vmem:[%s244 + $0x78] sm:$0xff] %vm845, %v828
        %862 = vst.msk [vmem:[%s244 + $0x80] sm:$0xff] %vm845, %v829
        %863 = vst.msk [vmem:[%s244 + $0x88] sm:$0xff] %vm845, %v830
        %864 = vst.msk [vmem:[%s244 + $0x90] sm:$0xff] %vm845, %v831
        %865 = vst.msk [vmem:[%s244 + $0x98] sm:$0xff] %vm845, %v832
        %866 = vst.msk [vmem:[%s244 + $0xa0] sm:$0xff] %vm845, %v833
        %867 = vst.msk [vmem:[%s244 + $0xa8] sm:$0xff] %vm845, %v834
        %868 = vst.msk [vmem:[%s244 + $0xb0] sm:$0xff] %vm845, %v835
        %869 = vst.msk [vmem:[%s244 + $0xb8] sm:$0xff] %vm845, %v836
        %870 = vst.msk [vmem:[%s244 + $0xc0] sm:$0xff] %vm845, %v837
        %871 = vst.msk [vmem:[%s244 + $0xc8] sm:$0xff] %vm845, %v838
        %872 = vst.msk [vmem:[%s244 + $0xd0] sm:$0xff] %vm845, %v839
        %873 = vst.msk [vmem:[%s244 + $0xd8] sm:$0xff] %vm845, %v840
        %874 = vst.msk [vmem:[%s244 + $0xe0] sm:$0xff] %vm845, %v841
        %875 = vst.msk [vmem:[%s244 + $0xe8] sm:$0xff] %vm845, %v842
        %876 = vst.msk [vmem:[%s244 + $0xf0] sm:$0xff] %vm845, %v843
        %877 = vst.msk [vmem:[%s244 + $0xf8] sm:$0xff] %vm845, %v844
        %910 = vrot.lane.b32.xlu0 %v813, 126
        %v911 = vpop.permute.xlu0 %910
        %912 = vrot.lane.b32.xlu0 %v814, 126
        %v913 = vpop.permute.xlu0 %912
        %914 = vrot.lane.b32.xlu0 %v815, 126
        %v915 = vpop.permute.xlu0 %914
        %916 = vrot.lane.b32.xlu0 %v816, 126
        %v917 = vpop.permute.xlu0 %916
        %918 = vrot.lane.b32.xlu0 %v817, 126
        %v919 = vpop.permute.xlu0 %918
        %920 = vrot.lane.b32.xlu0 %v818, 126
        %v921 = vpop.permute.xlu0 %920
        %922 = vrot.lane.b32.xlu0 %v819, 126
        %v923 = vpop.permute.xlu0 %922
        %924 = vrot.lane.b32.xlu0 %v820, 126
        %v925 = vpop.permute.xlu0 %924
        %926 = vrot.lane.b32.xlu0 %v821, 126
        %v927 = vpop.permute.xlu0 %926
        %928 = vrot.lane.b32.xlu0 %v822, 126
        %v929 = vpop.permute.xlu0 %928
        %930 = vrot.lane.b32.xlu0 %v823, 126
        %v931 = vpop.permute.xlu0 %930
        %932 = vrot.lane.b32.xlu0 %v824, 126
        %v933 = vpop.permute.xlu0 %932
        %934 = vrot.lane.b32.xlu0 %v825, 126
        %v935 = vpop.permute.xlu0 %934
        %936 = vrot.lane.b32.xlu0 %v826, 126
        %v937 = vpop.permute.xlu0 %936
        %938 = vrot.lane.b32.xlu0 %v827, 126
        %v939 = vpop.permute.xlu0 %938
        %940 = vrot.lane.b32.xlu0 %v828, 126
        %v941 = vpop.permute.xlu0 %940
        %942 = vrot.lane.b32.xlu0 %v829, 126
        %v943 = vpop.permute.xlu0 %942
        %944 = vrot.lane.b32.xlu0 %v830, 126
        %v945 = vpop.permute.xlu0 %944
        %946 = vrot.lane.b32.xlu0 %v831, 126
        %v947 = vpop.permute.xlu0 %946
        %948 = vrot.lane.b32.xlu0 %v832, 126
        %v949 = vpop.permute.xlu0 %948
        %950 = vrot.lane.b32.xlu0 %v833, 126
        %v951 = vpop.permute.xlu0 %950
        %952 = vrot.lane.b32.xlu0 %v834, 126
        %v953 = vpop.permute.xlu0 %952
        %954 = vrot.lane.b32.xlu0 %v835, 126
        %v955 = vpop.permute.xlu0 %954
        %956 = vrot.lane.b32.xlu0 %v836, 126
        %v957 = vpop.permute.xlu0 %956
        %958 = vrot.lane.b32.xlu0 %v837, 126
        %v959 = vpop.permute.xlu0 %958
        %960 = vrot.lane.b32.xlu0 %v838, 126
        %v961 = vpop.permute.xlu0 %960
        %962 = vrot.lane.b32.xlu0 %v839, 126
        %v963 = vpop.permute.xlu0 %962
        %964 = vrot.lane.b32.xlu0 %v840, 126
        %v965 = vpop.permute.xlu0 %964
        %966 = vrot.lane.b32.xlu0 %v841, 126
        %v967 = vpop.permute.xlu0 %966
        %968 = vrot.lane.b32.xlu0 %v842, 126
        %v969 = vpop.permute.xlu0 %968
        %970 = vrot.lane.b32.xlu0 %v843, 126
        %v971 = vpop.permute.xlu0 %970
        %972 = vrot.lane.b32.xlu0 %v844, 126
        %v973 = vpop.permute.xlu0 %972
        %1006 = vst.msk [vmem:[%s251] sm:$0xff] %vm845, %v911
        %1007 = vst.msk [vmem:[%s251 + $0x8] sm:$0xff] %vm845, %v913
        %1008 = vst.msk [vmem:[%s251 + $0x10] sm:$0xff] %vm845, %v915
        %1009 = vst.msk [vmem:[%s251 + $0x18] sm:$0xff] %vm845, %v917
        %1010 = vst.msk [vmem:[%s251 + $0x20] sm:$0xff] %vm845, %v919
        %1011 = vst.msk [vmem:[%s251 + $0x28] sm:$0xff] %vm845, %v921
        %1012 = vst.msk [vmem:[%s251 + $0x30] sm:$0xff] %vm845, %v923
        %1013 = vst.msk [vmem:[%s251 + $0x38] sm:$0xff] %vm845, %v925
        %1014 = vst.msk [vmem:[%s251 + $0x40] sm:$0xff] %vm845, %v927
        %1015 = vst.msk [vmem:[%s251 + $0x48] sm:$0xff] %vm845, %v929
        %1016 = vst.msk [vmem:[%s251 + $0x50] sm:$0xff] %vm845, %v931
        %1017 = vst.msk [vmem:[%s251 + $0x58] sm:$0xff] %vm845, %v933
        %1018 = vst.msk [vmem:[%s251 + $0x60] sm:$0xff] %vm845, %v935
        %1019 = vst.msk [vmem:[%s251 + $0x68] sm:$0xff] %vm845, %v937
        %1020 = vst.msk [vmem:[%s251 + $0x70] sm:$0xff] %vm845, %v939
        %1021 = vst.msk [vmem:[%s251 + $0x78] sm:$0xff] %vm845, %v941
        %1022 = vst.msk [vmem:[%s251 + $0x80] sm:$0xff] %vm845, %v943
        %1023 = vst.msk [vmem:[%s251 + $0x88] sm:$0xff] %vm845, %v945
        %1024 = vst.msk [vmem:[%s251 + $0x90] sm:$0xff] %vm845, %v947
        %1025 = vst.msk [vmem:[%s251 + $0x98] sm:$0xff] %vm845, %v949
        %1026 = vst.msk [vmem:[%s251 + $0xa0] sm:$0xff] %vm845, %v951
        %1027 = vst.msk [vmem:[%s251 + $0xa8] sm:$0xff] %vm845, %v953
        %1028 = vst.msk [vmem:[%s251 + $0xb0] sm:$0xff] %vm845, %v955
        %1029 = vst.msk [vmem:[%s251 + $0xb8] sm:$0xff] %vm845, %v957
        %1030 = vst.msk [vmem:[%s251 + $0xc0] sm:$0xff] %vm845, %v959
        %1031 = vst.msk [vmem:[%s251 + $0xc8] sm:$0xff] %vm845, %v961
        %1032 = vst.msk [vmem:[%s251 + $0xd0] sm:$0xff] %vm845, %v963
        %1033 = vst.msk [vmem:[%s251 + $0xd8] sm:$0xff] %vm845, %v965
        %1034 = vst.msk [vmem:[%s251 + $0xe0] sm:$0xff] %vm845, %v967
        %1035 = vst.msk [vmem:[%s251 + $0xe8] sm:$0xff] %vm845, %v969
        %1036 = vst.msk [vmem:[%s251 + $0xf0] sm:$0xff] %vm845, %v971
        %1037 = vst.msk [vmem:[%s251 + $0xf8] sm:$0xff] %vm845, %v973
        %s1038 = sand.u32 %s102, 1
        %s1039 = scalar_lea.sflag [#allocation4], %s1038
        %s1040 = sand.u32 %s102, 1
        %s1041 = smul.addr %s1040, 256
        %s1042 = scalar_lea.vmem [#allocation8], %s1041
        %s1043 = sand.u32 %s128, 1
        %s1044 = scalar_lea.sflag [#allocation10], %s1043
        %s1045 = sand.u32 %s128, 1
        %s1046 = smul.addr %s1045, 256
        %s1047 = scalar_lea.vmem [#allocation9], %s1046
        // Predicated region
        $region45: #{c2f_forward.3} parent=31 // pred_check
          %p1048 = pneg %p112
        $region46: #{c2f_forward.3} parent=31 // pred_check_branch
          %1050 = sbr.rel (%p1048) target = $region48
        $region47: #{c2f_forward.3} parent=31 // pred_region
          %s1051 = smul.u32 32, %s26
          %s1053 = ssub.s32 4096, 4096
          %1054 = vsyncadd %s1039, %s1053
          %s1055 = smul.addr %s1051, 128
          %s1056 = scalar_lea.hbm %s3, %s1055
          %s1057 = sshll.u32 %s1042, 4
          %s1058 = int_to_ptr.vmem [resolvable:$true] %s1057
          %1063 = dma.vmem_to_hbm [thread:$0]  %s1058, 4096, %s1056, %s1039, 128, 128, 8
        $region48: #{c2f_forward.3} parent=31 // pred_fallthru
          _
        // Predicated region
        $region49: #{c2f_forward.3} parent=31 // pred_check
          %p1064 = pneg %p138
        $region50: #{c2f_forward.3} parent=31 // pred_check_branch
          %1066 = sbr.rel (%p1064) target = $region52
        $region51: #{c2f_forward.3} parent=31 // pred_region
          %s1067 = smul.u32 32, %s26
          %s1069 = ssub.s32 4096, 4096
          %1070 = vsyncadd %s1044, %s1069
          %s1071 = smul.addr %s1067, 128
          %s1072 = scalar_lea.hbm %s4, %s1071
          %s1073 = sshll.u32 %s1047, 4
          %s1074 = int_to_ptr.vmem [resolvable:$true] %s1073
          %1079 = dma.vmem_to_hbm [thread:$0]  %s1074, 4096, %s1072, %s1044, 128, 128, 8
        $region52: #{c2f_forward.3} parent=31 // pred_fallthru
          _
      $region32: #{c2f_forward.3} parent=5 // pred_fallthru
        _
      %p1080 = scmp.le.s32.totalorder 2, %s21
      // Predicated region
      $region53: #{c2f_forward.3} parent=5 // pred_check
        %p1081 = pneg %p1080
      $region54: #{c2f_forward.3} parent=5 // pred_check_branch
        %1083 = sbr.rel (%p1081) target = $region56
      $region55: #{c2f_forward.3} parent=5 // pred_region
        %s1084 = ssub.s32 %s21, 2
        // Predicated region
        $region57: #{c2f_forward.3} parent=55 // pred_check
          %p1085 = pneg %p118
        $region58: #{c2f_forward.3} parent=55 // pred_check_branch
          %1087 = sbr.rel (%p1085) target = $region60
        $region59: #{c2f_forward.3} parent=55 // pred_region
          %s1088 = sand.u32 %s103, 1
          %s1089 = scalar_lea.sflag [#allocation4], %s1088
          %s1090 = sand.u32 %s103, 1
          %s1091 = smul.addr %s1090, 256
          %s1092 = scalar_lea.vmem [#allocation8], %s1091
          %1093 = dma.done %s1089, 4096
        $region60: #{c2f_forward.3} parent=55 // pred_fallthru
          _
        // Predicated region
        $region61: #{c2f_forward.3} parent=55 // pred_check
          %p1094 = pneg %p144
        $region62: #{c2f_forward.3} parent=55 // pred_check_branch
          %1096 = sbr.rel (%p1094) target = $region64
        $region63: #{c2f_forward.3} parent=55 // pred_region
          %s1097 = sand.u32 %s129, 1
          %s1098 = scalar_lea.sflag [#allocation10], %s1097
          %s1099 = sand.u32 %s129, 1
          %s1100 = smul.addr %s1099, 256
          %s1101 = scalar_lea.vmem [#allocation9], %s1100
          %1102 = dma.done %s1098, 4096
        $region64: #{c2f_forward.3} parent=55 // pred_fallthru
          _
      $region56: #{c2f_forward.3} parent=5 // pred_fallthru
        _
    $region6: #{c2f_forward.3} parent=1 // loop_footer
      %s25 = sadd.s32 1, %s21
    $region7: #{c2f_forward.3} parent=1 // loop_footer_branch
      %20 = sbr.rel target = $region3
    $region8: #{c2f_forward.3} parent=1 // loop_exit
      _
    %1103 = vsyncpa [#allocation3], 1
    %s1104 = scalar_lea.sflag [#allocation3], 1
    %1105 = vsyncpa %s1104, 1
    %1106 = vsyncpa [#allocation6], 1
    %1107 = vsyncpa [#allocation4], 1
    %s1108 = scalar_lea.sflag [#allocation4], 1
    %1109 = vsyncpa %s1108, 1
    %1110 = vsyncpa [#allocation10], 1
    %s1111 = scalar_lea.sflag [#allocation10], 1
    %1112 = vsyncpa %s1111, 1

// kernel: c2f_forward.5
$region0: #{c2f_forward.5}
  #allocation0 [shape = 'u32[]', space=smem, size = 0x4, offset = 0x4, fixed_abs, tag = 'smem constant byte address 0x4 - core index']
  #allocation1 [shape = 'u32[144,128]{1,0:T(1,128)}', space=vmem, size = 0x12000, scoped, tag = 'internal scratch']
  #allocation2 [shape = 'f32[256,6]{1,0:T(8,128)}', space=vmem, size = 0x20000, scoped, tag = 'scratch operand']
  %s0 = inlined_call_operand.hbm [shape: f32[512,2], index: 0, kind: input, shape index: {}]
  %s1 = inlined_call_operand.hbm [shape: f32[512,2], index: 1, kind: input, shape index: {}]
  %s2 = inlined_call_operand.hbm [shape: f32[512,2], index: 2, kind: input, shape index: {}]
  %s3 = inlined_call_operand.hbm [shape: f32[6,4], index: 3, kind: input, shape index: {}]
  %s4 = inlined_call_operand.hbm [shape: f32[1,4], index: 4, kind: input, shape index: {}]
  %s5 = inlined_call_operand.hbm [shape: f32[512,4], index: 5, kind: output, shape index: {}]
  %s6 = sld [smem:[#allocation0]]
  $region73: #{c2f_forward.5} parent=0
    _
  %s8 = ssub.s32 1, %s6
  %s9 = scalar_select 0, %s8, %s6
  $region1: #{c2f_forward.5} parent=0
    #allocation3 [shape = 'u8[262144]{0}', space=vmem, size = 0x40000, scoped, tag = 'input window, operand 0']
    #allocation4 [shape = 's32[2]{0}', space=sflag, size = 0x8, scoped, tag = 'scoped memory for c2f_forward.5']
    #allocation5 [shape = 's32[2]{0}', space=sflag, size = 0x8, scoped, tag = 'scoped memory for c2f_forward.5']
    #allocation6 [shape = 'u8[262144]{0}', space=vmem, size = 0x40000, scoped, tag = 'input window, operand 1']
    #allocation7 [shape = 's32[2]{0}', space=sflag, size = 0x8, scoped, tag = 'scoped memory for c2f_forward.5']
    #allocation8 [shape = 'u8[262144]{0}', space=vmem, size = 0x40000, scoped, tag = 'input window, operand 2']
    #allocation9 [shape = 'u8[4096]{0}', space=vmem, size = 0x1000, scoped, tag = 'input window, operand 3, single buffered']
    #allocation10 [shape = 's32[1]{0}', space=sflag, size = 0x4, scoped, tag = 'scoped memory for c2f_forward.5']
    #allocation11 [shape = 'u8[512]{0}', space=vmem, size = 0x400, scoped, tag = 'input window, operand 4, single buffered']
    #allocation12 [shape = 'u8[262144]{0}', space=vmem, size = 0x40000, scoped, tag = 'output window, operand 0']
    %10 = vsyncpa [#allocation4], 0
    %s11 = scalar_lea.sflag [#allocation4], 1
    %12 = vsyncpa %s11, 0
    %13 = vsyncpa [#allocation7], 0
    %s14 = scalar_lea.sflag [#allocation7], 1
    %15 = vsyncpa %s14, 0
    %16 = vsyncpa [#allocation10], 0
    %17 = vsyncpa [#allocation5], 0
    %s18 = scalar_lea.sflag [#allocation5], 1
    %19 = vsyncpa %s18, 0
    loop: start=0, step=1, limit=4
    $region2: #{c2f_forward.5} parent=1 // loop_pre_header
      _
    $region3: #{c2f_forward.5} parent=1 // loop_header
      %s21 = sphi 0, %s25
      %p22 = scmp.ge.s32.totalorder %s21, 4
      %s31 = sphi 0, %s33
      %s34 = sphi 0, %s31
      %s35 = sphi 0, %s34
      %s51 = sphi 0, %s35
      %s57 = sphi 0, %s59
      %s60 = sphi 0, %s57
      %s61 = sphi 0, %s60
      %s77 = sphi 0, %s61
      %s83 = sphi 0, %s85
      %s86 = sphi 0, %s83
      %s87 = sphi 0, %s86
      %s103 = sphi 0, %s87
      %s107 = sphi 0, %s107
      %s109 = sphi 0, %s107
      %s110 = sphi 0, %s109
      %s124 = sphi 0, %s110
      %s128 = sphi 0, %s128
      %s130 = sphi 0, %s128
      %s131 = sphi 0, %s130
      %s145 = sphi 0, %s131
      %s151 = sphi 0, %s153
      %s154 = sphi 0, %s151
      %s155 = sphi 0, %s154
      %s171 = sphi 0, %s155
    $region4: #{c2f_forward.5} parent=1 // loop_header_branch
      %24 = sbr.rel (%p22) target = $region8
    $region5: #{c2f_forward.5} parent=1 // loop_body
      %s26 = ssub.s32 %s21, 1
      %s27 = ssub.s32 %s21, 2
      %s28 = sadd.s32 %s21, 1
      %s29 = ssub.s32 %s21, %s28
      %p30 = scmp.eq.s32.totalorder %s29, 0
      %s32 = sadd.s32 %s31, 1
      %s33 = scalar_select %p30, %s31, %s32
      %p36 = pneg %p30
      %p37 = scmp.eq.s32.totalorder %s21, 1
      %p38 = por %p36, %p37
      %p39 = scmp.ne.s32.totalorder %s31, %s34
      %p40 = scmp.eq.s32.totalorder %s21, 0
      %p41 = por %p39, %p40
      %p42 = scmp.ne.s32.totalorder %s31, %s34
      %p43 = scmp.eq.s32.totalorder %s26, 1
      %p44 = por %p42, %p43
      %p45 = scmp.ne.s32.totalorder %s34, %s35
      %p46 = scmp.eq.s32.totalorder %s26, 0
      %p47 = por %p45, %p46
      %p48 = scmp.ne.s32.totalorder %s34, %s35
      %p49 = scmp.eq.s32.totalorder %s27, 1
      %p50 = por %p48, %p49
      %p52 = scmp.ne.s32.totalorder %s35, %s51
      %p53 = scmp.eq.s32.totalorder %s27, 0
      %p54 = por %p52, %p53
      %s55 = ssub.s32 %s21, %s28
      %p56 = scmp.eq.s32.totalorder %s55, 0
      %s58 = sadd.s32 %s57, 1
      %s59 = scalar_select %p56, %s57, %s58
      %p62 = pneg %p56
      %p63 = scmp.eq.s32.totalorder %s21, 1
      %p64 = por %p62, %p63
      %p65 = scmp.ne.s32.totalorder %s57, %s60
      %p66 = scmp.eq.s32.totalorder %s21, 0
      %p67 = por %p65, %p66
      %p68 = scmp.ne.s32.totalorder %s57, %s60
      %p69 = scmp.eq.s32.totalorder %s26, 1
      %p70 = por %p68, %p69
      %p71 = scmp.ne.s32.totalorder %s60, %s61
      %p72 = scmp.eq.s32.totalorder %s26, 0
      %p73 = por %p71, %p72
      %p74 = scmp.ne.s32.totalorder %s60, %s61
      %p75 = scmp.eq.s32.totalorder %s27, 1
      %p76 = por %p74, %p75
      %p78 = scmp.ne.s32.totalorder %s61, %s77
      %p79 = scmp.eq.s32.totalorder %s27, 0
      %p80 = por %p78, %p79
      %s81 = ssub.s32 %s21, %s28
      %p82 = scmp.eq.s32.totalorder %s81, 0
      %s84 = sadd.s32 %s83, 1
      %s85 = scalar_select %p82, %s83, %s84
      %p88 = pneg %p82
      %p89 = scmp.eq.s32.totalorder %s21, 1
      %p90 = por %p88, %p89
      %p91 = scmp.ne.s32.totalorder %s83, %s86
      %p92 = scmp.eq.s32.totalorder %s21, 0
      %p93 = por %p91, %p92
      %p94 = scmp.ne.s32.totalorder %s83, %s86
      %p95 = scmp.eq.s32.totalorder %s26, 1
      %p96 = por %p94, %p95
      %p97 = scmp.ne.s32.totalorder %s86, %s87
      %p98 = scmp.eq.s32.totalorder %s26, 0
      %p99 = por %p97, %p98
      %p100 = scmp.ne.s32.totalorder %s86, %s87
      %p101 = scmp.eq.s32.totalorder %s27, 1
      %p102 = por %p100, %p101
      %p104 = scmp.ne.s32.totalorder %s87, %s103
      %p105 = scmp.eq.s32.totalorder %s27, 0
      %p106 = por %p104, %p105
      %s108 = sadd.s32 %s107, 1
      %p111 = scmp.eq.s32.totalorder %s21, 1
      %p112 = scmp.ne.s32.totalorder %s107, %s109
      %p113 = scmp.eq.s32.totalorder %s21, 0
      %p114 = por %p112, %p113
      %p115 = scmp.ne.s32.totalorder %s107, %s109
      %p116 = scmp.eq.s32.totalorder %s26, 1
      %p117 = por %p115, %p116
      %p118 = scmp.ne.s32.totalorder %s109, %s110
      %p119 = scmp.eq.s32.totalorder %s26, 0
      %p120 = por %p118, %p119
      %p121 = scmp.ne.s32.totalorder %s109, %s110
      %p122 = scmp.eq.s32.totalorder %s27, 1
      %p123 = por %p121, %p122
      %p125 = scmp.ne.s32.totalorder %s110, %s124
      %p126 = scmp.eq.s32.totalorder %s27, 0
      %p127 = por %p125, %p126
      %s129 = sadd.s32 %s128, 1
      %p132 = scmp.eq.s32.totalorder %s21, 1
      %p133 = scmp.ne.s32.totalorder %s128, %s130
      %p134 = scmp.eq.s32.totalorder %s21, 0
      %p135 = por %p133, %p134
      %p136 = scmp.ne.s32.totalorder %s128, %s130
      %p137 = scmp.eq.s32.totalorder %s26, 1
      %p138 = por %p136, %p137
      %p139 = scmp.ne.s32.totalorder %s130, %s131
      %p140 = scmp.eq.s32.totalorder %s26, 0
      %p141 = por %p139, %p140
      %p142 = scmp.ne.s32.totalorder %s130, %s131
      %p143 = scmp.eq.s32.totalorder %s27, 1
      %p144 = por %p142, %p143
      %p146 = scmp.ne.s32.totalorder %s131, %s145
      %p147 = scmp.eq.s32.totalorder %s27, 0
      %p148 = por %p146, %p147
      %s149 = ssub.s32 %s21, %s28
      %p150 = scmp.eq.s32.totalorder %s149, 0
      %s152 = sadd.s32 %s151, 1
      %s153 = scalar_select %p150, %s151, %s152
      %p156 = pneg %p150
      %p157 = scmp.eq.s32.totalorder %s21, 1
      %p158 = por %p156, %p157
      %p159 = scmp.ne.s32.totalorder %s151, %s154
      %p160 = scmp.eq.s32.totalorder %s21, 0
      %p161 = por %p159, %p160
      %p162 = scmp.ne.s32.totalorder %s151, %s154
      %p163 = scmp.eq.s32.totalorder %s26, 1
      %p164 = por %p162, %p163
      %p165 = scmp.ne.s32.totalorder %s154, %s155
      %p166 = scmp.eq.s32.totalorder %s26, 0
      %p167 = por %p165, %p166
      %p168 = scmp.ne.s32.totalorder %s154, %s155
      %p169 = scmp.eq.s32.totalorder %s27, 1
      %p170 = por %p168, %p169
      %p172 = scmp.ne.s32.totalorder %s155, %s171
      %p173 = scmp.eq.s32.totalorder %s27, 0
      %p174 = por %p172, %p173
      %p175 = scmp.le.s32.totalorder 1, %s21
      %p176 = scmp.lt.s32.totalorder %s21, 3
      %p177 = pnand %p175, %p176
      %p178 = pneg %p177
      // Predicated region
      $region9: #{c2f_forward.5} parent=5 // pred_check
        _
      $region10: #{c2f_forward.5} parent=5 // pred_check_branch
        %180 = sbr.rel (%p177) target = $region12
      $region11: #{c2f_forward.5} parent=5 // pred_region
        %s181 = ssub.s32 %s21, 1
        // Predicated region
        $region13: #{c2f_forward.5} parent=11 // pred_check
          %p182 = pneg %p120
        $region14: #{c2f_forward.5} parent=11 // pred_check_branch
          %184 = sbr.rel (%p182) target = $region16
        $region15: #{c2f_forward.5} parent=11 // pred_region
          %s186 = ssub.s32 128, 128
          %187 = vsyncadd [#allocation10], %s186
          %s189 = sshll.u32 [#allocation9], 4
          %s190 = int_to_ptr.vmem [resolvable:$true] %s189
          %192 = dma.hbm_to_vmem [thread:$0]  %s3, 128, %s190, [#allocation10]
        $region16: #{c2f_forward.5} parent=11 // pred_fallthru
          _
        // Predicated region
        $region17: #{c2f_forward.5} parent=11 // pred_check
          %p193 = pneg %p141
        $region18: #{c2f_forward.5} parent=11 // pred_check_branch
          %195 = sbr.rel (%p193) target = $region20
        $region19: #{c2f_forward.5} parent=11 // pred_region
          %s197 = ssub.s32 16, 16
          %198 = vsyncadd [#allocation10], %s197
          %s200 = sshll.u32 [#allocation11], 4
          %s201 = int_to_ptr.vmem [resolvable:$true] %s200
          %203 = dma.hbm_to_vmem [thread:$0]  %s4, 16, %s201, [#allocation10]
        $region20: #{c2f_forward.5} parent=11 // pred_fallthru
          _
      $region12: #{c2f_forward.5} parent=5 // pred_fallthru
        _
      %p204 = scmp.lt.s32.totalorder %s21, 2
      // Predicated region
      $region21: #{c2f_forward.5} parent=5 // pred_check
        %p205 = pneg %p204
      $region22: #{c2f_forward.5} parent=5 // pred_check_branch
        %207 = sbr.rel (%p205) target = $region24
      $region23: #{c2f_forward.5} parent=5 // pred_region
        // Predicated region
        $region25: #{c2f_forward.5} parent=23 // pred_check
          %p208 = pneg %p41
        $region26: #{c2f_forward.5} parent=23 // pred_check_branch
          %210 = sbr.rel (%p208) target = $region28
        $region27: #{c2f_forward.5} parent=23 // pred_region
          %s211 = sand.u32 %s31, 1
          %s212 = scalar_lea.sflag [#allocation4], %s211
          %s213 = sand.u32 %s31, 1
          %s214 = smul.addr %s213, 256
          %s215 = scalar_lea.vmem [#allocation3], %s214
          %s216 = smul.u32 32, %s21
          %s218 = ssub.s32 4096, 4096
          %219 = vsyncadd %s212, %s218
          %s220 = smul.addr %s216, 128
          %s221 = scalar_lea.hbm %s0, %s220
          %s222 = sshll.u32 %s215, 4
          %s223 = int_to_ptr.vmem [resolvable:$true] %s222
          %228 = dma.hbm_to_vmem [thread:$0]  %s221, 4096, %s223, %s212, 128, 128, 8
        $region28: #{c2f_forward.5} parent=23 // pred_fallthru
          _
        // Predicated region
        $region29: #{c2f_forward.5} parent=23 // pred_check
          %p229 = pneg %p67
        $region30: #{c2f_forward.5} parent=23 // pred_check_branch
          %231 = sbr.rel (%p229) target = $region32
        $region31: #{c2f_forward.5} parent=23 // pred_region
          %s232 = sand.u32 %s21, 1
          %s233 = scalar_lea.sflag [#allocation7], %s232
          %s234 = sand.u32 %s57, 1
          %s235 = smul.addr %s234, 256
          %s236 = scalar_lea.vmem [#allocation6], %s235
          %s237 = smul.u32 32, %s21
          %s239 = ssub.s32 4096, 4096
          %240 = vsyncadd %s233, %s239
          %s241 = smul.addr %s237, 128
          %s242 = scalar_lea.hbm %s1, %s241
          %s243 = sshll.u32 %s236, 4
          %s244 = int_to_ptr.vmem [resolvable:$true] %s243
          %249 = dma.hbm_to_vmem [thread:$0]  %s242, 4096, %s244, %s233, 128, 128, 8
        $region32: #{c2f_forward.5} parent=23 // pred_fallthru
          _
        // Predicated region
        $region33: #{c2f_forward.5} parent=23 // pred_check
          %p250 = pneg %p93
        $region34: #{c2f_forward.5} parent=23 // pred_check_branch
          %252 = sbr.rel (%p250) target = $region36
        $region35: #{c2f_forward.5} parent=23 // pred_region
          %s253 = sand.u32 %s21, 1
          %s254 = scalar_lea.sflag [#allocation7], %s253
          %s255 = sand.u32 %s83, 1
          %s256 = smul.addr %s255, 256
          %s257 = scalar_lea.vmem [#allocation8], %s256
          %s258 = smul.u32 32, %s21
          %s260 = ssub.s32 4096, 4096
          %261 = vsyncadd %s254, %s260
          %s262 = smul.addr %s258, 128
          %s263 = scalar_lea.hbm %s2, %s262
          %s264 = sshll.u32 %s257, 4
          %s265 = int_to_ptr.vmem [resolvable:$true] %s264
          %270 = dma.hbm_to_vmem [thread:$0]  %s263, 4096, %s265, %s254, 128, 128, 8
        $region36: #{c2f_forward.5} parent=23 // pred_fallthru
          _
      $region24: #{c2f_forward.5} parent=5 // pred_fallthru
        _
      %p271 = scmp.le.s32.totalorder 1, %s21
      %p272 = scmp.lt.s32.totalorder %s21, 3
      %p273 = pnand %p271, %p272
      %p274 = pneg %p273
      // Predicated region
      $region37: #{c2f_forward.5} parent=5 // pred_check
        _
      $region38: #{c2f_forward.5} parent=5 // pred_check_branch
        %276 = sbr.rel (%p273) target = $region40
      $region39: #{c2f_forward.5} parent=5 // pred_region
        %s277 = ssub.s32 %s21, 1
        %s278 = sand.u32 %s34, 1
        %s279 = scalar_lea.sflag [#allocation4], %s278
        %s280 = sand.u32 %s34, 1
        %s281 = smul.addr %s280, 256
        %s282 = scalar_lea.vmem [#allocation3], %s281
        // Predicated region
        $region41: #{c2f_forward.5} parent=39 // pred_check
          %p283 = pneg %p47
        $region42: #{c2f_forward.5} parent=39 // pred_check_branch
          %285 = sbr.rel (%p283) target = $region44
        $region43: #{c2f_forward.5} parent=39 // pred_region
          %286 = dma.done %s279, 4096
        $region44: #{c2f_forward.5} parent=39 // pred_fallthru
          _
        %s287 = sand.u32 %s26, 1
        %s288 = scalar_lea.sflag [#allocation7], %s287
        %s289 = sand.u32 %s60, 1
        %s290 = smul.addr %s289, 256
        %s291 = scalar_lea.vmem [#allocation6], %s290
        // Predicated region
        $region45: #{c2f_forward.5} parent=39 // pred_check
          %p292 = pneg %p73
        $region46: #{c2f_forward.5} parent=39 // pred_check_branch
          %294 = sbr.rel (%p292) target = $region48
        $region47: #{c2f_forward.5} parent=39 // pred_region
          %295 = dma.done %s288, 4096
        $region48: #{c2f_forward.5} parent=39 // pred_fallthru
          _
        %s296 = sand.u32 %s26, 1
        %s297 = scalar_lea.sflag [#allocation7], %s296
        %s298 = sand.u32 %s86, 1
        %s299 = smul.addr %s298, 256
        %s300 = scalar_lea.vmem [#allocation8], %s299
        // Predicated region
        $region49: #{c2f_forward.5} parent=39 // pred_check
          %p301 = pneg %p99
        $region50: #{c2f_forward.5} parent=39 // pred_check_branch
          %303 = sbr.rel (%p301) target = $region52
        $region51: #{c2f_forward.5} parent=39 // pred_region
          %304 = dma.done %s297, 4096
        $region52: #{c2f_forward.5} parent=39 // pred_fallthru
          _
        // Predicated region
        $region53: #{c2f_forward.5} parent=39 // pred_check
          %p305 = pneg %p120
        $region54: #{c2f_forward.5} parent=39 // pred_check_branch
          %307 = sbr.rel (%p305) target = $region56
        $region55: #{c2f_forward.5} parent=39 // pred_region
          %308 = dma.done [#allocation10], 128
        $region56: #{c2f_forward.5} parent=39 // pred_fallthru
          _
        // Predicated region
        $region57: #{c2f_forward.5} parent=39 // pred_check
          %p309 = pneg %p141
        $region58: #{c2f_forward.5} parent=39 // pred_check_branch
          %311 = sbr.rel (%p309) target = $region60
        $region59: #{c2f_forward.5} parent=39 // pred_region
          %312 = dma.done [#allocation10], 16
        $region60: #{c2f_forward.5} parent=39 // pred_fallthru
          _
        %s313 = sand.u32 %s34, 1
        %s314 = scalar_lea.sflag [#allocation4], %s313
        %s315 = sand.u32 %s34, 1
        %s316 = smul.addr %s315, 256
        %s317 = scalar_lea.vmem [#allocation3], %s316
        %p318 = pneg %p47
        %p319 = pneg %p44
        %s320 = sand.u32 %s26, 1
        %s321 = scalar_lea.sflag [#allocation7], %s320
        %s322 = sand.u32 %s60, 1
        %s323 = smul.addr %s322, 256
        %s324 = scalar_lea.vmem [#allocation6], %s323
        %p325 = pneg %p73
        %p326 = pneg %p70
        %s327 = sand.u32 %s26, 1
        %s328 = scalar_lea.sflag [#allocation7], %s327
        %s329 = sand.u32 %s86, 1
        %s330 = smul.addr %s329, 256
        %s331 = scalar_lea.vmem [#allocation8], %s330
        %p332 = pneg %p99
        %p333 = pneg %p96
        %p334 = pneg %p120
        %p335 = pneg %p117
        %p336 = pneg %p141
        %p337 = pneg %p138
        %p338 = pneg %p167
        %p339 = pneg %p164
        %s340 = sand.u32 %s154, 1
        %s341 = scalar_lea.sflag [#allocation5], %s340
        %s342 = sand.u32 %s154, 1
        %s343 = smul.addr %s342, 256
        %s344 = scalar_lea.vmem [#allocation12], %s343
        %s345 = smul.u32 32, %s26
        %s346 = smul.u32 32, %s26
        %s347 = smul.u32 32, %s26
        %s348 = smul.u32 32, %s26
        %v349 = vld [vmem:[%s282] sm:$0xff]
        %v350 = vld [vmem:[%s282 + $0x8] sm:$0xff]
        %v351 = vld [vmem:[%s282 + $0x10] sm:$0xff]
        %v352 = vld [vmem:[%s282 + $0x18] sm:$0xff]
        %v353 = vld [vmem:[%s282 + $0x20] sm:$0xff]
        %v354 = vld [vmem:[%s282 + $0x28] sm:$0xff]
        %v355 = vld [vmem:[%s282 + $0x30] sm:$0xff]
        %v356 = vld [vmem:[%s282 + $0x38] sm:$0xff]
        %v357 = vld [vmem:[%s282 + $0x40] sm:$0xff]
        %v358 = vld [vmem:[%s282 + $0x48] sm:$0xff]
        %v359 = vld [vmem:[%s282 + $0x50] sm:$0xff]
        %v360 = vld [vmem:[%s282 + $0x58] sm:$0xff]
        %v361 = vld [vmem:[%s282 + $0x60] sm:$0xff]
        %v362 = vld [vmem:[%s282 + $0x68] sm:$0xff]
        %v363 = vld [vmem:[%s282 + $0x70] sm:$0xff]
        %v364 = vld [vmem:[%s282 + $0x78] sm:$0xff]
        %v365 = vld [vmem:[%s282 + $0x80] sm:$0xff]
        %v366 = vld [vmem:[%s282 + $0x88] sm:$0xff]
        %v367 = vld [vmem:[%s282 + $0x90] sm:$0xff]
        %v368 = vld [vmem:[%s282 + $0x98] sm:$0xff]
        %v369 = vld [vmem:[%s282 + $0xa0] sm:$0xff]
        %v370 = vld [vmem:[%s282 + $0xa8] sm:$0xff]
        %v371 = vld [vmem:[%s282 + $0xb0] sm:$0xff]
        %v372 = vld [vmem:[%s282 + $0xb8] sm:$0xff]
        %v373 = vld [vmem:[%s282 + $0xc0] sm:$0xff]
        %v374 = vld [vmem:[%s282 + $0xc8] sm:$0xff]
        %v375 = vld [vmem:[%s282 + $0xd0] sm:$0xff]
        %v376 = vld [vmem:[%s282 + $0xd8] sm:$0xff]
        %v377 = vld [vmem:[%s282 + $0xe0] sm:$0xff]
        %v378 = vld [vmem:[%s282 + $0xe8] sm:$0xff]
        %v379 = vld [vmem:[%s282 + $0xf0] sm:$0xff]
        %v380 = vld [vmem:[%s282 + $0xf8] sm:$0xff]
        %vm381 = vcmask 15360
        %382 = vst.msk [vmem:[#allocation2] sm:$0xff] %vm381, %v349
        %383 = vst.msk [vmem:[#allocation2 + $0x8] sm:$0xff] %vm381, %v350
        %384 = vst.msk [vmem:[#allocation2 + $0x10] sm:$0xff] %vm381, %v351
        %385 = vst.msk [vmem:[#allocation2 + $0x18] sm:$0xff] %vm381, %v352
        %386 = vst.msk [vmem:[#allocation2 + $0x20] sm:$0xff] %vm381, %v353
        %387 = vst.msk [vmem:[#allocation2 + $0x28] sm:$0xff] %vm381, %v354
        %388 = vst.msk [vmem:[#allocation2 + $0x30] sm:$0xff] %vm381, %v355
        %389 = vst.msk [vmem:[#allocation2 + $0x38] sm:$0xff] %vm381, %v356
        %390 = vst.msk [vmem:[#allocation2 + $0x40] sm:$0xff] %vm381, %v357
        %391 = vst.msk [vmem:[#allocation2 + $0x48] sm:$0xff] %vm381, %v358
        %392 = vst.msk [vmem:[#allocation2 + $0x50] sm:$0xff] %vm381, %v359
        %393 = vst.msk [vmem:[#allocation2 + $0x58] sm:$0xff] %vm381, %v360
        %394 = vst.msk [vmem:[#allocation2 + $0x60] sm:$0xff] %vm381, %v361
        %395 = vst.msk [vmem:[#allocation2 + $0x68] sm:$0xff] %vm381, %v362
        %396 = vst.msk [vmem:[#allocation2 + $0x70] sm:$0xff] %vm381, %v363
        %397 = vst.msk [vmem:[#allocation2 + $0x78] sm:$0xff] %vm381, %v364
        %398 = vst.msk [vmem:[#allocation2 + $0x80] sm:$0xff] %vm381, %v365
        %399 = vst.msk [vmem:[#allocation2 + $0x88] sm:$0xff] %vm381, %v366
        %400 = vst.msk [vmem:[#allocation2 + $0x90] sm:$0xff] %vm381, %v367
        %401 = vst.msk [vmem:[#allocation2 + $0x98] sm:$0xff] %vm381, %v368
        %402 = vst.msk [vmem:[#allocation2 + $0xa0] sm:$0xff] %vm381, %v369
        %403 = vst.msk [vmem:[#allocation2 + $0xa8] sm:$0xff] %vm381, %v370
        %404 = vst.msk [vmem:[#allocation2 + $0xb0] sm:$0xff] %vm381, %v371
        %405 = vst.msk [vmem:[#allocation2 + $0xb8] sm:$0xff] %vm381, %v372
        %406 = vst.msk [vmem:[#allocation2 + $0xc0] sm:$0xff] %vm381, %v373
        %407 = vst.msk [vmem:[#allocation2 + $0xc8] sm:$0xff] %vm381, %v374
        %408 = vst.msk [vmem:[#allocation2 + $0xd0] sm:$0xff] %vm381, %v375
        %409 = vst.msk [vmem:[#allocation2 + $0xd8] sm:$0xff] %vm381, %v376
        %410 = vst.msk [vmem:[#allocation2 + $0xe0] sm:$0xff] %vm381, %v377
        %411 = vst.msk [vmem:[#allocation2 + $0xe8] sm:$0xff] %vm381, %v378
        %412 = vst.msk [vmem:[#allocation2 + $0xf0] sm:$0xff] %vm381, %v379
        %413 = vst.msk [vmem:[#allocation2 + $0xf8] sm:$0xff] %vm381, %v380
        %v414 = vld [vmem:[%s291] sm:$0xff]
        %v415 = vld [vmem:[%s291 + $0x8] sm:$0xff]
        %v416 = vld [vmem:[%s291 + $0x10] sm:$0xff]
        %v417 = vld [vmem:[%s291 + $0x18] sm:$0xff]
        %v418 = vld [vmem:[%s291 + $0x20] sm:$0xff]
        %v419 = vld [vmem:[%s291 + $0x28] sm:$0xff]
        %v420 = vld [vmem:[%s291 + $0x30] sm:$0xff]
        %v421 = vld [vmem:[%s291 + $0x38] sm:$0xff]
        %v422 = vld [vmem:[%s291 + $0x40] sm:$0xff]
        %v423 = vld [vmem:[%s291 + $0x48] sm:$0xff]
        %v424 = vld [vmem:[%s291 + $0x50] sm:$0xff]
        %v425 = vld [vmem:[%s291 + $0x58] sm:$0xff]
        %v426 = vld [vmem:[%s291 + $0x60] sm:$0xff]
        %v427 = vld [vmem:[%s291 + $0x68] sm:$0xff]
        %v428 = vld [vmem:[%s291 + $0x70] sm:$0xff]
        %v429 = vld [vmem:[%s291 + $0x78] sm:$0xff]
        %v430 = vld [vmem:[%s291 + $0x80] sm:$0xff]
        %v431 = vld [vmem:[%s291 + $0x88] sm:$0xff]
        %v432 = vld [vmem:[%s291 + $0x90] sm:$0xff]
        %v433 = vld [vmem:[%s291 + $0x98] sm:$0xff]
        %v434 = vld [vmem:[%s291 + $0xa0] sm:$0xff]
        %v435 = vld [vmem:[%s291 + $0xa8] sm:$0xff]
        %v436 = vld [vmem:[%s291 + $0xb0] sm:$0xff]
        %v437 = vld [vmem:[%s291 + $0xb8] sm:$0xff]
        %v438 = vld [vmem:[%s291 + $0xc0] sm:$0xff]
        %v439 = vld [vmem:[%s291 + $0xc8] sm:$0xff]
        %v440 = vld [vmem:[%s291 + $0xd0] sm:$0xff]
        %v441 = vld [vmem:[%s291 + $0xd8] sm:$0xff]
        %v442 = vld [vmem:[%s291 + $0xe0] sm:$0xff]
        %v443 = vld [vmem:[%s291 + $0xe8] sm:$0xff]
        %v444 = vld [vmem:[%s291 + $0xf0] sm:$0xff]
        %v445 = vld [vmem:[%s291 + $0xf8] sm:$0xff]
        %478 = vrot.lane.b32.xlu0 %v414, 2
        %v479 = vpop.permute.xlu0 %478
        %480 = vrot.lane.b32.xlu0 %v415, 2
        %v481 = vpop.permute.xlu0 %480
        %482 = vrot.lane.b32.xlu0 %v416, 2
        %v483 = vpop.permute.xlu0 %482
        %484 = vrot.lane.b32.xlu0 %v417, 2
        %v485 = vpop.permute.xlu0 %484
        %486 = vrot.lane.b32.xlu0 %v418, 2
        %v487 = vpop.permute.xlu0 %486
        %488 = vrot.lane.b32.xlu0 %v419, 2
        %v489 = vpop.permute.xlu0 %488
        %490 = vrot.lane.b32.xlu0 %v420, 2
        %v491 = vpop.permute.xlu0 %490
        %492 = vrot.lane.b32.xlu0 %v421, 2
        %v493 = vpop.permute.xlu0 %492
        %494 = vrot.lane.b32.xlu0 %v422, 2
        %v495 = vpop.permute.xlu0 %494
        %496 = vrot.lane.b32.xlu0 %v423, 2
        %v497 = vpop.permute.xlu0 %496
        %498 = vrot.lane.b32.xlu0 %v424, 2
        %v499 = vpop.permute.xlu0 %498
        %500 = vrot.lane.b32.xlu0 %v425, 2
        %v501 = vpop.permute.xlu0 %500
        %502 = vrot.lane.b32.xlu0 %v426, 2
        %v503 = vpop.permute.xlu0 %502
        %504 = vrot.lane.b32.xlu0 %v427, 2
        %v505 = vpop.permute.xlu0 %504
        %506 = vrot.lane.b32.xlu0 %v428, 2
        %v507 = vpop.permute.xlu0 %506
        %508 = vrot.lane.b32.xlu0 %v429, 2
        %v509 = vpop.permute.xlu0 %508
        %510 = vrot.lane.b32.xlu0 %v430, 2
        %v511 = vpop.permute.xlu0 %510
        %512 = vrot.lane.b32.xlu0 %v431, 2
        %v513 = vpop.permute.xlu0 %512
        %514 = vrot.lane.b32.xlu0 %v432, 2
        %v515 = vpop.permute.xlu0 %514
        %516 = vrot.lane.b32.xlu0 %v433, 2
        %v517 = vpop.permute.xlu0 %516
        %518 = vrot.lane.b32.xlu0 %v434, 2
        %v519 = vpop.permute.xlu0 %518
        %520 = vrot.lane.b32.xlu0 %v435, 2
        %v521 = vpop.permute.xlu0 %520
        %522 = vrot.lane.b32.xlu0 %v436, 2
        %v523 = vpop.permute.xlu0 %522
        %524 = vrot.lane.b32.xlu0 %v437, 2
        %v525 = vpop.permute.xlu0 %524
        %526 = vrot.lane.b32.xlu0 %v438, 2
        %v527 = vpop.permute.xlu0 %526
        %528 = vrot.lane.b32.xlu0 %v439, 2
        %v529 = vpop.permute.xlu0 %528
        %530 = vrot.lane.b32.xlu0 %v440, 2
        %v531 = vpop.permute.xlu0 %530
        %532 = vrot.lane.b32.xlu0 %v441, 2
        %v533 = vpop.permute.xlu0 %532
        %534 = vrot.lane.b32.xlu0 %v442, 2
        %v535 = vpop.permute.xlu0 %534
        %536 = vrot.lane.b32.xlu0 %v443, 2
        %v537 = vpop.permute.xlu0 %536
        %538 = vrot.lane.b32.xlu0 %v444, 2
        %v539 = vpop.permute.xlu0 %538
        %540 = vrot.lane.b32.xlu0 %v445, 2
        %v541 = vpop.permute.xlu0 %540
        %vm574 = vcmask 31760
        %575 = vst.msk [vmem:[#allocation2] sm:$0xff] %vm574, %v479
        %576 = vst.msk [vmem:[#allocation2 + $0x8] sm:$0xff] %vm574, %v481
        %577 = vst.msk [vmem:[#allocation2 + $0x10] sm:$0xff] %vm574, %v483
        %578 = vst.msk [vmem:[#allocation2 + $0x18] sm:$0xff] %vm574, %v485
        %579 = vst.msk [vmem:[#allocation2 + $0x20] sm:$0xff] %vm574, %v487
        %580 = vst.msk [vmem:[#allocation2 + $0x28] sm:$0xff] %vm574, %v489
        %581 = vst.msk [vmem:[#allocation2 + $0x30] sm:$0xff] %vm574, %v491
        %582 = vst.msk [vmem:[#allocation2 + $0x38] sm:$0xff] %vm574, %v493
        %583 = vst.msk [vmem:[#allocation2 + $0x40] sm:$0xff] %vm574, %v495
        %584 = vst.msk [vmem:[#allocation2 + $0x48] sm:$0xff] %vm574, %v497
        %585 = vst.msk [vmem:[#allocation2 + $0x50] sm:$0xff] %vm574, %v499
        %586 = vst.msk [vmem:[#allocation2 + $0x58] sm:$0xff] %vm574, %v501
        %587 = vst.msk [vmem:[#allocation2 + $0x60] sm:$0xff] %vm574, %v503
        %588 = vst.msk [vmem:[#allocation2 + $0x68] sm:$0xff] %vm574, %v505
        %589 = vst.msk [vmem:[#allocation2 + $0x70] sm:$0xff] %vm574, %v507
        %590 = vst.msk [vmem:[#allocation2 + $0x78] sm:$0xff] %vm574, %v509
        %591 = vst.msk [vmem:[#allocation2 + $0x80] sm:$0xff] %vm574, %v511
        %592 = vst.msk [vmem:[#allocation2 + $0x88] sm:$0xff] %vm574, %v513
        %593 = vst.msk [vmem:[#allocation2 + $0x90] sm:$0xff] %vm574, %v515
        %594 = vst.msk [vmem:[#allocation2 + $0x98] sm:$0xff] %vm574, %v517
        %595 = vst.msk [vmem:[#allocation2 + $0xa0] sm:$0xff] %vm574, %v519
        %596 = vst.msk [vmem:[#allocation2 + $0xa8] sm:$0xff] %vm574, %v521
        %597 = vst.msk [vmem:[#allocation2 + $0xb0] sm:$0xff] %vm574, %v523
        %598 = vst.msk [vmem:[#allocation2 + $0xb8] sm:$0xff] %vm574, %v525
        %599 = vst.msk [vmem:[#allocation2 + $0xc0] sm:$0xff] %vm574, %v527
        %600 = vst.msk [vmem:[#allocation2 + $0xc8] sm:$0xff] %vm574, %v529
        %601 = vst.msk [vmem:[#allocation2 + $0xd0] sm:$0xff] %vm574, %v531
        %602 = vst.msk [vmem:[#allocation2 + $0xd8] sm:$0xff] %vm574, %v533
        %603 = vst.msk [vmem:[#allocation2 + $0xe0] sm:$0xff] %vm574, %v535
        %604 = vst.msk [vmem:[#allocation2 + $0xe8] sm:$0xff] %vm574, %v537
        %605 = vst.msk [vmem:[#allocation2 + $0xf0] sm:$0xff] %vm574, %v539
        %606 = vst.msk [vmem:[#allocation2 + $0xf8] sm:$0xff] %vm574, %v541
        %v607 = vld [vmem:[%s300] sm:$0xff]
        %v608 = vld [vmem:[%s300 + $0x8] sm:$0xff]
        %v609 = vld [vmem:[%s300 + $0x10] sm:$0xff]
        %v610 = vld [vmem:[%s300 + $0x18] sm:$0xff]
        %v611 = vld [vmem:[%s300 + $0x20] sm:$0xff]
        %v612 = vld [vmem:[%s300 + $0x28] sm:$0xff]
        %v613 = vld [vmem:[%s300 + $0x30] sm:$0xff]
        %v614 = vld [vmem:[%s300 + $0x38] sm:$0xff]
        %v615 = vld [vmem:[%s300 + $0x40] sm:$0xff]
        %v616 = vld [vmem:[%s300 + $0x48] sm:$0xff]
        %v617 = vld [vmem:[%s300 + $0x50] sm:$0xff]
        %v618 = vld [vmem:[%s300 + $0x58] sm:$0xff]
        %v619 = vld [vmem:[%s300 + $0x60] sm:$0xff]
        %v620 = vld [vmem:[%s300 + $0x68] sm:$0xff]
        %v621 = vld [vmem:[%s300 + $0x70] sm:$0xff]
        %v622 = vld [vmem:[%s300 + $0x78] sm:$0xff]
        %v623 = vld [vmem:[%s300 + $0x80] sm:$0xff]
        %v624 = vld [vmem:[%s300 + $0x88] sm:$0xff]
        %v625 = vld [vmem:[%s300 + $0x90] sm:$0xff]
        %v626 = vld [vmem:[%s300 + $0x98] sm:$0xff]
        %v627 = vld [vmem:[%s300 + $0xa0] sm:$0xff]
        %v628 = vld [vmem:[%s300 + $0xa8] sm:$0xff]
        %v629 = vld [vmem:[%s300 + $0xb0] sm:$0xff]
        %v630 = vld [vmem:[%s300 + $0xb8] sm:$0xff]
        %v631 = vld [vmem:[%s300 + $0xc0] sm:$0xff]
        %v632 = vld [vmem:[%s300 + $0xc8] sm:$0xff]
        %v633 = vld [vmem:[%s300 + $0xd0] sm:$0xff]
        %v634 = vld [vmem:[%s300 + $0xd8] sm:$0xff]
        %v635 = vld [vmem:[%s300 + $0xe0] sm:$0xff]
        %v636 = vld [vmem:[%s300 + $0xe8] sm:$0xff]
        %v637 = vld [vmem:[%s300 + $0xf0] sm:$0xff]
        %v638 = vld [vmem:[%s300 + $0xf8] sm:$0xff]
        %671 = vrot.lane.b32.xlu0 %v607, 4
        %v672 = vpop.permute.xlu0 %671
        %673 = vrot.lane.b32.xlu0 %v608, 4
        %v674 = vpop.permute.xlu0 %673
        %675 = vrot.lane.b32.xlu0 %v609, 4
        %v676 = vpop.permute.xlu0 %675
        %677 = vrot.lane.b32.xlu0 %v610, 4
        %v678 = vpop.permute.xlu0 %677
        %679 = vrot.lane.b32.xlu0 %v611, 4
        %v680 = vpop.permute.xlu0 %679
        %681 = vrot.lane.b32.xlu0 %v612, 4
        %v682 = vpop.permute.xlu0 %681
        %683 = vrot.lane.b32.xlu0 %v613, 4
        %v684 = vpop.permute.xlu0 %683
        %685 = vrot.lane.b32.xlu0 %v614, 4
        %v686 = vpop.permute.xlu0 %685
        %687 = vrot.lane.b32.xlu0 %v615, 4
        %v688 = vpop.permute.xlu0 %687
        %689 = vrot.lane.b32.xlu0 %v616, 4
        %v690 = vpop.permute.xlu0 %689
        %691 = vrot.lane.b32.xlu0 %v617, 4
        %v692 = vpop.permute.xlu0 %691
        %693 = vrot.lane.b32.xlu0 %v618, 4
        %v694 = vpop.permute.xlu0 %693
        %695 = vrot.lane.b32.xlu0 %v619, 4
        %v696 = vpop.permute.xlu0 %695
        %697 = vrot.lane.b32.xlu0 %v620, 4
        %v698 = vpop.permute.xlu0 %697
        %699 = vrot.lane.b32.xlu0 %v621, 4
        %v700 = vpop.permute.xlu0 %699
        %701 = vrot.lane.b32.xlu0 %v622, 4
        %v702 = vpop.permute.xlu0 %701
        %703 = vrot.lane.b32.xlu0 %v623, 4
        %v704 = vpop.permute.xlu0 %703
        %705 = vrot.lane.b32.xlu0 %v624, 4
        %v706 = vpop.permute.xlu0 %705
        %707 = vrot.lane.b32.xlu0 %v625, 4
        %v708 = vpop.permute.xlu0 %707
        %709 = vrot.lane.b32.xlu0 %v626, 4
        %v710 = vpop.permute.xlu0 %709
        %711 = vrot.lane.b32.xlu0 %v627, 4
        %v712 = vpop.permute.xlu0 %711
        %713 = vrot.lane.b32.xlu0 %v628, 4
        %v714 = vpop.permute.xlu0 %713
        %715 = vrot.lane.b32.xlu0 %v629, 4
        %v716 = vpop.permute.xlu0 %715
        %717 = vrot.lane.b32.xlu0 %v630, 4
        %v718 = vpop.permute.xlu0 %717
        %719 = vrot.lane.b32.xlu0 %v631, 4
        %v720 = vpop.permute.xlu0 %719
        %721 = vrot.lane.b32.xlu0 %v632, 4
        %v722 = vpop.permute.xlu0 %721
        %723 = vrot.lane.b32.xlu0 %v633, 4
        %v724 = vpop.permute.xlu0 %723
        %725 = vrot.lane.b32.xlu0 %v634, 4
        %v726 = vpop.permute.xlu0 %725
        %727 = vrot.lane.b32.xlu0 %v635, 4
        %v728 = vpop.permute.xlu0 %727
        %729 = vrot.lane.b32.xlu0 %v636, 4
        %v730 = vpop.permute.xlu0 %729
        %731 = vrot.lane.b32.xlu0 %v637, 4
        %v732 = vpop.permute.xlu0 %731
        %733 = vrot.lane.b32.xlu0 %v638, 4
        %v734 = vpop.permute.xlu0 %733
        %vm767 = vcmask 48160
        %768 = vst.msk [vmem:[#allocation2] sm:$0xff] %vm767, %v672
        %769 = vst.msk [vmem:[#allocation2 + $0x8] sm:$0xff] %vm767, %v674
        %770 = vst.msk [vmem:[#allocation2 + $0x10] sm:$0xff] %vm767, %v676
        %771 = vst.msk [vmem:[#allocation2 + $0x18] sm:$0xff] %vm767, %v678
        %772 = vst.msk [vmem:[#allocation2 + $0x20] sm:$0xff] %vm767, %v680
        %773 = vst.msk [vmem:[#allocation2 + $0x28] sm:$0xff] %vm767, %v682
        %774 = vst.msk [vmem:[#allocation2 + $0x30] sm:$0xff] %vm767, %v684
        %775 = vst.msk [vmem:[#allocation2 + $0x38] sm:$0xff] %vm767, %v686
        %776 = vst.msk [vmem:[#allocation2 + $0x40] sm:$0xff] %vm767, %v688
        %777 = vst.msk [vmem:[#allocation2 + $0x48] sm:$0xff] %vm767, %v690
        %778 = vst.msk [vmem:[#allocation2 + $0x50] sm:$0xff] %vm767, %v692
        %779 = vst.msk [vmem:[#allocation2 + $0x58] sm:$0xff] %vm767, %v694
        %780 = vst.msk [vmem:[#allocation2 + $0x60] sm:$0xff] %vm767, %v696
        %781 = vst.msk [vmem:[#allocation2 + $0x68] sm:$0xff] %vm767, %v698
        %782 = vst.msk [vmem:[#allocation2 + $0x70] sm:$0xff] %vm767, %v700
        %783 = vst.msk [vmem:[#allocation2 + $0x78] sm:$0xff] %vm767, %v702
        %784 = vst.msk [vmem:[#allocation2 + $0x80] sm:$0xff] %vm767, %v704
        %785 = vst.msk [vmem:[#allocation2 + $0x88] sm:$0xff] %vm767, %v706
        %786 = vst.msk [vmem:[#allocation2 + $0x90] sm:$0xff] %vm767, %v708
        %787 = vst.msk [vmem:[#allocation2 + $0x98] sm:$0xff] %vm767, %v710
        %788 = vst.msk [vmem:[#allocation2 + $0xa0] sm:$0xff] %vm767, %v712
        %789 = vst.msk [vmem:[#allocation2 + $0xa8] sm:$0xff] %vm767, %v714
        %790 = vst.msk [vmem:[#allocation2 + $0xb0] sm:$0xff] %vm767, %v716
        %791 = vst.msk [vmem:[#allocation2 + $0xb8] sm:$0xff] %vm767, %v718
        %792 = vst.msk [vmem:[#allocation2 + $0xc0] sm:$0xff] %vm767, %v720
        %793 = vst.msk [vmem:[#allocation2 + $0xc8] sm:$0xff] %vm767, %v722
        %794 = vst.msk [vmem:[#allocation2 + $0xd0] sm:$0xff] %vm767, %v724
        %795 = vst.msk [vmem:[#allocation2 + $0xd8] sm:$0xff] %vm767, %v726
        %796 = vst.msk [vmem:[#allocation2 + $0xe0] sm:$0xff] %vm767, %v728
        %797 = vst.msk [vmem:[#allocation2 + $0xe8] sm:$0xff] %vm767, %v730
        %798 = vst.msk [vmem:[#allocation2 + $0xf0] sm:$0xff] %vm767, %v732
        %799 = vst.msk [vmem:[#allocation2 + $0xf8] sm:$0xff] %vm767, %v734
        %v800 = vld [vmem:[#allocation2] sm:$0xff]
        %v801 = vld [vmem:[#allocation2 + $0x8] sm:$0xff]
        %v802 = vld [vmem:[#allocation2 + $0x10] sm:$0xff]
        %v803 = vld [vmem:[#allocation2 + $0x18] sm:$0xff]
        %v804 = vld [vmem:[#allocation2 + $0x20] sm:$0xff]
        %v805 = vld [vmem:[#allocation2 + $0x28] sm:$0xff]
        %v806 = vld [vmem:[#allocation2 + $0x30] sm:$0xff]
        %v807 = vld [vmem:[#allocation2 + $0x38] sm:$0xff]
        %v808 = vld [vmem:[#allocation2 + $0x40] sm:$0xff]
        %v809 = vld [vmem:[#allocation2 + $0x48] sm:$0xff]
        %v810 = vld [vmem:[#allocation2 + $0x50] sm:$0xff]
        %v811 = vld [vmem:[#allocation2 + $0x58] sm:$0xff]
        %v812 = vld [vmem:[#allocation2 + $0x60] sm:$0xff]
        %v813 = vld [vmem:[#allocation2 + $0x68] sm:$0xff]
        %v814 = vld [vmem:[#allocation2 + $0x70] sm:$0xff]
        %v815 = vld [vmem:[#allocation2 + $0x78] sm:$0xff]
        %v816 = vld [vmem:[#allocation2 + $0x80] sm:$0xff]
        %v817 = vld [vmem:[#allocation2 + $0x88] sm:$0xff]
        %v818 = vld [vmem:[#allocation2 + $0x90] sm:$0xff]
        %v819 = vld [vmem:[#allocation2 + $0x98] sm:$0xff]
        %v820 = vld [vmem:[#allocation2 + $0xa0] sm:$0xff]
        %v821 = vld [vmem:[#allocation2 + $0xa8] sm:$0xff]
        %v822 = vld [vmem:[#allocation2 + $0xb0] sm:$0xff]
        %v823 = vld [vmem:[#allocation2 + $0xb8] sm:$0xff]
        %v824 = vld [vmem:[#allocation2 + $0xc0] sm:$0xff]
        %v825 = vld [vmem:[#allocation2 + $0xc8] sm:$0xff]
        %v826 = vld [vmem:[#allocation2 + $0xd0] sm:$0xff]
        %v827 = vld [vmem:[#allocation2 + $0xd8] sm:$0xff]
        %v828 = vld [vmem:[#allocation2 + $0xe0] sm:$0xff]
        %v829 = vld [vmem:[#allocation2 + $0xe8] sm:$0xff]
        %v830 = vld [vmem:[#allocation2 + $0xf0] sm:$0xff]
        %v831 = vld [vmem:[#allocation2 + $0xf8] sm:$0xff]
        %v832 = vld [vmem:[#allocation9] sm:$0x3f]
        %v833 = vld [vmem:[#allocation11] sm:$0x1]
        %v835 = vlaneseq
        %v836 = vshrl.u32 %v835, 7
        %v837 = vsub.s32 0, %v836
        %v838 = vrot.slane %v833, %v837
        %vm840 = vcmask 48128
        %v842 = vsel %vm840, %v800, 0
        %v845 = vsel %vm840, %v801, 0
        %v848 = vsel %vm840, %v802, 0
        %v851 = vsel %vm840, %v803, 0
        %v854 = vsel %vm840, %v804, 0
        %v857 = vsel %vm840, %v805, 0
        %v860 = vsel %vm840, %v806, 0
        %v863 = vsel %vm840, %v807, 0
        %v866 = vsel %vm840, %v808, 0
        %v869 = vsel %vm840, %v809, 0
        %v872 = vsel %vm840, %v810, 0
        %v875 = vsel %vm840, %v811, 0
        %v878 = vsel %vm840, %v812, 0
        %v881 = vsel %vm840, %v813, 0
        %v884 = vsel %vm840, %v814, 0
        %v887 = vsel %vm840, %v815, 0
        %v890 = vsel %vm840, %v816, 0
        %v893 = vsel %vm840, %v817, 0
        %v896 = vsel %vm840, %v818, 0
        %v899 = vsel %vm840, %v819, 0
        %v902 = vsel %vm840, %v820, 0
        %v905 = vsel %vm840, %v821, 0
        %v908 = vsel %vm840, %v822, 0
        %v911 = vsel %vm840, %v823, 0
        %v914 = vsel %vm840, %v824, 0
        %v917 = vsel %vm840, %v825, 0
        %v920 = vsel %vm840, %v826, 0
        %v923 = vsel %vm840, %v827, 0
        %v926 = vsel %vm840, %v828, 0
        %v929 = vsel %vm840, %v829, 0
        %v932 = vsel %vm840, %v830, 0
        %v935 = vsel %vm840, %v831, 0
        %vm937 = vcmask 1045504
        %v939 = vsel %vm937, %v832, 0
        %941 = vmatprep.subr.mxu0 0.0
        %942 = vmatpush1.msra.mxu0 %v939
        %943 = vmatprep.subr.mxu0 0.0
        %944 = vmatpush1.msra.mxu0 0.0
        %945 = vmatprep.subr.mxu0 0.0
        %946 = vmatpush1.msra.mxu0 0.0
        %947 = vmatprep.subr.mxu0 0.0
        %948 = vmatpush1.msra.mxu0 0.0
        %949 = vmatprep.subr.mxu0 0.0
        %950 = vmatpush1.msra.mxu0 0.0
        %951 = vmatprep.subr.mxu0 0.0
        %952 = vmatpush1.msra.mxu0 0.0
        %953 = vmatprep.subr.mxu0 0.0
        %954 = vmatpush1.msra.mxu0 0.0
        %955 = vmatprep.subr.mxu0 0.0
        %956 = vmatpush1.msra.mxu0 0.0
        %957 = vmatprep.subr.mxu0 0.0
        %958 = vmatpush1.msra.mxu0 0.0
        %959 = vmatprep.subr.mxu0 0.0
        %960 = vmatpush1.msra.mxu0 0.0
        %961 = vmatprep.subr.mxu0 0.0
        %962 = vmatpush1.msra.mxu0 0.0
        %963 = vmatprep.subr.mxu0 0.0
        %964 = vmatpush1.msra.mxu0 0.0
        %965 = vmatprep.subr.mxu0 0.0
        %966 = vmatpush1.msra.mxu0 0.0
        %967 = vmatprep.subr.mxu0 0.0
        %968 = vmatpush1.msra.mxu0 0.0
        %969 = vmatprep.subr.mxu0 0.0
        %970 = vmatpush1.msra.mxu0 0.0
        %971 = vmatprep.subr.mxu0 0.0
        %972 = vmatpush1.msra.mxu0 0.0
        %973 = vmatprep.subr.mxu0 0.0
        %974 = vmatpush1.msra.mxu0 0.0
        %975 = vmatprep.subr.mxu0 0.0
        %976 = vmatpush1.msra.mxu0 0.0
        %977 = vmatprep.subr.mxu0 0.0
        %978 = vmatpush1.msra.mxu0 0.0
        %979 = vmatprep.subr.mxu0 0.0
        %980 = vmatpush1.msra.mxu0 0.0
        %981 = vmatprep.subr.mxu0 0.0
        %982 = vmatpush1.msra.mxu0 0.0
        %983 = vmatprep.subr.mxu0 0.0
        %984 = vmatpush1.msra.mxu0 0.0
        %985 = vmatprep.subr.mxu0 0.0
        %986 = vmatpush1.msra.mxu0 0.0
        %987 = vmatprep.subr.mxu0 0.0
        %988 = vmatpush1.msra.mxu0 0.0
        %989 = vmatprep.subr.mxu0 0.0
        %990 = vmatpush1.msra.mxu0 0.0
        %991 = vmatprep.subr.mxu0 0.0
        %992 = vmatpush1.msra.mxu0 0.0
        %993 = vmatprep.subr.mxu0 0.0
        %994 = vmatpush1.msra.mxu0 0.0
        %995 = vmatprep.subr.mxu0 0.0
        %996 = vmatpush1.msra.mxu0 0.0
        %997 = vmatprep.subr.mxu0 0.0
        %998 = vmatpush1.msra.mxu0 0.0
        %999 = vmatprep.subr.mxu0 0.0
        %1000 = vmatpush1.msra.mxu0 0.0
        %1001 = vmatprep.subr.mxu0 0.0
        %1002 = vmatpush1.msra.mxu0 0.0
        %1003 = vmatprep.subr.mxu0 0.0
        %1004 = vmatpush1.msra.mxu0 0.0
        %1005 = vmatprep.mubr.f32.mxu0 0.0
        %1006 = vmatmul.mubr.f32.gmra.mrb[0].mxu0 %v842
        %v1007 = vpop.f32.mrb[0].mxu0
        %v1008 = vadd.f32 %v838, %v1007
        %v1009 = vpop.f32.mrb[0].mxu0
        %1010 = vmatprep.mubr.f32.mxu0 0.0
        %1011 = vmatmul.mubr.f32.gmra.mrb[0].mxu0 %v845
        %v1012 = vpop.f32.mrb[0].mxu0
        %v1013 = vadd.f32 %v838, %v1012
        %v1014 = vpop.f32.mrb[0].mxu0
        %1015 = vmatprep.mubr.f32.mxu0 0.0
        %1016 = vmatmul.mubr.f32.gmra.mrb[0].mxu0 %v848
        %v1017 = vpop.f32.mrb[0].mxu0
        %v1018 = vadd.f32 %v838, %v1017
        %v1019 = vpop.f32.mrb[0].mxu0
        %1020 = vmatprep.mubr.f32.mxu0 0.0
        %1021 = vmatmul.mubr.f32.gmra.mrb[0].mxu0 %v851
        %v1022 = vpop.f32.mrb[0].mxu0
        %v1023 = vadd.f32 %v838, %v1022
        %v1024 = vpop.f32.mrb[0].mxu0
        %1025 = vmatprep.mubr.f32.mxu0 0.0
        %1026 = vmatmul.mubr.f32.gmra.mrb[0].mxu0 %v854
        %v1027 = vpop.f32.mrb[0].mxu0
        %v1028 = vadd.f32 %v838, %v1027
        %v1029 = vpop.f32.mrb[0].mxu0
        %1030 = vmatprep.mubr.f32.mxu0 0.0
        %1031 = vmatmul.mubr.f32.gmra.mrb[0].mxu0 %v857
        %v1032 = vpop.f32.mrb[0].mxu0
        %v1033 = vadd.f32 %v838, %v1032
        %v1034 = vpop.f32.mrb[0].mxu0
        %1035 = vmatprep.mubr.f32.mxu0 0.0
        %1036 = vmatmul.mubr.f32.gmra.mrb[0].mxu0 %v860
        %v1037 = vpop.f32.mrb[0].mxu0
        %v1038 = vadd.f32 %v838, %v1037
        %v1039 = vpop.f32.mrb[0].mxu0
        %1040 = vmatprep.mubr.f32.mxu0 0.0
        %1041 = vmatmul.mubr.f32.gmra.mrb[0].mxu0 %v863
        %v1042 = vpop.f32.mrb[0].mxu0
        %v1043 = vadd.f32 %v838, %v1042
        %v1044 = vpop.f32.mrb[0].mxu0
        %1045 = vmatprep.mubr.f32.mxu0 0.0
        %1046 = vmatmul.mubr.f32.gmra.mrb[0].mxu0 %v866
        %v1047 = vpop.f32.mrb[0].mxu0
        %v1048 = vadd.f32 %v838, %v1047
        %v1049 = vpop.f32.mrb[0].mxu0
        %1050 = vmatprep.mubr.f32.mxu0 0.0
        %1051 = vmatmul.mubr.f32.gmra.mrb[0].mxu0 %v869
        %v1052 = vpop.f32.mrb[0].mxu0
        %v1053 = vadd.f32 %v838, %v1052
        %v1054 = vpop.f32.mrb[0].mxu0
        %1055 = vmatprep.mubr.f32.mxu0 0.0
        %1056 = vmatmul.mubr.f32.gmra.mrb[0].mxu0 %v872
        %v1057 = vpop.f32.mrb[0].mxu0
        %v1058 = vadd.f32 %v838, %v1057
        %v1059 = vpop.f32.mrb[0].mxu0
        %1060 = vmatprep.mubr.f32.mxu0 0.0
        %1061 = vmatmul.mubr.f32.gmra.mrb[0].mxu0 %v875
        %v1062 = vpop.f32.mrb[0].mxu0
        %v1063 = vadd.f32 %v838, %v1062
        %v1064 = vpop.f32.mrb[0].mxu0
        %1065 = vmatprep.mubr.f32.mxu0 0.0
        %1066 = vmatmul.mubr.f32.gmra.mrb[0].mxu0 %v878
        %v1067 = vpop.f32.mrb[0].mxu0
        %v1068 = vadd.f32 %v838, %v1067
        %v1069 = vpop.f32.mrb[0].mxu0
        %1070 = vmatprep.mubr.f32.mxu0 0.0
        %1071 = vmatmul.mubr.f32.gmra.mrb[0].mxu0 %v881
        %v1072 = vpop.f32.mrb[0].mxu0
        %v1073 = vadd.f32 %v838, %v1072
        %v1074 = vpop.f32.mrb[0].mxu0
        %1075 = vmatprep.mubr.f32.mxu0 0.0
        %1076 = vmatmul.mubr.f32.gmra.mrb[0].mxu0 %v884
        %v1077 = vpop.f32.mrb[0].mxu0
        %v1078 = vadd.f32 %v838, %v1077
        %v1079 = vpop.f32.mrb[0].mxu0
        %1080 = vmatprep.mubr.f32.mxu0 0.0
        %1081 = vmatmul.mubr.f32.gmra.mrb[0].mxu0 %v887
        %v1082 = vpop.f32.mrb[0].mxu0
        %v1083 = vadd.f32 %v838, %v1082
        %v1084 = vpop.f32.mrb[0].mxu0
        %1085 = vmatprep.mubr.f32.mxu0 0.0
        %1086 = vmatmul.mubr.f32.gmra.mrb[0].mxu0 %v890
        %v1087 = vpop.f32.mrb[0].mxu0
        %v1088 = vadd.f32 %v838, %v1087
        %v1089 = vpop.f32.mrb[0].mxu0
        %1090 = vmatprep.mubr.f32.mxu0 0.0
        %1091 = vmatmul.mubr.f32.gmra.mrb[0].mxu0 %v893
        %v1092 = vpop.f32.mrb[0].mxu0
        %v1093 = vadd.f32 %v838, %v1092
        %v1094 = vpop.f32.mrb[0].mxu0
        %1095 = vmatprep.mubr.f32.mxu0 0.0
        %1096 = vmatmul.mubr.f32.gmra.mrb[0].mxu0 %v896
        %v1097 = vpop.f32.mrb[0].mxu0
        %v1098 = vadd.f32 %v838, %v1097
        %v1099 = vpop.f32.mrb[0].mxu0
        %1100 = vmatprep.mubr.f32.mxu0 0.0
        %1101 = vmatmul.mubr.f32.gmra.mrb[0].mxu0 %v899
        %v1102 = vpop.f32.mrb[0].mxu0
        %v1103 = vadd.f32 %v838, %v1102
        %v1104 = vpop.f32.mrb[0].mxu0
        %1105 = vmatprep.mubr.f32.mxu0 0.0
        %1106 = vmatmul.mubr.f32.gmra.mrb[0].mxu0 %v902
        %v1107 = vpop.f32.mrb[0].mxu0
        %v1108 = vadd.f32 %v838, %v1107
        %v1109 = vpop.f32.mrb[0].mxu0
        %1110 = vmatprep.mubr.f32.mxu0 0.0
        %1111 = vmatmul.mubr.f32.gmra.mrb[0].mxu0 %v905
        %v1112 = vpop.f32.mrb[0].mxu0
        %v1113 = vadd.f32 %v838, %v1112
        %v1114 = vpop.f32.mrb[0].mxu0
        %1115 = vmatprep.mubr.f32.mxu0 0.0
        %1116 = vmatmul.mubr.f32.gmra.mrb[0].mxu0 %v908
        %v1117 = vpop.f32.mrb[0].mxu0
        %v1118 = vadd.f32 %v838, %v1117
        %v1119 = vpop.f32.mrb[0].mxu0
        %1120 = vmatprep.mubr.f32.mxu0 0.0
        %1121 = vmatmul.mubr.f32.gmra.mrb[0].mxu0 %v911
        %v1122 = vpop.f32.mrb[0].mxu0
        %v1123 = vadd.f32 %v838, %v1122
        %v1124 = vpop.f32.mrb[0].mxu0
        %1125 = vmatprep.mubr.f32.mxu0 0.0
        %1126 = vmatmul.mubr.f32.gmra.mrb[0].mxu0 %v914
        %v1127 = vpop.f32.mrb[0].mxu0
        %v1128 = vadd.f32 %v838, %v1127
        %v1129 = vpop.f32.mrb[0].mxu0
        %1130 = vmatprep.mubr.f32.mxu0 0.0
        %1131 = vmatmul.mubr.f32.gmra.mrb[0].mxu0 %v917
        %v1132 = vpop.f32.mrb[0].mxu0
        %v1133 = vadd.f32 %v838, %v1132
        %v1134 = vpop.f32.mrb[0].mxu0
        %1135 = vmatprep.mubr.f32.mxu0 0.0
        %1136 = vmatmul.mubr.f32.gmra.mrb[0].mxu0 %v920
        %v1137 = vpop.f32.mrb[0].mxu0
        %v1138 = vadd.f32 %v838, %v1137
        %v1139 = vpop.f32.mrb[0].mxu0
        %1140 = vmatprep.mubr.f32.mxu0 0.0
        %1141 = vmatmul.mubr.f32.gmra.mrb[0].mxu0 %v923
        %v1142 = vpop.f32.mrb[0].mxu0
        %v1143 = vadd.f32 %v838, %v1142
        %v1144 = vpop.f32.mrb[0].mxu0
        %1145 = vmatprep.mubr.f32.mxu0 0.0
        %1146 = vmatmul.mubr.f32.gmra.mrb[0].mxu0 %v926
        %v1147 = vpop.f32.mrb[0].mxu0
        %v1148 = vadd.f32 %v838, %v1147
        %v1149 = vpop.f32.mrb[0].mxu0
        %1150 = vmatprep.mubr.f32.mxu0 0.0
        %1151 = vmatmul.mubr.f32.gmra.mrb[0].mxu0 %v929
        %v1152 = vpop.f32.mrb[0].mxu0
        %v1153 = vadd.f32 %v838, %v1152
        %v1154 = vpop.f32.mrb[0].mxu0
        %1155 = vmatprep.mubr.f32.mxu0 0.0
        %1156 = vmatmul.mubr.f32.gmra.mrb[0].mxu0 %v932
        %v1157 = vpop.f32.mrb[0].mxu0
        %v1158 = vadd.f32 %v838, %v1157
        %v1159 = vpop.f32.mrb[0].mxu0
        %1160 = vmatprep.mubr.f32.mxu0 0.0
        %1161 = vmatmul.mubr.f32.gmra.mrb[0].mxu0 %v935
        %v1162 = vpop.f32.mrb[0].mxu0
        %v1163 = vadd.f32 %v838, %v1162
        %v1164 = vpop.f32.mrb[0].mxu0
        %1165 = vdwg.mxu0
        %v1166 = vxor.u32 %v1008, 2147483648
        %v1167 = vxor.u32 %v1013, 2147483648
        %v1168 = vxor.u32 %v1018, 2147483648
        %v1169 = vxor.u32 %v1023, 2147483648
        %v1170 = vxor.u32 %v1028, 2147483648
        %v1171 = vxor.u32 %v1033, 2147483648
        %v1172 = vxor.u32 %v1038, 2147483648
        %v1173 = vxor.u32 %v1043, 2147483648
        %v1174 = vxor.u32 %v1048, 2147483648
        %v1175 = vxor.u32 %v1053, 2147483648
        %v1176 = vxor.u32 %v1058, 2147483648
        %v1177 = vxor.u32 %v1063, 2147483648
        %v1178 = vxor.u32 %v1068, 2147483648
        %v1179 = vxor.u32 %v1073, 2147483648
        %v1180 = vxor.u32 %v1078, 2147483648
        %v1181 = vxor.u32 %v1083, 2147483648
        %v1182 = vxor.u32 %v1088, 2147483648
        %v1183 = vxor.u32 %v1093, 2147483648
        %v1184 = vxor.u32 %v1098, 2147483648
        %v1185 = vxor.u32 %v1103, 2147483648
        %v1186 = vxor.u32 %v1108, 2147483648
        %v1187 = vxor.u32 %v1113, 2147483648
        %v1188 = vxor.u32 %v1118, 2147483648
        %v1189 = vxor.u32 %v1123, 2147483648
        %v1190 = vxor.u32 %v1128, 2147483648
        %v1191 = vxor.u32 %v1133, 2147483648
        %v1192 = vxor.u32 %v1138, 2147483648
        %v1193 = vxor.u32 %v1143, 2147483648
        %v1194 = vxor.u32 %v1148, 2147483648
        %v1195 = vxor.u32 %v1153, 2147483648
        %v1196 = vxor.u32 %v1158, 2147483648
        %v1197 = vxor.u32 %v1163, 2147483648
        %v1198 = vmul.f32 %v1166, 1.442695
        %v1199 = vpow.pop %v1198
        %v1200 = vmul.f32 %v1167, 1.442695
        %v1201 = vpow.pop %v1200
        %v1202 = vmul.f32 %v1168, 1.442695
        %v1203 = vpow.pop %v1202
        %v1204 = vmul.f32 %v1169, 1.442695
        %v1205 = vpow.pop %v1204
        %v1206 = vmul.f32 %v1170, 1.442695
        %v1207 = vpow.pop %v1206
        %v1208 = vmul.f32 %v1171, 1.442695
        %v1209 = vpow.pop %v1208
        %v1210 = vmul.f32 %v1172, 1.442695
        %v1211 = vpow.pop %v1210
        %v1212 = vmul.f32 %v1173, 1.442695
        %v1213 = vpow.pop %v1212
        %v1214 = vmul.f32 %v1174, 1.442695
        %v1215 = vpow.pop %v1214
        %v1216 = vmul.f32 %v1175, 1.442695
        %v1217 = vpow.pop %v1216
        %v1218 = vmul.f32 %v1176, 1.442695
        %v1219 = vpow.pop %v1218
        %v1220 = vmul.f32 %v1177, 1.442695
        %v1221 = vpow.pop %v1220
        %v1222 = vmul.f32 %v1178, 1.442695
        %v1223 = vpow.pop %v1222
        %v1224 = vmul.f32 %v1179, 1.442695
        %v1225 = vpow.pop %v1224
        %v1226 = vmul.f32 %v1180, 1.442695
        %v1227 = vpow.pop %v1226
        %v1228 = vmul.f32 %v1181, 1.442695
        %v1229 = vpow.pop %v1228
        %v1230 = vmul.f32 %v1182, 1.442695
        %v1231 = vpow.pop %v1230
        %v1232 = vmul.f32 %v1183, 1.442695
        %v1233 = vpow.pop %v1232
        %v1234 = vmul.f32 %v1184, 1.442695
        %v1235 = vpow.pop %v1234
        %v1236 = vmul.f32 %v1185, 1.442695
        %v1237 = vpow.pop %v1236
        %v1238 = vmul.f32 %v1186, 1.442695
        %v1239 = vpow.pop %v1238
        %v1240 = vmul.f32 %v1187, 1.442695
        %v1241 = vpow.pop %v1240
        %v1242 = vmul.f32 %v1188, 1.442695
        %v1243 = vpow.pop %v1242
        %v1244 = vmul.f32 %v1189, 1.442695
        %v1245 = vpow.pop %v1244
        %v1246 = vmul.f32 %v1190, 1.442695
        %v1247 = vpow.pop %v1246
        %v1248 = vmul.f32 %v1191, 1.442695
        %v1249 = vpow.pop %v1248
        %v1250 = vmul.f32 %v1192, 1.442695
        %v1251 = vpow.pop %v1250
        %v1252 = vmul.f32 %v1193, 1.442695
        %v1253 = vpow.pop %v1252
        %v1254 = vmul.f32 %v1194, 1.442695
        %v1255 = vpow.pop %v1254
        %v1256 = vmul.f32 %v1195, 1.442695
        %v1257 = vpow.pop %v1256
        %v1258 = vmul.f32 %v1196, 1.442695
        %v1259 = vpow.pop %v1258
        %v1260 = vmul.f32 %v1197, 1.442695
        %v1261 = vpow.pop %v1260
        %v1262 = vadd.f32 %v1199, 1.0
        %v1263 = vadd.f32 %v1201, 1.0
        %v1264 = vadd.f32 %v1203, 1.0
        %v1265 = vadd.f32 %v1205, 1.0
        %v1266 = vadd.f32 %v1207, 1.0
        %v1267 = vadd.f32 %v1209, 1.0
        %v1268 = vadd.f32 %v1211, 1.0
        %v1269 = vadd.f32 %v1213, 1.0
        %v1270 = vadd.f32 %v1215, 1.0
        %v1271 = vadd.f32 %v1217, 1.0
        %v1272 = vadd.f32 %v1219, 1.0
        %v1273 = vadd.f32 %v1221, 1.0
        %v1274 = vadd.f32 %v1223, 1.0
        %v1275 = vadd.f32 %v1225, 1.0
        %v1276 = vadd.f32 %v1227, 1.0
        %v1277 = vadd.f32 %v1229, 1.0
        %v1278 = vadd.f32 %v1231, 1.0
        %v1279 = vadd.f32 %v1233, 1.0
        %v1280 = vadd.f32 %v1235, 1.0
        %v1281 = vadd.f32 %v1237, 1.0
        %v1282 = vadd.f32 %v1239, 1.0
        %v1283 = vadd.f32 %v1241, 1.0
        %v1284 = vadd.f32 %v1243, 1.0
        %v1285 = vadd.f32 %v1245, 1.0
        %v1286 = vadd.f32 %v1247, 1.0
        %v1287 = vadd.f32 %v1249, 1.0
        %v1288 = vadd.f32 %v1251, 1.0
        %v1289 = vadd.f32 %v1253, 1.0
        %v1290 = vadd.f32 %v1255, 1.0
        %v1291 = vadd.f32 %v1257, 1.0
        %v1292 = vadd.f32 %v1259, 1.0
        %v1293 = vadd.f32 %v1261, 1.0
        %v1294 = vrcp.pop %v1262
        %v1295 = vmul.f32 1.0, %v1294
        %v1296 = vrcp.pop %v1263
        %v1297 = vmul.f32 1.0, %v1296
        %v1298 = vrcp.pop %v1264
        %v1299 = vmul.f32 1.0, %v1298
        %v1300 = vrcp.pop %v1265
        %v1301 = vmul.f32 1.0, %v1300
        %v1302 = vrcp.pop %v1266
        %v1303 = vmul.f32 1.0, %v1302
        %v1304 = vrcp.pop %v1267
        %v1305 = vmul.f32 1.0, %v1304
        %v1306 = vrcp.pop %v1268
        %v1307 = vmul.f32 1.0, %v1306
        %v1308 = vrcp.pop %v1269
        %v1309 = vmul.f32 1.0, %v1308
        %v1310 = vrcp.pop %v1270
        %v1311 = vmul.f32 1.0, %v1310
        %v1312 = vrcp.pop %v1271
        %v1313 = vmul.f32 1.0, %v1312
        %v1314 = vrcp.pop %v1272
        %v1315 = vmul.f32 1.0, %v1314
        %v1316 = vrcp.pop %v1273
        %v1317 = vmul.f32 1.0, %v1316
        %v1318 = vrcp.pop %v1274
        %v1319 = vmul.f32 1.0, %v1318
        %v1320 = vrcp.pop %v1275
        %v1321 = vmul.f32 1.0, %v1320
        %v1322 = vrcp.pop %v1276
        %v1323 = vmul.f32 1.0, %v1322
        %v1324 = vrcp.pop %v1277
        %v1325 = vmul.f32 1.0, %v1324
        %v1326 = vrcp.pop %v1278
        %v1327 = vmul.f32 1.0, %v1326
        %v1328 = vrcp.pop %v1279
        %v1329 = vmul.f32 1.0, %v1328
        %v1330 = vrcp.pop %v1280
        %v1331 = vmul.f32 1.0, %v1330
        %v1332 = vrcp.pop %v1281
        %v1333 = vmul.f32 1.0, %v1332
        %v1334 = vrcp.pop %v1282
        %v1335 = vmul.f32 1.0, %v1334
        %v1336 = vrcp.pop %v1283
        %v1337 = vmul.f32 1.0, %v1336
        %v1338 = vrcp.pop %v1284
        %v1339 = vmul.f32 1.0, %v1338
        %v1340 = vrcp.pop %v1285
        %v1341 = vmul.f32 1.0, %v1340
        %v1342 = vrcp.pop %v1286
        %v1343 = vmul.f32 1.0, %v1342
        %v1344 = vrcp.pop %v1287
        %v1345 = vmul.f32 1.0, %v1344
        %v1346 = vrcp.pop %v1288
        %v1347 = vmul.f32 1.0, %v1346
        %v1348 = vrcp.pop %v1289
        %v1349 = vmul.f32 1.0, %v1348
        %v1350 = vrcp.pop %v1290
        %v1351 = vmul.f32 1.0, %v1350
        %v1352 = vrcp.pop %v1291
        %v1353 = vmul.f32 1.0, %v1352
        %v1354 = vrcp.pop %v1292
        %v1355 = vmul.f32 1.0, %v1354
        %v1356 = vrcp.pop %v1293
        %v1357 = vmul.f32 1.0, %v1356
        %v1358 = vmul.f32 %v1008, %v1295
        %v1359 = vmul.f32 %v1013, %v1297
        %v1360 = vmul.f32 %v1018, %v1299
        %v1361 = vmul.f32 %v1023, %v1301
        %v1362 = vmul.f32 %v1028, %v1303
        %v1363 = vmul.f32 %v1033, %v1305
        %v1364 = vmul.f32 %v1038, %v1307
        %v1365 = vmul.f32 %v1043, %v1309
        %v1366 = vmul.f32 %v1048, %v1311
        %v1367 = vmul.f32 %v1053, %v1313
        %v1368 = vmul.f32 %v1058, %v1315
        %v1369 = vmul.f32 %v1063, %v1317
        %v1370 = vmul.f32 %v1068, %v1319
        %v1371 = vmul.f32 %v1073, %v1321
        %v1372 = vmul.f32 %v1078, %v1323
        %v1373 = vmul.f32 %v1083, %v1325
        %v1374 = vmul.f32 %v1088, %v1327
        %v1375 = vmul.f32 %v1093, %v1329
        %v1376 = vmul.f32 %v1098, %v1331
        %v1377 = vmul.f32 %v1103, %v1333
        %v1378 = vmul.f32 %v1108, %v1335
        %v1379 = vmul.f32 %v1113, %v1337
        %v1380 = vmul.f32 %v1118, %v1339
        %v1381 = vmul.f32 %v1123, %v1341
        %v1382 = vmul.f32 %v1128, %v1343
        %v1383 = vmul.f32 %v1133, %v1345
        %v1384 = vmul.f32 %v1138, %v1347
        %v1385 = vmul.f32 %v1143, %v1349
        %v1386 = vmul.f32 %v1148, %v1351
        %v1387 = vmul.f32 %v1153, %v1353
        %v1388 = vmul.f32 %v1158, %v1355
        %v1389 = vmul.f32 %v1163, %v1357
        %vm1390 = vcmask 31744
        %1391 = vst.msk [vmem:[%s344] sm:$0xff] %vm1390, %v1358
        %1392 = vst.msk [vmem:[%s344 + $0x8] sm:$0xff] %vm1390, %v1359
        %1393 = vst.msk [vmem:[%s344 + $0x10] sm:$0xff] %vm1390, %v1360
        %1394 = vst.msk [vmem:[%s344 + $0x18] sm:$0xff] %vm1390, %v1361
        %1395 = vst.msk [vmem:[%s344 + $0x20] sm:$0xff] %vm1390, %v1362
        %1396 = vst.msk [vmem:[%s344 + $0x28] sm:$0xff] %vm1390, %v1363
        %1397 = vst.msk [vmem:[%s344 + $0x30] sm:$0xff] %vm1390, %v1364
        %1398 = vst.msk [vmem:[%s344 + $0x38] sm:$0xff] %vm1390, %v1365
        %1399 = vst.msk [vmem:[%s344 + $0x40] sm:$0xff] %vm1390, %v1366
        %1400 = vst.msk [vmem:[%s344 + $0x48] sm:$0xff] %vm1390, %v1367
        %1401 = vst.msk [vmem:[%s344 + $0x50] sm:$0xff] %vm1390, %v1368
        %1402 = vst.msk [vmem:[%s344 + $0x58] sm:$0xff] %vm1390, %v1369
        %1403 = vst.msk [vmem:[%s344 + $0x60] sm:$0xff] %vm1390, %v1370
        %1404 = vst.msk [vmem:[%s344 + $0x68] sm:$0xff] %vm1390, %v1371
        %1405 = vst.msk [vmem:[%s344 + $0x70] sm:$0xff] %vm1390, %v1372
        %1406 = vst.msk [vmem:[%s344 + $0x78] sm:$0xff] %vm1390, %v1373
        %1407 = vst.msk [vmem:[%s344 + $0x80] sm:$0xff] %vm1390, %v1374
        %1408 = vst.msk [vmem:[%s344 + $0x88] sm:$0xff] %vm1390, %v1375
        %1409 = vst.msk [vmem:[%s344 + $0x90] sm:$0xff] %vm1390, %v1376
        %1410 = vst.msk [vmem:[%s344 + $0x98] sm:$0xff] %vm1390, %v1377
        %1411 = vst.msk [vmem:[%s344 + $0xa0] sm:$0xff] %vm1390, %v1378
        %1412 = vst.msk [vmem:[%s344 + $0xa8] sm:$0xff] %vm1390, %v1379
        %1413 = vst.msk [vmem:[%s344 + $0xb0] sm:$0xff] %vm1390, %v1380
        %1414 = vst.msk [vmem:[%s344 + $0xb8] sm:$0xff] %vm1390, %v1381
        %1415 = vst.msk [vmem:[%s344 + $0xc0] sm:$0xff] %vm1390, %v1382
        %1416 = vst.msk [vmem:[%s344 + $0xc8] sm:$0xff] %vm1390, %v1383
        %1417 = vst.msk [vmem:[%s344 + $0xd0] sm:$0xff] %vm1390, %v1384
        %1418 = vst.msk [vmem:[%s344 + $0xd8] sm:$0xff] %vm1390, %v1385
        %1419 = vst.msk [vmem:[%s344 + $0xe0] sm:$0xff] %vm1390, %v1386
        %1420 = vst.msk [vmem:[%s344 + $0xe8] sm:$0xff] %vm1390, %v1387
        %1421 = vst.msk [vmem:[%s344 + $0xf0] sm:$0xff] %vm1390, %v1388
        %1422 = vst.msk [vmem:[%s344 + $0xf8] sm:$0xff] %vm1390, %v1389
        %s1423 = sand.u32 %s154, 1
        %s1424 = scalar_lea.sflag [#allocation5], %s1423
        %s1425 = sand.u32 %s154, 1
        %s1426 = smul.addr %s1425, 256
        %s1427 = scalar_lea.vmem [#allocation12], %s1426
        // Predicated region
        $region61: #{c2f_forward.5} parent=39 // pred_check
          %p1428 = pneg %p164
        $region62: #{c2f_forward.5} parent=39 // pred_check_branch
          %1430 = sbr.rel (%p1428) target = $region64
        $region63: #{c2f_forward.5} parent=39 // pred_region
          %s1431 = smul.u32 32, %s26
          %s1433 = ssub.s32 4096, 4096
          %1434 = vsyncadd %s1424, %s1433
          %s1435 = smul.addr %s1431, 128
          %s1436 = scalar_lea.hbm %s5, %s1435
          %s1437 = sshll.u32 %s1427, 4
          %s1438 = int_to_ptr.vmem [resolvable:$true] %s1437
          %1443 = dma.vmem_to_hbm [thread:$0]  %s1438, 4096, %s1436, %s1424, 128, 128, 8
        $region64: #{c2f_forward.5} parent=39 // pred_fallthru
          _
      $region40: #{c2f_forward.5} parent=5 // pred_fallthru
        _
      %p1444 = scmp.le.s32.totalorder 2, %s21
      // Predicated region
      $region65: #{c2f_forward.5} parent=5 // pred_check
        %p1445 = pneg %p1444
      $region66: #{c2f_forward.5} parent=5 // pred_check_branch
        %1447 = sbr.rel (%p1445) target = $region68
      $region67: #{c2f_forward.5} parent=5 // pred_region
        %s1448 = ssub.s32 %s21, 2
        // Predicated region
        $region69: #{c2f_forward.5} parent=67 // pred_check
          %p1449 = pneg %p170
        $region70: #{c2f_forward.5} parent=67 // pred_check_branch
          %1451 = sbr.rel (%p1449) target = $region72
        $region71: #{c2f_forward.5} parent=67 // pred_region
          %s1452 = sand.u32 %s155, 1
          %s1453 = scalar_lea.sflag [#allocation5], %s1452
          %s1454 = sand.u32 %s155, 1
          %s1455 = smul.addr %s1454, 256
          %s1456 = scalar_lea.vmem [#allocation12], %s1455
          %1457 = dma.done %s1453, 4096
        $region72: #{c2f_forward.5} parent=67 // pred_fallthru
          _
      $region68: #{c2f_forward.5} parent=5 // pred_fallthru
        _
    $region6: #{c2f_forward.5} parent=1 // loop_footer
      %s25 = sadd.s32 1, %s21
    $region7: #{c2f_forward.5} parent=1 // loop_footer_branch
      %20 = sbr.rel target = $region3
    $region8: #{c2f_forward.5} parent=1 // loop_exit
      _
    %1458 = vsyncpa [#allocation4], 1
    %s1459 = scalar_lea.sflag [#allocation4], 1
    %1460 = vsyncpa %s1459, 1
    %1461 = vsyncpa [#allocation7], 1
    %s1462 = scalar_lea.sflag [#allocation7], 1
    %1463 = vsyncpa %s1462, 1
    %1464 = vsyncpa [#allocation10], 1
    %1465 = vsyncpa [#allocation5], 1
    %s1466 = scalar_lea.sflag [#allocation5], 1
    %1467 = vsyncpa %s1466, 1

// kernel: c2f_forward.4
$region0: #{c2f_forward.4}
  #allocation0 [shape = 'u32[]', space=smem, size = 0x4, offset = 0x4, fixed_abs, tag = 'smem constant byte address 0x4 - core index']
  #allocation1 [shape = 'u32[144,128]{1,0:T(1,128)}', space=vmem, size = 0x12000, scoped, tag = 'internal scratch']
  #allocation2 [shape = 'f32[18,25,2]{2,1,0:T(8,128)}', space=vmem, size = 0x48000, scoped, tag = 'scratch operand']
  #allocation3 [shape = 'f32[16,16,18]{2,1,0:T(8,128)}', space=vmem, size = 0x20000, scoped, tag = 'scratch operand']
  %s0 = inlined_call_operand.hbm [shape: f32[512,2], index: 0, kind: input, shape index: {}]
  %s1 = inlined_call_operand.hbm [shape: f32[18,2], index: 1, kind: input, shape index: {}]
  %s2 = inlined_call_operand.hbm [shape: f32[1,2], index: 2, kind: input, shape index: {}]
  %s3 = inlined_call_operand.hbm [shape: f32[18,2], index: 3, kind: input, shape index: {}]
  %s4 = inlined_call_operand.hbm [shape: f32[1,2], index: 4, kind: input, shape index: {}]
  %s5 = inlined_call_operand.hbm [shape: f32[512,2], index: 5, kind: output, shape index: {}]
  %s6 = sld [smem:[#allocation0]]
  $region73: #{c2f_forward.4} parent=0
    _
  %s8 = ssub.s32 1, %s6
  %s9 = scalar_select 0, %s8, %s6
  $region1: #{c2f_forward.4} parent=0
    #allocation4 [shape = 'u8[262144]{0}', space=vmem, size = 0x40000, scoped, tag = 'input window, operand 0']
    #allocation5 [shape = 's32[2]{0}', space=sflag, size = 0x8, scoped, tag = 'scoped memory for c2f_forward.4']
    #allocation6 [shape = 's32[2]{0}', space=sflag, size = 0x8, scoped, tag = 'scoped memory for c2f_forward.4']
    #allocation7 [shape = 'u8[12288]{0}', space=vmem, size = 0x3000, scoped, tag = 'input window, operand 1, single buffered']
    #allocation8 [shape = 's32[1]{0}', space=sflag, size = 0x4, scoped, tag = 'scoped memory for c2f_forward.4']
    #allocation9 [shape = 'u8[512]{0}', space=vmem, size = 0x400, scoped, tag = 'input window, operand 2, single buffered']
    #allocation10 [shape = 'u8[12288]{0}', space=vmem, size = 0x3000, scoped, tag = 'input window, operand 3, single buffered']
    #allocation11 [shape = 's32[1]{0}', space=sflag, size = 0x4, scoped, tag = 'scoped memory for c2f_forward.4']
    #allocation12 [shape = 'u8[512]{0}', space=vmem, size = 0x400, scoped, tag = 'input window, operand 4, single buffered']
    #allocation13 [shape = 'u8[262144]{0}', space=vmem, size = 0x40000, scoped, tag = 'output window, operand 0']
    %10 = vsyncpa [#allocation5], 0
    %s11 = scalar_lea.sflag [#allocation5], 1
    %12 = vsyncpa %s11, 0
    %13 = vsyncpa [#allocation8], 0
    %14 = vsyncpa [#allocation11], 0
    %15 = vsyncpa [#allocation6], 0
    %s16 = scalar_lea.sflag [#allocation6], 1
    %17 = vsyncpa %s16, 0
    loop: start=0, step=1, limit=4
    $region2: #{c2f_forward.4} parent=1 // loop_pre_header
      _
    $region3: #{c2f_forward.4} parent=1 // loop_header
      %s19 = sphi 0, %s23
      %p20 = scmp.ge.s32.totalorder %s19, 4
      %s29 = sphi 0, %s31
      %s32 = sphi 0, %s29
      %s33 = sphi 0, %s32
      %s49 = sphi 0, %s33
      %s53 = sphi 0, %s53
      %s55 = sphi 0, %s53
      %s56 = sphi 0, %s55
      %s70 = sphi 0, %s56
      %s74 = sphi 0, %s74
      %s76 = sphi 0, %s74
      %s77 = sphi 0, %s76
      %s91 = sphi 0, %s77
      %s95 = sphi 0, %s95
      %s97 = sphi 0, %s95
      %s98 = sphi 0, %s97
      %s112 = sphi 0, %s98
      %s116 = sphi 0, %s116
      %s118 = sphi 0, %s116
      %s119 = sphi 0, %s118
      %s133 = sphi 0, %s119
      %s139 = sphi 0, %s141
      %s142 = sphi 0, %s139
      %s143 = sphi 0, %s142
      %s159 = sphi 0, %s143
    $region4: #{c2f_forward.4} parent=1 // loop_header_branch
      %22 = sbr.rel (%p20) target = $region8
    $region5: #{c2f_forward.4} parent=1 // loop_body
      %s24 = ssub.s32 %s19, 1
      %s25 = ssub.s32 %s19, 2
      %s26 = sadd.s32 %s19, 1
      %s27 = ssub.s32 %s19, %s26
      %p28 = scmp.eq.s32.totalorder %s27, 0
      %s30 = sadd.s32 %s29, 1
      %s31 = scalar_select %p28, %s29, %s30
      %p34 = pneg %p28
      %p35 = scmp.eq.s32.totalorder %s19, 1
      %p36 = por %p34, %p35
      %p37 = scmp.ne.s32.totalorder %s29, %s32
      %p38 = scmp.eq.s32.totalorder %s19, 0
      %p39 = por %p37, %p38
      %p40 = scmp.ne.s32.totalorder %s29, %s32
      %p41 = scmp.eq.s32.totalorder %s24, 1
      %p42 = por %p40, %p41
      %p43 = scmp.ne.s32.totalorder %s32, %s33
      %p44 = scmp.eq.s32.totalorder %s24, 0
      %p45 = por %p43, %p44
      %p46 = scmp.ne.s32.totalorder %s32, %s33
      %p47 = scmp.eq.s32.totalorder %s25, 1
      %p48 = por %p46, %p47
      %p50 = scmp.ne.s32.totalorder %s33, %s49
      %p51 = scmp.eq.s32.totalorder %s25, 0
      %p52 = por %p50, %p51
      %s54 = sadd.s32 %s53, 1
      %p57 = scmp.eq.s32.totalorder %s19, 1
      %p58 = scmp.ne.s32.totalorder %s53, %s55
      %p59 = scmp.eq.s32.totalorder %s19, 0
      %p60 = por %p58, %p59
      %p61 = scmp.ne.s32.totalorder %s53, %s55
      %p62 = scmp.eq.s32.totalorder %s24, 1
      %p63 = por %p61, %p62
      %p64 = scmp.ne.s32.totalorder %s55, %s56
      %p65 = scmp.eq.s32.totalorder %s24, 0
      %p66 = por %p64, %p65
      %p67 = scmp.ne.s32.totalorder %s55, %s56
      %p68 = scmp.eq.s32.totalorder %s25, 1
      %p69 = por %p67, %p68
      %p71 = scmp.ne.s32.totalorder %s56, %s70
      %p72 = scmp.eq.s32.totalorder %s25, 0
      %p73 = por %p71, %p72
      %s75 = sadd.s32 %s74, 1
      %p78 = scmp.eq.s32.totalorder %s19, 1
      %p79 = scmp.ne.s32.totalorder %s74, %s76
      %p80 = scmp.eq.s32.totalorder %s19, 0
      %p81 = por %p79, %p80
      %p82 = scmp.ne.s32.totalorder %s74, %s76
      %p83 = scmp.eq.s32.totalorder %s24, 1
      %p84 = por %p82, %p83
      %p85 = scmp.ne.s32.totalorder %s76, %s77
      %p86 = scmp.eq.s32.totalorder %s24, 0
      %p87 = por %p85, %p86
      %p88 = scmp.ne.s32.totalorder %s76, %s77
      %p89 = scmp.eq.s32.totalorder %s25, 1
      %p90 = por %p88, %p89
      %p92 = scmp.ne.s32.totalorder %s77, %s91
      %p93 = scmp.eq.s32.totalorder %s25, 0
      %p94 = por %p92, %p93
      %s96 = sadd.s32 %s95, 1
      %p99 = scmp.eq.s32.totalorder %s19, 1
      %p100 = scmp.ne.s32.totalorder %s95, %s97
      %p101 = scmp.eq.s32.totalorder %s19, 0
      %p102 = por %p100, %p101
      %p103 = scmp.ne.s32.totalorder %s95, %s97
      %p104 = scmp.eq.s32.totalorder %s24, 1
      %p105 = por %p103, %p104
      %p106 = scmp.ne.s32.totalorder %s97, %s98
      %p107 = scmp.eq.s32.totalorder %s24, 0
      %p108 = por %p106, %p107
      %p109 = scmp.ne.s32.totalorder %s97, %s98
      %p110 = scmp.eq.s32.totalorder %s25, 1
      %p111 = por %p109, %p110
      %p113 = scmp.ne.s32.totalorder %s98, %s112
      %p114 = scmp.eq.s32.totalorder %s25, 0
      %p115 = por %p113, %p114
      %s117 = sadd.s32 %s116, 1
      %p120 = scmp.eq.s32.totalorder %s19, 1
      %p121 = scmp.ne.s32.totalorder %s116, %s118
      %p122 = scmp.eq.s32.totalorder %s19, 0
      %p123 = por %p121, %p122
      %p124 = scmp.ne.s32.totalorder %s116, %s118
      %p125 = scmp.eq.s32.totalorder %s24, 1
      %p126 = por %p124, %p125
      %p127 = scmp.ne.s32.totalorder %s118, %s119
      %p128 = scmp.eq.s32.totalorder %s24, 0
      %p129 = por %p127, %p128
      %p130 = scmp.ne.s32.totalorder %s118, %s119
      %p131 = scmp.eq.s32.totalorder %s25, 1
      %p132 = por %p130, %p131
      %p134 = scmp.ne.s32.totalorder %s119, %s133
      %p135 = scmp.eq.s32.totalorder %s25, 0
      %p136 = por %p134, %p135
      %s137 = ssub.s32 %s19, %s26
      %p138 = scmp.eq.s32.totalorder %s137, 0
      %s140 = sadd.s32 %s139, 1
      %s141 = scalar_select %p138, %s139, %s140
      %p144 = pneg %p138
      %p145 = scmp.eq.s32.totalorder %s19, 1
      %p146 = por %p144, %p145
      %p147 = scmp.ne.s32.totalorder %s139, %s142
      %p148 = scmp.eq.s32.totalorder %s19, 0
      %p149 = por %p147, %p148
      %p150 = scmp.ne.s32.totalorder %s139, %s142
      %p151 = scmp.eq.s32.totalorder %s24, 1
      %p152 = por %p150, %p151
      %p153 = scmp.ne.s32.totalorder %s142, %s143
      %p154 = scmp.eq.s32.totalorder %s24, 0
      %p155 = por %p153, %p154
      %p156 = scmp.ne.s32.totalorder %s142, %s143
      %p157 = scmp.eq.s32.totalorder %s25, 1
      %p158 = por %p156, %p157
      %p160 = scmp.ne.s32.totalorder %s143, %s159
      %p161 = scmp.eq.s32.totalorder %s25, 0
      %p162 = por %p160, %p161
      %p163 = scmp.le.s32.totalorder 1, %s19
      %p164 = scmp.lt.s32.totalorder %s19, 3
      %p165 = pnand %p163, %p164
      %p166 = pneg %p165
      // Predicated region
      $region9: #{c2f_forward.4} parent=5 // pred_check
        _
      $region10: #{c2f_forward.4} parent=5 // pred_check_branch
        %168 = sbr.rel (%p165) target = $region12
      $region11: #{c2f_forward.4} parent=5 // pred_region
        %s169 = ssub.s32 %s19, 1
        // Predicated region
        $region13: #{c2f_forward.4} parent=11 // pred_check
          %p170 = pneg %p66
        $region14: #{c2f_forward.4} parent=11 // pred_check_branch
          %172 = sbr.rel (%p170) target = $region16
        $region15: #{c2f_forward.4} parent=11 // pred_region
          %s174 = ssub.s32 384, 384
          %175 = vsyncadd [#allocation8], %s174
          %s176 = sshll.u32 [#allocation7], 4
          %s177 = int_to_ptr.vmem [resolvable:$true] %s176
          %182 = dma.hbm_to_vmem [thread:$0]  %s1, 384, %s177, [#allocation8], 128, 128, 8
        $region16: #{c2f_forward.4} parent=11 // pred_fallthru
          _
        // Predicated region
        $region17: #{c2f_forward.4} parent=11 // pred_check
          %p183 = pneg %p87
        $region18: #{c2f_forward.4} parent=11 // pred_check_branch
          %185 = sbr.rel (%p183) target = $region20
        $region19: #{c2f_forward.4} parent=11 // pred_region
          %s187 = ssub.s32 16, 16
          %188 = vsyncadd [#allocation8], %s187
          %s190 = sshll.u32 [#allocation9], 4
          %s191 = int_to_ptr.vmem [resolvable:$true] %s190
          %193 = dma.hbm_to_vmem [thread:$0]  %s2, 16, %s191, [#allocation8]
        $region20: #{c2f_forward.4} parent=11 // pred_fallthru
          _
        // Predicated region
        $region21: #{c2f_forward.4} parent=11 // pred_check
          %p194 = pneg %p108
        $region22: #{c2f_forward.4} parent=11 // pred_check_branch
          %196 = sbr.rel (%p194) target = $region24
        $region23: #{c2f_forward.4} parent=11 // pred_region
          %s198 = ssub.s32 384, 384
          %199 = vsyncadd [#allocation11], %s198
          %s200 = sshll.u32 [#allocation10], 4
          %s201 = int_to_ptr.vmem [resolvable:$true] %s200
          %206 = dma.hbm_to_vmem [thread:$0]  %s3, 384, %s201, [#allocation11], 128, 128, 8
        $region24: #{c2f_forward.4} parent=11 // pred_fallthru
          _
        // Predicated region
        $region25: #{c2f_forward.4} parent=11 // pred_check
          %p207 = pneg %p129
        $region26: #{c2f_forward.4} parent=11 // pred_check_branch
          %209 = sbr.rel (%p207) target = $region28
        $region27: #{c2f_forward.4} parent=11 // pred_region
          %s211 = ssub.s32 16, 16
          %212 = vsyncadd [#allocation11], %s211
          %s214 = sshll.u32 [#allocation12], 4
          %s215 = int_to_ptr.vmem [resolvable:$true] %s214
          %217 = dma.hbm_to_vmem [thread:$0]  %s4, 16, %s215, [#allocation11]
        $region28: #{c2f_forward.4} parent=11 // pred_fallthru
          _
      $region12: #{c2f_forward.4} parent=5 // pred_fallthru
        _
      %p218 = scmp.lt.s32.totalorder %s19, 2
      // Predicated region
      $region29: #{c2f_forward.4} parent=5 // pred_check
        %p219 = pneg %p218
      $region30: #{c2f_forward.4} parent=5 // pred_check_branch
        %221 = sbr.rel (%p219) target = $region32
      $region31: #{c2f_forward.4} parent=5 // pred_region
        // Predicated region
        $region33: #{c2f_forward.4} parent=31 // pred_check
          %p222 = pneg %p39
        $region34: #{c2f_forward.4} parent=31 // pred_check_branch
          %224 = sbr.rel (%p222) target = $region36
        $region35: #{c2f_forward.4} parent=31 // pred_region
          %s225 = sand.u32 %s29, 1
          %s226 = scalar_lea.sflag [#allocation5], %s225
          %s227 = sand.u32 %s29, 1
          %s228 = smul.addr %s227, 256
          %s229 = scalar_lea.vmem [#allocation4], %s228
          %s230 = smul.u32 32, %s19
          %s232 = ssub.s32 4096, 4096
          %233 = vsyncadd %s226, %s232
          %s234 = smul.addr %s230, 128
          %s235 = scalar_lea.hbm %s0, %s234
          %s236 = sshll.u32 %s229, 4
          %s237 = int_to_ptr.vmem [resolvable:$true] %s236
          %242 = dma.hbm_to_vmem [thread:$0]  %s235, 4096, %s237, %s226, 128, 128, 8
        $region36: #{c2f_forward.4} parent=31 // pred_fallthru
          _
      $region32: #{c2f_forward.4} parent=5 // pred_fallthru
        _
      %p243 = scmp.le.s32.totalorder 1, %s19
      %p244 = scmp.lt.s32.totalorder %s19, 3
      %p245 = pnand %p243, %p244
      %p246 = pneg %p245
      // Predicated region
      $region37: #{c2f_forward.4} parent=5 // pred_check
        _
      $region38: #{c2f_forward.4} parent=5 // pred_check_branch
        %248 = sbr.rel (%p245) target = $region40
      $region39: #{c2f_forward.4} parent=5 // pred_region
        %s249 = ssub.s32 %s19, 1
        %s250 = sand.u32 %s32, 1
        %s251 = scalar_lea.sflag [#allocation5], %s250
        %s252 = sand.u32 %s32, 1
        %s253 = smul.addr %s252, 256
        %s254 = scalar_lea.vmem [#allocation4], %s253
        // Predicated region
        $region41: #{c2f_forward.4} parent=39 // pred_check
          %p255 = pneg %p45
        $region42: #{c2f_forward.4} parent=39 // pred_check_branch
          %257 = sbr.rel (%p255) target = $region44
        $region43: #{c2f_forward.4} parent=39 // pred_region
          %258 = dma.done %s251, 4096
        $region44: #{c2f_forward.4} parent=39 // pred_fallthru
          _
        // Predicated region
        $region45: #{c2f_forward.4} parent=39 // pred_check
          %p259 = pneg %p66
        $region46: #{c2f_forward.4} parent=39 // pred_check_branch
          %261 = sbr.rel (%p259) target = $region48
        $region47: #{c2f_forward.4} parent=39 // pred_region
          %262 = dma.done [#allocation8], 384
        $region48: #{c2f_forward.4} parent=39 // pred_fallthru
          _
        // Predicated region
        $region49: #{c2f_forward.4} parent=39 // pred_check
          %p263 = pneg %p87
        $region50: #{c2f_forward.4} parent=39 // pred_check_branch
          %265 = sbr.rel (%p263) target = $region52
        $region51: #{c2f_forward.4} parent=39 // pred_region
          %266 = dma.done [#allocation8], 16
        $region52: #{c2f_forward.4} parent=39 // pred_fallthru
          _
        // Predicated region
        $region53: #{c2f_forward.4} parent=39 // pred_check
          %p267 = pneg %p108
        $region54: #{c2f_forward.4} parent=39 // pred_check_branch
          %269 = sbr.rel (%p267) target = $region56
        $region55: #{c2f_forward.4} parent=39 // pred_region
          %270 = dma.done [#allocation11], 384
        $region56: #{c2f_forward.4} parent=39 // pred_fallthru
          _
        // Predicated region
        $region57: #{c2f_forward.4} parent=39 // pred_check
          %p271 = pneg %p129
        $region58: #{c2f_forward.4} parent=39 // pred_check_branch
          %273 = sbr.rel (%p271) target = $region60
        $region59: #{c2f_forward.4} parent=39 // pred_region
          %274 = dma.done [#allocation11], 16
        $region60: #{c2f_forward.4} parent=39 // pred_fallthru
          _
        %s275 = sand.u32 %s32, 1
        %s276 = scalar_lea.sflag [#allocation5], %s275
        %s277 = sand.u32 %s32, 1
        %s278 = smul.addr %s277, 256
        %s279 = scalar_lea.vmem [#allocation4], %s278
        %p280 = pneg %p45
        %p281 = pneg %p42
        %p282 = pneg %p66
        %p283 = pneg %p63
        %p284 = pneg %p87
        %p285 = pneg %p84
        %p286 = pneg %p108
        %p287 = pneg %p105
        %p288 = pneg %p129
        %p289 = pneg %p126
        %p290 = pneg %p155
        %p291 = pneg %p152
        %s292 = sand.u32 %s142, 1
        %s293 = scalar_lea.sflag [#allocation6], %s292
        %s294 = sand.u32 %s142, 1
        %s295 = smul.addr %s294, 256
        %s296 = scalar_lea.vmem [#allocation13], %s295
        %s297 = smul.u32 32, %s24
        %s298 = smul.u32 32, %s24
        %v299 = vld [vmem:[%s254] sm:$0xff]
        %v300 = vld [vmem:[%s254 + $0x8] sm:$0xff]
        %v301 = vld [vmem:[%s254 + $0x10] sm:$0xff]
        %v302 = vld [vmem:[%s254 + $0x18] sm:$0xff]
        %v303 = vld [vmem:[%s254 + $0x20] sm:$0xff]
        %v304 = vld [vmem:[%s254 + $0x28] sm:$0xff]
        %v305 = vld [vmem:[%s254 + $0x30] sm:$0xff]
        %v306 = vld [vmem:[%s254 + $0x38] sm:$0xff]
        %v307 = vld [vmem:[%s254 + $0x40] sm:$0xff]
        %v308 = vld [vmem:[%s254 + $0x48] sm:$0xff]
        %v309 = vld [vmem:[%s254 + $0x50] sm:$0xff]
        %v310 = vld [vmem:[%s254 + $0x58] sm:$0xff]
        %v311 = vld [vmem:[%s254 + $0x60] sm:$0xff]
        %v312 = vld [vmem:[%s254 + $0x68] sm:$0xff]
        %v313 = vld [vmem:[%s254 + $0x70] sm:$0xff]
        %v314 = vld [vmem:[%s254 + $0x78] sm:$0xff]
        %v315 = vld [vmem:[%s254 + $0x80] sm:$0xff]
        %v316 = vld [vmem:[%s254 + $0x88] sm:$0xff]
        %v317 = vld [vmem:[%s254 + $0x90] sm:$0xff]
        %v318 = vld [vmem:[%s254 + $0x98] sm:$0xff]
        %v319 = vld [vmem:[%s254 + $0xa0] sm:$0xff]
        %v320 = vld [vmem:[%s254 + $0xa8] sm:$0xff]
        %v321 = vld [vmem:[%s254 + $0xb0] sm:$0xff]
        %v322 = vld [vmem:[%s254 + $0xb8] sm:$0xff]
        %v323 = vld [vmem:[%s254 + $0xc0] sm:$0xff]
        %v324 = vld [vmem:[%s254 + $0xc8] sm:$0xff]
        %v325 = vld [vmem:[%s254 + $0xd0] sm:$0xff]
        %v326 = vld [vmem:[%s254 + $0xd8] sm:$0xff]
        %v327 = vld [vmem:[%s254 + $0xe0] sm:$0xff]
        %v328 = vld [vmem:[%s254 + $0xe8] sm:$0xff]
        %v329 = vld [vmem:[%s254 + $0xf0] sm:$0xff]
        %v330 = vld [vmem:[%s254 + $0xf8] sm:$0xff]
        %vm331 = vcmask 15360
        %332 = vst.msk [vmem:[#allocation2] sm:$0xff] %vm331, 0.0
        %333 = vst.msk [vmem:[#allocation2 + $0x8] sm:$0xff] %vm331, 0.0
        %334 = vst.msk [vmem:[#allocation2 + $0x10] sm:$0xff] %vm331, 0.0
        %vm335 = vcmask 8192
        %336 = vst.msk [vmem:[#allocation2 + $0x18] sm:$0x1] %vm335, 0.0
        %s337 = scalar_lea.vmem [#allocation2], 544
        %338 = vst.msk [vmem:[%s337] sm:$0xff] %vm331, 0.0
        %339 = vst.msk [vmem:[%s337 + $0x8] sm:$0xff] %vm331, 0.0
        %340 = vst.msk [vmem:[%s337 + $0x10] sm:$0xff] %vm331, 0.0
        %341 = vst.msk [vmem:[%s337 + $0x18] sm:$0x1] %vm335, 0.0
        %s342 = scalar_lea.vmem [#allocation2], 32
        %343 = vst.msk [vmem:[%s342 + $0x7] sm:$0x1] %vm335, 0.0
        %344 = vst.msk [vmem:[%s342 + $0x27] sm:$0x1] %vm335, 0.0
        %345 = vst.msk [vmem:[%s342 + $0x47] sm:$0x1] %vm335, 0.0
        %346 = vst.msk [vmem:[%s342 + $0x67] sm:$0x1] %vm335, 0.0
        %347 = vst.msk [vmem:[%s342 + $0x87] sm:$0x1] %vm335, 0.0
        %348 = vst.msk [vmem:[%s342 + $0xa7] sm:$0x1] %vm335, 0.0
        %349 = vst.msk [vmem:[%s342 + $0xc7] sm:$0x1] %vm335, 0.0
        %350 = vst.msk [vmem:[%s342 + $0xe7] sm:$0x1] %vm335, 0.0
        %351 = vst.msk [vmem:[%s342 + $0x107] sm:$0x1] %vm335, 0.0
        %352 = vst.msk [vmem:[%s342 + $0x127] sm:$0x1] %vm335, 0.0
        %353 = vst.msk [vmem:[%s342 + $0x147] sm:$0x1] %vm335, 0.0
        %354 = vst.msk [vmem:[%s342 + $0x167] sm:$0x1] %vm335, 0.0
        %355 = vst.msk [vmem:[%s342 + $0x187] sm:$0x1] %vm335, 0.0
        %356 = vst.msk [vmem:[%s342 + $0x1a7] sm:$0x1] %vm335, 0.0
        %357 = vst.msk [vmem:[%s342 + $0x1c7] sm:$0x1] %vm335, 0.0
        %358 = vst.msk [vmem:[%s342 + $0x1e7] sm:$0x1] %vm335, 0.0
        %359 = vst.msk [vmem:[%s342 + $0x18] sm:$0x1] %vm335, 0.0
        %360 = vst.msk [vmem:[%s342 + $0x38] sm:$0x1] %vm335, 0.0
        %361 = vst.msk [vmem:[%s342 + $0x58] sm:$0x1] %vm335, 0.0
        %362 = vst.msk [vmem:[%s342 + $0x78] sm:$0x1] %vm335, 0.0
        %363 = vst.msk [vmem:[%s342 + $0x98] sm:$0x1] %vm335, 0.0
        %364 = vst.msk [vmem:[%s342 + $0xb8] sm:$0x1] %vm335, 0.0
        %365 = vst.msk [vmem:[%s342 + $0xd8] sm:$0x1] %vm335, 0.0
        %366 = vst.msk [vmem:[%s342 + $0xf8] sm:$0x1] %vm335, 0.0
        %367 = vst.msk [vmem:[%s342 + $0x118] sm:$0x1] %vm335, 0.0
        %368 = vst.msk [vmem:[%s342 + $0x138] sm:$0x1] %vm335, 0.0
        %369 = vst.msk [vmem:[%s342 + $0x158] sm:$0x1] %vm335, 0.0
        %370 = vst.msk [vmem:[%s342 + $0x178] sm:$0x1] %vm335, 0.0
        %371 = vst.msk [vmem:[%s342 + $0x198] sm:$0x1] %vm335, 0.0
        %372 = vst.msk [vmem:[%s342 + $0x1b8] sm:$0x1] %vm335, 0.0
        %373 = vst.msk [vmem:[%s342 + $0x1d8] sm:$0x1] %vm335, 0.0
        %374 = vst.msk [vmem:[%s342 + $0x1f8] sm:$0x1] %vm335, 0.0
        %375 = vst.msk [vmem:[%s342 + $0x8] sm:$0xff] %vm331, %v299
        %376 = vst.msk [vmem:[%s342 + $0x10] sm:$0xff] %vm331, %v300
        %377 = vst.msk [vmem:[%s342 + $0x28] sm:$0xff] %vm331, %v301
        %378 = vst.msk [vmem:[%s342 + $0x30] sm:$0xff] %vm331, %v302
        %379 = vst.msk [vmem:[%s342 + $0x48] sm:$0xff] %vm331, %v303
        %380 = vst.msk [vmem:[%s342 + $0x50] sm:$0xff] %vm331, %v304
        %381 = vst.msk [vmem:[%s342 + $0x68] sm:$0xff] %vm331, %v305
        %382 = vst.msk [vmem:[%s342 + $0x70] sm:$0xff] %vm331, %v306
        %383 = vst.msk [vmem:[%s342 + $0x88] sm:$0xff] %vm331, %v307
        %384 = vst.msk [vmem:[%s342 + $0x90] sm:$0xff] %vm331, %v308
        %385 = vst.msk [vmem:[%s342 + $0xa8] sm:$0xff] %vm331, %v309
        %386 = vst.msk [vmem:[%s342 + $0xb0] sm:$0xff] %vm331, %v310
        %387 = vst.msk [vmem:[%s342 + $0xc8] sm:$0xff] %vm331, %v311
        %388 = vst.msk [vmem:[%s342 + $0xd0] sm:$0xff] %vm331, %v312
        %389 = vst.msk [vmem:[%s342 + $0xe8] sm:$0xff] %vm331, %v313
        %390 = vst.msk [vmem:[%s342 + $0xf0] sm:$0xff] %vm331, %v314
        %391 = vst.msk [vmem:[%s342 + $0x108] sm:$0xff] %vm331, %v315
        %392 = vst.msk [vmem:[%s342 + $0x110] sm:$0xff] %vm331, %v316
        %393 = vst.msk [vmem:[%s342 + $0x128] sm:$0xff] %vm331, %v317
        %394 = vst.msk [vmem:[%s342 + $0x130] sm:$0xff] %vm331, %v318
        %395 = vst.msk [vmem:[%s342 + $0x148] sm:$0xff] %vm331, %v319
        %396 = vst.msk [vmem:[%s342 + $0x150] sm:$0xff] %vm331, %v320
        %397 = vst.msk [vmem:[%s342 + $0x168] sm:$0xff] %vm331, %v321
        %398 = vst.msk [vmem:[%s342 + $0x170] sm:$0xff] %vm331, %v322
        %399 = vst.msk [vmem:[%s342 + $0x188] sm:$0xff] %vm331, %v323
        %400 = vst.msk [vmem:[%s342 + $0x190] sm:$0xff] %vm331, %v324
        %401 = vst.msk [vmem:[%s342 + $0x1a8] sm:$0xff] %vm331, %v325
        %402 = vst.msk [vmem:[%s342 + $0x1b0] sm:$0xff] %vm331, %v326
        %403 = vst.msk [vmem:[%s342 + $0x1c8] sm:$0xff] %vm331, %v327
        %404 = vst.msk [vmem:[%s342 + $0x1d0] sm:$0xff] %vm331, %v328
        %405 = vst.msk [vmem:[%s342 + $0x1e8] sm:$0xff] %vm331, %v329
        %406 = vst.msk [vmem:[%s342 + $0x1f0] sm:$0xff] %vm331, %v330
        %v407 = vld [vmem:[#allocation2 + $0x7] sm:$0xff]
        %v408 = vld [vmem:[#allocation2 + $0xf] sm:$0xff]
        %v409 = vld [vmem:[#allocation2 + $0x27] sm:$0xff]
        %v410 = vld [vmem:[#allocation2 + $0x2f] sm:$0xff]
        %v411 = vld [vmem:[#allocation2 + $0x47] sm:$0xff]
        %v412 = vld [vmem:[#allocation2 + $0x4f] sm:$0xff]
        %v413 = vld [vmem:[#allocation2 + $0x67] sm:$0xff]
        %v414 = vld [vmem:[#allocation2 + $0x6f] sm:$0xff]
        %v415 = vld [vmem:[#allocation2 + $0x87] sm:$0xff]
        %v416 = vld [vmem:[#allocation2 + $0x8f] sm:$0xff]
        %v417 = vld [vmem:[#allocation2 + $0xa7] sm:$0xff]
        %v418 = vld [vmem:[#allocation2 + $0xaf] sm:$0xff]
        %v419 = vld [vmem:[#allocation2 + $0xc7] sm:$0xff]
        %v420 = vld [vmem:[#allocation2 + $0xcf] sm:$0xff]
        %v421 = vld [vmem:[#allocation2 + $0xe7] sm:$0xff]
        %v422 = vld [vmem:[#allocation2 + $0xef] sm:$0xff]
        %v423 = vld [vmem:[#allocation2 + $0x107] sm:$0xff]
        %v424 = vld [vmem:[#allocation2 + $0x10f] sm:$0xff]
        %v425 = vld [vmem:[#allocation2 + $0x127] sm:$0xff]
        %v426 = vld [vmem:[#allocation2 + $0x12f] sm:$0xff]
        %v427 = vld [vmem:[#allocation2 + $0x147] sm:$0xff]
        %v428 = vld [vmem:[#allocation2 + $0x14f] sm:$0xff]
        %v429 = vld [vmem:[#allocation2 + $0x167] sm:$0xff]
        %v430 = vld [vmem:[#allocation2 + $0x16f] sm:$0xff]
        %v431 = vld [vmem:[#allocation2 + $0x187] sm:$0xff]
        %v432 = vld [vmem:[#allocation2 + $0x18f] sm:$0xff]
        %v433 = vld [vmem:[#allocation2 + $0x1a7] sm:$0xff]
        %v434 = vld [vmem:[#allocation2 + $0x1af] sm:$0xff]
        %v435 = vld [vmem:[#allocation2 + $0x1c7] sm:$0xff]
        %v436 = vld [vmem:[#allocation2 + $0x1cf] sm:$0xff]
        %v437 = vld [vmem:[#allocation2 + $0x1e7] sm:$0xff]
        %v438 = vld [vmem:[#allocation2 + $0x1ef] sm:$0xff]
        %439 = vst.msk [vmem:[#allocation3] sm:$0xff] %vm331, %v407
        %440 = vst.msk [vmem:[#allocation3 + $0x8] sm:$0xff] %vm331, %v408
        %441 = vst.msk [vmem:[#allocation3 + $0x10] sm:$0xff] %vm331, %v409
        %442 = vst.msk [vmem:[#allocation3 + $0x18] sm:$0xff] %vm331, %v410
        %443 = vst.msk [vmem:[#allocation3 + $0x20] sm:$0xff] %vm331, %v411
        %444 = vst.msk [vmem:[#allocation3 + $0x28] sm:$0xff] %vm331, %v412
        %445 = vst.msk [vmem:[#allocation3 + $0x30] sm:$0xff] %vm331, %v413
        %446 = vst.msk [vmem:[#allocation3 + $0x38] sm:$0xff] %vm331, %v414
        %447 = vst.msk [vmem:[#allocation3 + $0x40] sm:$0xff] %vm331, %v415
        %448 = vst.msk [vmem:[#allocation3 + $0x48] sm:$0xff] %vm331, %v416
        %449 = vst.msk [vmem:[#allocation3 + $0x50] sm:$0xff] %vm331, %v417
        %450 = vst.msk [vmem:[#allocation3 + $0x58] sm:$0xff] %vm331, %v418
        %451 = vst.msk [vmem:[#allocation3 + $0x60] sm:$0xff] %vm331, %v419
        %452 = vst.msk [vmem:[#allocation3 + $0x68] sm:$0xff] %vm331, %v420
        %453 = vst.msk [vmem:[#allocation3 + $0x70] sm:$0xff] %vm331, %v421
        %454 = vst.msk [vmem:[#allocation3 + $0x78] sm:$0xff] %vm331, %v422
        %455 = vst.msk [vmem:[#allocation3 + $0x80] sm:$0xff] %vm331, %v423
        %456 = vst.msk [vmem:[#allocation3 + $0x88] sm:$0xff] %vm331, %v424
        %457 = vst.msk [vmem:[#allocation3 + $0x90] sm:$0xff] %vm331, %v425
        %458 = vst.msk [vmem:[#allocation3 + $0x98] sm:$0xff] %vm331, %v426
        %459 = vst.msk [vmem:[#allocation3 + $0xa0] sm:$0xff] %vm331, %v427
        %460 = vst.msk [vmem:[#allocation3 + $0xa8] sm:$0xff] %vm331, %v428
        %461 = vst.msk [vmem:[#allocation3 + $0xb0] sm:$0xff] %vm331, %v429
        %462 = vst.msk [vmem:[#allocation3 + $0xb8] sm:$0xff] %vm331, %v430
        %463 = vst.msk [vmem:[#allocation3 + $0xc0] sm:$0xff] %vm331, %v431
        %464 = vst.msk [vmem:[#allocation3 + $0xc8] sm:$0xff] %vm331, %v432
        %465 = vst.msk [vmem:[#allocation3 + $0xd0] sm:$0xff] %vm331, %v433
        %466 = vst.msk [vmem:[#allocation3 + $0xd8] sm:$0xff] %vm331, %v434
        %467 = vst.msk [vmem:[#allocation3 + $0xe0] sm:$0xff] %vm331, %v435
        %468 = vst.msk [vmem:[#allocation3 + $0xe8] sm:$0xff] %vm331, %v436
        %469 = vst.msk [vmem:[#allocation3 + $0xf0] sm:$0xff] %vm331, %v437
        %470 = vst.msk [vmem:[#allocation3 + $0xf8] sm:$0xff] %vm331, %v438
        %v471 = vld [vmem:[#allocation2 + $0x8] sm:$0xff]
        %v472 = vld [vmem:[#allocation2 + $0x10] sm:$0xff]
        %v473 = vld [vmem:[#allocation2 + $0x28] sm:$0xff]
        %v474 = vld [vmem:[#allocation2 + $0x30] sm:$0xff]
        %v475 = vld [vmem:[#allocation2 + $0x48] sm:$0xff]
        %v476 = vld [vmem:[#allocation2 + $0x50] sm:$0xff]
        %v477 = vld [vmem:[#allocation2 + $0x68] sm:$0xff]
        %v478 = vld [vmem:[#allocation2 + $0x70] sm:$0xff]
        %v479 = vld [vmem:[#allocation2 + $0x88] sm:$0xff]
        %v480 = vld [vmem:[#allocation2 + $0x90] sm:$0xff]
        %v481 = vld [vmem:[#allocation2 + $0xa8] sm:$0xff]
        %v482 = vld [vmem:[#allocation2 + $0xb0] sm:$0xff]
        %v483 = vld [vmem:[#allocation2 + $0xc8] sm:$0xff]
        %v484 = vld [vmem:[#allocation2 + $0xd0] sm:$0xff]
        %v485 = vld [vmem:[#allocation2 + $0xe8] sm:$0xff]
        %v486 = vld [vmem:[#allocation2 + $0xf0] sm:$0xff]
        %v487 = vld [vmem:[#allocation2 + $0x108] sm:$0xff]
        %v488 = vld [vmem:[#allocation2 + $0x110] sm:$0xff]
        %v489 = vld [vmem:[#allocation2 + $0x128] sm:$0xff]
        %v490 = vld [vmem:[#allocation2 + $0x130] sm:$0xff]
        %v491 = vld [vmem:[#allocation2 + $0x148] sm:$0xff]
        %v492 = vld [vmem:[#allocation2 + $0x150] sm:$0xff]
        %v493 = vld [vmem:[#allocation2 + $0x168] sm:$0xff]
        %v494 = vld [vmem:[#allocation2 + $0x170] sm:$0xff]
        %v495 = vld [vmem:[#allocation2 + $0x188] sm:$0xff]
        %v496 = vld [vmem:[#allocation2 + $0x190] sm:$0xff]
        %v497 = vld [vmem:[#allocation2 + $0x1a8] sm:$0xff]
        %v498 = vld [vmem:[#allocation2 + $0x1b0] sm:$0xff]
        %v499 = vld [vmem:[#allocation2 + $0x1c8] sm:$0xff]
        %v500 = vld [vmem:[#allocation2 + $0x1d0] sm:$0xff]
        %v501 = vld [vmem:[#allocation2 + $0x1e8] sm:$0xff]
        %v502 = vld [vmem:[#allocation2 + $0x1f0] sm:$0xff]
        %535 = vrot.lane.b32.xlu0 %v471, 2
        %v536 = vpop.permute.xlu0 %535
        %537 = vrot.lane.b32.xlu0 %v472, 2
        %v538 = vpop.permute.xlu0 %537
        %539 = vrot.lane.b32.xlu0 %v473, 2
        %v540 = vpop.permute.xlu0 %539
        %541 = vrot.lane.b32.xlu0 %v474, 2
        %v542 = vpop.permute.xlu0 %541
        %543 = vrot.lane.b32.xlu0 %v475, 2
        %v544 = vpop.permute.xlu0 %543
        %545 = vrot.lane.b32.xlu0 %v476, 2
        %v546 = vpop.permute.xlu0 %545
        %547 = vrot.lane.b32.xlu0 %v477, 2
        %v548 = vpop.permute.xlu0 %547
        %549 = vrot.lane.b32.xlu0 %v478, 2
        %v550 = vpop.permute.xlu0 %549
        %551 = vrot.lane.b32.xlu0 %v479, 2
        %v552 = vpop.permute.xlu0 %551
        %553 = vrot.lane.b32.xlu0 %v480, 2
        %v554 = vpop.permute.xlu0 %553
        %555 = vrot.lane.b32.xlu0 %v481, 2
        %v556 = vpop.permute.xlu0 %555
        %557 = vrot.lane.b32.xlu0 %v482, 2
        %v558 = vpop.permute.xlu0 %557
        %559 = vrot.lane.b32.xlu0 %v483, 2
        %v560 = vpop.permute.xlu0 %559
        %561 = vrot.lane.b32.xlu0 %v484, 2
        %v562 = vpop.permute.xlu0 %561
        %563 = vrot.lane.b32.xlu0 %v485, 2
        %v564 = vpop.permute.xlu0 %563
        %565 = vrot.lane.b32.xlu0 %v486, 2
        %v566 = vpop.permute.xlu0 %565
        %567 = vrot.lane.b32.xlu0 %v487, 2
        %v568 = vpop.permute.xlu0 %567
        %569 = vrot.lane.b32.xlu0 %v488, 2
        %v570 = vpop.permute.xlu0 %569
        %571 = vrot.lane.b32.xlu0 %v489, 2
        %v572 = vpop.permute.xlu0 %571
        %573 = vrot.lane.b32.xlu0 %v490, 2
        %v574 = vpop.permute.xlu0 %573
        %575 = vrot.lane.b32.xlu0 %v491, 2
        %v576 = vpop.permute.xlu0 %575
        %577 = vrot.lane.b32.xlu0 %v492, 2
        %v578 = vpop.permute.xlu0 %577
        %579 = vrot.lane.b32.xlu0 %v493, 2
        %v580 = vpop.permute.xlu0 %579
        %581 = vrot.lane.b32.xlu0 %v494, 2
        %v582 = vpop.permute.xlu0 %581
        %583 = vrot.lane.b32.xlu0 %v495, 2
        %v584 = vpop.permute.xlu0 %583
        %585 = vrot.lane.b32.xlu0 %v496, 2
        %v586 = vpop.permute.xlu0 %585
        %587 = vrot.lane.b32.xlu0 %v497, 2
        %v588 = vpop.permute.xlu0 %587
        %589 = vrot.lane.b32.xlu0 %v498, 2
        %v590 = vpop.permute.xlu0 %589
        %591 = vrot.lane.b32.xlu0 %v499, 2
        %v592 = vpop.permute.xlu0 %591
        %593 = vrot.lane.b32.xlu0 %v500, 2
        %v594 = vpop.permute.xlu0 %593
        %595 = vrot.lane.b32.xlu0 %v501, 2
        %v596 = vpop.permute.xlu0 %595
        %597 = vrot.lane.b32.xlu0 %v502, 2
        %v598 = vpop.permute.xlu0 %597
        %vm631 = vcmask 31760
        %632 = vst.msk [vmem:[#allocation3] sm:$0xff] %vm631, %v536
        %633 = vst.msk [vmem:[#allocation3 + $0x8] sm:$0xff] %vm631, %v538
        %634 = vst.msk [vmem:[#allocation3 + $0x10] sm:$0xff] %vm631, %v540
        %635 = vst.msk [vmem:[#allocation3 + $0x18] sm:$0xff] %vm631, %v542
        %636 = vst.msk [vmem:[#allocation3 + $0x20] sm:$0xff] %vm631, %v544
        %637 = vst.msk [vmem:[#allocation3 + $0x28] sm:$0xff] %vm631, %v546
        %638 = vst.msk [vmem:[#allocation3 + $0x30] sm:$0xff] %vm631, %v548
        %639 = vst.msk [vmem:[#allocation3 + $0x38] sm:$0xff] %vm631, %v550
        %640 = vst.msk [vmem:[#allocation3 + $0x40] sm:$0xff] %vm631, %v552
        %641 = vst.msk [vmem:[#allocation3 + $0x48] sm:$0xff] %vm631, %v554
        %642 = vst.msk [vmem:[#allocation3 + $0x50] sm:$0xff] %vm631, %v556
        %643 = vst.msk [vmem:[#allocation3 + $0x58] sm:$0xff] %vm631, %v558
        %644 = vst.msk [vmem:[#allocation3 + $0x60] sm:$0xff] %vm631, %v560
        %645 = vst.msk [vmem:[#allocation3 + $0x68] sm:$0xff] %vm631, %v562
        %646 = vst.msk [vmem:[#allocation3 + $0x70] sm:$0xff] %vm631, %v564
        %647 = vst.msk [vmem:[#allocation3 + $0x78] sm:$0xff] %vm631, %v566
        %648 = vst.msk [vmem:[#allocation3 + $0x80] sm:$0xff] %vm631, %v568
        %649 = vst.msk [vmem:[#allocation3 + $0x88] sm:$0xff] %vm631, %v570
        %650 = vst.msk [vmem:[#allocation3 + $0x90] sm:$0xff] %vm631, %v572
        %651 = vst.msk [vmem:[#allocation3 + $0x98] sm:$0xff] %vm631, %v574
        %652 = vst.msk [vmem:[#allocation3 + $0xa0] sm:$0xff] %vm631, %v576
        %653 = vst.msk [vmem:[#allocation3 + $0xa8] sm:$0xff] %vm631, %v578
        %654 = vst.msk [vmem:[#allocation3 + $0xb0] sm:$0xff] %vm631, %v580
        %655 = vst.msk [vmem:[#allocation3 + $0xb8] sm:$0xff] %vm631, %v582
        %656 = vst.msk [vmem:[#allocation3 + $0xc0] sm:$0xff] %vm631, %v584
        %657 = vst.msk [vmem:[#allocation3 + $0xc8] sm:$0xff] %vm631, %v586
        %658 = vst.msk [vmem:[#allocation3 + $0xd0] sm:$0xff] %vm631, %v588
        %659 = vst.msk [vmem:[#allocation3 + $0xd8] sm:$0xff] %vm631, %v590
        %660 = vst.msk [vmem:[#allocation3 + $0xe0] sm:$0xff] %vm631, %v592
        %661 = vst.msk [vmem:[#allocation3 + $0xe8] sm:$0xff] %vm631, %v594
        %662 = vst.msk [vmem:[#allocation3 + $0xf0] sm:$0xff] %vm631, %v596
        %663 = vst.msk [vmem:[#allocation3 + $0xf8] sm:$0xff] %vm631, %v598
        %v664 = vld [vmem:[#allocation2 + $0x9] sm:$0xff]
        %v665 = vld [vmem:[#allocation2 + $0x11] sm:$0xff]
        %v666 = vld [vmem:[#allocation2 + $0x29] sm:$0xff]
        %v667 = vld [vmem:[#allocation2 + $0x31] sm:$0xff]
        %v668 = vld [vmem:[#allocation2 + $0x49] sm:$0xff]
        %v669 = vld [vmem:[#allocation2 + $0x51] sm:$0xff]
        %v670 = vld [vmem:[#allocation2 + $0x69] sm:$0xff]
        %v671 = vld [vmem:[#allocation2 + $0x71] sm:$0xff]
        %v672 = vld [vmem:[#allocation2 + $0x89] sm:$0xff]
        %v673 = vld [vmem:[#allocation2 + $0x91] sm:$0xff]
        %v674 = vld [vmem:[#allocation2 + $0xa9] sm:$0xff]
        %v675 = vld [vmem:[#allocation2 + $0xb1] sm:$0xff]
        %v676 = vld [vmem:[#allocation2 + $0xc9] sm:$0xff]
        %v677 = vld [vmem:[#allocation2 + $0xd1] sm:$0xff]
        %v678 = vld [vmem:[#allocation2 + $0xe9] sm:$0xff]
        %v679 = vld [vmem:[#allocation2 + $0xf1] sm:$0xff]
        %v680 = vld [vmem:[#allocation2 + $0x109] sm:$0xff]
        %v681 = vld [vmem:[#allocation2 + $0x111] sm:$0xff]
        %v682 = vld [vmem:[#allocation2 + $0x129] sm:$0xff]
        %v683 = vld [vmem:[#allocation2 + $0x131] sm:$0xff]
        %v684 = vld [vmem:[#allocation2 + $0x149] sm:$0xff]
        %v685 = vld [vmem:[#allocation2 + $0x151] sm:$0xff]
        %v686 = vld [vmem:[#allocation2 + $0x169] sm:$0xff]
        %v687 = vld [vmem:[#allocation2 + $0x171] sm:$0xff]
        %v688 = vld [vmem:[#allocation2 + $0x189] sm:$0xff]
        %v689 = vld [vmem:[#allocation2 + $0x191] sm:$0xff]
        %v690 = vld [vmem:[#allocation2 + $0x1a9] sm:$0xff]
        %v691 = vld [vmem:[#allocation2 + $0x1b1] sm:$0xff]
        %v692 = vld [vmem:[#allocation2 + $0x1c9] sm:$0xff]
        %v693 = vld [vmem:[#allocation2 + $0x1d1] sm:$0xff]
        %v694 = vld [vmem:[#allocation2 + $0x1e9] sm:$0xff]
        %v695 = vld [vmem:[#allocation2 + $0x1f1] sm:$0xff]
        %728 = vrot.lane.b32.xlu0 %v664, 4
        %v729 = vpop.permute.xlu0 %728
        %730 = vrot.lane.b32.xlu0 %v665, 4
        %v731 = vpop.permute.xlu0 %730
        %732 = vrot.lane.b32.xlu0 %v666, 4
        %v733 = vpop.permute.xlu0 %732
        %734 = vrot.lane.b32.xlu0 %v667, 4
        %v735 = vpop.permute.xlu0 %734
        %736 = vrot.lane.b32.xlu0 %v668, 4
        %v737 = vpop.permute.xlu0 %736
        %738 = vrot.lane.b32.xlu0 %v669, 4
        %v739 = vpop.permute.xlu0 %738
        %740 = vrot.lane.b32.xlu0 %v670, 4
        %v741 = vpop.permute.xlu0 %740
        %742 = vrot.lane.b32.xlu0 %v671, 4
        %v743 = vpop.permute.xlu0 %742
        %744 = vrot.lane.b32.xlu0 %v672, 4
        %v745 = vpop.permute.xlu0 %744
        %746 = vrot.lane.b32.xlu0 %v673, 4
        %v747 = vpop.permute.xlu0 %746
        %748 = vrot.lane.b32.xlu0 %v674, 4
        %v749 = vpop.permute.xlu0 %748
        %750 = vrot.lane.b32.xlu0 %v675, 4
        %v751 = vpop.permute.xlu0 %750
        %752 = vrot.lane.b32.xlu0 %v676, 4
        %v753 = vpop.permute.xlu0 %752
        %754 = vrot.lane.b32.xlu0 %v677, 4
        %v755 = vpop.permute.xlu0 %754
        %756 = vrot.lane.b32.xlu0 %v678, 4
        %v757 = vpop.permute.xlu0 %756
        %758 = vrot.lane.b32.xlu0 %v679, 4
        %v759 = vpop.permute.xlu0 %758
        %760 = vrot.lane.b32.xlu0 %v680, 4
        %v761 = vpop.permute.xlu0 %760
        %762 = vrot.lane.b32.xlu0 %v681, 4
        %v763 = vpop.permute.xlu0 %762
        %764 = vrot.lane.b32.xlu0 %v682, 4
        %v765 = vpop.permute.xlu0 %764
        %766 = vrot.lane.b32.xlu0 %v683, 4
        %v767 = vpop.permute.xlu0 %766
        %768 = vrot.lane.b32.xlu0 %v684, 4
        %v769 = vpop.permute.xlu0 %768
        %770 = vrot.lane.b32.xlu0 %v685, 4
        %v771 = vpop.permute.xlu0 %770
        %772 = vrot.lane.b32.xlu0 %v686, 4
        %v773 = vpop.permute.xlu0 %772
        %774 = vrot.lane.b32.xlu0 %v687, 4
        %v775 = vpop.permute.xlu0 %774
        %776 = vrot.lane.b32.xlu0 %v688, 4
        %v777 = vpop.permute.xlu0 %776
        %778 = vrot.lane.b32.xlu0 %v689, 4
        %v779 = vpop.permute.xlu0 %778
        %780 = vrot.lane.b32.xlu0 %v690, 4
        %v781 = vpop.permute.xlu0 %780
        %782 = vrot.lane.b32.xlu0 %v691, 4
        %v783 = vpop.permute.xlu0 %782
        %784 = vrot.lane.b32.xlu0 %v692, 4
        %v785 = vpop.permute.xlu0 %784
        %786 = vrot.lane.b32.xlu0 %v693, 4
        %v787 = vpop.permute.xlu0 %786
        %788 = vrot.lane.b32.xlu0 %v694, 4
        %v789 = vpop.permute.xlu0 %788
        %790 = vrot.lane.b32.xlu0 %v695, 4
        %v791 = vpop.permute.xlu0 %790
        %vm824 = vcmask 48160
        %825 = vst.msk [vmem:[#allocation3] sm:$0xff] %vm824, %v729
        %826 = vst.msk [vmem:[#allocation3 + $0x8] sm:$0xff] %vm824, %v731
        %827 = vst.msk [vmem:[#allocation3 + $0x10] sm:$0xff] %vm824, %v733
        %828 = vst.msk [vmem:[#allocation3 + $0x18] sm:$0xff] %vm824, %v735
        %829 = vst.msk [vmem:[#allocation3 + $0x20] sm:$0xff] %vm824, %v737
        %830 = vst.msk [vmem:[#allocation3 + $0x28] sm:$0xff] %vm824, %v739
        %831 = vst.msk [vmem:[#allocation3 + $0x30] sm:$0xff] %vm824, %v741
        %832 = vst.msk [vmem:[#allocation3 + $0x38] sm:$0xff] %vm824, %v743
        %833 = vst.msk [vmem:[#allocation3 + $0x40] sm:$0xff] %vm824, %v745
        %834 = vst.msk [vmem:[#allocation3 + $0x48] sm:$0xff] %vm824, %v747
        %835 = vst.msk [vmem:[#allocation3 + $0x50] sm:$0xff] %vm824, %v749
        %836 = vst.msk [vmem:[#allocation3 + $0x58] sm:$0xff] %vm824, %v751
        %837 = vst.msk [vmem:[#allocation3 + $0x60] sm:$0xff] %vm824, %v753
        %838 = vst.msk [vmem:[#allocation3 + $0x68] sm:$0xff] %vm824, %v755
        %839 = vst.msk [vmem:[#allocation3 + $0x70] sm:$0xff] %vm824, %v757
        %840 = vst.msk [vmem:[#allocation3 + $0x78] sm:$0xff] %vm824, %v759
        %841 = vst.msk [vmem:[#allocation3 + $0x80] sm:$0xff] %vm824, %v761
        %842 = vst.msk [vmem:[#allocation3 + $0x88] sm:$0xff] %vm824, %v763
        %843 = vst.msk [vmem:[#allocation3 + $0x90] sm:$0xff] %vm824, %v765
        %844 = vst.msk [vmem:[#allocation3 + $0x98] sm:$0xff] %vm824, %v767
        %845 = vst.msk [vmem:[#allocation3 + $0xa0] sm:$0xff] %vm824, %v769
        %846 = vst.msk [vmem:[#allocation3 + $0xa8] sm:$0xff] %vm824, %v771
        %847 = vst.msk [vmem:[#allocation3 + $0xb0] sm:$0xff] %vm824, %v773
        %848 = vst.msk [vmem:[#allocation3 + $0xb8] sm:$0xff] %vm824, %v775
        %849 = vst.msk [vmem:[#allocation3 + $0xc0] sm:$0xff] %vm824, %v777
        %850 = vst.msk [vmem:[#allocation3 + $0xc8] sm:$0xff] %vm824, %v779
        %851 = vst.msk [vmem:[#allocation3 + $0xd0] sm:$0xff] %vm824, %v781
        %852 = vst.msk [vmem:[#allocation3 + $0xd8] sm:$0xff] %vm824, %v783
        %853 = vst.msk [vmem:[#allocation3 + $0xe0] sm:$0xff] %vm824, %v785
        %854 = vst.msk [vmem:[#allocation3 + $0xe8] sm:$0xff] %vm824, %v787
        %855 = vst.msk [vmem:[#allocation3 + $0xf0] sm:$0xff] %vm824, %v789
        %856 = vst.msk [vmem:[#allocation3 + $0xf8] sm:$0xff] %vm824, %v791
        %v857 = vld [vmem:[%s342 + $0x7] sm:$0xff]
        %v858 = vld [vmem:[%s342 + $0xf] sm:$0xff]
        %v859 = vld [vmem:[%s342 + $0x27] sm:$0xff]
        %v860 = vld [vmem:[%s342 + $0x2f] sm:$0xff]
        %v861 = vld [vmem:[%s342 + $0x47] sm:$0xff]
        %v862 = vld [vmem:[%s342 + $0x4f] sm:$0xff]
        %v863 = vld [vmem:[%s342 + $0x67] sm:$0xff]
        %v864 = vld [vmem:[%s342 + $0x6f] sm:$0xff]
        %v865 = vld [vmem:[%s342 + $0x87] sm:$0xff]
        %v866 = vld [vmem:[%s342 + $0x8f] sm:$0xff]
        %v867 = vld [vmem:[%s342 + $0xa7] sm:$0xff]
        %v868 = vld [vmem:[%s342 + $0xaf] sm:$0xff]
        %v869 = vld [vmem:[%s342 + $0xc7] sm:$0xff]
        %v870 = vld [vmem:[%s342 + $0xcf] sm:$0xff]
        %v871 = vld [vmem:[%s342 + $0xe7] sm:$0xff]
        %v872 = vld [vmem:[%s342 + $0xef] sm:$0xff]
        %v873 = vld [vmem:[%s342 + $0x107] sm:$0xff]
        %v874 = vld [vmem:[%s342 + $0x10f] sm:$0xff]
        %v875 = vld [vmem:[%s342 + $0x127] sm:$0xff]
        %v876 = vld [vmem:[%s342 + $0x12f] sm:$0xff]
        %v877 = vld [vmem:[%s342 + $0x147] sm:$0xff]
        %v878 = vld [vmem:[%s342 + $0x14f] sm:$0xff]
        %v879 = vld [vmem:[%s342 + $0x167] sm:$0xff]
        %v880 = vld [vmem:[%s342 + $0x16f] sm:$0xff]
        %v881 = vld [vmem:[%s342 + $0x187] sm:$0xff]
        %v882 = vld [vmem:[%s342 + $0x18f] sm:$0xff]
        %v883 = vld [vmem:[%s342 + $0x1a7] sm:$0xff]
        %v884 = vld [vmem:[%s342 + $0x1af] sm:$0xff]
        %v885 = vld [vmem:[%s342 + $0x1c7] sm:$0xff]
        %v886 = vld [vmem:[%s342 + $0x1cf] sm:$0xff]
        %v887 = vld [vmem:[%s342 + $0x1e7] sm:$0xff]
        %v888 = vld [vmem:[%s342 + $0x1ef] sm:$0xff]
        %921 = vrot.lane.b32.xlu0 %v857, 6
        %v922 = vpop.permute.xlu0 %921
        %923 = vrot.lane.b32.xlu0 %v858, 6
        %v924 = vpop.permute.xlu0 %923
        %925 = vrot.lane.b32.xlu0 %v859, 6
        %v926 = vpop.permute.xlu0 %925
        %927 = vrot.lane.b32.xlu0 %v860, 6
        %v928 = vpop.permute.xlu0 %927
        %929 = vrot.lane.b32.xlu0 %v861, 6
        %v930 = vpop.permute.xlu0 %929
        %931 = vrot.lane.b32.xlu0 %v862, 6
        %v932 = vpop.permute.xlu0 %931
        %933 = vrot.lane.b32.xlu0 %v863, 6
        %v934 = vpop.permute.xlu0 %933
        %935 = vrot.lane.b32.xlu0 %v864, 6
        %v936 = vpop.permute.xlu0 %935
        %937 = vrot.lane.b32.xlu0 %v865, 6
        %v938 = vpop.permute.xlu0 %937
        %939 = vrot.lane.b32.xlu0 %v866, 6
        %v940 = vpop.permute.xlu0 %939
        %941 = vrot.lane.b32.xlu0 %v867, 6
        %v942 = vpop.permute.xlu0 %941
        %943 = vrot.lane.b32.xlu0 %v868, 6
        %v944 = vpop.permute.xlu0 %943
        %945 = vrot.lane.b32.xlu0 %v869, 6
        %v946 = vpop.permute.xlu0 %945
        %947 = vrot.lane.b32.xlu0 %v870, 6
        %v948 = vpop.permute.xlu0 %947
        %949 = vrot.lane.b32.xlu0 %v871, 6
        %v950 = vpop.permute.xlu0 %949
        %951 = vrot.lane.b32.xlu0 %v872, 6
        %v952 = vpop.permute.xlu0 %951
        %953 = vrot.lane.b32.xlu0 %v873, 6
        %v954 = vpop.permute.xlu0 %953
        %955 = vrot.lane.b32.xlu0 %v874, 6
        %v956 = vpop.permute.xlu0 %955
        %957 = vrot.lane.b32.xlu0 %v875, 6
        %v958 = vpop.permute.xlu0 %957
        %959 = vrot.lane.b32.xlu0 %v876, 6
        %v960 = vpop.permute.xlu0 %959
        %961 = vrot.lane.b32.xlu0 %v877, 6
        %v962 = vpop.permute.xlu0 %961
        %963 = vrot.lane.b32.xlu0 %v878, 6
        %v964 = vpop.permute.xlu0 %963
        %965 = vrot.lane.b32.xlu0 %v879, 6
        %v966 = vpop.permute.xlu0 %965
        %967 = vrot.lane.b32.xlu0 %v880, 6
        %v968 = vpop.permute.xlu0 %967
        %969 = vrot.lane.b32.xlu0 %v881, 6
        %v970 = vpop.permute.xlu0 %969
        %971 = vrot.lane.b32.xlu0 %v882, 6
        %v972 = vpop.permute.xlu0 %971
        %973 = vrot.lane.b32.xlu0 %v883, 6
        %v974 = vpop.permute.xlu0 %973
        %975 = vrot.lane.b32.xlu0 %v884, 6
        %v976 = vpop.permute.xlu0 %975
        %977 = vrot.lane.b32.xlu0 %v885, 6
        %v978 = vpop.permute.xlu0 %977
        %979 = vrot.lane.b32.xlu0 %v886, 6
        %v980 = vpop.permute.xlu0 %979
        %981 = vrot.lane.b32.xlu0 %v887, 6
        %v982 = vpop.permute.xlu0 %981
        %983 = vrot.lane.b32.xlu0 %v888, 6
        %v984 = vpop.permute.xlu0 %983
        %vm1017 = vcmask 64560
        %1018 = vst.msk [vmem:[#allocation3] sm:$0xff] %vm1017, %v922
        %1019 = vst.msk [vmem:[#allocation3 + $0x8] sm:$0xff] %vm1017, %v924
        %1020 = vst.msk [vmem:[#allocation3 + $0x10] sm:$0xff] %vm1017, %v926
        %1021 = vst.msk [vmem:[#allocation3 + $0x18] sm:$0xff] %vm1017, %v928
        %1022 = vst.msk [vmem:[#allocation3 + $0x20] sm:$0xff] %vm1017, %v930
        %1023 = vst.msk [vmem:[#allocation3 + $0x28] sm:$0xff] %vm1017, %v932
        %1024 = vst.msk [vmem:[#allocation3 + $0x30] sm:$0xff] %vm1017, %v934
        %1025 = vst.msk [vmem:[#allocation3 + $0x38] sm:$0xff] %vm1017, %v936
        %1026 = vst.msk [vmem:[#allocation3 + $0x40] sm:$0xff] %vm1017, %v938
        %1027 = vst.msk [vmem:[#allocation3 + $0x48] sm:$0xff] %vm1017, %v940
        %1028 = vst.msk [vmem:[#allocation3 + $0x50] sm:$0xff] %vm1017, %v942
        %1029 = vst.msk [vmem:[#allocation3 + $0x58] sm:$0xff] %vm1017, %v944
        %1030 = vst.msk [vmem:[#allocation3 + $0x60] sm:$0xff] %vm1017, %v946
        %1031 = vst.msk [vmem:[#allocation3 + $0x68] sm:$0xff] %vm1017, %v948
        %1032 = vst.msk [vmem:[#allocation3 + $0x70] sm:$0xff] %vm1017, %v950
        %1033 = vst.msk [vmem:[#allocation3 + $0x78] sm:$0xff] %vm1017, %v952
        %1034 = vst.msk [vmem:[#allocation3 + $0x80] sm:$0xff] %vm1017, %v954
        %1035 = vst.msk [vmem:[#allocation3 + $0x88] sm:$0xff] %vm1017, %v956
        %1036 = vst.msk [vmem:[#allocation3 + $0x90] sm:$0xff] %vm1017, %v958
        %1037 = vst.msk [vmem:[#allocation3 + $0x98] sm:$0xff] %vm1017, %v960
        %1038 = vst.msk [vmem:[#allocation3 + $0xa0] sm:$0xff] %vm1017, %v962
        %1039 = vst.msk [vmem:[#allocation3 + $0xa8] sm:$0xff] %vm1017, %v964
        %1040 = vst.msk [vmem:[#allocation3 + $0xb0] sm:$0xff] %vm1017, %v966
        %1041 = vst.msk [vmem:[#allocation3 + $0xb8] sm:$0xff] %vm1017, %v968
        %1042 = vst.msk [vmem:[#allocation3 + $0xc0] sm:$0xff] %vm1017, %v970
        %1043 = vst.msk [vmem:[#allocation3 + $0xc8] sm:$0xff] %vm1017, %v972
        %1044 = vst.msk [vmem:[#allocation3 + $0xd0] sm:$0xff] %vm1017, %v974
        %1045 = vst.msk [vmem:[#allocation3 + $0xd8] sm:$0xff] %vm1017, %v976
        %1046 = vst.msk [vmem:[#allocation3 + $0xe0] sm:$0xff] %vm1017, %v978
        %1047 = vst.msk [vmem:[#allocation3 + $0xe8] sm:$0xff] %vm1017, %v980
        %1048 = vst.msk [vmem:[#allocation3 + $0xf0] sm:$0xff] %vm1017, %v982
        %1049 = vst.msk [vmem:[#allocation3 + $0xf8] sm:$0xff] %vm1017, %v984
        %v1050 = vld [vmem:[%s342 + $0x8] sm:$0xff]
        %v1051 = vld [vmem:[%s342 + $0x10] sm:$0xff]
        %v1052 = vld [vmem:[%s342 + $0x28] sm:$0xff]
        %v1053 = vld [vmem:[%s342 + $0x30] sm:$0xff]
        %v1054 = vld [vmem:[%s342 + $0x48] sm:$0xff]
        %v1055 = vld [vmem:[%s342 + $0x50] sm:$0xff]
        %v1056 = vld [vmem:[%s342 + $0x68] sm:$0xff]
        %v1057 = vld [vmem:[%s342 + $0x70] sm:$0xff]
        %v1058 = vld [vmem:[%s342 + $0x88] sm:$0xff]
        %v1059 = vld [vmem:[%s342 + $0x90] sm:$0xff]
        %v1060 = vld [vmem:[%s342 + $0xa8] sm:$0xff]
        %v1061 = vld [vmem:[%s342 + $0xb0] sm:$0xff]
        %v1062 = vld [vmem:[%s342 + $0xc8] sm:$0xff]
        %v1063 = vld [vmem:[%s342 + $0xd0] sm:$0xff]
        %v1064 = vld [vmem:[%s342 + $0xe8] sm:$0xff]
        %v1065 = vld [vmem:[%s342 + $0xf0] sm:$0xff]
        %v1066 = vld [vmem:[%s342 + $0x108] sm:$0xff]
        %v1067 = vld [vmem:[%s342 + $0x110] sm:$0xff]
        %v1068 = vld [vmem:[%s342 + $0x128] sm:$0xff]
        %v1069 = vld [vmem:[%s342 + $0x130] sm:$0xff]
        %v1070 = vld [vmem:[%s342 + $0x148] sm:$0xff]
        %v1071 = vld [vmem:[%s342 + $0x150] sm:$0xff]
        %v1072 = vld [vmem:[%s342 + $0x168] sm:$0xff]
        %v1073 = vld [vmem:[%s342 + $0x170] sm:$0xff]
        %v1074 = vld [vmem:[%s342 + $0x188] sm:$0xff]
        %v1075 = vld [vmem:[%s342 + $0x190] sm:$0xff]
        %v1076 = vld [vmem:[%s342 + $0x1a8] sm:$0xff]
        %v1077 = vld [vmem:[%s342 + $0x1b0] sm:$0xff]
        %v1078 = vld [vmem:[%s342 + $0x1c8] sm:$0xff]
        %v1079 = vld [vmem:[%s342 + $0x1d0] sm:$0xff]
        %v1080 = vld [vmem:[%s342 + $0x1e8] sm:$0xff]
        %v1081 = vld [vmem:[%s342 + $0x1f0] sm:$0xff]
        %1114 = vrot.lane.b32.xlu0 %v1050, 8
        %v1115 = vpop.permute.xlu0 %1114
        %1116 = vrot.lane.b32.xlu0 %v1051, 8
        %v1117 = vpop.permute.xlu0 %1116
        %1118 = vrot.lane.b32.xlu0 %v1052, 8
        %v1119 = vpop.permute.xlu0 %1118
        %1120 = vrot.lane.b32.xlu0 %v1053, 8
        %v1121 = vpop.permute.xlu0 %1120
        %1122 = vrot.lane.b32.xlu0 %v1054, 8
        %v1123 = vpop.permute.xlu0 %1122
        %1124 = vrot.lane.b32.xlu0 %v1055, 8
        %v1125 = vpop.permute.xlu0 %1124
        %1126 = vrot.lane.b32.xlu0 %v1056, 8
        %v1127 = vpop.permute.xlu0 %1126
        %1128 = vrot.lane.b32.xlu0 %v1057, 8
        %v1129 = vpop.permute.xlu0 %1128
        %1130 = vrot.lane.b32.xlu0 %v1058, 8
        %v1131 = vpop.permute.xlu0 %1130
        %1132 = vrot.lane.b32.xlu0 %v1059, 8
        %v1133 = vpop.permute.xlu0 %1132
        %1134 = vrot.lane.b32.xlu0 %v1060, 8
        %v1135 = vpop.permute.xlu0 %1134
        %1136 = vrot.lane.b32.xlu0 %v1061, 8
        %v1137 = vpop.permute.xlu0 %1136
        %1138 = vrot.lane.b32.xlu0 %v1062, 8
        %v1139 = vpop.permute.xlu0 %1138
        %1140 = vrot.lane.b32.xlu0 %v1063, 8
        %v1141 = vpop.permute.xlu0 %1140
        %1142 = vrot.lane.b32.xlu0 %v1064, 8
        %v1143 = vpop.permute.xlu0 %1142
        %1144 = vrot.lane.b32.xlu0 %v1065, 8
        %v1145 = vpop.permute.xlu0 %1144
        %1146 = vrot.lane.b32.xlu0 %v1066, 8
        %v1147 = vpop.permute.xlu0 %1146
        %1148 = vrot.lane.b32.xlu0 %v1067, 8
        %v1149 = vpop.permute.xlu0 %1148
        %1150 = vrot.lane.b32.xlu0 %v1068, 8
        %v1151 = vpop.permute.xlu0 %1150
        %1152 = vrot.lane.b32.xlu0 %v1069, 8
        %v1153 = vpop.permute.xlu0 %1152
        %1154 = vrot.lane.b32.xlu0 %v1070, 8
        %v1155 = vpop.permute.xlu0 %1154
        %1156 = vrot.lane.b32.xlu0 %v1071, 8
        %v1157 = vpop.permute.xlu0 %1156
        %1158 = vrot.lane.b32.xlu0 %v1072, 8
        %v1159 = vpop.permute.xlu0 %1158
        %1160 = vrot.lane.b32.xlu0 %v1073, 8
        %v1161 = vpop.permute.xlu0 %1160
        %1162 = vrot.lane.b32.xlu0 %v1074, 8
        %v1163 = vpop.permute.xlu0 %1162
        %1164 = vrot.lane.b32.xlu0 %v1075, 8
        %v1165 = vpop.permute.xlu0 %1164
        %1166 = vrot.lane.b32.xlu0 %v1076, 8
        %v1167 = vpop.permute.xlu0 %1166
        %1168 = vrot.lane.b32.xlu0 %v1077, 8
        %v1169 = vpop.permute.xlu0 %1168
        %1170 = vrot.lane.b32.xlu0 %v1078, 8
        %v1171 = vpop.permute.xlu0 %1170
        %1172 = vrot.lane.b32.xlu0 %v1079, 8
        %v1173 = vpop.permute.xlu0 %1172
        %1174 = vrot.lane.b32.xlu0 %v1080, 8
        %v1175 = vpop.permute.xlu0 %1174
        %1176 = vrot.lane.b32.xlu0 %v1081, 8
        %v1177 = vpop.permute.xlu0 %1176
        %vm1210 = vcmask 80960
        %1211 = vst.msk [vmem:[#allocation3] sm:$0xff] %vm1210, %v1115
        %1212 = vst.msk [vmem:[#allocation3 + $0x8] sm:$0xff] %vm1210, %v1117
        %1213 = vst.msk [vmem:[#allocation3 + $0x10] sm:$0xff] %vm1210, %v1119
        %1214 = vst.msk [vmem:[#allocation3 + $0x18] sm:$0xff] %vm1210, %v1121
        %1215 = vst.msk [vmem:[#allocation3 + $0x20] sm:$0xff] %vm1210, %v1123
        %1216 = vst.msk [vmem:[#allocation3 + $0x28] sm:$0xff] %vm1210, %v1125
        %1217 = vst.msk [vmem:[#allocation3 + $0x30] sm:$0xff] %vm1210, %v1127
        %1218 = vst.msk [vmem:[#allocation3 + $0x38] sm:$0xff] %vm1210, %v1129
        %1219 = vst.msk [vmem:[#allocation3 + $0x40] sm:$0xff] %vm1210, %v1131
        %1220 = vst.msk [vmem:[#allocation3 + $0x48] sm:$0xff] %vm1210, %v1133
        %1221 = vst.msk [vmem:[#allocation3 + $0x50] sm:$0xff] %vm1210, %v1135
        %1222 = vst.msk [vmem:[#allocation3 + $0x58] sm:$0xff] %vm1210, %v1137
        %1223 = vst.msk [vmem:[#allocation3 + $0x60] sm:$0xff] %vm1210, %v1139
        %1224 = vst.msk [vmem:[#allocation3 + $0x68] sm:$0xff] %vm1210, %v1141
        %1225 = vst.msk [vmem:[#allocation3 + $0x70] sm:$0xff] %vm1210, %v1143
        %1226 = vst.msk [vmem:[#allocation3 + $0x78] sm:$0xff] %vm1210, %v1145
        %1227 = vst.msk [vmem:[#allocation3 + $0x80] sm:$0xff] %vm1210, %v1147
        %1228 = vst.msk [vmem:[#allocation3 + $0x88] sm:$0xff] %vm1210, %v1149
        %1229 = vst.msk [vmem:[#allocation3 + $0x90] sm:$0xff] %vm1210, %v1151
        %1230 = vst.msk [vmem:[#allocation3 + $0x98] sm:$0xff] %vm1210, %v1153
        %1231 = vst.msk [vmem:[#allocation3 + $0xa0] sm:$0xff] %vm1210, %v1155
        %1232 = vst.msk [vmem:[#allocation3 + $0xa8] sm:$0xff] %vm1210, %v1157
        %1233 = vst.msk [vmem:[#allocation3 + $0xb0] sm:$0xff] %vm1210, %v1159
        %1234 = vst.msk [vmem:[#allocation3 + $0xb8] sm:$0xff] %vm1210, %v1161
        %1235 = vst.msk [vmem:[#allocation3 + $0xc0] sm:$0xff] %vm1210, %v1163
        %1236 = vst.msk [vmem:[#allocation3 + $0xc8] sm:$0xff] %vm1210, %v1165
        %1237 = vst.msk [vmem:[#allocation3 + $0xd0] sm:$0xff] %vm1210, %v1167
        %1238 = vst.msk [vmem:[#allocation3 + $0xd8] sm:$0xff] %vm1210, %v1169
        %1239 = vst.msk [vmem:[#allocation3 + $0xe0] sm:$0xff] %vm1210, %v1171
        %1240 = vst.msk [vmem:[#allocation3 + $0xe8] sm:$0xff] %vm1210, %v1173
        %1241 = vst.msk [vmem:[#allocation3 + $0xf0] sm:$0xff] %vm1210, %v1175
        %1242 = vst.msk [vmem:[#allocation3 + $0xf8] sm:$0xff] %vm1210, %v1177
        %v1243 = vld [vmem:[%s342 + $0x9] sm:$0xff]
        %v1244 = vld [vmem:[%s342 + $0x11] sm:$0xff]
        %v1245 = vld [vmem:[%s342 + $0x29] sm:$0xff]
        %v1246 = vld [vmem:[%s342 + $0x31] sm:$0xff]
        %v1247 = vld [vmem:[%s342 + $0x49] sm:$0xff]
        %v1248 = vld [vmem:[%s342 + $0x51] sm:$0xff]
        %v1249 = vld [vmem:[%s342 + $0x69] sm:$0xff]
        %v1250 = vld [vmem:[%s342 + $0x71] sm:$0xff]
        %v1251 = vld [vmem:[%s342 + $0x89] sm:$0xff]
        %v1252 = vld [vmem:[%s342 + $0x91] sm:$0xff]
        %v1253 = vld [vmem:[%s342 + $0xa9] sm:$0xff]
        %v1254 = vld [vmem:[%s342 + $0xb1] sm:$0xff]
        %v1255 = vld [vmem:[%s342 + $0xc9] sm:$0xff]
        %v1256 = vld [vmem:[%s342 + $0xd1] sm:$0xff]
        %v1257 = vld [vmem:[%s342 + $0xe9] sm:$0xff]
        %v1258 = vld [vmem:[%s342 + $0xf1] sm:$0xff]
        %v1259 = vld [vmem:[%s342 + $0x109] sm:$0xff]
        %v1260 = vld [vmem:[%s342 + $0x111] sm:$0xff]
        %v1261 = vld [vmem:[%s342 + $0x129] sm:$0xff]
        %v1262 = vld [vmem:[%s342 + $0x131] sm:$0xff]
        %v1263 = vld [vmem:[%s342 + $0x149] sm:$0xff]
        %v1264 = vld [vmem:[%s342 + $0x151] sm:$0xff]
        %v1265 = vld [vmem:[%s342 + $0x169] sm:$0xff]
        %v1266 = vld [vmem:[%s342 + $0x171] sm:$0xff]
        %v1267 = vld [vmem:[%s342 + $0x189] sm:$0xff]
        %v1268 = vld [vmem:[%s342 + $0x191] sm:$0xff]
        %v1269 = vld [vmem:[%s342 + $0x1a9] sm:$0xff]
        %v1270 = vld [vmem:[%s342 + $0x1b1] sm:$0xff]
        %v1271 = vld [vmem:[%s342 + $0x1c9] sm:$0xff]
        %v1272 = vld [vmem:[%s342 + $0x1d1] sm:$0xff]
        %v1273 = vld [vmem:[%s342 + $0x1e9] sm:$0xff]
        %v1274 = vld [vmem:[%s342 + $0x1f1] sm:$0xff]
        %1307 = vrot.lane.b32.xlu0 %v1243, 10
        %v1308 = vpop.permute.xlu0 %1307
        %1309 = vrot.lane.b32.xlu0 %v1244, 10
        %v1310 = vpop.permute.xlu0 %1309
        %1311 = vrot.lane.b32.xlu0 %v1245, 10
        %v1312 = vpop.permute.xlu0 %1311
        %1313 = vrot.lane.b32.xlu0 %v1246, 10
        %v1314 = vpop.permute.xlu0 %1313
        %1315 = vrot.lane.b32.xlu0 %v1247, 10
        %v1316 = vpop.permute.xlu0 %1315
        %1317 = vrot.lane.b32.xlu0 %v1248, 10
        %v1318 = vpop.permute.xlu0 %1317
        %1319 = vrot.lane.b32.xlu0 %v1249, 10
        %v1320 = vpop.permute.xlu0 %1319
        %1321 = vrot.lane.b32.xlu0 %v1250, 10
        %v1322 = vpop.permute.xlu0 %1321
        %1323 = vrot.lane.b32.xlu0 %v1251, 10
        %v1324 = vpop.permute.xlu0 %1323
        %1325 = vrot.lane.b32.xlu0 %v1252, 10
        %v1326 = vpop.permute.xlu0 %1325
        %1327 = vrot.lane.b32.xlu0 %v1253, 10
        %v1328 = vpop.permute.xlu0 %1327
        %1329 = vrot.lane.b32.xlu0 %v1254, 10
        %v1330 = vpop.permute.xlu0 %1329
        %1331 = vrot.lane.b32.xlu0 %v1255, 10
        %v1332 = vpop.permute.xlu0 %1331
        %1333 = vrot.lane.b32.xlu0 %v1256, 10
        %v1334 = vpop.permute.xlu0 %1333
        %1335 = vrot.lane.b32.xlu0 %v1257, 10
        %v1336 = vpop.permute.xlu0 %1335
        %1337 = vrot.lane.b32.xlu0 %v1258, 10
        %v1338 = vpop.permute.xlu0 %1337
        %1339 = vrot.lane.b32.xlu0 %v1259, 10
        %v1340 = vpop.permute.xlu0 %1339
        %1341 = vrot.lane.b32.xlu0 %v1260, 10
        %v1342 = vpop.permute.xlu0 %1341
        %1343 = vrot.lane.b32.xlu0 %v1261, 10
        %v1344 = vpop.permute.xlu0 %1343
        %1345 = vrot.lane.b32.xlu0 %v1262, 10
        %v1346 = vpop.permute.xlu0 %1345
        %1347 = vrot.lane.b32.xlu0 %v1263, 10
        %v1348 = vpop.permute.xlu0 %1347
        %1349 = vrot.lane.b32.xlu0 %v1264, 10
        %v1350 = vpop.permute.xlu0 %1349
        %1351 = vrot.lane.b32.xlu0 %v1265, 10
        %v1352 = vpop.permute.xlu0 %1351
        %1353 = vrot.lane.b32.xlu0 %v1266, 10
        %v1354 = vpop.permute.xlu0 %1353
        %1355 = vrot.lane.b32.xlu0 %v1267, 10
        %v1356 = vpop.permute.xlu0 %1355
        %1357 = vrot.lane.b32.xlu0 %v1268, 10
        %v1358 = vpop.permute.xlu0 %1357
        %1359 = vrot.lane.b32.xlu0 %v1269, 10
        %v1360 = vpop.permute.xlu0 %1359
        %1361 = vrot.lane.b32.xlu0 %v1270, 10
        %v1362 = vpop.permute.xlu0 %1361
        %1363 = vrot.lane.b32.xlu0 %v1271, 10
        %v1364 = vpop.permute.xlu0 %1363
        %1365 = vrot.lane.b32.xlu0 %v1272, 10
        %v1366 = vpop.permute.xlu0 %1365
        %1367 = vrot.lane.b32.xlu0 %v1273, 10
        %v1368 = vpop.permute.xlu0 %1367
        %1369 = vrot.lane.b32.xlu0 %v1274, 10
        %v1370 = vpop.permute.xlu0 %1369
        %vm1403 = vcmask 97360
        %1404 = vst.msk [vmem:[#allocation3] sm:$0xff] %vm1403, %v1308
        %1405 = vst.msk [vmem:[#allocation3 + $0x8] sm:$0xff] %vm1403, %v1310
        %1406 = vst.msk [vmem:[#allocation3 + $0x10] sm:$0xff] %vm1403, %v1312
        %1407 = vst.msk [vmem:[#allocation3 + $0x18] sm:$0xff] %vm1403, %v1314
        %1408 = vst.msk [vmem:[#allocation3 + $0x20] sm:$0xff] %vm1403, %v1316
        %1409 = vst.msk [vmem:[#allocation3 + $0x28] sm:$0xff] %vm1403, %v1318
        %1410 = vst.msk [vmem:[#allocation3 + $0x30] sm:$0xff] %vm1403, %v1320
        %1411 = vst.msk [vmem:[#allocation3 + $0x38] sm:$0xff] %vm1403, %v1322
        %1412 = vst.msk [vmem:[#allocation3 + $0x40] sm:$0xff] %vm1403, %v1324
        %1413 = vst.msk [vmem:[#allocation3 + $0x48] sm:$0xff] %vm1403, %v1326
        %1414 = vst.msk [vmem:[#allocation3 + $0x50] sm:$0xff] %vm1403, %v1328
        %1415 = vst.msk [vmem:[#allocation3 + $0x58] sm:$0xff] %vm1403, %v1330
        %1416 = vst.msk [vmem:[#allocation3 + $0x60] sm:$0xff] %vm1403, %v1332
        %1417 = vst.msk [vmem:[#allocation3 + $0x68] sm:$0xff] %vm1403, %v1334
        %1418 = vst.msk [vmem:[#allocation3 + $0x70] sm:$0xff] %vm1403, %v1336
        %1419 = vst.msk [vmem:[#allocation3 + $0x78] sm:$0xff] %vm1403, %v1338
        %1420 = vst.msk [vmem:[#allocation3 + $0x80] sm:$0xff] %vm1403, %v1340
        %1421 = vst.msk [vmem:[#allocation3 + $0x88] sm:$0xff] %vm1403, %v1342
        %1422 = vst.msk [vmem:[#allocation3 + $0x90] sm:$0xff] %vm1403, %v1344
        %1423 = vst.msk [vmem:[#allocation3 + $0x98] sm:$0xff] %vm1403, %v1346
        %1424 = vst.msk [vmem:[#allocation3 + $0xa0] sm:$0xff] %vm1403, %v1348
        %1425 = vst.msk [vmem:[#allocation3 + $0xa8] sm:$0xff] %vm1403, %v1350
        %1426 = vst.msk [vmem:[#allocation3 + $0xb0] sm:$0xff] %vm1403, %v1352
        %1427 = vst.msk [vmem:[#allocation3 + $0xb8] sm:$0xff] %vm1403, %v1354
        %1428 = vst.msk [vmem:[#allocation3 + $0xc0] sm:$0xff] %vm1403, %v1356
        %1429 = vst.msk [vmem:[#allocation3 + $0xc8] sm:$0xff] %vm1403, %v1358
        %1430 = vst.msk [vmem:[#allocation3 + $0xd0] sm:$0xff] %vm1403, %v1360
        %1431 = vst.msk [vmem:[#allocation3 + $0xd8] sm:$0xff] %vm1403, %v1362
        %1432 = vst.msk [vmem:[#allocation3 + $0xe0] sm:$0xff] %vm1403, %v1364
        %1433 = vst.msk [vmem:[#allocation3 + $0xe8] sm:$0xff] %vm1403, %v1366
        %1434 = vst.msk [vmem:[#allocation3 + $0xf0] sm:$0xff] %vm1403, %v1368
        %1435 = vst.msk [vmem:[#allocation3 + $0xf8] sm:$0xff] %vm1403, %v1370
        %s1436 = scalar_lea.vmem [#allocation2], 64
        %v1437 = vld [vmem:[%s1436 + $0x7] sm:$0xff]
        %v1438 = vld [vmem:[%s1436 + $0xf] sm:$0xff]
        %v1439 = vld [vmem:[%s1436 + $0x27] sm:$0xff]
        %v1440 = vld [vmem:[%s1436 + $0x2f] sm:$0xff]
        %v1441 = vld [vmem:[%s1436 + $0x47] sm:$0xff]
        %v1442 = vld [vmem:[%s1436 + $0x4f] sm:$0xff]
        %v1443 = vld [vmem:[%s1436 + $0x67] sm:$0xff]
        %v1444 = vld [vmem:[%s1436 + $0x6f] sm:$0xff]
        %v1445 = vld [vmem:[%s1436 + $0x87] sm:$0xff]
        %v1446 = vld [vmem:[%s1436 + $0x8f] sm:$0xff]
        %v1447 = vld [vmem:[%s1436 + $0xa7] sm:$0xff]
        %v1448 = vld [vmem:[%s1436 + $0xaf] sm:$0xff]
        %v1449 = vld [vmem:[%s1436 + $0xc7] sm:$0xff]
        %v1450 = vld [vmem:[%s1436 + $0xcf] sm:$0xff]
        %v1451 = vld [vmem:[%s1436 + $0xe7] sm:$0xff]
        %v1452 = vld [vmem:[%s1436 + $0xef] sm:$0xff]
        %v1453 = vld [vmem:[%s1436 + $0x107] sm:$0xff]
        %v1454 = vld [vmem:[%s1436 + $0x10f] sm:$0xff]
        %v1455 = vld [vmem:[%s1436 + $0x127] sm:$0xff]
        %v1456 = vld [vmem:[%s1436 + $0x12f] sm:$0xff]
        %v1457 = vld [vmem:[%s1436 + $0x147] sm:$0xff]
        %v1458 = vld [vmem:[%s1436 + $0x14f] sm:$0xff]
        %v1459 = vld [vmem:[%s1436 + $0x167] sm:$0xff]
        %v1460 = vld [vmem:[%s1436 + $0x16f] sm:$0xff]
        %v1461 = vld [vmem:[%s1436 + $0x187] sm:$0xff]
        %v1462 = vld [vmem:[%s1436 + $0x18f] sm:$0xff]
        %v1463 = vld [vmem:[%s1436 + $0x1a7] sm:$0xff]
        %v1464 = vld [vmem:[%s1436 + $0x1af] sm:$0xff]
        %v1465 = vld [vmem:[%s1436 + $0x1c7] sm:$0xff]
        %v1466 = vld [vmem:[%s1436 + $0x1cf] sm:$0xff]
        %v1467 = vld [vmem:[%s1436 + $0x1e7] sm:$0xff]
        %v1468 = vld [vmem:[%s1436 + $0x1ef] sm:$0xff]
        %1501 = vrot.lane.b32.xlu0 %v1437, 12
        %v1502 = vpop.permute.xlu0 %1501
        %1503 = vrot.lane.b32.xlu0 %v1438, 12
        %v1504 = vpop.permute.xlu0 %1503
        %1505 = vrot.lane.b32.xlu0 %v1439, 12
        %v1506 = vpop.permute.xlu0 %1505
        %1507 = vrot.lane.b32.xlu0 %v1440, 12
        %v1508 = vpop.permute.xlu0 %1507
        %1509 = vrot.lane.b32.xlu0 %v1441, 12
        %v1510 = vpop.permute.xlu0 %1509
        %1511 = vrot.lane.b32.xlu0 %v1442, 12
        %v1512 = vpop.permute.xlu0 %1511
        %1513 = vrot.lane.b32.xlu0 %v1443, 12
        %v1514 = vpop.permute.xlu0 %1513
        %1515 = vrot.lane.b32.xlu0 %v1444, 12
        %v1516 = vpop.permute.xlu0 %1515
        %1517 = vrot.lane.b32.xlu0 %v1445, 12
        %v1518 = vpop.permute.xlu0 %1517
        %1519 = vrot.lane.b32.xlu0 %v1446, 12
        %v1520 = vpop.permute.xlu0 %1519
        %1521 = vrot.lane.b32.xlu0 %v1447, 12
        %v1522 = vpop.permute.xlu0 %1521
        %1523 = vrot.lane.b32.xlu0 %v1448, 12
        %v1524 = vpop.permute.xlu0 %1523
        %1525 = vrot.lane.b32.xlu0 %v1449, 12
        %v1526 = vpop.permute.xlu0 %1525
        %1527 = vrot.lane.b32.xlu0 %v1450, 12
        %v1528 = vpop.permute.xlu0 %1527
        %1529 = vrot.lane.b32.xlu0 %v1451, 12
        %v1530 = vpop.permute.xlu0 %1529
        %1531 = vrot.lane.b32.xlu0 %v1452, 12
        %v1532 = vpop.permute.xlu0 %1531
        %1533 = vrot.lane.b32.xlu0 %v1453, 12
        %v1534 = vpop.permute.xlu0 %1533
        %1535 = vrot.lane.b32.xlu0 %v1454, 12
        %v1536 = vpop.permute.xlu0 %1535
        %1537 = vrot.lane.b32.xlu0 %v1455, 12
        %v1538 = vpop.permute.xlu0 %1537
        %1539 = vrot.lane.b32.xlu0 %v1456, 12
        %v1540 = vpop.permute.xlu0 %1539
        %1541 = vrot.lane.b32.xlu0 %v1457, 12
        %v1542 = vpop.permute.xlu0 %1541
        %1543 = vrot.lane.b32.xlu0 %v1458, 12
        %v1544 = vpop.permute.xlu0 %1543
        %1545 = vrot.lane.b32.xlu0 %v1459, 12
        %v1546 = vpop.permute.xlu0 %1545
        %1547 = vrot.lane.b32.xlu0 %v1460, 12
        %v1548 = vpop.permute.xlu0 %1547
        %1549 = vrot.lane.b32.xlu0 %v1461, 12
        %v1550 = vpop.permute.xlu0 %1549
        %1551 = vrot.lane.b32.xlu0 %v1462, 12
        %v1552 = vpop.permute.xlu0 %1551
        %1553 = vrot.lane.b32.xlu0 %v1463, 12
        %v1554 = vpop.permute.xlu0 %1553
        %1555 = vrot.lane.b32.xlu0 %v1464, 12
        %v1556 = vpop.permute.xlu0 %1555
        %1557 = vrot.lane.b32.xlu0 %v1465, 12
        %v1558 = vpop.permute.xlu0 %1557
        %1559 = vrot.lane.b32.xlu0 %v1466, 12
        %v1560 = vpop.permute.xlu0 %1559
        %1561 = vrot.lane.b32.xlu0 %v1467, 12
        %v1562 = vpop.permute.xlu0 %1561
        %1563 = vrot.lane.b32.xlu0 %v1468, 12
        %v1564 = vpop.permute.xlu0 %1563
        %vm1597 = vcmask 113760
        %1598 = vst.msk [vmem:[#allocation3] sm:$0xff] %vm1597, %v1502
        %1599 = vst.msk [vmem:[#allocation3 + $0x8] sm:$0xff] %vm1597, %v1504
        %1600 = vst.msk [vmem:[#allocation3 + $0x10] sm:$0xff] %vm1597, %v1506
        %1601 = vst.msk [vmem:[#allocation3 + $0x18] sm:$0xff] %vm1597, %v1508
        %1602 = vst.msk [vmem:[#allocation3 + $0x20] sm:$0xff] %vm1597, %v1510
        %1603 = vst.msk [vmem:[#allocation3 + $0x28] sm:$0xff] %vm1597, %v1512
        %1604 = vst.msk [vmem:[#allocation3 + $0x30] sm:$0xff] %vm1597, %v1514
        %1605 = vst.msk [vmem:[#allocation3 + $0x38] sm:$0xff] %vm1597, %v1516
        %1606 = vst.msk [vmem:[#allocation3 + $0x40] sm:$0xff] %vm1597, %v1518
        %1607 = vst.msk [vmem:[#allocation3 + $0x48] sm:$0xff] %vm1597, %v1520
        %1608 = vst.msk [vmem:[#allocation3 + $0x50] sm:$0xff] %vm1597, %v1522
        %1609 = vst.msk [vmem:[#allocation3 + $0x58] sm:$0xff] %vm1597, %v1524
        %1610 = vst.msk [vmem:[#allocation3 + $0x60] sm:$0xff] %vm1597, %v1526
        %1611 = vst.msk [vmem:[#allocation3 + $0x68] sm:$0xff] %vm1597, %v1528
        %1612 = vst.msk [vmem:[#allocation3 + $0x70] sm:$0xff] %vm1597, %v1530
        %1613 = vst.msk [vmem:[#allocation3 + $0x78] sm:$0xff] %vm1597, %v1532
        %1614 = vst.msk [vmem:[#allocation3 + $0x80] sm:$0xff] %vm1597, %v1534
        %1615 = vst.msk [vmem:[#allocation3 + $0x88] sm:$0xff] %vm1597, %v1536
        %1616 = vst.msk [vmem:[#allocation3 + $0x90] sm:$0xff] %vm1597, %v1538
        %1617 = vst.msk [vmem:[#allocation3 + $0x98] sm:$0xff] %vm1597, %v1540
        %1618 = vst.msk [vmem:[#allocation3 + $0xa0] sm:$0xff] %vm1597, %v1542
        %1619 = vst.msk [vmem:[#allocation3 + $0xa8] sm:$0xff] %vm1597, %v1544
        %1620 = vst.msk [vmem:[#allocation3 + $0xb0] sm:$0xff] %vm1597, %v1546
        %1621 = vst.msk [vmem:[#allocation3 + $0xb8] sm:$0xff] %vm1597, %v1548
        %1622 = vst.msk [vmem:[#allocation3 + $0xc0] sm:$0xff] %vm1597, %v1550
        %1623 = vst.msk [vmem:[#allocation3 + $0xc8] sm:$0xff] %vm1597, %v1552
        %1624 = vst.msk [vmem:[#allocation3 + $0xd0] sm:$0xff] %vm1597, %v1554
        %1625 = vst.msk [vmem:[#allocation3 + $0xd8] sm:$0xff] %vm1597, %v1556
        %1626 = vst.msk [vmem:[#allocation3 + $0xe0] sm:$0xff] %vm1597, %v1558
        %1627 = vst.msk [vmem:[#allocation3 + $0xe8] sm:$0xff] %vm1597, %v1560
        %1628 = vst.msk [vmem:[#allocation3 + $0xf0] sm:$0xff] %vm1597, %v1562
        %1629 = vst.msk [vmem:[#allocation3 + $0xf8] sm:$0xff] %vm1597, %v1564
        %v1630 = vld [vmem:[%s1436 + $0x8] sm:$0xff]
        %v1631 = vld [vmem:[%s1436 + $0x10] sm:$0xff]
        %v1632 = vld [vmem:[%s1436 + $0x28] sm:$0xff]
        %v1633 = vld [vmem:[%s1436 + $0x30] sm:$0xff]
        %v1634 = vld [vmem:[%s1436 + $0x48] sm:$0xff]
        %v1635 = vld [vmem:[%s1436 + $0x50] sm:$0xff]
        %v1636 = vld [vmem:[%s1436 + $0x68] sm:$0xff]
        %v1637 = vld [vmem:[%s1436 + $0x70] sm:$0xff]
        %v1638 = vld [vmem:[%s1436 + $0x88] sm:$0xff]
        %v1639 = vld [vmem:[%s1436 + $0x90] sm:$0xff]
        %v1640 = vld [vmem:[%s1436 + $0xa8] sm:$0xff]
        %v1641 = vld [vmem:[%s1436 + $0xb0] sm:$0xff]
        %v1642 = vld [vmem:[%s1436 + $0xc8] sm:$0xff]
        %v1643 = vld [vmem:[%s1436 + $0xd0] sm:$0xff]
        %v1644 = vld [vmem:[%s1436 + $0xe8] sm:$0xff]
        %v1645 = vld [vmem:[%s1436 + $0xf0] sm:$0xff]
        %v1646 = vld [vmem:[%s1436 + $0x108] sm:$0xff]
        %v1647 = vld [vmem:[%s1436 + $0x110] sm:$0xff]
        %v1648 = vld [vmem:[%s1436 + $0x128] sm:$0xff]
        %v1649 = vld [vmem:[%s1436 + $0x130] sm:$0xff]
        %v1650 = vld [vmem:[%s1436 + $0x148] sm:$0xff]
        %v1651 = vld [vmem:[%s1436 + $0x150] sm:$0xff]
        %v1652 = vld [vmem:[%s1436 + $0x168] sm:$0xff]
        %v1653 = vld [vmem:[%s1436 + $0x170] sm:$0xff]
        %v1654 = vld [vmem:[%s1436 + $0x188] sm:$0xff]
        %v1655 = vld [vmem:[%s1436 + $0x190] sm:$0xff]
        %v1656 = vld [vmem:[%s1436 + $0x1a8] sm:$0xff]
        %v1657 = vld [vmem:[%s1436 + $0x1b0] sm:$0xff]
        %v1658 = vld [vmem:[%s1436 + $0x1c8] sm:$0xff]
        %v1659 = vld [vmem:[%s1436 + $0x1d0] sm:$0xff]
        %v1660 = vld [vmem:[%s1436 + $0x1e8] sm:$0xff]
        %v1661 = vld [vmem:[%s1436 + $0x1f0] sm:$0xff]
        %1694 = vrot.lane.b32.xlu0 %v1630, 14
        %v1695 = vpop.permute.xlu0 %1694
        %1696 = vrot.lane.b32.xlu0 %v1631, 14
        %v1697 = vpop.permute.xlu0 %1696
        %1698 = vrot.lane.b32.xlu0 %v1632, 14
        %v1699 = vpop.permute.xlu0 %1698
        %1700 = vrot.lane.b32.xlu0 %v1633, 14
        %v1701 = vpop.permute.xlu0 %1700
        %1702 = vrot.lane.b32.xlu0 %v1634, 14
        %v1703 = vpop.permute.xlu0 %1702
        %1704 = vrot.lane.b32.xlu0 %v1635, 14
        %v1705 = vpop.permute.xlu0 %1704
        %1706 = vrot.lane.b32.xlu0 %v1636, 14
        %v1707 = vpop.permute.xlu0 %1706
        %1708 = vrot.lane.b32.xlu0 %v1637, 14
        %v1709 = vpop.permute.xlu0 %1708
        %1710 = vrot.lane.b32.xlu0 %v1638, 14
        %v1711 = vpop.permute.xlu0 %1710
        %1712 = vrot.lane.b32.xlu0 %v1639, 14
        %v1713 = vpop.permute.xlu0 %1712
        %1714 = vrot.lane.b32.xlu0 %v1640, 14
        %v1715 = vpop.permute.xlu0 %1714
        %1716 = vrot.lane.b32.xlu0 %v1641, 14
        %v1717 = vpop.permute.xlu0 %1716
        %1718 = vrot.lane.b32.xlu0 %v1642, 14
        %v1719 = vpop.permute.xlu0 %1718
        %1720 = vrot.lane.b32.xlu0 %v1643, 14
        %v1721 = vpop.permute.xlu0 %1720
        %1722 = vrot.lane.b32.xlu0 %v1644, 14
        %v1723 = vpop.permute.xlu0 %1722
        %1724 = vrot.lane.b32.xlu0 %v1645, 14
        %v1725 = vpop.permute.xlu0 %1724
        %1726 = vrot.lane.b32.xlu0 %v1646, 14
        %v1727 = vpop.permute.xlu0 %1726
        %1728 = vrot.lane.b32.xlu0 %v1647, 14
        %v1729 = vpop.permute.xlu0 %1728
        %1730 = vrot.lane.b32.xlu0 %v1648, 14
        %v1731 = vpop.permute.xlu0 %1730
        %1732 = vrot.lane.b32.xlu0 %v1649, 14
        %v1733 = vpop.permute.xlu0 %1732
        %1734 = vrot.lane.b32.xlu0 %v1650, 14
        %v1735 = vpop.permute.xlu0 %1734
        %1736 = vrot.lane.b32.xlu0 %v1651, 14
        %v1737 = vpop.permute.xlu0 %1736
        %1738 = vrot.lane.b32.xlu0 %v1652, 14
        %v1739 = vpop.permute.xlu0 %1738
        %1740 = vrot.lane.b32.xlu0 %v1653, 14
        %v1741 = vpop.permute.xlu0 %1740
        %1742 = vrot.lane.b32.xlu0 %v1654, 14
        %v1743 = vpop.permute.xlu0 %1742
        %1744 = vrot.lane.b32.xlu0 %v1655, 14
        %v1745 = vpop.permute.xlu0 %1744
        %1746 = vrot.lane.b32.xlu0 %v1656, 14
        %v1747 = vpop.permute.xlu0 %1746
        %1748 = vrot.lane.b32.xlu0 %v1657, 14
        %v1749 = vpop.permute.xlu0 %1748
        %1750 = vrot.lane.b32.xlu0 %v1658, 14
        %v1751 = vpop.permute.xlu0 %1750
        %1752 = vrot.lane.b32.xlu0 %v1659, 14
        %v1753 = vpop.permute.xlu0 %1752
        %1754 = vrot.lane.b32.xlu0 %v1660, 14
        %v1755 = vpop.permute.xlu0 %1754
        %1756 = vrot.lane.b32.xlu0 %v1661, 14
        %v1757 = vpop.permute.xlu0 %1756
        %vm1790 = vcmask 130160
        %1791 = vst.msk [vmem:[#allocation3] sm:$0xff] %vm1790, %v1695
        %1792 = vst.msk [vmem:[#allocation3 + $0x8] sm:$0xff] %vm1790, %v1697
        %1793 = vst.msk [vmem:[#allocation3 + $0x10] sm:$0xff] %vm1790, %v1699
        %1794 = vst.msk [vmem:[#allocation3 + $0x18] sm:$0xff] %vm1790, %v1701
        %1795 = vst.msk [vmem:[#allocation3 + $0x20] sm:$0xff] %vm1790, %v1703
        %1796 = vst.msk [vmem:[#allocation3 + $0x28] sm:$0xff] %vm1790, %v1705
        %1797 = vst.msk [vmem:[#allocation3 + $0x30] sm:$0xff] %vm1790, %v1707
        %1798 = vst.msk [vmem:[#allocation3 + $0x38] sm:$0xff] %vm1790, %v1709
        %1799 = vst.msk [vmem:[#allocation3 + $0x40] sm:$0xff] %vm1790, %v1711
        %1800 = vst.msk [vmem:[#allocation3 + $0x48] sm:$0xff] %vm1790, %v1713
        %1801 = vst.msk [vmem:[#allocation3 + $0x50] sm:$0xff] %vm1790, %v1715
        %1802 = vst.msk [vmem:[#allocation3 + $0x58] sm:$0xff] %vm1790, %v1717
        %1803 = vst.msk [vmem:[#allocation3 + $0x60] sm:$0xff] %vm1790, %v1719
        %1804 = vst.msk [vmem:[#allocation3 + $0x68] sm:$0xff] %vm1790, %v1721
        %1805 = vst.msk [vmem:[#allocation3 + $0x70] sm:$0xff] %vm1790, %v1723
        %1806 = vst.msk [vmem:[#allocation3 + $0x78] sm:$0xff] %vm1790, %v1725
        %1807 = vst.msk [vmem:[#allocation3 + $0x80] sm:$0xff] %vm1790, %v1727
        %1808 = vst.msk [vmem:[#allocation3 + $0x88] sm:$0xff] %vm1790, %v1729
        %1809 = vst.msk [vmem:[#allocation3 + $0x90] sm:$0xff] %vm1790, %v1731
        %1810 = vst.msk [vmem:[#allocation3 + $0x98] sm:$0xff] %vm1790, %v1733
        %1811 = vst.msk [vmem:[#allocation3 + $0xa0] sm:$0xff] %vm1790, %v1735
        %1812 = vst.msk [vmem:[#allocation3 + $0xa8] sm:$0xff] %vm1790, %v1737
        %1813 = vst.msk [vmem:[#allocation3 + $0xb0] sm:$0xff] %vm1790, %v1739
        %1814 = vst.msk [vmem:[#allocation3 + $0xb8] sm:$0xff] %vm1790, %v1741
        %1815 = vst.msk [vmem:[#allocation3 + $0xc0] sm:$0xff] %vm1790, %v1743
        %1816 = vst.msk [vmem:[#allocation3 + $0xc8] sm:$0xff] %vm1790, %v1745
        %1817 = vst.msk [vmem:[#allocation3 + $0xd0] sm:$0xff] %vm1790, %v1747
        %1818 = vst.msk [vmem:[#allocation3 + $0xd8] sm:$0xff] %vm1790, %v1749
        %1819 = vst.msk [vmem:[#allocation3 + $0xe0] sm:$0xff] %vm1790, %v1751
        %1820 = vst.msk [vmem:[#allocation3 + $0xe8] sm:$0xff] %vm1790, %v1753
        %1821 = vst.msk [vmem:[#allocation3 + $0xf0] sm:$0xff] %vm1790, %v1755
        %1822 = vst.msk [vmem:[#allocation3 + $0xf8] sm:$0xff] %vm1790, %v1757
        %v1823 = vld [vmem:[%s1436 + $0x9] sm:$0xff]
        %v1824 = vld [vmem:[%s1436 + $0x11] sm:$0xff]
        %v1825 = vld [vmem:[%s1436 + $0x29] sm:$0xff]
        %v1826 = vld [vmem:[%s1436 + $0x31] sm:$0xff]
        %v1827 = vld [vmem:[%s1436 + $0x49] sm:$0xff]
        %v1828 = vld [vmem:[%s1436 + $0x51] sm:$0xff]
        %v1829 = vld [vmem:[%s1436 + $0x69] sm:$0xff]
        %v1830 = vld [vmem:[%s1436 + $0x71] sm:$0xff]
        %v1831 = vld [vmem:[%s1436 + $0x89] sm:$0xff]
        %v1832 = vld [vmem:[%s1436 + $0x91] sm:$0xff]
        %v1833 = vld [vmem:[%s1436 + $0xa9] sm:$0xff]
        %v1834 = vld [vmem:[%s1436 + $0xb1] sm:$0xff]
        %v1835 = vld [vmem:[%s1436 + $0xc9] sm:$0xff]
        %v1836 = vld [vmem:[%s1436 + $0xd1] sm:$0xff]
        %v1837 = vld [vmem:[%s1436 + $0xe9] sm:$0xff]
        %v1838 = vld [vmem:[%s1436 + $0xf1] sm:$0xff]
        %v1839 = vld [vmem:[%s1436 + $0x109] sm:$0xff]
        %v1840 = vld [vmem:[%s1436 + $0x111] sm:$0xff]
        %v1841 = vld [vmem:[%s1436 + $0x129] sm:$0xff]
        %v1842 = vld [vmem:[%s1436 + $0x131] sm:$0xff]
        %v1843 = vld [vmem:[%s1436 + $0x149] sm:$0xff]
        %v1844 = vld [vmem:[%s1436 + $0x151] sm:$0xff]
        %v1845 = vld [vmem:[%s1436 + $0x169] sm:$0xff]
        %v1846 = vld [vmem:[%s1436 + $0x171] sm:$0xff]
        %v1847 = vld [vmem:[%s1436 + $0x189] sm:$0xff]
        %v1848 = vld [vmem:[%s1436 + $0x191] sm:$0xff]
        %v1849 = vld [vmem:[%s1436 + $0x1a9] sm:$0xff]
        %v1850 = vld [vmem:[%s1436 + $0x1b1] sm:$0xff]
        %v1851 = vld [vmem:[%s1436 + $0x1c9] sm:$0xff]
        %v1852 = vld [vmem:[%s1436 + $0x1d1] sm:$0xff]
        %v1853 = vld [vmem:[%s1436 + $0x1e9] sm:$0xff]
        %v1854 = vld [vmem:[%s1436 + $0x1f1] sm:$0xff]
        %1887 = vrot.lane.b32.xlu0 %v1823, 16
        %v1888 = vpop.permute.xlu0 %1887
        %1889 = vrot.lane.b32.xlu0 %v1824, 16
        %v1890 = vpop.permute.xlu0 %1889
        %1891 = vrot.lane.b32.xlu0 %v1825, 16
        %v1892 = vpop.permute.xlu0 %1891
        %1893 = vrot.lane.b32.xlu0 %v1826, 16
        %v1894 = vpop.permute.xlu0 %1893
        %1895 = vrot.lane.b32.xlu0 %v1827, 16
        %v1896 = vpop.permute.xlu0 %1895
        %1897 = vrot.lane.b32.xlu0 %v1828, 16
        %v1898 = vpop.permute.xlu0 %1897
        %1899 = vrot.lane.b32.xlu0 %v1829, 16
        %v1900 = vpop.permute.xlu0 %1899
        %1901 = vrot.lane.b32.xlu0 %v1830, 16
        %v1902 = vpop.permute.xlu0 %1901
        %1903 = vrot.lane.b32.xlu0 %v1831, 16
        %v1904 = vpop.permute.xlu0 %1903
        %1905 = vrot.lane.b32.xlu0 %v1832, 16
        %v1906 = vpop.permute.xlu0 %1905
        %1907 = vrot.lane.b32.xlu0 %v1833, 16
        %v1908 = vpop.permute.xlu0 %1907
        %1909 = vrot.lane.b32.xlu0 %v1834, 16
        %v1910 = vpop.permute.xlu0 %1909
        %1911 = vrot.lane.b32.xlu0 %v1835, 16
        %v1912 = vpop.permute.xlu0 %1911
        %1913 = vrot.lane.b32.xlu0 %v1836, 16
        %v1914 = vpop.permute.xlu0 %1913
        %1915 = vrot.lane.b32.xlu0 %v1837, 16
        %v1916 = vpop.permute.xlu0 %1915
        %1917 = vrot.lane.b32.xlu0 %v1838, 16
        %v1918 = vpop.permute.xlu0 %1917
        %1919 = vrot.lane.b32.xlu0 %v1839, 16
        %v1920 = vpop.permute.xlu0 %1919
        %1921 = vrot.lane.b32.xlu0 %v1840, 16
        %v1922 = vpop.permute.xlu0 %1921
        %1923 = vrot.lane.b32.xlu0 %v1841, 16
        %v1924 = vpop.permute.xlu0 %1923
        %1925 = vrot.lane.b32.xlu0 %v1842, 16
        %v1926 = vpop.permute.xlu0 %1925
        %1927 = vrot.lane.b32.xlu0 %v1843, 16
        %v1928 = vpop.permute.xlu0 %1927
        %1929 = vrot.lane.b32.xlu0 %v1844, 16
        %v1930 = vpop.permute.xlu0 %1929
        %1931 = vrot.lane.b32.xlu0 %v1845, 16
        %v1932 = vpop.permute.xlu0 %1931
        %1933 = vrot.lane.b32.xlu0 %v1846, 16
        %v1934 = vpop.permute.xlu0 %1933
        %1935 = vrot.lane.b32.xlu0 %v1847, 16
        %v1936 = vpop.permute.xlu0 %1935
        %1937 = vrot.lane.b32.xlu0 %v1848, 16
        %v1938 = vpop.permute.xlu0 %1937
        %1939 = vrot.lane.b32.xlu0 %v1849, 16
        %v1940 = vpop.permute.xlu0 %1939
        %1941 = vrot.lane.b32.xlu0 %v1850, 16
        %v1942 = vpop.permute.xlu0 %1941
        %1943 = vrot.lane.b32.xlu0 %v1851, 16
        %v1944 = vpop.permute.xlu0 %1943
        %1945 = vrot.lane.b32.xlu0 %v1852, 16
        %v1946 = vpop.permute.xlu0 %1945
        %1947 = vrot.lane.b32.xlu0 %v1853, 16
        %v1948 = vpop.permute.xlu0 %1947
        %1949 = vrot.lane.b32.xlu0 %v1854, 16
        %v1950 = vpop.permute.xlu0 %1949
        %vm1983 = vcmask 146560
        %1984 = vst.msk [vmem:[#allocation3] sm:$0xff] %vm1983, %v1888
        %1985 = vst.msk [vmem:[#allocation3 + $0x8] sm:$0xff] %vm1983, %v1890
        %1986 = vst.msk [vmem:[#allocation3 + $0x10] sm:$0xff] %vm1983, %v1892
        %1987 = vst.msk [vmem:[#allocation3 + $0x18] sm:$0xff] %vm1983, %v1894
        %1988 = vst.msk [vmem:[#allocation3 + $0x20] sm:$0xff] %vm1983, %v1896
        %1989 = vst.msk [vmem:[#allocation3 + $0x28] sm:$0xff] %vm1983, %v1898
        %1990 = vst.msk [vmem:[#allocation3 + $0x30] sm:$0xff] %vm1983, %v1900
        %1991 = vst.msk [vmem:[#allocation3 + $0x38] sm:$0xff] %vm1983, %v1902
        %1992 = vst.msk [vmem:[#allocation3 + $0x40] sm:$0xff] %vm1983, %v1904
        %1993 = vst.msk [vmem:[#allocation3 + $0x48] sm:$0xff] %vm1983, %v1906
        %1994 = vst.msk [vmem:[#allocation3 + $0x50] sm:$0xff] %vm1983, %v1908
        %1995 = vst.msk [vmem:[#allocation3 + $0x58] sm:$0xff] %vm1983, %v1910
        %1996 = vst.msk [vmem:[#allocation3 + $0x60] sm:$0xff] %vm1983, %v1912
        %1997 = vst.msk [vmem:[#allocation3 + $0x68] sm:$0xff] %vm1983, %v1914
        %1998 = vst.msk [vmem:[#allocation3 + $0x70] sm:$0xff] %vm1983, %v1916
        %1999 = vst.msk [vmem:[#allocation3 + $0x78] sm:$0xff] %vm1983, %v1918
        %2000 = vst.msk [vmem:[#allocation3 + $0x80] sm:$0xff] %vm1983, %v1920
        %2001 = vst.msk [vmem:[#allocation3 + $0x88] sm:$0xff] %vm1983, %v1922
        %2002 = vst.msk [vmem:[#allocation3 + $0x90] sm:$0xff] %vm1983, %v1924
        %2003 = vst.msk [vmem:[#allocation3 + $0x98] sm:$0xff] %vm1983, %v1926
        %2004 = vst.msk [vmem:[#allocation3 + $0xa0] sm:$0xff] %vm1983, %v1928
        %2005 = vst.msk [vmem:[#allocation3 + $0xa8] sm:$0xff] %vm1983, %v1930
        %2006 = vst.msk [vmem:[#allocation3 + $0xb0] sm:$0xff] %vm1983, %v1932
        %2007 = vst.msk [vmem:[#allocation3 + $0xb8] sm:$0xff] %vm1983, %v1934
        %2008 = vst.msk [vmem:[#allocation3 + $0xc0] sm:$0xff] %vm1983, %v1936
        %2009 = vst.msk [vmem:[#allocation3 + $0xc8] sm:$0xff] %vm1983, %v1938
        %2010 = vst.msk [vmem:[#allocation3 + $0xd0] sm:$0xff] %vm1983, %v1940
        %2011 = vst.msk [vmem:[#allocation3 + $0xd8] sm:$0xff] %vm1983, %v1942
        %2012 = vst.msk [vmem:[#allocation3 + $0xe0] sm:$0xff] %vm1983, %v1944
        %2013 = vst.msk [vmem:[#allocation3 + $0xe8] sm:$0xff] %vm1983, %v1946
        %2014 = vst.msk [vmem:[#allocation3 + $0xf0] sm:$0xff] %vm1983, %v1948
        %2015 = vst.msk [vmem:[#allocation3 + $0xf8] sm:$0xff] %vm1983, %v1950
        %v2016 = vld [vmem:[#allocation3] sm:$0xff]
        %v2017 = vld [vmem:[#allocation3 + $0x8] sm:$0xff]
        %v2018 = vld [vmem:[#allocation3 + $0x10] sm:$0xff]
        %v2019 = vld [vmem:[#allocation3 + $0x18] sm:$0xff]
        %v2020 = vld [vmem:[#allocation3 + $0x20] sm:$0xff]
        %v2021 = vld [vmem:[#allocation3 + $0x28] sm:$0xff]
        %v2022 = vld [vmem:[#allocation3 + $0x30] sm:$0xff]
        %v2023 = vld [vmem:[#allocation3 + $0x38] sm:$0xff]
        %v2024 = vld [vmem:[#allocation3 + $0x40] sm:$0xff]
        %v2025 = vld [vmem:[#allocation3 + $0x48] sm:$0xff]
        %v2026 = vld [vmem:[#allocation3 + $0x50] sm:$0xff]
        %v2027 = vld [vmem:[#allocation3 + $0x58] sm:$0xff]
        %v2028 = vld [vmem:[#allocation3 + $0x60] sm:$0xff]
        %v2029 = vld [vmem:[#allocation3 + $0x68] sm:$0xff]
        %v2030 = vld [vmem:[#allocation3 + $0x70] sm:$0xff]
        %v2031 = vld [vmem:[#allocation3 + $0x78] sm:$0xff]
        %v2032 = vld [vmem:[#allocation3 + $0x80] sm:$0xff]
        %v2033 = vld [vmem:[#allocation3 + $0x88] sm:$0xff]
        %v2034 = vld [vmem:[#allocation3 + $0x90] sm:$0xff]
        %v2035 = vld [vmem:[#allocation3 + $0x98] sm:$0xff]
        %v2036 = vld [vmem:[#allocation3 + $0xa0] sm:$0xff]
        %v2037 = vld [vmem:[#allocation3 + $0xa8] sm:$0xff]
        %v2038 = vld [vmem:[#allocation3 + $0xb0] sm:$0xff]
        %v2039 = vld [vmem:[#allocation3 + $0xb8] sm:$0xff]
        %v2040 = vld [vmem:[#allocation3 + $0xc0] sm:$0xff]
        %v2041 = vld [vmem:[#allocation3 + $0xc8] sm:$0xff]
        %v2042 = vld [vmem:[#allocation3 + $0xd0] sm:$0xff]
        %v2043 = vld [vmem:[#allocation3 + $0xd8] sm:$0xff]
        %v2044 = vld [vmem:[#allocation3 + $0xe0] sm:$0xff]
        %v2045 = vld [vmem:[#allocation3 + $0xe8] sm:$0xff]
        %v2046 = vld [vmem:[#allocation3 + $0xf0] sm:$0xff]
        %v2047 = vld [vmem:[#allocation3 + $0xf8] sm:$0xff]
        %v2048 = vld [vmem:[#allocation7] sm:$0xff]
        %v2049 = vld [vmem:[#allocation7 + $0x8] sm:$0xff]
        %v2050 = vld [vmem:[#allocation7 + $0x10] sm:$0x3]
        %v2051 = vld [vmem:[#allocation9] sm:$0x1]
        %v2053 = vlaneseq
        %v2054 = vshrl.u32 %v2053, 7
        %v2055 = vsub.s32 0, %v2054
        %v2056 = vrot.slane %v2051, %v2055
        %vm2058 = vcmask 146432
        %v2060 = vsel %vm2058, %v2016, 0
        %v2063 = vsel %vm2058, %v2017, 0
        %v2066 = vsel %vm2058, %v2018, 0
        %v2069 = vsel %vm2058, %v2019, 0
        %v2072 = vsel %vm2058, %v2020, 0
        %v2075 = vsel %vm2058, %v2021, 0
        %v2078 = vsel %vm2058, %v2022, 0
        %v2081 = vsel %vm2058, %v2023, 0
        %v2084 = vsel %vm2058, %v2024, 0
        %v2087 = vsel %vm2058, %v2025, 0
        %v2090 = vsel %vm2058, %v2026, 0
        %v2093 = vsel %vm2058, %v2027, 0
        %v2096 = vsel %vm2058, %v2028, 0
        %v2099 = vsel %vm2058, %v2029, 0
        %v2102 = vsel %vm2058, %v2030, 0
        %v2105 = vsel %vm2058, %v2031, 0
        %v2108 = vsel %vm2058, %v2032, 0
        %v2111 = vsel %vm2058, %v2033, 0
        %v2114 = vsel %vm2058, %v2034, 0
        %v2117 = vsel %vm2058, %v2035, 0
        %v2120 = vsel %vm2058, %v2036, 0
        %v2123 = vsel %vm2058, %v2037, 0
        %v2126 = vsel %vm2058, %v2038, 0
        %v2129 = vsel %vm2058, %v2039, 0
        %v2132 = vsel %vm2058, %v2040, 0
        %v2135 = vsel %vm2058, %v2041, 0
        %v2138 = vsel %vm2058, %v2042, 0
        %v2141 = vsel %vm2058, %v2043, 0
        %v2144 = vsel %vm2058, %v2044, 0
        %v2147 = vsel %vm2058, %v2045, 0
        %v2150 = vsel %vm2058, %v2046, 0
        %v2153 = vsel %vm2058, %v2047, 0
        %vm2155 = vcmask 1041408
        %v2157 = vsel %vm2155, %v2050, 0
        %2159 = vmatprep.subr.mxu0 0.0
        %2160 = vmatpush1.msra.mxu0 %v2048
        %2161 = vmatprep.subr.mxu0 0.0
        %2162 = vmatpush1.msra.mxu0 %v2049
        %2163 = vmatprep.subr.mxu0 0.0
        %2164 = vmatpush1.msra.mxu0 %v2157
        %2165 = vmatprep.subr.mxu0 0.0
        %2166 = vmatpush1.msra.mxu0 0.0
        %2167 = vmatprep.subr.mxu0 0.0
        %2168 = vmatpush1.msra.mxu0 0.0
        %2169 = vmatprep.subr.mxu0 0.0
        %2170 = vmatpush1.msra.mxu0 0.0
        %2171 = vmatprep.subr.mxu0 0.0
        %2172 = vmatpush1.msra.mxu0 0.0
        %2173 = vmatprep.subr.mxu0 0.0
        %2174 = vmatpush1.msra.mxu0 0.0
        %2175 = vmatprep.subr.mxu0 0.0
        %2176 = vmatpush1.msra.mxu0 0.0
        %2177 = vmatprep.subr.mxu0 0.0
        %2178 = vmatpush1.msra.mxu0 0.0
        %2179 = vmatprep.subr.mxu0 0.0
        %2180 = vmatpush1.msra.mxu0 0.0
        %2181 = vmatprep.subr.mxu0 0.0
        %2182 = vmatpush1.msra.mxu0 0.0
        %2183 = vmatprep.subr.mxu0 0.0
        %2184 = vmatpush1.msra.mxu0 0.0
        %2185 = vmatprep.subr.mxu0 0.0
        %2186 = vmatpush1.msra.mxu0 0.0
        %2187 = vmatprep.subr.mxu0 0.0
        %2188 = vmatpush1.msra.mxu0 0.0
        %2189 = vmatprep.subr.mxu0 0.0
        %2190 = vmatpush1.msra.mxu0 0.0
        %2191 = vmatprep.subr.mxu0 0.0
        %2192 = vmatpush1.msra.mxu0 0.0
        %2193 = vmatprep.subr.mxu0 0.0
        %2194 = vmatpush1.msra.mxu0 0.0
        %2195 = vmatprep.subr.mxu0 0.0
        %2196 = vmatpush1.msra.mxu0 0.0
        %2197 = vmatprep.subr.mxu0 0.0
        %2198 = vmatpush1.msra.mxu0 0.0
        %2199 = vmatprep.subr.mxu0 0.0
        %2200 = vmatpush1.msra.mxu0 0.0
        %2201 = vmatprep.subr.mxu0 0.0
        %2202 = vmatpush1.msra.mxu0 0.0
        %2203 = vmatprep.subr.mxu0 0.0
        %2204 = vmatpush1.msra.mxu0 0.0
        %2205 = vmatprep.subr.mxu0 0.0
        %2206 = vmatpush1.msra.mxu0 0.0
        %2207 = vmatprep.subr.mxu0 0.0
        %2208 = vmatpush1.msra.mxu0 0.0
        %2209 = vmatprep.subr.mxu0 0.0
        %2210 = vmatpush1.msra.mxu0 0.0
        %2211 = vmatprep.subr.mxu0 0.0
        %2212 = vmatpush1.msra.mxu0 0.0
        %2213 = vmatprep.subr.mxu0 0.0
        %2214 = vmatpush1.msra.mxu0 0.0
        %2215 = vmatprep.subr.mxu0 0.0
        %2216 = vmatpush1.msra.mxu0 0.0
        %2217 = vmatprep.subr.mxu0 0.0
        %2218 = vmatpush1.msra.mxu0 0.0
        %2219 = vmatprep.subr.mxu0 0.0
        %2220 = vmatpush1.msra.mxu0 0.0
        %2221 = vmatprep.subr.mxu0 0.0
        %2222 = vmatpush1.msra.mxu0 0.0
        %2223 = vmatprep.mubr.f32.mxu0 0.0
        %2224 = vmatmul.mubr.f32.gmra.mrb[0].mxu0 %v2060
        %v2225 = vpop.f32.mrb[0].mxu0
        %v2226 = vadd.f32 %v2056, %v2225
        %v2227 = vpop.f32.mrb[0].mxu0
        %2228 = vmatprep.mubr.f32.mxu0 0.0
        %2229 = vmatmul.mubr.f32.gmra.mrb[0].mxu0 %v2063
        %v2230 = vpop.f32.mrb[0].mxu0
        %v2231 = vadd.f32 %v2056, %v2230
        %v2232 = vpop.f32.mrb[0].mxu0
        %2233 = vmatprep.mubr.f32.mxu0 0.0
        %2234 = vmatmul.mubr.f32.gmra.mrb[0].mxu0 %v2066
        %v2235 = vpop.f32.mrb[0].mxu0
        %v2236 = vadd.f32 %v2056, %v2235
        %v2237 = vpop.f32.mrb[0].mxu0
        %2238 = vmatprep.mubr.f32.mxu0 0.0
        %2239 = vmatmul.mubr.f32.gmra.mrb[0].mxu0 %v2069
        %v2240 = vpop.f32.mrb[0].mxu0
        %v2241 = vadd.f32 %v2056, %v2240
        %v2242 = vpop.f32.mrb[0].mxu0
        %2243 = vmatprep.mubr.f32.mxu0 0.0
        %2244 = vmatmul.mubr.f32.gmra.mrb[0].mxu0 %v2072
        %v2245 = vpop.f32.mrb[0].mxu0
        %v2246 = vadd.f32 %v2056, %v2245
        %v2247 = vpop.f32.mrb[0].mxu0
        %2248 = vmatprep.mubr.f32.mxu0 0.0
        %2249 = vmatmul.mubr.f32.gmra.mrb[0].mxu0 %v2075
        %v2250 = vpop.f32.mrb[0].mxu0
        %v2251 = vadd.f32 %v2056, %v2250
        %v2252 = vpop.f32.mrb[0].mxu0
        %2253 = vmatprep.mubr.f32.mxu0 0.0
        %2254 = vmatmul.mubr.f32.gmra.mrb[0].mxu0 %v2078
        %v2255 = vpop.f32.mrb[0].mxu0
        %v2256 = vadd.f32 %v2056, %v2255
        %v2257 = vpop.f32.mrb[0].mxu0
        %2258 = vmatprep.mubr.f32.mxu0 0.0
        %2259 = vmatmul.mubr.f32.gmra.mrb[0].mxu0 %v2081
        %v2260 = vpop.f32.mrb[0].mxu0
        %v2261 = vadd.f32 %v2056, %v2260
        %v2262 = vpop.f32.mrb[0].mxu0
        %2263 = vmatprep.mubr.f32.mxu0 0.0
        %2264 = vmatmul.mubr.f32.gmra.mrb[0].mxu0 %v2084
        %v2265 = vpop.f32.mrb[0].mxu0
        %v2266 = vadd.f32 %v2056, %v2265
        %v2267 = vpop.f32.mrb[0].mxu0
        %2268 = vmatprep.mubr.f32.mxu0 0.0
        %2269 = vmatmul.mubr.f32.gmra.mrb[0].mxu0 %v2087
        %v2270 = vpop.f32.mrb[0].mxu0
        %v2271 = vadd.f32 %v2056, %v2270
        %v2272 = vpop.f32.mrb[0].mxu0
        %2273 = vmatprep.mubr.f32.mxu0 0.0
        %2274 = vmatmul.mubr.f32.gmra.mrb[0].mxu0 %v2090
        %v2275 = vpop.f32.mrb[0].mxu0
        %v2276 = vadd.f32 %v2056, %v2275
        %v2277 = vpop.f32.mrb[0].mxu0
        %2278 = vmatprep.mubr.f32.mxu0 0.0
        %2279 = vmatmul.mubr.f32.gmra.mrb[0].mxu0 %v2093
        %v2280 = vpop.f32.mrb[0].mxu0
        %v2281 = vadd.f32 %v2056, %v2280
        %v2282 = vpop.f32.mrb[0].mxu0
        %2283 = vmatprep.mubr.f32.mxu0 0.0
        %2284 = vmatmul.mubr.f32.gmra.mrb[0].mxu0 %v2096
        %v2285 = vpop.f32.mrb[0].mxu0
        %v2286 = vadd.f32 %v2056, %v2285
        %v2287 = vpop.f32.mrb[0].mxu0
        %2288 = vmatprep.mubr.f32.mxu0 0.0
        %2289 = vmatmul.mubr.f32.gmra.mrb[0].mxu0 %v2099
        %v2290 = vpop.f32.mrb[0].mxu0
        %v2291 = vadd.f32 %v2056, %v2290
        %v2292 = vpop.f32.mrb[0].mxu0
        %2293 = vmatprep.mubr.f32.mxu0 0.0
        %2294 = vmatmul.mubr.f32.gmra.mrb[0].mxu0 %v2102
        %v2295 = vpop.f32.mrb[0].mxu0
        %v2296 = vadd.f32 %v2056, %v2295
        %v2297 = vpop.f32.mrb[0].mxu0
        %2298 = vmatprep.mubr.f32.mxu0 0.0
        %2299 = vmatmul.mubr.f32.gmra.mrb[0].mxu0 %v2105
        %v2300 = vpop.f32.mrb[0].mxu0
        %v2301 = vadd.f32 %v2056, %v2300
        %v2302 = vpop.f32.mrb[0].mxu0
        %2303 = vmatprep.mubr.f32.mxu0 0.0
        %2304 = vmatmul.mubr.f32.gmra.mrb[0].mxu0 %v2108
        %v2305 = vpop.f32.mrb[0].mxu0
        %v2306 = vadd.f32 %v2056, %v2305
        %v2307 = vpop.f32.mrb[0].mxu0
        %2308 = vmatprep.mubr.f32.mxu0 0.0
        %2309 = vmatmul.mubr.f32.gmra.mrb[0].mxu0 %v2111
        %v2310 = vpop.f32.mrb[0].mxu0
        %v2311 = vadd.f32 %v2056, %v2310
        %v2312 = vpop.f32.mrb[0].mxu0
        %2313 = vmatprep.mubr.f32.mxu0 0.0
        %2314 = vmatmul.mubr.f32.gmra.mrb[0].mxu0 %v2114
        %v2315 = vpop.f32.mrb[0].mxu0
        %v2316 = vadd.f32 %v2056, %v2315
        %v2317 = vpop.f32.mrb[0].mxu0
        %2318 = vmatprep.mubr.f32.mxu0 0.0
        %2319 = vmatmul.mubr.f32.gmra.mrb[0].mxu0 %v2117
        %v2320 = vpop.f32.mrb[0].mxu0
        %v2321 = vadd.f32 %v2056, %v2320
        %v2322 = vpop.f32.mrb[0].mxu0
        %2323 = vmatprep.mubr.f32.mxu0 0.0
        %2324 = vmatmul.mubr.f32.gmra.mrb[0].mxu0 %v2120
        %v2325 = vpop.f32.mrb[0].mxu0
        %v2326 = vadd.f32 %v2056, %v2325
        %v2327 = vpop.f32.mrb[0].mxu0
        %2328 = vmatprep.mubr.f32.mxu0 0.0
        %2329 = vmatmul.mubr.f32.gmra.mrb[0].mxu0 %v2123
        %v2330 = vpop.f32.mrb[0].mxu0
        %v2331 = vadd.f32 %v2056, %v2330
        %v2332 = vpop.f32.mrb[0].mxu0
        %2333 = vmatprep.mubr.f32.mxu0 0.0
        %2334 = vmatmul.mubr.f32.gmra.mrb[0].mxu0 %v2126
        %v2335 = vpop.f32.mrb[0].mxu0
        %v2336 = vadd.f32 %v2056, %v2335
        %v2337 = vpop.f32.mrb[0].mxu0
        %2338 = vmatprep.mubr.f32.mxu0 0.0
        %2339 = vmatmul.mubr.f32.gmra.mrb[0].mxu0 %v2129
        %v2340 = vpop.f32.mrb[0].mxu0
        %v2341 = vadd.f32 %v2056, %v2340
        %v2342 = vpop.f32.mrb[0].mxu0
        %2343 = vmatprep.mubr.f32.mxu0 0.0
        %2344 = vmatmul.mubr.f32.gmra.mrb[0].mxu0 %v2132
        %v2345 = vpop.f32.mrb[0].mxu0
        %v2346 = vadd.f32 %v2056, %v2345
        %v2347 = vpop.f32.mrb[0].mxu0
        %2348 = vmatprep.mubr.f32.mxu0 0.0
        %2349 = vmatmul.mubr.f32.gmra.mrb[0].mxu0 %v2135
        %v2350 = vpop.f32.mrb[0].mxu0
        %v2351 = vadd.f32 %v2056, %v2350
        %v2352 = vpop.f32.mrb[0].mxu0
        %2353 = vmatprep.mubr.f32.mxu0 0.0
        %2354 = vmatmul.mubr.f32.gmra.mrb[0].mxu0 %v2138
        %v2355 = vpop.f32.mrb[0].mxu0
        %v2356 = vadd.f32 %v2056, %v2355
        %v2357 = vpop.f32.mrb[0].mxu0
        %2358 = vmatprep.mubr.f32.mxu0 0.0
        %2359 = vmatmul.mubr.f32.gmra.mrb[0].mxu0 %v2141
        %v2360 = vpop.f32.mrb[0].mxu0
        %v2361 = vadd.f32 %v2056, %v2360
        %v2362 = vpop.f32.mrb[0].mxu0
        %2363 = vmatprep.mubr.f32.mxu0 0.0
        %2364 = vmatmul.mubr.f32.gmra.mrb[0].mxu0 %v2144
        %v2365 = vpop.f32.mrb[0].mxu0
        %v2366 = vadd.f32 %v2056, %v2365
        %v2367 = vpop.f32.mrb[0].mxu0
        %2368 = vmatprep.mubr.f32.mxu0 0.0
        %2369 = vmatmul.mubr.f32.gmra.mrb[0].mxu0 %v2147
        %v2370 = vpop.f32.mrb[0].mxu0
        %v2371 = vadd.f32 %v2056, %v2370
        %v2372 = vpop.f32.mrb[0].mxu0
        %2373 = vmatprep.mubr.f32.mxu0 0.0
        %2374 = vmatmul.mubr.f32.gmra.mrb[0].mxu0 %v2150
        %v2375 = vpop.f32.mrb[0].mxu0
        %v2376 = vadd.f32 %v2056, %v2375
        %v2377 = vpop.f32.mrb[0].mxu0
        %2378 = vmatprep.mubr.f32.mxu0 0.0
        %2379 = vmatmul.mubr.f32.gmra.mrb[0].mxu0 %v2153
        %v2380 = vpop.f32.mrb[0].mxu0
        %v2381 = vadd.f32 %v2056, %v2380
        %v2382 = vpop.f32.mrb[0].mxu0
        %2383 = vdwg.mxu0
        %v2384 = vxor.u32 %v2226, 2147483648
        %v2385 = vxor.u32 %v2231, 2147483648
        %v2386 = vxor.u32 %v2236, 2147483648
        %v2387 = vxor.u32 %v2241, 2147483648
        %v2388 = vxor.u32 %v2246, 2147483648
        %v2389 = vxor.u32 %v2251, 2147483648
        %v2390 = vxor.u32 %v2256, 2147483648
        %v2391 = vxor.u32 %v2261, 2147483648
        %v2392 = vxor.u32 %v2266, 2147483648
        %v2393 = vxor.u32 %v2271, 2147483648
        %v2394 = vxor.u32 %v2276, 2147483648
        %v2395 = vxor.u32 %v2281, 2147483648
        %v2396 = vxor.u32 %v2286, 2147483648
        %v2397 = vxor.u32 %v2291, 2147483648
        %v2398 = vxor.u32 %v2296, 2147483648
        %v2399 = vxor.u32 %v2301, 2147483648
        %v2400 = vxor.u32 %v2306, 2147483648
        %v2401 = vxor.u32 %v2311, 2147483648
        %v2402 = vxor.u32 %v2316, 2147483648
        %v2403 = vxor.u32 %v2321, 2147483648
        %v2404 = vxor.u32 %v2326, 2147483648
        %v2405 = vxor.u32 %v2331, 2147483648
        %v2406 = vxor.u32 %v2336, 2147483648
        %v2407 = vxor.u32 %v2341, 2147483648
        %v2408 = vxor.u32 %v2346, 2147483648
        %v2409 = vxor.u32 %v2351, 2147483648
        %v2410 = vxor.u32 %v2356, 2147483648
        %v2411 = vxor.u32 %v2361, 2147483648
        %v2412 = vxor.u32 %v2366, 2147483648
        %v2413 = vxor.u32 %v2371, 2147483648
        %v2414 = vxor.u32 %v2376, 2147483648
        %v2415 = vxor.u32 %v2381, 2147483648
        %v2416 = vmul.f32 %v2384, 1.442695
        %v2417 = vpow.pop %v2416
        %v2418 = vmul.f32 %v2385, 1.442695
        %v2419 = vpow.pop %v2418
        %v2420 = vmul.f32 %v2386, 1.442695
        %v2421 = vpow.pop %v2420
        %v2422 = vmul.f32 %v2387, 1.442695
        %v2423 = vpow.pop %v2422
        %v2424 = vmul.f32 %v2388, 1.442695
        %v2425 = vpow.pop %v2424
        %v2426 = vmul.f32 %v2389, 1.442695
        %v2427 = vpow.pop %v2426
        %v2428 = vmul.f32 %v2390, 1.442695
        %v2429 = vpow.pop %v2428
        %v2430 = vmul.f32 %v2391, 1.442695
        %v2431 = vpow.pop %v2430
        %v2432 = vmul.f32 %v2392, 1.442695
        %v2433 = vpow.pop %v2432
        %v2434 = vmul.f32 %v2393, 1.442695
        %v2435 = vpow.pop %v2434
        %v2436 = vmul.f32 %v2394, 1.442695
        %v2437 = vpow.pop %v2436
        %v2438 = vmul.f32 %v2395, 1.442695
        %v2439 = vpow.pop %v2438
        %v2440 = vmul.f32 %v2396, 1.442695
        %v2441 = vpow.pop %v2440
        %v2442 = vmul.f32 %v2397, 1.442695
        %v2443 = vpow.pop %v2442
        %v2444 = vmul.f32 %v2398, 1.442695
        %v2445 = vpow.pop %v2444
        %v2446 = vmul.f32 %v2399, 1.442695
        %v2447 = vpow.pop %v2446
        %v2448 = vmul.f32 %v2400, 1.442695
        %v2449 = vpow.pop %v2448
        %v2450 = vmul.f32 %v2401, 1.442695
        %v2451 = vpow.pop %v2450
        %v2452 = vmul.f32 %v2402, 1.442695
        %v2453 = vpow.pop %v2452
        %v2454 = vmul.f32 %v2403, 1.442695
        %v2455 = vpow.pop %v2454
        %v2456 = vmul.f32 %v2404, 1.442695
        %v2457 = vpow.pop %v2456
        %v2458 = vmul.f32 %v2405, 1.442695
        %v2459 = vpow.pop %v2458
        %v2460 = vmul.f32 %v2406, 1.442695
        %v2461 = vpow.pop %v2460
        %v2462 = vmul.f32 %v2407, 1.442695
        %v2463 = vpow.pop %v2462
        %v2464 = vmul.f32 %v2408, 1.442695
        %v2465 = vpow.pop %v2464
        %v2466 = vmul.f32 %v2409, 1.442695
        %v2467 = vpow.pop %v2466
        %v2468 = vmul.f32 %v2410, 1.442695
        %v2469 = vpow.pop %v2468
        %v2470 = vmul.f32 %v2411, 1.442695
        %v2471 = vpow.pop %v2470
        %v2472 = vmul.f32 %v2412, 1.442695
        %v2473 = vpow.pop %v2472
        %v2474 = vmul.f32 %v2413, 1.442695
        %v2475 = vpow.pop %v2474
        %v2476 = vmul.f32 %v2414, 1.442695
        %v2477 = vpow.pop %v2476
        %v2478 = vmul.f32 %v2415, 1.442695
        %v2479 = vpow.pop %v2478
        %v2480 = vadd.f32 %v2417, 1.0
        %v2481 = vadd.f32 %v2419, 1.0
        %v2482 = vadd.f32 %v2421, 1.0
        %v2483 = vadd.f32 %v2423, 1.0
        %v2484 = vadd.f32 %v2425, 1.0
        %v2485 = vadd.f32 %v2427, 1.0
        %v2486 = vadd.f32 %v2429, 1.0
        %v2487 = vadd.f32 %v2431, 1.0
        %v2488 = vadd.f32 %v2433, 1.0
        %v2489 = vadd.f32 %v2435, 1.0
        %v2490 = vadd.f32 %v2437, 1.0
        %v2491 = vadd.f32 %v2439, 1.0
        %v2492 = vadd.f32 %v2441, 1.0
        %v2493 = vadd.f32 %v2443, 1.0
        %v2494 = vadd.f32 %v2445, 1.0
        %v2495 = vadd.f32 %v2447, 1.0
        %v2496 = vadd.f32 %v2449, 1.0
        %v2497 = vadd.f32 %v2451, 1.0
        %v2498 = vadd.f32 %v2453, 1.0
        %v2499 = vadd.f32 %v2455, 1.0
        %v2500 = vadd.f32 %v2457, 1.0
        %v2501 = vadd.f32 %v2459, 1.0
        %v2502 = vadd.f32 %v2461, 1.0
        %v2503 = vadd.f32 %v2463, 1.0
        %v2504 = vadd.f32 %v2465, 1.0
        %v2505 = vadd.f32 %v2467, 1.0
        %v2506 = vadd.f32 %v2469, 1.0
        %v2507 = vadd.f32 %v2471, 1.0
        %v2508 = vadd.f32 %v2473, 1.0
        %v2509 = vadd.f32 %v2475, 1.0
        %v2510 = vadd.f32 %v2477, 1.0
        %v2511 = vadd.f32 %v2479, 1.0
        %v2512 = vrcp.pop %v2480
        %v2513 = vmul.f32 1.0, %v2512
        %v2514 = vrcp.pop %v2481
        %v2515 = vmul.f32 1.0, %v2514
        %v2516 = vrcp.pop %v2482
        %v2517 = vmul.f32 1.0, %v2516
        %v2518 = vrcp.pop %v2483
        %v2519 = vmul.f32 1.0, %v2518
        %v2520 = vrcp.pop %v2484
        %v2521 = vmul.f32 1.0, %v2520
        %v2522 = vrcp.pop %v2485
        %v2523 = vmul.f32 1.0, %v2522
        %v2524 = vrcp.pop %v2486
        %v2525 = vmul.f32 1.0, %v2524
        %v2526 = vrcp.pop %v2487
        %v2527 = vmul.f32 1.0, %v2526
        %v2528 = vrcp.pop %v2488
        %v2529 = vmul.f32 1.0, %v2528
        %v2530 = vrcp.pop %v2489
        %v2531 = vmul.f32 1.0, %v2530
        %v2532 = vrcp.pop %v2490
        %v2533 = vmul.f32 1.0, %v2532
        %v2534 = vrcp.pop %v2491
        %v2535 = vmul.f32 1.0, %v2534
        %v2536 = vrcp.pop %v2492
        %v2537 = vmul.f32 1.0, %v2536
        %v2538 = vrcp.pop %v2493
        %v2539 = vmul.f32 1.0, %v2538
        %v2540 = vrcp.pop %v2494
        %v2541 = vmul.f32 1.0, %v2540
        %v2542 = vrcp.pop %v2495
        %v2543 = vmul.f32 1.0, %v2542
        %v2544 = vrcp.pop %v2496
        %v2545 = vmul.f32 1.0, %v2544
        %v2546 = vrcp.pop %v2497
        %v2547 = vmul.f32 1.0, %v2546
        %v2548 = vrcp.pop %v2498
        %v2549 = vmul.f32 1.0, %v2548
        %v2550 = vrcp.pop %v2499
        %v2551 = vmul.f32 1.0, %v2550
        %v2552 = vrcp.pop %v2500
        %v2553 = vmul.f32 1.0, %v2552
        %v2554 = vrcp.pop %v2501
        %v2555 = vmul.f32 1.0, %v2554
        %v2556 = vrcp.pop %v2502
        %v2557 = vmul.f32 1.0, %v2556
        %v2558 = vrcp.pop %v2503
        %v2559 = vmul.f32 1.0, %v2558
        %v2560 = vrcp.pop %v2504
        %v2561 = vmul.f32 1.0, %v2560
        %v2562 = vrcp.pop %v2505
        %v2563 = vmul.f32 1.0, %v2562
        %v2564 = vrcp.pop %v2506
        %v2565 = vmul.f32 1.0, %v2564
        %v2566 = vrcp.pop %v2507
        %v2567 = vmul.f32 1.0, %v2566
        %v2568 = vrcp.pop %v2508
        %v2569 = vmul.f32 1.0, %v2568
        %v2570 = vrcp.pop %v2509
        %v2571 = vmul.f32 1.0, %v2570
        %v2572 = vrcp.pop %v2510
        %v2573 = vmul.f32 1.0, %v2572
        %v2574 = vrcp.pop %v2511
        %v2575 = vmul.f32 1.0, %v2574
        %v2576 = vmul.f32 %v2226, %v2513
        %v2577 = vmul.f32 %v2231, %v2515
        %v2578 = vmul.f32 %v2236, %v2517
        %v2579 = vmul.f32 %v2241, %v2519
        %v2580 = vmul.f32 %v2246, %v2521
        %v2581 = vmul.f32 %v2251, %v2523
        %v2582 = vmul.f32 %v2256, %v2525
        %v2583 = vmul.f32 %v2261, %v2527
        %v2584 = vmul.f32 %v2266, %v2529
        %v2585 = vmul.f32 %v2271, %v2531
        %v2586 = vmul.f32 %v2276, %v2533
        %v2587 = vmul.f32 %v2281, %v2535
        %v2588 = vmul.f32 %v2286, %v2537
        %v2589 = vmul.f32 %v2291, %v2539
        %v2590 = vmul.f32 %v2296, %v2541
        %v2591 = vmul.f32 %v2301, %v2543
        %v2592 = vmul.f32 %v2306, %v2545
        %v2593 = vmul.f32 %v2311, %v2547
        %v2594 = vmul.f32 %v2316, %v2549
        %v2595 = vmul.f32 %v2321, %v2551
        %v2596 = vmul.f32 %v2326, %v2553
        %v2597 = vmul.f32 %v2331, %v2555
        %v2598 = vmul.f32 %v2336, %v2557
        %v2599 = vmul.f32 %v2341, %v2559
        %v2600 = vmul.f32 %v2346, %v2561
        %v2601 = vmul.f32 %v2351, %v2563
        %v2602 = vmul.f32 %v2356, %v2565
        %v2603 = vmul.f32 %v2361, %v2567
        %v2604 = vmul.f32 %v2366, %v2569
        %v2605 = vmul.f32 %v2371, %v2571
        %v2606 = vmul.f32 %v2376, %v2573
        %v2607 = vmul.f32 %v2381, %v2575
        %2608 = vst.msk [vmem:[%s342 + $0x8] sm:$0xff] %vm331, %v2576
        %2609 = vst.msk [vmem:[%s342 + $0x10] sm:$0xff] %vm331, %v2577
        %2610 = vst.msk [vmem:[%s342 + $0x28] sm:$0xff] %vm331, %v2578
        %2611 = vst.msk [vmem:[%s342 + $0x30] sm:$0xff] %vm331, %v2579
        %2612 = vst.msk [vmem:[%s342 + $0x48] sm:$0xff] %vm331, %v2580
        %2613 = vst.msk [vmem:[%s342 + $0x50] sm:$0xff] %vm331, %v2581
        %2614 = vst.msk [vmem:[%s342 + $0x68] sm:$0xff] %vm331, %v2582
        %2615 = vst.msk [vmem:[%s342 + $0x70] sm:$0xff] %vm331, %v2583
        %2616 = vst.msk [vmem:[%s342 + $0x88] sm:$0xff] %vm331, %v2584
        %2617 = vst.msk [vmem:[%s342 + $0x90] sm:$0xff] %vm331, %v2585
        %2618 = vst.msk [vmem:[%s342 + $0xa8] sm:$0xff] %vm331, %v2586
        %2619 = vst.msk [vmem:[%s342 + $0xb0] sm:$0xff] %vm331, %v2587
        %2620 = vst.msk [vmem:[%s342 + $0xc8] sm:$0xff] %vm331, %v2588
        %2621 = vst.msk [vmem:[%s342 + $0xd0] sm:$0xff] %vm331, %v2589
        %2622 = vst.msk [vmem:[%s342 + $0xe8] sm:$0xff] %vm331, %v2590
        %2623 = vst.msk [vmem:[%s342 + $0xf0] sm:$0xff] %vm331, %v2591
        %2624 = vst.msk [vmem:[%s342 + $0x108] sm:$0xff] %vm331, %v2592
        %2625 = vst.msk [vmem:[%s342 + $0x110] sm:$0xff] %vm331, %v2593
        %2626 = vst.msk [vmem:[%s342 + $0x128] sm:$0xff] %vm331, %v2594
        %2627 = vst.msk [vmem:[%s342 + $0x130] sm:$0xff] %vm331, %v2595
        %2628 = vst.msk [vmem:[%s342 + $0x148] sm:$0xff] %vm331, %v2596
        %2629 = vst.msk [vmem:[%s342 + $0x150] sm:$0xff] %vm331, %v2597
        %2630 = vst.msk [vmem:[%s342 + $0x168] sm:$0xff] %vm331, %v2598
        %2631 = vst.msk [vmem:[%s342 + $0x170] sm:$0xff] %vm331, %v2599
        %2632 = vst.msk [vmem:[%s342 + $0x188] sm:$0xff] %vm331, %v2600
        %2633 = vst.msk [vmem:[%s342 + $0x190] sm:$0xff] %vm331, %v2601
        %2634 = vst.msk [vmem:[%s342 + $0x1a8] sm:$0xff] %vm331, %v2602
        %2635 = vst.msk [vmem:[%s342 + $0x1b0] sm:$0xff] %vm331, %v2603
        %2636 = vst.msk [vmem:[%s342 + $0x1c8] sm:$0xff] %vm331, %v2604
        %2637 = vst.msk [vmem:[%s342 + $0x1d0] sm:$0xff] %vm331, %v2605
        %2638 = vst.msk [vmem:[%s342 + $0x1e8] sm:$0xff] %vm331, %v2606
        %2639 = vst.msk [vmem:[%s342 + $0x1f0] sm:$0xff] %vm331, %v2607
        %v2640 = vld [vmem:[#allocation2 + $0x7] sm:$0xff]
        %v2641 = vld [vmem:[#allocation2 + $0xf] sm:$0xff]
        %v2642 = vld [vmem:[#allocation2 + $0x27] sm:$0xff]
        %v2643 = vld [vmem:[#allocation2 + $0x2f] sm:$0xff]
        %v2644 = vld [vmem:[#allocation2 + $0x47] sm:$0xff]
        %v2645 = vld [vmem:[#allocation2 + $0x4f] sm:$0xff]
        %v2646 = vld [vmem:[#allocation2 + $0x67] sm:$0xff]
        %v2647 = vld [vmem:[#allocation2 + $0x6f] sm:$0xff]
        %v2648 = vld [vmem:[#allocation2 + $0x87] sm:$0xff]
        %v2649 = vld [vmem:[#allocation2 + $0x8f] sm:$0xff]
        %v2650 = vld [vmem:[#allocation2 + $0xa7] sm:$0xff]
        %v2651 = vld [vmem:[#allocation2 + $0xaf] sm:$0xff]
        %v2652 = vld [vmem:[#allocation2 + $0xc7] sm:$0xff]
        %v2653 = vld [vmem:[#allocation2 + $0xcf] sm:$0xff]
        %v2654 = vld [vmem:[#allocation2 + $0xe7] sm:$0xff]
        %v2655 = vld [vmem:[#allocation2 + $0xef] sm:$0xff]
        %v2656 = vld [vmem:[#allocation2 + $0x107] sm:$0xff]
        %v2657 = vld [vmem:[#allocation2 + $0x10f] sm:$0xff]
        %v2658 = vld [vmem:[#allocation2 + $0x127] sm:$0xff]
        %v2659 = vld [vmem:[#allocation2 + $0x12f] sm:$0xff]
        %v2660 = vld [vmem:[#allocation2 + $0x147] sm:$0xff]
        %v2661 = vld [vmem:[#allocation2 + $0x14f] sm:$0xff]
        %v2662 = vld [vmem:[#allocation2 + $0x167] sm:$0xff]
        %v2663 = vld [vmem:[#allocation2 + $0x16f] sm:$0xff]
        %v2664 = vld [vmem:[#allocation2 + $0x187] sm:$0xff]
        %v2665 = vld [vmem:[#allocation2 + $0x18f] sm:$0xff]
        %v2666 = vld [vmem:[#allocation2 + $0x1a7] sm:$0xff]
        %v2667 = vld [vmem:[#allocation2 + $0x1af] sm:$0xff]
        %v2668 = vld [vmem:[#allocation2 + $0x1c7] sm:$0xff]
        %v2669 = vld [vmem:[#allocation2 + $0x1cf] sm:$0xff]
        %v2670 = vld [vmem:[#allocation2 + $0x1e7] sm:$0xff]
        %v2671 = vld [vmem:[#allocation2 + $0x1ef] sm:$0xff]
        %2672 = vst.msk [vmem:[#allocation3] sm:$0xff] %vm331, %v2640
        %2673 = vst.msk [vmem:[#allocation3 + $0x8] sm:$0xff] %vm331, %v2641
        %2674 = vst.msk [vmem:[#allocation3 + $0x10] sm:$0xff] %vm331, %v2642
        %2675 = vst.msk [vmem:[#allocation3 + $0x18] sm:$0xff] %vm331, %v2643
        %2676 = vst.msk [vmem:[#allocation3 + $0x20] sm:$0xff] %vm331, %v2644
        %2677 = vst.msk [vmem:[#allocation3 + $0x28] sm:$0xff] %vm331, %v2645
        %2678 = vst.msk [vmem:[#allocation3 + $0x30] sm:$0xff] %vm331, %v2646
        %2679 = vst.msk [vmem:[#allocation3 + $0x38] sm:$0xff] %vm331, %v2647
        %2680 = vst.msk [vmem:[#allocation3 + $0x40] sm:$0xff] %vm331, %v2648
        %2681 = vst.msk [vmem:[#allocation3 + $0x48] sm:$0xff] %vm331, %v2649
        %2682 = vst.msk [vmem:[#allocation3 + $0x50] sm:$0xff] %vm331, %v2650
        %2683 = vst.msk [vmem:[#allocation3 + $0x58] sm:$0xff] %vm331, %v2651
        %2684 = vst.msk [vmem:[#allocation3 + $0x60] sm:$0xff] %vm331, %v2652
        %2685 = vst.msk [vmem:[#allocation3 + $0x68] sm:$0xff] %vm331, %v2653
        %2686 = vst.msk [vmem:[#allocation3 + $0x70] sm:$0xff] %vm331, %v2654
        %2687 = vst.msk [vmem:[#allocation3 + $0x78] sm:$0xff] %vm331, %v2655
        %2688 = vst.msk [vmem:[#allocation3 + $0x80] sm:$0xff] %vm331, %v2656
        %2689 = vst.msk [vmem:[#allocation3 + $0x88] sm:$0xff] %vm331, %v2657
        %2690 = vst.msk [vmem:[#allocation3 + $0x90] sm:$0xff] %vm331, %v2658
        %2691 = vst.msk [vmem:[#allocation3 + $0x98] sm:$0xff] %vm331, %v2659
        %2692 = vst.msk [vmem:[#allocation3 + $0xa0] sm:$0xff] %vm331, %v2660
        %2693 = vst.msk [vmem:[#allocation3 + $0xa8] sm:$0xff] %vm331, %v2661
        %2694 = vst.msk [vmem:[#allocation3 + $0xb0] sm:$0xff] %vm331, %v2662
        %2695 = vst.msk [vmem:[#allocation3 + $0xb8] sm:$0xff] %vm331, %v2663
        %2696 = vst.msk [vmem:[#allocation3 + $0xc0] sm:$0xff] %vm331, %v2664
        %2697 = vst.msk [vmem:[#allocation3 + $0xc8] sm:$0xff] %vm331, %v2665
        %2698 = vst.msk [vmem:[#allocation3 + $0xd0] sm:$0xff] %vm331, %v2666
        %2699 = vst.msk [vmem:[#allocation3 + $0xd8] sm:$0xff] %vm331, %v2667
        %2700 = vst.msk [vmem:[#allocation3 + $0xe0] sm:$0xff] %vm331, %v2668
        %2701 = vst.msk [vmem:[#allocation3 + $0xe8] sm:$0xff] %vm331, %v2669
        %2702 = vst.msk [vmem:[#allocation3 + $0xf0] sm:$0xff] %vm331, %v2670
        %2703 = vst.msk [vmem:[#allocation3 + $0xf8] sm:$0xff] %vm331, %v2671
        %v2704 = vld [vmem:[#allocation2 + $0x8] sm:$0xff]
        %v2705 = vld [vmem:[#allocation2 + $0x10] sm:$0xff]
        %v2706 = vld [vmem:[#allocation2 + $0x28] sm:$0xff]
        %v2707 = vld [vmem:[#allocation2 + $0x30] sm:$0xff]
        %v2708 = vld [vmem:[#allocation2 + $0x48] sm:$0xff]
        %v2709 = vld [vmem:[#allocation2 + $0x50] sm:$0xff]
        %v2710 = vld [vmem:[#allocation2 + $0x68] sm:$0xff]
        %v2711 = vld [vmem:[#allocation2 + $0x70] sm:$0xff]
        %v2712 = vld [vmem:[#allocation2 + $0x88] sm:$0xff]
        %v2713 = vld [vmem:[#allocation2 + $0x90] sm:$0xff]
        %v2714 = vld [vmem:[#allocation2 + $0xa8] sm:$0xff]
        %v2715 = vld [vmem:[#allocation2 + $0xb0] sm:$0xff]
        %v2716 = vld [vmem:[#allocation2 + $0xc8] sm:$0xff]
        %v2717 = vld [vmem:[#allocation2 + $0xd0] sm:$0xff]
        %v2718 = vld [vmem:[#allocation2 + $0xe8] sm:$0xff]
        %v2719 = vld [vmem:[#allocation2 + $0xf0] sm:$0xff]
        %v2720 = vld [vmem:[#allocation2 + $0x108] sm:$0xff]
        %v2721 = vld [vmem:[#allocation2 + $0x110] sm:$0xff]
        %v2722 = vld [vmem:[#allocation2 + $0x128] sm:$0xff]
        %v2723 = vld [vmem:[#allocation2 + $0x130] sm:$0xff]
        %v2724 = vld [vmem:[#allocation2 + $0x148] sm:$0xff]
        %v2725 = vld [vmem:[#allocation2 + $0x150] sm:$0xff]
        %v2726 = vld [vmem:[#allocation2 + $0x168] sm:$0xff]
        %v2727 = vld [vmem:[#allocation2 + $0x170] sm:$0xff]
        %v2728 = vld [vmem:[#allocation2 + $0x188] sm:$0xff]
        %v2729 = vld [vmem:[#allocation2 + $0x190] sm:$0xff]
        %v2730 = vld [vmem:[#allocation2 + $0x1a8] sm:$0xff]
        %v2731 = vld [vmem:[#allocation2 + $0x1b0] sm:$0xff]
        %v2732 = vld [vmem:[#allocation2 + $0x1c8] sm:$0xff]
        %v2733 = vld [vmem:[#allocation2 + $0x1d0] sm:$0xff]
        %v2734 = vld [vmem:[#allocation2 + $0x1e8] sm:$0xff]
        %v2735 = vld [vmem:[#allocation2 + $0x1f0] sm:$0xff]
        %2768 = vrot.lane.b32.xlu0 %v2704, 2
        %v2769 = vpop.permute.xlu0 %2768
        %2770 = vrot.lane.b32.xlu0 %v2705, 2
        %v2771 = vpop.permute.xlu0 %2770
        %2772 = vrot.lane.b32.xlu0 %v2706, 2
        %v2773 = vpop.permute.xlu0 %2772
        %2774 = vrot.lane.b32.xlu0 %v2707, 2
        %v2775 = vpop.permute.xlu0 %2774
        %2776 = vrot.lane.b32.xlu0 %v2708, 2
        %v2777 = vpop.permute.xlu0 %2776
        %2778 = vrot.lane.b32.xlu0 %v2709, 2
        %v2779 = vpop.permute.xlu0 %2778
        %2780 = vrot.lane.b32.xlu0 %v2710, 2
        %v2781 = vpop.permute.xlu0 %2780
        %2782 = vrot.lane.b32.xlu0 %v2711, 2
        %v2783 = vpop.permute.xlu0 %2782
        %2784 = vrot.lane.b32.xlu0 %v2712, 2
        %v2785 = vpop.permute.xlu0 %2784
        %2786 = vrot.lane.b32.xlu0 %v2713, 2
        %v2787 = vpop.permute.xlu0 %2786
        %2788 = vrot.lane.b32.xlu0 %v2714, 2
        %v2789 = vpop.permute.xlu0 %2788
        %2790 = vrot.lane.b32.xlu0 %v2715, 2
        %v2791 = vpop.permute.xlu0 %2790
        %2792 = vrot.lane.b32.xlu0 %v2716, 2
        %v2793 = vpop.permute.xlu0 %2792
        %2794 = vrot.lane.b32.xlu0 %v2717, 2
        %v2795 = vpop.permute.xlu0 %2794
        %2796 = vrot.lane.b32.xlu0 %v2718, 2
        %v2797 = vpop.permute.xlu0 %2796
        %2798 = vrot.lane.b32.xlu0 %v2719, 2
        %v2799 = vpop.permute.xlu0 %2798
        %2800 = vrot.lane.b32.xlu0 %v2720, 2
        %v2801 = vpop.permute.xlu0 %2800
        %2802 = vrot.lane.b32.xlu0 %v2721, 2
        %v2803 = vpop.permute.xlu0 %2802
        %2804 = vrot.lane.b32.xlu0 %v2722, 2
        %v2805 = vpop.permute.xlu0 %2804
        %2806 = vrot.lane.b32.xlu0 %v2723, 2
        %v2807 = vpop.permute.xlu0 %2806
        %2808 = vrot.lane.b32.xlu0 %v2724, 2
        %v2809 = vpop.permute.xlu0 %2808
        %2810 = vrot.lane.b32.xlu0 %v2725, 2
        %v2811 = vpop.permute.xlu0 %2810
        %2812 = vrot.lane.b32.xlu0 %v2726, 2
        %v2813 = vpop.permute.xlu0 %2812
        %2814 = vrot.lane.b32.xlu0 %v2727, 2
        %v2815 = vpop.permute.xlu0 %2814
        %2816 = vrot.lane.b32.xlu0 %v2728, 2
        %v2817 = vpop.permute.xlu0 %2816
        %2818 = vrot.lane.b32.xlu0 %v2729, 2
        %v2819 = vpop.permute.xlu0 %2818
        %2820 = vrot.lane.b32.xlu0 %v2730, 2
        %v2821 = vpop.permute.xlu0 %2820
        %2822 = vrot.lane.b32.xlu0 %v2731, 2
        %v2823 = vpop.permute.xlu0 %2822
        %2824 = vrot.lane.b32.xlu0 %v2732, 2
        %v2825 = vpop.permute.xlu0 %2824
        %2826 = vrot.lane.b32.xlu0 %v2733, 2
        %v2827 = vpop.permute.xlu0 %2826
        %2828 = vrot.lane.b32.xlu0 %v2734, 2
        %v2829 = vpop.permute.xlu0 %2828
        %2830 = vrot.lane.b32.xlu0 %v2735, 2
        %v2831 = vpop.permute.xlu0 %2830
        %2864 = vst.msk [vmem:[#allocation3] sm:$0xff] %vm631, %v2769
        %2865 = vst.msk [vmem:[#allocation3 + $0x8] sm:$0xff] %vm631, %v2771
        %2866 = vst.msk [vmem:[#allocation3 + $0x10] sm:$0xff] %vm631, %v2773
        %2867 = vst.msk [vmem:[#allocation3 + $0x18] sm:$0xff] %vm631, %v2775
        %2868 = vst.msk [vmem:[#allocation3 + $0x20] sm:$0xff] %vm631, %v2777
        %2869 = vst.msk [vmem:[#allocation3 + $0x28] sm:$0xff] %vm631, %v2779
        %2870 = vst.msk [vmem:[#allocation3 + $0x30] sm:$0xff] %vm631, %v2781
        %2871 = vst.msk [vmem:[#allocation3 + $0x38] sm:$0xff] %vm631, %v2783
        %2872 = vst.msk [vmem:[#allocation3 + $0x40] sm:$0xff] %vm631, %v2785
        %2873 = vst.msk [vmem:[#allocation3 + $0x48] sm:$0xff] %vm631, %v2787
        %2874 = vst.msk [vmem:[#allocation3 + $0x50] sm:$0xff] %vm631, %v2789
        %2875 = vst.msk [vmem:[#allocation3 + $0x58] sm:$0xff] %vm631, %v2791
        %2876 = vst.msk [vmem:[#allocation3 + $0x60] sm:$0xff] %vm631, %v2793
        %2877 = vst.msk [vmem:[#allocation3 + $0x68] sm:$0xff] %vm631, %v2795
        %2878 = vst.msk [vmem:[#allocation3 + $0x70] sm:$0xff] %vm631, %v2797
        %2879 = vst.msk [vmem:[#allocation3 + $0x78] sm:$0xff] %vm631, %v2799
        %2880 = vst.msk [vmem:[#allocation3 + $0x80] sm:$0xff] %vm631, %v2801
        %2881 = vst.msk [vmem:[#allocation3 + $0x88] sm:$0xff] %vm631, %v2803
        %2882 = vst.msk [vmem:[#allocation3 + $0x90] sm:$0xff] %vm631, %v2805
        %2883 = vst.msk [vmem:[#allocation3 + $0x98] sm:$0xff] %vm631, %v2807
        %2884 = vst.msk [vmem:[#allocation3 + $0xa0] sm:$0xff] %vm631, %v2809
        %2885 = vst.msk [vmem:[#allocation3 + $0xa8] sm:$0xff] %vm631, %v2811
        %2886 = vst.msk [vmem:[#allocation3 + $0xb0] sm:$0xff] %vm631, %v2813
        %2887 = vst.msk [vmem:[#allocation3 + $0xb8] sm:$0xff] %vm631, %v2815
        %2888 = vst.msk [vmem:[#allocation3 + $0xc0] sm:$0xff] %vm631, %v2817
        %2889 = vst.msk [vmem:[#allocation3 + $0xc8] sm:$0xff] %vm631, %v2819
        %2890 = vst.msk [vmem:[#allocation3 + $0xd0] sm:$0xff] %vm631, %v2821
        %2891 = vst.msk [vmem:[#allocation3 + $0xd8] sm:$0xff] %vm631, %v2823
        %2892 = vst.msk [vmem:[#allocation3 + $0xe0] sm:$0xff] %vm631, %v2825
        %2893 = vst.msk [vmem:[#allocation3 + $0xe8] sm:$0xff] %vm631, %v2827
        %2894 = vst.msk [vmem:[#allocation3 + $0xf0] sm:$0xff] %vm631, %v2829
        %2895 = vst.msk [vmem:[#allocation3 + $0xf8] sm:$0xff] %vm631, %v2831
        %v2896 = vld [vmem:[#allocation2 + $0x9] sm:$0xff]
        %v2897 = vld [vmem:[#allocation2 + $0x11] sm:$0xff]
        %v2898 = vld [vmem:[#allocation2 + $0x29] sm:$0xff]
        %v2899 = vld [vmem:[#allocation2 + $0x31] sm:$0xff]
        %v2900 = vld [vmem:[#allocation2 + $0x49] sm:$0xff]
        %v2901 = vld [vmem:[#allocation2 + $0x51] sm:$0xff]
        %v2902 = vld [vmem:[#allocation2 + $0x69] sm:$0xff]
        %v2903 = vld [vmem:[#allocation2 + $0x71] sm:$0xff]
        %v2904 = vld [vmem:[#allocation2 + $0x89] sm:$0xff]
        %v2905 = vld [vmem:[#allocation2 + $0x91] sm:$0xff]
        %v2906 = vld [vmem:[#allocation2 + $0xa9] sm:$0xff]
        %v2907 = vld [vmem:[#allocation2 + $0xb1] sm:$0xff]
        %v2908 = vld [vmem:[#allocation2 + $0xc9] sm:$0xff]
        %v2909 = vld [vmem:[#allocation2 + $0xd1] sm:$0xff]
        %v2910 = vld [vmem:[#allocation2 + $0xe9] sm:$0xff]
        %v2911 = vld [vmem:[#allocation2 + $0xf1] sm:$0xff]
        %v2912 = vld [vmem:[#allocation2 + $0x109] sm:$0xff]
        %v2913 = vld [vmem:[#allocation2 + $0x111] sm:$0xff]
        %v2914 = vld [vmem:[#allocation2 + $0x129] sm:$0xff]
        %v2915 = vld [vmem:[#allocation2 + $0x131] sm:$0xff]
        %v2916 = vld [vmem:[#allocation2 + $0x149] sm:$0xff]
        %v2917 = vld [vmem:[#allocation2 + $0x151] sm:$0xff]
        %v2918 = vld [vmem:[#allocation2 + $0x169] sm:$0xff]
        %v2919 = vld [vmem:[#allocation2 + $0x171] sm:$0xff]
        %v2920 = vld [vmem:[#allocation2 + $0x189] sm:$0xff]
        %v2921 = vld [vmem:[#allocation2 + $0x191] sm:$0xff]
        %v2922 = vld [vmem:[#allocation2 + $0x1a9] sm:$0xff]
        %v2923 = vld [vmem:[#allocation2 + $0x1b1] sm:$0xff]
        %v2924 = vld [vmem:[#allocation2 + $0x1c9] sm:$0xff]
        %v2925 = vld [vmem:[#allocation2 + $0x1d1] sm:$0xff]
        %v2926 = vld [vmem:[#allocation2 + $0x1e9] sm:$0xff]
        %v2927 = vld [vmem:[#allocation2 + $0x1f1] sm:$0xff]
        %2960 = vrot.lane.b32.xlu0 %v2896, 4
        %v2961 = vpop.permute.xlu0 %2960
        %2962 = vrot.lane.b32.xlu0 %v2897, 4
        %v2963 = vpop.permute.xlu0 %2962
        %2964 = vrot.lane.b32.xlu0 %v2898, 4
        %v2965 = vpop.permute.xlu0 %2964
        %2966 = vrot.lane.b32.xlu0 %v2899, 4
        %v2967 = vpop.permute.xlu0 %2966
        %2968 = vrot.lane.b32.xlu0 %v2900, 4
        %v2969 = vpop.permute.xlu0 %2968
        %2970 = vrot.lane.b32.xlu0 %v2901, 4
        %v2971 = vpop.permute.xlu0 %2970
        %2972 = vrot.lane.b32.xlu0 %v2902, 4
        %v2973 = vpop.permute.xlu0 %2972
        %2974 = vrot.lane.b32.xlu0 %v2903, 4
        %v2975 = vpop.permute.xlu0 %2974
        %2976 = vrot.lane.b32.xlu0 %v2904, 4
        %v2977 = vpop.permute.xlu0 %2976
        %2978 = vrot.lane.b32.xlu0 %v2905, 4
        %v2979 = vpop.permute.xlu0 %2978
        %2980 = vrot.lane.b32.xlu0 %v2906, 4
        %v2981 = vpop.permute.xlu0 %2980
        %2982 = vrot.lane.b32.xlu0 %v2907, 4
        %v2983 = vpop.permute.xlu0 %2982
        %2984 = vrot.lane.b32.xlu0 %v2908, 4
        %v2985 = vpop.permute.xlu0 %2984
        %2986 = vrot.lane.b32.xlu0 %v2909, 4
        %v2987 = vpop.permute.xlu0 %2986
        %2988 = vrot.lane.b32.xlu0 %v2910, 4
        %v2989 = vpop.permute.xlu0 %2988
        %2990 = vrot.lane.b32.xlu0 %v2911, 4
        %v2991 = vpop.permute.xlu0 %2990
        %2992 = vrot.lane.b32.xlu0 %v2912, 4
        %v2993 = vpop.permute.xlu0 %2992
        %2994 = vrot.lane.b32.xlu0 %v2913, 4
        %v2995 = vpop.permute.xlu0 %2994
        %2996 = vrot.lane.b32.xlu0 %v2914, 4
        %v2997 = vpop.permute.xlu0 %2996
        %2998 = vrot.lane.b32.xlu0 %v2915, 4
        %v2999 = vpop.permute.xlu0 %2998
        %3000 = vrot.lane.b32.xlu0 %v2916, 4
        %v3001 = vpop.permute.xlu0 %3000
        %3002 = vrot.lane.b32.xlu0 %v2917, 4
        %v3003 = vpop.permute.xlu0 %3002
        %3004 = vrot.lane.b32.xlu0 %v2918, 4
        %v3005 = vpop.permute.xlu0 %3004
        %3006 = vrot.lane.b32.xlu0 %v2919, 4
        %v3007 = vpop.permute.xlu0 %3006
        %3008 = vrot.lane.b32.xlu0 %v2920, 4
        %v3009 = vpop.permute.xlu0 %3008
        %3010 = vrot.lane.b32.xlu0 %v2921, 4
        %v3011 = vpop.permute.xlu0 %3010
        %3012 = vrot.lane.b32.xlu0 %v2922, 4
        %v3013 = vpop.permute.xlu0 %3012
        %3014 = vrot.lane.b32.xlu0 %v2923, 4
        %v3015 = vpop.permute.xlu0 %3014
        %3016 = vrot.lane.b32.xlu0 %v2924, 4
        %v3017 = vpop.permute.xlu0 %3016
        %3018 = vrot.lane.b32.xlu0 %v2925, 4
        %v3019 = vpop.permute.xlu0 %3018
        %3020 = vrot.lane.b32.xlu0 %v2926, 4
        %v3021 = vpop.permute.xlu0 %3020
        %3022 = vrot.lane.b32.xlu0 %v2927, 4
        %v3023 = vpop.permute.xlu0 %3022
        %3056 = vst.msk [vmem:[#allocation3] sm:$0xff] %vm824, %v2961
        %3057 = vst.msk [vmem:[#allocation3 + $0x8] sm:$0xff] %vm824, %v2963
        %3058 = vst.msk [vmem:[#allocation3 + $0x10] sm:$0xff] %vm824, %v2965
        %3059 = vst.msk [vmem:[#allocation3 + $0x18] sm:$0xff] %vm824, %v2967
        %3060 = vst.msk [vmem:[#allocation3 + $0x20] sm:$0xff] %vm824, %v2969
        %3061 = vst.msk [vmem:[#allocation3 + $0x28] sm:$0xff] %vm824, %v2971
        %3062 = vst.msk [vmem:[#allocation3 + $0x30] sm:$0xff] %vm824, %v2973
        %3063 = vst.msk [vmem:[#allocation3 + $0x38] sm:$0xff] %vm824, %v2975
        %3064 = vst.msk [vmem:[#allocation3 + $0x40] sm:$0xff] %vm824, %v2977
        %3065 = vst.msk [vmem:[#allocation3 + $0x48] sm:$0xff] %vm824, %v2979
        %3066 = vst.msk [vmem:[#allocation3 + $0x50] sm:$0xff] %vm824, %v2981
        %3067 = vst.msk [vmem:[#allocation3 + $0x58] sm:$0xff] %vm824, %v2983
        %3068 = vst.msk [vmem:[#allocation3 + $0x60] sm:$0xff] %vm824, %v2985
        %3069 = vst.msk [vmem:[#allocation3 + $0x68] sm:$0xff] %vm824, %v2987
        %3070 = vst.msk [vmem:[#allocation3 + $0x70] sm:$0xff] %vm824, %v2989
        %3071 = vst.msk [vmem:[#allocation3 + $0x78] sm:$0xff] %vm824, %v2991
        %3072 = vst.msk [vmem:[#allocation3 + $0x80] sm:$0xff] %vm824, %v2993
        %3073 = vst.msk [vmem:[#allocation3 + $0x88] sm:$0xff] %vm824, %v2995
        %3074 = vst.msk [vmem:[#allocation3 + $0x90] sm:$0xff] %vm824, %v2997
        %3075 = vst.msk [vmem:[#allocation3 + $0x98] sm:$0xff] %vm824, %v2999
        %3076 = vst.msk [vmem:[#allocation3 + $0xa0] sm:$0xff] %vm824, %v3001
        %3077 = vst.msk [vmem:[#allocation3 + $0xa8] sm:$0xff] %vm824, %v3003
        %3078 = vst.msk [vmem:[#allocation3 + $0xb0] sm:$0xff] %vm824, %v3005
        %3079 = vst.msk [vmem:[#allocation3 + $0xb8] sm:$0xff] %vm824, %v3007
        %3080 = vst.msk [vmem:[#allocation3 + $0xc0] sm:$0xff] %vm824, %v3009
        %3081 = vst.msk [vmem:[#allocation3 + $0xc8] sm:$0xff] %vm824, %v3011
        %3082 = vst.msk [vmem:[#allocation3 + $0xd0] sm:$0xff] %vm824, %v3013
        %3083 = vst.msk [vmem:[#allocation3 + $0xd8] sm:$0xff] %vm824, %v3015
        %3084 = vst.msk [vmem:[#allocation3 + $0xe0] sm:$0xff] %vm824, %v3017
        %3085 = vst.msk [vmem:[#allocation3 + $0xe8] sm:$0xff] %vm824, %v3019
        %3086 = vst.msk [vmem:[#allocation3 + $0xf0] sm:$0xff] %vm824, %v3021
        %3087 = vst.msk [vmem:[#allocation3 + $0xf8] sm:$0xff] %vm824, %v3023
        %v3088 = vld [vmem:[%s342 + $0x7] sm:$0xff]
        %v3089 = vld [vmem:[%s342 + $0xf] sm:$0xff]
        %v3090 = vld [vmem:[%s342 + $0x27] sm:$0xff]
        %v3091 = vld [vmem:[%s342 + $0x2f] sm:$0xff]
        %v3092 = vld [vmem:[%s342 + $0x47] sm:$0xff]
        %v3093 = vld [vmem:[%s342 + $0x4f] sm:$0xff]
        %v3094 = vld [vmem:[%s342 + $0x67] sm:$0xff]
        %v3095 = vld [vmem:[%s342 + $0x6f] sm:$0xff]
        %v3096 = vld [vmem:[%s342 + $0x87] sm:$0xff]
        %v3097 = vld [vmem:[%s342 + $0x8f] sm:$0xff]
        %v3098 = vld [vmem:[%s342 + $0xa7] sm:$0xff]
        %v3099 = vld [vmem:[%s342 + $0xaf] sm:$0xff]
        %v3100 = vld [vmem:[%s342 + $0xc7] sm:$0xff]
        %v3101 = vld [vmem:[%s342 + $0xcf] sm:$0xff]
        %v3102 = vld [vmem:[%s342 + $0xe7] sm:$0xff]
        %v3103 = vld [vmem:[%s342 + $0xef] sm:$0xff]
        %v3104 = vld [vmem:[%s342 + $0x107] sm:$0xff]
        %v3105 = vld [vmem:[%s342 + $0x10f] sm:$0xff]
        %v3106 = vld [vmem:[%s342 + $0x127] sm:$0xff]
        %v3107 = vld [vmem:[%s342 + $0x12f] sm:$0xff]
        %v3108 = vld [vmem:[%s342 + $0x147] sm:$0xff]
        %v3109 = vld [vmem:[%s342 + $0x14f] sm:$0xff]
        %v3110 = vld [vmem:[%s342 + $0x167] sm:$0xff]
        %v3111 = vld [vmem:[%s342 + $0x16f] sm:$0xff]
        %v3112 = vld [vmem:[%s342 + $0x187] sm:$0xff]
        %v3113 = vld [vmem:[%s342 + $0x18f] sm:$0xff]
        %v3114 = vld [vmem:[%s342 + $0x1a7] sm:$0xff]
        %v3115 = vld [vmem:[%s342 + $0x1af] sm:$0xff]
        %v3116 = vld [vmem:[%s342 + $0x1c7] sm:$0xff]
        %v3117 = vld [vmem:[%s342 + $0x1cf] sm:$0xff]
        %v3118 = vld [vmem:[%s342 + $0x1e7] sm:$0xff]
        %v3119 = vld [vmem:[%s342 + $0x1ef] sm:$0xff]
        %3152 = vrot.lane.b32.xlu0 %v3088, 6
        %v3153 = vpop.permute.xlu0 %3152
        %3154 = vrot.lane.b32.xlu0 %v3089, 6
        %v3155 = vpop.permute.xlu0 %3154
        %3156 = vrot.lane.b32.xlu0 %v3090, 6
        %v3157 = vpop.permute.xlu0 %3156
        %3158 = vrot.lane.b32.xlu0 %v3091, 6
        %v3159 = vpop.permute.xlu0 %3158
        %3160 = vrot.lane.b32.xlu0 %v3092, 6
        %v3161 = vpop.permute.xlu0 %3160
        %3162 = vrot.lane.b32.xlu0 %v3093, 6
        %v3163 = vpop.permute.xlu0 %3162
        %3164 = vrot.lane.b32.xlu0 %v3094, 6
        %v3165 = vpop.permute.xlu0 %3164
        %3166 = vrot.lane.b32.xlu0 %v3095, 6
        %v3167 = vpop.permute.xlu0 %3166
        %3168 = vrot.lane.b32.xlu0 %v3096, 6
        %v3169 = vpop.permute.xlu0 %3168
        %3170 = vrot.lane.b32.xlu0 %v3097, 6
        %v3171 = vpop.permute.xlu0 %3170
        %3172 = vrot.lane.b32.xlu0 %v3098, 6
        %v3173 = vpop.permute.xlu0 %3172
        %3174 = vrot.lane.b32.xlu0 %v3099, 6
        %v3175 = vpop.permute.xlu0 %3174
        %3176 = vrot.lane.b32.xlu0 %v3100, 6
        %v3177 = vpop.permute.xlu0 %3176
        %3178 = vrot.lane.b32.xlu0 %v3101, 6
        %v3179 = vpop.permute.xlu0 %3178
        %3180 = vrot.lane.b32.xlu0 %v3102, 6
        %v3181 = vpop.permute.xlu0 %3180
        %3182 = vrot.lane.b32.xlu0 %v3103, 6
        %v3183 = vpop.permute.xlu0 %3182
        %3184 = vrot.lane.b32.xlu0 %v3104, 6
        %v3185 = vpop.permute.xlu0 %3184
        %3186 = vrot.lane.b32.xlu0 %v3105, 6
        %v3187 = vpop.permute.xlu0 %3186
        %3188 = vrot.lane.b32.xlu0 %v3106, 6
        %v3189 = vpop.permute.xlu0 %3188
        %3190 = vrot.lane.b32.xlu0 %v3107, 6
        %v3191 = vpop.permute.xlu0 %3190
        %3192 = vrot.lane.b32.xlu0 %v3108, 6
        %v3193 = vpop.permute.xlu0 %3192
        %3194 = vrot.lane.b32.xlu0 %v3109, 6
        %v3195 = vpop.permute.xlu0 %3194
        %3196 = vrot.lane.b32.xlu0 %v3110, 6
        %v3197 = vpop.permute.xlu0 %3196
        %3198 = vrot.lane.b32.xlu0 %v3111, 6
        %v3199 = vpop.permute.xlu0 %3198
        %3200 = vrot.lane.b32.xlu0 %v3112, 6
        %v3201 = vpop.permute.xlu0 %3200
        %3202 = vrot.lane.b32.xlu0 %v3113, 6
        %v3203 = vpop.permute.xlu0 %3202
        %3204 = vrot.lane.b32.xlu0 %v3114, 6
        %v3205 = vpop.permute.xlu0 %3204
        %3206 = vrot.lane.b32.xlu0 %v3115, 6
        %v3207 = vpop.permute.xlu0 %3206
        %3208 = vrot.lane.b32.xlu0 %v3116, 6
        %v3209 = vpop.permute.xlu0 %3208
        %3210 = vrot.lane.b32.xlu0 %v3117, 6
        %v3211 = vpop.permute.xlu0 %3210
        %3212 = vrot.lane.b32.xlu0 %v3118, 6
        %v3213 = vpop.permute.xlu0 %3212
        %3214 = vrot.lane.b32.xlu0 %v3119, 6
        %v3215 = vpop.permute.xlu0 %3214
        %3248 = vst.msk [vmem:[#allocation3] sm:$0xff] %vm1017, %v3153
        %3249 = vst.msk [vmem:[#allocation3 + $0x8] sm:$0xff] %vm1017, %v3155
        %3250 = vst.msk [vmem:[#allocation3 + $0x10] sm:$0xff] %vm1017, %v3157
        %3251 = vst.msk [vmem:[#allocation3 + $0x18] sm:$0xff] %vm1017, %v3159
        %3252 = vst.msk [vmem:[#allocation3 + $0x20] sm:$0xff] %vm1017, %v3161
        %3253 = vst.msk [vmem:[#allocation3 + $0x28] sm:$0xff] %vm1017, %v3163
        %3254 = vst.msk [vmem:[#allocation3 + $0x30] sm:$0xff] %vm1017, %v3165
        %3255 = vst.msk [vmem:[#allocation3 + $0x38] sm:$0xff] %vm1017, %v3167
        %3256 = vst.msk [vmem:[#allocation3 + $0x40] sm:$0xff] %vm1017, %v3169
        %3257 = vst.msk [vmem:[#allocation3 + $0x48] sm:$0xff] %vm1017, %v3171
        %3258 = vst.msk [vmem:[#allocation3 + $0x50] sm:$0xff] %vm1017, %v3173
        %3259 = vst.msk [vmem:[#allocation3 + $0x58] sm:$0xff] %vm1017, %v3175
        %3260 = vst.msk [vmem:[#allocation3 + $0x60] sm:$0xff] %vm1017, %v3177
        %3261 = vst.msk [vmem:[#allocation3 + $0x68] sm:$0xff] %vm1017, %v3179
        %3262 = vst.msk [vmem:[#allocation3 + $0x70] sm:$0xff] %vm1017, %v3181
        %3263 = vst.msk [vmem:[#allocation3 + $0x78] sm:$0xff] %vm1017, %v3183
        %3264 = vst.msk [vmem:[#allocation3 + $0x80] sm:$0xff] %vm1017, %v3185
        %3265 = vst.msk [vmem:[#allocation3 + $0x88] sm:$0xff] %vm1017, %v3187
        %3266 = vst.msk [vmem:[#allocation3 + $0x90] sm:$0xff] %vm1017, %v3189
        %3267 = vst.msk [vmem:[#allocation3 + $0x98] sm:$0xff] %vm1017, %v3191
        %3268 = vst.msk [vmem:[#allocation3 + $0xa0] sm:$0xff] %vm1017, %v3193
        %3269 = vst.msk [vmem:[#allocation3 + $0xa8] sm:$0xff] %vm1017, %v3195
        %3270 = vst.msk [vmem:[#allocation3 + $0xb0] sm:$0xff] %vm1017, %v3197
        %3271 = vst.msk [vmem:[#allocation3 + $0xb8] sm:$0xff] %vm1017, %v3199
        %3272 = vst.msk [vmem:[#allocation3 + $0xc0] sm:$0xff] %vm1017, %v3201
        %3273 = vst.msk [vmem:[#allocation3 + $0xc8] sm:$0xff] %vm1017, %v3203
        %3274 = vst.msk [vmem:[#allocation3 + $0xd0] sm:$0xff] %vm1017, %v3205
        %3275 = vst.msk [vmem:[#allocation3 + $0xd8] sm:$0xff] %vm1017, %v3207
        %3276 = vst.msk [vmem:[#allocation3 + $0xe0] sm:$0xff] %vm1017, %v3209
        %3277 = vst.msk [vmem:[#allocation3 + $0xe8] sm:$0xff] %vm1017, %v3211
        %3278 = vst.msk [vmem:[#allocation3 + $0xf0] sm:$0xff] %vm1017, %v3213
        %3279 = vst.msk [vmem:[#allocation3 + $0xf8] sm:$0xff] %vm1017, %v3215
        %v3280 = vld [vmem:[%s342 + $0x8] sm:$0xff]
        %v3281 = vld [vmem:[%s342 + $0x10] sm:$0xff]
        %v3282 = vld [vmem:[%s342 + $0x28] sm:$0xff]
        %v3283 = vld [vmem:[%s342 + $0x30] sm:$0xff]
        %v3284 = vld [vmem:[%s342 + $0x48] sm:$0xff]
        %v3285 = vld [vmem:[%s342 + $0x50] sm:$0xff]
        %v3286 = vld [vmem:[%s342 + $0x68] sm:$0xff]
        %v3287 = vld [vmem:[%s342 + $0x70] sm:$0xff]
        %v3288 = vld [vmem:[%s342 + $0x88] sm:$0xff]
        %v3289 = vld [vmem:[%s342 + $0x90] sm:$0xff]
        %v3290 = vld [vmem:[%s342 + $0xa8] sm:$0xff]
        %v3291 = vld [vmem:[%s342 + $0xb0] sm:$0xff]
        %v3292 = vld [vmem:[%s342 + $0xc8] sm:$0xff]
        %v3293 = vld [vmem:[%s342 + $0xd0] sm:$0xff]
        %v3294 = vld [vmem:[%s342 + $0xe8] sm:$0xff]
        %v3295 = vld [vmem:[%s342 + $0xf0] sm:$0xff]
        %v3296 = vld [vmem:[%s342 + $0x108] sm:$0xff]
        %v3297 = vld [vmem:[%s342 + $0x110] sm:$0xff]
        %v3298 = vld [vmem:[%s342 + $0x128] sm:$0xff]
        %v3299 = vld [vmem:[%s342 + $0x130] sm:$0xff]
        %v3300 = vld [vmem:[%s342 + $0x148] sm:$0xff]
        %v3301 = vld [vmem:[%s342 + $0x150] sm:$0xff]
        %v3302 = vld [vmem:[%s342 + $0x168] sm:$0xff]
        %v3303 = vld [vmem:[%s342 + $0x170] sm:$0xff]
        %v3304 = vld [vmem:[%s342 + $0x188] sm:$0xff]
        %v3305 = vld [vmem:[%s342 + $0x190] sm:$0xff]
        %v3306 = vld [vmem:[%s342 + $0x1a8] sm:$0xff]
        %v3307 = vld [vmem:[%s342 + $0x1b0] sm:$0xff]
        %v3308 = vld [vmem:[%s342 + $0x1c8] sm:$0xff]
        %v3309 = vld [vmem:[%s342 + $0x1d0] sm:$0xff]
        %v3310 = vld [vmem:[%s342 + $0x1e8] sm:$0xff]
        %v3311 = vld [vmem:[%s342 + $0x1f0] sm:$0xff]
        %3344 = vrot.lane.b32.xlu0 %v3280, 8
        %v3345 = vpop.permute.xlu0 %3344
        %3346 = vrot.lane.b32.xlu0 %v3281, 8
        %v3347 = vpop.permute.xlu0 %3346
        %3348 = vrot.lane.b32.xlu0 %v3282, 8
        %v3349 = vpop.permute.xlu0 %3348
        %3350 = vrot.lane.b32.xlu0 %v3283, 8
        %v3351 = vpop.permute.xlu0 %3350
        %3352 = vrot.lane.b32.xlu0 %v3284, 8
        %v3353 = vpop.permute.xlu0 %3352
        %3354 = vrot.lane.b32.xlu0 %v3285, 8
        %v3355 = vpop.permute.xlu0 %3354
        %3356 = vrot.lane.b32.xlu0 %v3286, 8
        %v3357 = vpop.permute.xlu0 %3356
        %3358 = vrot.lane.b32.xlu0 %v3287, 8
        %v3359 = vpop.permute.xlu0 %3358
        %3360 = vrot.lane.b32.xlu0 %v3288, 8
        %v3361 = vpop.permute.xlu0 %3360
        %3362 = vrot.lane.b32.xlu0 %v3289, 8
        %v3363 = vpop.permute.xlu0 %3362
        %3364 = vrot.lane.b32.xlu0 %v3290, 8
        %v3365 = vpop.permute.xlu0 %3364
        %3366 = vrot.lane.b32.xlu0 %v3291, 8
        %v3367 = vpop.permute.xlu0 %3366
        %3368 = vrot.lane.b32.xlu0 %v3292, 8
        %v3369 = vpop.permute.xlu0 %3368
        %3370 = vrot.lane.b32.xlu0 %v3293, 8
        %v3371 = vpop.permute.xlu0 %3370
        %3372 = vrot.lane.b32.xlu0 %v3294, 8
        %v3373 = vpop.permute.xlu0 %3372
        %3374 = vrot.lane.b32.xlu0 %v3295, 8
        %v3375 = vpop.permute.xlu0 %3374
        %3376 = vrot.lane.b32.xlu0 %v3296, 8
        %v3377 = vpop.permute.xlu0 %3376
        %3378 = vrot.lane.b32.xlu0 %v3297, 8
        %v3379 = vpop.permute.xlu0 %3378
        %3380 = vrot.lane.b32.xlu0 %v3298, 8
        %v3381 = vpop.permute.xlu0 %3380
        %3382 = vrot.lane.b32.xlu0 %v3299, 8
        %v3383 = vpop.permute.xlu0 %3382
        %3384 = vrot.lane.b32.xlu0 %v3300, 8
        %v3385 = vpop.permute.xlu0 %3384
        %3386 = vrot.lane.b32.xlu0 %v3301, 8
        %v3387 = vpop.permute.xlu0 %3386
        %3388 = vrot.lane.b32.xlu0 %v3302, 8
        %v3389 = vpop.permute.xlu0 %3388
        %3390 = vrot.lane.b32.xlu0 %v3303, 8
        %v3391 = vpop.permute.xlu0 %3390
        %3392 = vrot.lane.b32.xlu0 %v3304, 8
        %v3393 = vpop.permute.xlu0 %3392
        %3394 = vrot.lane.b32.xlu0 %v3305, 8
        %v3395 = vpop.permute.xlu0 %3394
        %3396 = vrot.lane.b32.xlu0 %v3306, 8
        %v3397 = vpop.permute.xlu0 %3396
        %3398 = vrot.lane.b32.xlu0 %v3307, 8
        %v3399 = vpop.permute.xlu0 %3398
        %3400 = vrot.lane.b32.xlu0 %v3308, 8
        %v3401 = vpop.permute.xlu0 %3400
        %3402 = vrot.lane.b32.xlu0 %v3309, 8
        %v3403 = vpop.permute.xlu0 %3402
        %3404 = vrot.lane.b32.xlu0 %v3310, 8
        %v3405 = vpop.permute.xlu0 %3404
        %3406 = vrot.lane.b32.xlu0 %v3311, 8
        %v3407 = vpop.permute.xlu0 %3406
        %3440 = vst.msk [vmem:[#allocation3] sm:$0xff] %vm1210, %v3345
        %3441 = vst.msk [vmem:[#allocation3 + $0x8] sm:$0xff] %vm1210, %v3347
        %3442 = vst.msk [vmem:[#allocation3 + $0x10] sm:$0xff] %vm1210, %v3349
        %3443 = vst.msk [vmem:[#allocation3 + $0x18] sm:$0xff] %vm1210, %v3351
        %3444 = vst.msk [vmem:[#allocation3 + $0x20] sm:$0xff] %vm1210, %v3353
        %3445 = vst.msk [vmem:[#allocation3 + $0x28] sm:$0xff] %vm1210, %v3355
        %3446 = vst.msk [vmem:[#allocation3 + $0x30] sm:$0xff] %vm1210, %v3357
        %3447 = vst.msk [vmem:[#allocation3 + $0x38] sm:$0xff] %vm1210, %v3359
        %3448 = vst.msk [vmem:[#allocation3 + $0x40] sm:$0xff] %vm1210, %v3361
        %3449 = vst.msk [vmem:[#allocation3 + $0x48] sm:$0xff] %vm1210, %v3363
        %3450 = vst.msk [vmem:[#allocation3 + $0x50] sm:$0xff] %vm1210, %v3365
        %3451 = vst.msk [vmem:[#allocation3 + $0x58] sm:$0xff] %vm1210, %v3367
        %3452 = vst.msk [vmem:[#allocation3 + $0x60] sm:$0xff] %vm1210, %v3369
        %3453 = vst.msk [vmem:[#allocation3 + $0x68] sm:$0xff] %vm1210, %v3371
        %3454 = vst.msk [vmem:[#allocation3 + $0x70] sm:$0xff] %vm1210, %v3373
        %3455 = vst.msk [vmem:[#allocation3 + $0x78] sm:$0xff] %vm1210, %v3375
        %3456 = vst.msk [vmem:[#allocation3 + $0x80] sm:$0xff] %vm1210, %v3377
        %3457 = vst.msk [vmem:[#allocation3 + $0x88] sm:$0xff] %vm1210, %v3379
        %3458 = vst.msk [vmem:[#allocation3 + $0x90] sm:$0xff] %vm1210, %v3381
        %3459 = vst.msk [vmem:[#allocation3 + $0x98] sm:$0xff] %vm1210, %v3383
        %3460 = vst.msk [vmem:[#allocation3 + $0xa0] sm:$0xff] %vm1210, %v3385
        %3461 = vst.msk [vmem:[#allocation3 + $0xa8] sm:$0xff] %vm1210, %v3387
        %3462 = vst.msk [vmem:[#allocation3 + $0xb0] sm:$0xff] %vm1210, %v3389
        %3463 = vst.msk [vmem:[#allocation3 + $0xb8] sm:$0xff] %vm1210, %v3391
        %3464 = vst.msk [vmem:[#allocation3 + $0xc0] sm:$0xff] %vm1210, %v3393
        %3465 = vst.msk [vmem:[#allocation3 + $0xc8] sm:$0xff] %vm1210, %v3395
        %3466 = vst.msk [vmem:[#allocation3 + $0xd0] sm:$0xff] %vm1210, %v3397
        %3467 = vst.msk [vmem:[#allocation3 + $0xd8] sm:$0xff] %vm1210, %v3399
        %3468 = vst.msk [vmem:[#allocation3 + $0xe0] sm:$0xff] %vm1210, %v3401
        %3469 = vst.msk [vmem:[#allocation3 + $0xe8] sm:$0xff] %vm1210, %v3403
        %3470 = vst.msk [vmem:[#allocation3 + $0xf0] sm:$0xff] %vm1210, %v3405
        %3471 = vst.msk [vmem:[#allocation3 + $0xf8] sm:$0xff] %vm1210, %v3407
        %v3472 = vld [vmem:[%s342 + $0x9] sm:$0xff]
        %v3473 = vld [vmem:[%s342 + $0x11] sm:$0xff]
        %v3474 = vld [vmem:[%s342 + $0x29] sm:$0xff]
        %v3475 = vld [vmem:[%s342 + $0x31] sm:$0xff]
        %v3476 = vld [vmem:[%s342 + $0x49] sm:$0xff]
        %v3477 = vld [vmem:[%s342 + $0x51] sm:$0xff]
        %v3478 = vld [vmem:[%s342 + $0x69] sm:$0xff]
        %v3479 = vld [vmem:[%s342 + $0x71] sm:$0xff]
        %v3480 = vld [vmem:[%s342 + $0x89] sm:$0xff]
        %v3481 = vld [vmem:[%s342 + $0x91] sm:$0xff]
        %v3482 = vld [vmem:[%s342 + $0xa9] sm:$0xff]
        %v3483 = vld [vmem:[%s342 + $0xb1] sm:$0xff]
        %v3484 = vld [vmem:[%s342 + $0xc9] sm:$0xff]
        %v3485 = vld [vmem:[%s342 + $0xd1] sm:$0xff]
        %v3486 = vld [vmem:[%s342 + $0xe9] sm:$0xff]
        %v3487 = vld [vmem:[%s342 + $0xf1] sm:$0xff]
        %v3488 = vld [vmem:[%s342 + $0x109] sm:$0xff]
        %v3489 = vld [vmem:[%s342 + $0x111] sm:$0xff]
        %v3490 = vld [vmem:[%s342 + $0x129] sm:$0xff]
        %v3491 = vld [vmem:[%s342 + $0x131] sm:$0xff]
        %v3492 = vld [vmem:[%s342 + $0x149] sm:$0xff]
        %v3493 = vld [vmem:[%s342 + $0x151] sm:$0xff]
        %v3494 = vld [vmem:[%s342 + $0x169] sm:$0xff]
        %v3495 = vld [vmem:[%s342 + $0x171] sm:$0xff]
        %v3496 = vld [vmem:[%s342 + $0x189] sm:$0xff]
        %v3497 = vld [vmem:[%s342 + $0x191] sm:$0xff]
        %v3498 = vld [vmem:[%s342 + $0x1a9] sm:$0xff]
        %v3499 = vld [vmem:[%s342 + $0x1b1] sm:$0xff]
        %v3500 = vld [vmem:[%s342 + $0x1c9] sm:$0xff]
        %v3501 = vld [vmem:[%s342 + $0x1d1] sm:$0xff]
        %v3502 = vld [vmem:[%s342 + $0x1e9] sm:$0xff]
        %v3503 = vld [vmem:[%s342 + $0x1f1] sm:$0xff]
        %3536 = vrot.lane.b32.xlu0 %v3472, 10
        %v3537 = vpop.permute.xlu0 %3536
        %3538 = vrot.lane.b32.xlu0 %v3473, 10
        %v3539 = vpop.permute.xlu0 %3538
        %3540 = vrot.lane.b32.xlu0 %v3474, 10
        %v3541 = vpop.permute.xlu0 %3540
        %3542 = vrot.lane.b32.xlu0 %v3475, 10
        %v3543 = vpop.permute.xlu0 %3542
        %3544 = vrot.lane.b32.xlu0 %v3476, 10
        %v3545 = vpop.permute.xlu0 %3544
        %3546 = vrot.lane.b32.xlu0 %v3477, 10
        %v3547 = vpop.permute.xlu0 %3546
        %3548 = vrot.lane.b32.xlu0 %v3478, 10
        %v3549 = vpop.permute.xlu0 %3548
        %3550 = vrot.lane.b32.xlu0 %v3479, 10
        %v3551 = vpop.permute.xlu0 %3550
        %3552 = vrot.lane.b32.xlu0 %v3480, 10
        %v3553 = vpop.permute.xlu0 %3552
        %3554 = vrot.lane.b32.xlu0 %v3481, 10
        %v3555 = vpop.permute.xlu0 %3554
        %3556 = vrot.lane.b32.xlu0 %v3482, 10
        %v3557 = vpop.permute.xlu0 %3556
        %3558 = vrot.lane.b32.xlu0 %v3483, 10
        %v3559 = vpop.permute.xlu0 %3558
        %3560 = vrot.lane.b32.xlu0 %v3484, 10
        %v3561 = vpop.permute.xlu0 %3560
        %3562 = vrot.lane.b32.xlu0 %v3485, 10
        %v3563 = vpop.permute.xlu0 %3562
        %3564 = vrot.lane.b32.xlu0 %v3486, 10
        %v3565 = vpop.permute.xlu0 %3564
        %3566 = vrot.lane.b32.xlu0 %v3487, 10
        %v3567 = vpop.permute.xlu0 %3566
        %3568 = vrot.lane.b32.xlu0 %v3488, 10
        %v3569 = vpop.permute.xlu0 %3568
        %3570 = vrot.lane.b32.xlu0 %v3489, 10
        %v3571 = vpop.permute.xlu0 %3570
        %3572 = vrot.lane.b32.xlu0 %v3490, 10
        %v3573 = vpop.permute.xlu0 %3572
        %3574 = vrot.lane.b32.xlu0 %v3491, 10
        %v3575 = vpop.permute.xlu0 %3574
        %3576 = vrot.lane.b32.xlu0 %v3492, 10
        %v3577 = vpop.permute.xlu0 %3576
        %3578 = vrot.lane.b32.xlu0 %v3493, 10
        %v3579 = vpop.permute.xlu0 %3578
        %3580 = vrot.lane.b32.xlu0 %v3494, 10
        %v3581 = vpop.permute.xlu0 %3580
        %3582 = vrot.lane.b32.xlu0 %v3495, 10
        %v3583 = vpop.permute.xlu0 %3582
        %3584 = vrot.lane.b32.xlu0 %v3496, 10
        %v3585 = vpop.permute.xlu0 %3584
        %3586 = vrot.lane.b32.xlu0 %v3497, 10
        %v3587 = vpop.permute.xlu0 %3586
        %3588 = vrot.lane.b32.xlu0 %v3498, 10
        %v3589 = vpop.permute.xlu0 %3588
        %3590 = vrot.lane.b32.xlu0 %v3499, 10
        %v3591 = vpop.permute.xlu0 %3590
        %3592 = vrot.lane.b32.xlu0 %v3500, 10
        %v3593 = vpop.permute.xlu0 %3592
        %3594 = vrot.lane.b32.xlu0 %v3501, 10
        %v3595 = vpop.permute.xlu0 %3594
        %3596 = vrot.lane.b32.xlu0 %v3502, 10
        %v3597 = vpop.permute.xlu0 %3596
        %3598 = vrot.lane.b32.xlu0 %v3503, 10
        %v3599 = vpop.permute.xlu0 %3598
        %3632 = vst.msk [vmem:[#allocation3] sm:$0xff] %vm1403, %v3537
        %3633 = vst.msk [vmem:[#allocation3 + $0x8] sm:$0xff] %vm1403, %v3539
        %3634 = vst.msk [vmem:[#allocation3 + $0x10] sm:$0xff] %vm1403, %v3541
        %3635 = vst.msk [vmem:[#allocation3 + $0x18] sm:$0xff] %vm1403, %v3543
        %3636 = vst.msk [vmem:[#allocation3 + $0x20] sm:$0xff] %vm1403, %v3545
        %3637 = vst.msk [vmem:[#allocation3 + $0x28] sm:$0xff] %vm1403, %v3547
        %3638 = vst.msk [vmem:[#allocation3 + $0x30] sm:$0xff] %vm1403, %v3549
        %3639 = vst.msk [vmem:[#allocation3 + $0x38] sm:$0xff] %vm1403, %v3551
        %3640 = vst.msk [vmem:[#allocation3 + $0x40] sm:$0xff] %vm1403, %v3553
        %3641 = vst.msk [vmem:[#allocation3 + $0x48] sm:$0xff] %vm1403, %v3555
        %3642 = vst.msk [vmem:[#allocation3 + $0x50] sm:$0xff] %vm1403, %v3557
        %3643 = vst.msk [vmem:[#allocation3 + $0x58] sm:$0xff] %vm1403, %v3559
        %3644 = vst.msk [vmem:[#allocation3 + $0x60] sm:$0xff] %vm1403, %v3561
        %3645 = vst.msk [vmem:[#allocation3 + $0x68] sm:$0xff] %vm1403, %v3563
        %3646 = vst.msk [vmem:[#allocation3 + $0x70] sm:$0xff] %vm1403, %v3565
        %3647 = vst.msk [vmem:[#allocation3 + $0x78] sm:$0xff] %vm1403, %v3567
        %3648 = vst.msk [vmem:[#allocation3 + $0x80] sm:$0xff] %vm1403, %v3569
        %3649 = vst.msk [vmem:[#allocation3 + $0x88] sm:$0xff] %vm1403, %v3571
        %3650 = vst.msk [vmem:[#allocation3 + $0x90] sm:$0xff] %vm1403, %v3573
        %3651 = vst.msk [vmem:[#allocation3 + $0x98] sm:$0xff] %vm1403, %v3575
        %3652 = vst.msk [vmem:[#allocation3 + $0xa0] sm:$0xff] %vm1403, %v3577
        %3653 = vst.msk [vmem:[#allocation3 + $0xa8] sm:$0xff] %vm1403, %v3579
        %3654 = vst.msk [vmem:[#allocation3 + $0xb0] sm:$0xff] %vm1403, %v3581
        %3655 = vst.msk [vmem:[#allocation3 + $0xb8] sm:$0xff] %vm1403, %v3583
        %3656 = vst.msk [vmem:[#allocation3 + $0xc0] sm:$0xff] %vm1403, %v3585
        %3657 = vst.msk [vmem:[#allocation3 + $0xc8] sm:$0xff] %vm1403, %v3587
        %3658 = vst.msk [vmem:[#allocation3 + $0xd0] sm:$0xff] %vm1403, %v3589
        %3659 = vst.msk [vmem:[#allocation3 + $0xd8] sm:$0xff] %vm1403, %v3591
        %3660 = vst.msk [vmem:[#allocation3 + $0xe0] sm:$0xff] %vm1403, %v3593
        %3661 = vst.msk [vmem:[#allocation3 + $0xe8] sm:$0xff] %vm1403, %v3595
        %3662 = vst.msk [vmem:[#allocation3 + $0xf0] sm:$0xff] %vm1403, %v3597
        %3663 = vst.msk [vmem:[#allocation3 + $0xf8] sm:$0xff] %vm1403, %v3599
        %v3664 = vld [vmem:[%s1436 + $0x7] sm:$0xff]
        %v3665 = vld [vmem:[%s1436 + $0xf] sm:$0xff]
        %v3666 = vld [vmem:[%s1436 + $0x27] sm:$0xff]
        %v3667 = vld [vmem:[%s1436 + $0x2f] sm:$0xff]
        %v3668 = vld [vmem:[%s1436 + $0x47] sm:$0xff]
        %v3669 = vld [vmem:[%s1436 + $0x4f] sm:$0xff]
        %v3670 = vld [vmem:[%s1436 + $0x67] sm:$0xff]
        %v3671 = vld [vmem:[%s1436 + $0x6f] sm:$0xff]
        %v3672 = vld [vmem:[%s1436 + $0x87] sm:$0xff]
        %v3673 = vld [vmem:[%s1436 + $0x8f] sm:$0xff]
        %v3674 = vld [vmem:[%s1436 + $0xa7] sm:$0xff]
        %v3675 = vld [vmem:[%s1436 + $0xaf] sm:$0xff]
        %v3676 = vld [vmem:[%s1436 + $0xc7] sm:$0xff]
        %v3677 = vld [vmem:[%s1436 + $0xcf] sm:$0xff]
        %v3678 = vld [vmem:[%s1436 + $0xe7] sm:$0xff]
        %v3679 = vld [vmem:[%s1436 + $0xef] sm:$0xff]
        %v3680 = vld [vmem:[%s1436 + $0x107] sm:$0xff]
        %v3681 = vld [vmem:[%s1436 + $0x10f] sm:$0xff]
        %v3682 = vld [vmem:[%s1436 + $0x127] sm:$0xff]
        %v3683 = vld [vmem:[%s1436 + $0x12f] sm:$0xff]
        %v3684 = vld [vmem:[%s1436 + $0x147] sm:$0xff]
        %v3685 = vld [vmem:[%s1436 + $0x14f] sm:$0xff]
        %v3686 = vld [vmem:[%s1436 + $0x167] sm:$0xff]
        %v3687 = vld [vmem:[%s1436 + $0x16f] sm:$0xff]
        %v3688 = vld [vmem:[%s1436 + $0x187] sm:$0xff]
        %v3689 = vld [vmem:[%s1436 + $0x18f] sm:$0xff]
        %v3690 = vld [vmem:[%s1436 + $0x1a7] sm:$0xff]
        %v3691 = vld [vmem:[%s1436 + $0x1af] sm:$0xff]
        %v3692 = vld [vmem:[%s1436 + $0x1c7] sm:$0xff]
        %v3693 = vld [vmem:[%s1436 + $0x1cf] sm:$0xff]
        %v3694 = vld [vmem:[%s1436 + $0x1e7] sm:$0xff]
        %v3695 = vld [vmem:[%s1436 + $0x1ef] sm:$0xff]
        %3728 = vrot.lane.b32.xlu0 %v3664, 12
        %v3729 = vpop.permute.xlu0 %3728
        %3730 = vrot.lane.b32.xlu0 %v3665, 12
        %v3731 = vpop.permute.xlu0 %3730
        %3732 = vrot.lane.b32.xlu0 %v3666, 12
        %v3733 = vpop.permute.xlu0 %3732
        %3734 = vrot.lane.b32.xlu0 %v3667, 12
        %v3735 = vpop.permute.xlu0 %3734
        %3736 = vrot.lane.b32.xlu0 %v3668, 12
        %v3737 = vpop.permute.xlu0 %3736
        %3738 = vrot.lane.b32.xlu0 %v3669, 12
        %v3739 = vpop.permute.xlu0 %3738
        %3740 = vrot.lane.b32.xlu0 %v3670, 12
        %v3741 = vpop.permute.xlu0 %3740
        %3742 = vrot.lane.b32.xlu0 %v3671, 12
        %v3743 = vpop.permute.xlu0 %3742
        %3744 = vrot.lane.b32.xlu0 %v3672, 12
        %v3745 = vpop.permute.xlu0 %3744
        %3746 = vrot.lane.b32.xlu0 %v3673, 12
        %v3747 = vpop.permute.xlu0 %3746
        %3748 = vrot.lane.b32.xlu0 %v3674, 12
        %v3749 = vpop.permute.xlu0 %3748
        %3750 = vrot.lane.b32.xlu0 %v3675, 12
        %v3751 = vpop.permute.xlu0 %3750
        %3752 = vrot.lane.b32.xlu0 %v3676, 12
        %v3753 = vpop.permute.xlu0 %3752
        %3754 = vrot.lane.b32.xlu0 %v3677, 12
        %v3755 = vpop.permute.xlu0 %3754
        %3756 = vrot.lane.b32.xlu0 %v3678, 12
        %v3757 = vpop.permute.xlu0 %3756
        %3758 = vrot.lane.b32.xlu0 %v3679, 12
        %v3759 = vpop.permute.xlu0 %3758
        %3760 = vrot.lane.b32.xlu0 %v3680, 12
        %v3761 = vpop.permute.xlu0 %3760
        %3762 = vrot.lane.b32.xlu0 %v3681, 12
        %v3763 = vpop.permute.xlu0 %3762
        %3764 = vrot.lane.b32.xlu0 %v3682, 12
        %v3765 = vpop.permute.xlu0 %3764
        %3766 = vrot.lane.b32.xlu0 %v3683, 12
        %v3767 = vpop.permute.xlu0 %3766
        %3768 = vrot.lane.b32.xlu0 %v3684, 12
        %v3769 = vpop.permute.xlu0 %3768
        %3770 = vrot.lane.b32.xlu0 %v3685, 12
        %v3771 = vpop.permute.xlu0 %3770
        %3772 = vrot.lane.b32.xlu0 %v3686, 12
        %v3773 = vpop.permute.xlu0 %3772
        %3774 = vrot.lane.b32.xlu0 %v3687, 12
        %v3775 = vpop.permute.xlu0 %3774
        %3776 = vrot.lane.b32.xlu0 %v3688, 12
        %v3777 = vpop.permute.xlu0 %3776
        %3778 = vrot.lane.b32.xlu0 %v3689, 12
        %v3779 = vpop.permute.xlu0 %3778
        %3780 = vrot.lane.b32.xlu0 %v3690, 12
        %v3781 = vpop.permute.xlu0 %3780
        %3782 = vrot.lane.b32.xlu0 %v3691, 12
        %v3783 = vpop.permute.xlu0 %3782
        %3784 = vrot.lane.b32.xlu0 %v3692, 12
        %v3785 = vpop.permute.xlu0 %3784
        %3786 = vrot.lane.b32.xlu0 %v3693, 12
        %v3787 = vpop.permute.xlu0 %3786
        %3788 = vrot.lane.b32.xlu0 %v3694, 12
        %v3789 = vpop.permute.xlu0 %3788
        %3790 = vrot.lane.b32.xlu0 %v3695, 12
        %v3791 = vpop.permute.xlu0 %3790
        %3824 = vst.msk [vmem:[#allocation3] sm:$0xff] %vm1597, %v3729
        %3825 = vst.msk [vmem:[#allocation3 + $0x8] sm:$0xff] %vm1597, %v3731
        %3826 = vst.msk [vmem:[#allocation3 + $0x10] sm:$0xff] %vm1597, %v3733
        %3827 = vst.msk [vmem:[#allocation3 + $0x18] sm:$0xff] %vm1597, %v3735
        %3828 = vst.msk [vmem:[#allocation3 + $0x20] sm:$0xff] %vm1597, %v3737
        %3829 = vst.msk [vmem:[#allocation3 + $0x28] sm:$0xff] %vm1597, %v3739
        %3830 = vst.msk [vmem:[#allocation3 + $0x30] sm:$0xff] %vm1597, %v3741
        %3831 = vst.msk [vmem:[#allocation3 + $0x38] sm:$0xff] %vm1597, %v3743
        %3832 = vst.msk [vmem:[#allocation3 + $0x40] sm:$0xff] %vm1597, %v3745
        %3833 = vst.msk [vmem:[#allocation3 + $0x48] sm:$0xff] %vm1597, %v3747
        %3834 = vst.msk [vmem:[#allocation3 + $0x50] sm:$0xff] %vm1597, %v3749
        %3835 = vst.msk [vmem:[#allocation3 + $0x58] sm:$0xff] %vm1597, %v3751
        %3836 = vst.msk [vmem:[#allocation3 + $0x60] sm:$0xff] %vm1597, %v3753
        %3837 = vst.msk [vmem:[#allocation3 + $0x68] sm:$0xff] %vm1597, %v3755
        %3838 = vst.msk [vmem:[#allocation3 + $0x70] sm:$0xff] %vm1597, %v3757
        %3839 = vst.msk [vmem:[#allocation3 + $0x78] sm:$0xff] %vm1597, %v3759
        %3840 = vst.msk [vmem:[#allocation3 + $0x80] sm:$0xff] %vm1597, %v3761
        %3841 = vst.msk [vmem:[#allocation3 + $0x88] sm:$0xff] %vm1597, %v3763
        %3842 = vst.msk [vmem:[#allocation3 + $0x90] sm:$0xff] %vm1597, %v3765
        %3843 = vst.msk [vmem:[#allocation3 + $0x98] sm:$0xff] %vm1597, %v3767
        %3844 = vst.msk [vmem:[#allocation3 + $0xa0] sm:$0xff] %vm1597, %v3769
        %3845 = vst.msk [vmem:[#allocation3 + $0xa8] sm:$0xff] %vm1597, %v3771
        %3846 = vst.msk [vmem:[#allocation3 + $0xb0] sm:$0xff] %vm1597, %v3773
        %3847 = vst.msk [vmem:[#allocation3 + $0xb8] sm:$0xff] %vm1597, %v3775
        %3848 = vst.msk [vmem:[#allocation3 + $0xc0] sm:$0xff] %vm1597, %v3777
        %3849 = vst.msk [vmem:[#allocation3 + $0xc8] sm:$0xff] %vm1597, %v3779
        %3850 = vst.msk [vmem:[#allocation3 + $0xd0] sm:$0xff] %vm1597, %v3781
        %3851 = vst.msk [vmem:[#allocation3 + $0xd8] sm:$0xff] %vm1597, %v3783
        %3852 = vst.msk [vmem:[#allocation3 + $0xe0] sm:$0xff] %vm1597, %v3785
        %3853 = vst.msk [vmem:[#allocation3 + $0xe8] sm:$0xff] %vm1597, %v3787
        %3854 = vst.msk [vmem:[#allocation3 + $0xf0] sm:$0xff] %vm1597, %v3789
        %3855 = vst.msk [vmem:[#allocation3 + $0xf8] sm:$0xff] %vm1597, %v3791
        %v3856 = vld [vmem:[%s1436 + $0x8] sm:$0xff]
        %v3857 = vld [vmem:[%s1436 + $0x10] sm:$0xff]
        %v3858 = vld [vmem:[%s1436 + $0x28] sm:$0xff]
        %v3859 = vld [vmem:[%s1436 + $0x30] sm:$0xff]
        %v3860 = vld [vmem:[%s1436 + $0x48] sm:$0xff]
        %v3861 = vld [vmem:[%s1436 + $0x50] sm:$0xff]
        %v3862 = vld [vmem:[%s1436 + $0x68] sm:$0xff]
        %v3863 = vld [vmem:[%s1436 + $0x70] sm:$0xff]
        %v3864 = vld [vmem:[%s1436 + $0x88] sm:$0xff]
        %v3865 = vld [vmem:[%s1436 + $0x90] sm:$0xff]
        %v3866 = vld [vmem:[%s1436 + $0xa8] sm:$0xff]
        %v3867 = vld [vmem:[%s1436 + $0xb0] sm:$0xff]
        %v3868 = vld [vmem:[%s1436 + $0xc8] sm:$0xff]
        %v3869 = vld [vmem:[%s1436 + $0xd0] sm:$0xff]
        %v3870 = vld [vmem:[%s1436 + $0xe8] sm:$0xff]
        %v3871 = vld [vmem:[%s1436 + $0xf0] sm:$0xff]
        %v3872 = vld [vmem:[%s1436 + $0x108] sm:$0xff]
        %v3873 = vld [vmem:[%s1436 + $0x110] sm:$0xff]
        %v3874 = vld [vmem:[%s1436 + $0x128] sm:$0xff]
        %v3875 = vld [vmem:[%s1436 + $0x130] sm:$0xff]
        %v3876 = vld [vmem:[%s1436 + $0x148] sm:$0xff]
        %v3877 = vld [vmem:[%s1436 + $0x150] sm:$0xff]
        %v3878 = vld [vmem:[%s1436 + $0x168] sm:$0xff]
        %v3879 = vld [vmem:[%s1436 + $0x170] sm:$0xff]
        %v3880 = vld [vmem:[%s1436 + $0x188] sm:$0xff]
        %v3881 = vld [vmem:[%s1436 + $0x190] sm:$0xff]
        %v3882 = vld [vmem:[%s1436 + $0x1a8] sm:$0xff]
        %v3883 = vld [vmem:[%s1436 + $0x1b0] sm:$0xff]
        %v3884 = vld [vmem:[%s1436 + $0x1c8] sm:$0xff]
        %v3885 = vld [vmem:[%s1436 + $0x1d0] sm:$0xff]
        %v3886 = vld [vmem:[%s1436 + $0x1e8] sm:$0xff]
        %v3887 = vld [vmem:[%s1436 + $0x1f0] sm:$0xff]
        %3920 = vrot.lane.b32.xlu0 %v3856, 14
        %v3921 = vpop.permute.xlu0 %3920
        %3922 = vrot.lane.b32.xlu0 %v3857, 14
        %v3923 = vpop.permute.xlu0 %3922
        %3924 = vrot.lane.b32.xlu0 %v3858, 14
        %v3925 = vpop.permute.xlu0 %3924
        %3926 = vrot.lane.b32.xlu0 %v3859, 14
        %v3927 = vpop.permute.xlu0 %3926
        %3928 = vrot.lane.b32.xlu0 %v3860, 14
        %v3929 = vpop.permute.xlu0 %3928
        %3930 = vrot.lane.b32.xlu0 %v3861, 14
        %v3931 = vpop.permute.xlu0 %3930
        %3932 = vrot.lane.b32.xlu0 %v3862, 14
        %v3933 = vpop.permute.xlu0 %3932
        %3934 = vrot.lane.b32.xlu0 %v3863, 14
        %v3935 = vpop.permute.xlu0 %3934
        %3936 = vrot.lane.b32.xlu0 %v3864, 14
        %v3937 = vpop.permute.xlu0 %3936
        %3938 = vrot.lane.b32.xlu0 %v3865, 14
        %v3939 = vpop.permute.xlu0 %3938
        %3940 = vrot.lane.b32.xlu0 %v3866, 14
        %v3941 = vpop.permute.xlu0 %3940
        %3942 = vrot.lane.b32.xlu0 %v3867, 14
        %v3943 = vpop.permute.xlu0 %3942
        %3944 = vrot.lane.b32.xlu0 %v3868, 14
        %v3945 = vpop.permute.xlu0 %3944
        %3946 = vrot.lane.b32.xlu0 %v3869, 14
        %v3947 = vpop.permute.xlu0 %3946
        %3948 = vrot.lane.b32.xlu0 %v3870, 14
        %v3949 = vpop.permute.xlu0 %3948
        %3950 = vrot.lane.b32.xlu0 %v3871, 14
        %v3951 = vpop.permute.xlu0 %3950
        %3952 = vrot.lane.b32.xlu0 %v3872, 14
        %v3953 = vpop.permute.xlu0 %3952
        %3954 = vrot.lane.b32.xlu0 %v3873, 14
        %v3955 = vpop.permute.xlu0 %3954
        %3956 = vrot.lane.b32.xlu0 %v3874, 14
        %v3957 = vpop.permute.xlu0 %3956
        %3958 = vrot.lane.b32.xlu0 %v3875, 14
        %v3959 = vpop.permute.xlu0 %3958
        %3960 = vrot.lane.b32.xlu0 %v3876, 14
        %v3961 = vpop.permute.xlu0 %3960
        %3962 = vrot.lane.b32.xlu0 %v3877, 14
        %v3963 = vpop.permute.xlu0 %3962
        %3964 = vrot.lane.b32.xlu0 %v3878, 14
        %v3965 = vpop.permute.xlu0 %3964
        %3966 = vrot.lane.b32.xlu0 %v3879, 14
        %v3967 = vpop.permute.xlu0 %3966
        %3968 = vrot.lane.b32.xlu0 %v3880, 14
        %v3969 = vpop.permute.xlu0 %3968
        %3970 = vrot.lane.b32.xlu0 %v3881, 14
        %v3971 = vpop.permute.xlu0 %3970
        %3972 = vrot.lane.b32.xlu0 %v3882, 14
        %v3973 = vpop.permute.xlu0 %3972
        %3974 = vrot.lane.b32.xlu0 %v3883, 14
        %v3975 = vpop.permute.xlu0 %3974
        %3976 = vrot.lane.b32.xlu0 %v3884, 14
        %v3977 = vpop.permute.xlu0 %3976
        %3978 = vrot.lane.b32.xlu0 %v3885, 14
        %v3979 = vpop.permute.xlu0 %3978
        %3980 = vrot.lane.b32.xlu0 %v3886, 14
        %v3981 = vpop.permute.xlu0 %3980
        %3982 = vrot.lane.b32.xlu0 %v3887, 14
        %v3983 = vpop.permute.xlu0 %3982
        %4016 = vst.msk [vmem:[#allocation3] sm:$0xff] %vm1790, %v3921
        %4017 = vst.msk [vmem:[#allocation3 + $0x8] sm:$0xff] %vm1790, %v3923
        %4018 = vst.msk [vmem:[#allocation3 + $0x10] sm:$0xff] %vm1790, %v3925
        %4019 = vst.msk [vmem:[#allocation3 + $0x18] sm:$0xff] %vm1790, %v3927
        %4020 = vst.msk [vmem:[#allocation3 + $0x20] sm:$0xff] %vm1790, %v3929
        %4021 = vst.msk [vmem:[#allocation3 + $0x28] sm:$0xff] %vm1790, %v3931
        %4022 = vst.msk [vmem:[#allocation3 + $0x30] sm:$0xff] %vm1790, %v3933
        %4023 = vst.msk [vmem:[#allocation3 + $0x38] sm:$0xff] %vm1790, %v3935
        %4024 = vst.msk [vmem:[#allocation3 + $0x40] sm:$0xff] %vm1790, %v3937
        %4025 = vst.msk [vmem:[#allocation3 + $0x48] sm:$0xff] %vm1790, %v3939
        %4026 = vst.msk [vmem:[#allocation3 + $0x50] sm:$0xff] %vm1790, %v3941
        %4027 = vst.msk [vmem:[#allocation3 + $0x58] sm:$0xff] %vm1790, %v3943
        %4028 = vst.msk [vmem:[#allocation3 + $0x60] sm:$0xff] %vm1790, %v3945
        %4029 = vst.msk [vmem:[#allocation3 + $0x68] sm:$0xff] %vm1790, %v3947
        %4030 = vst.msk [vmem:[#allocation3 + $0x70] sm:$0xff] %vm1790, %v3949
        %4031 = vst.msk [vmem:[#allocation3 + $0x78] sm:$0xff] %vm1790, %v3951
        %4032 = vst.msk [vmem:[#allocation3 + $0x80] sm:$0xff] %vm1790, %v3953
        %4033 = vst.msk [vmem:[#allocation3 + $0x88] sm:$0xff] %vm1790, %v3955
        %4034 = vst.msk [vmem:[#allocation3 + $0x90] sm:$0xff] %vm1790, %v3957
        %4035 = vst.msk [vmem:[#allocation3 + $0x98] sm:$0xff] %vm1790, %v3959
        %4036 = vst.msk [vmem:[#allocation3 + $0xa0] sm:$0xff] %vm1790, %v3961
        %4037 = vst.msk [vmem:[#allocation3 + $0xa8] sm:$0xff] %vm1790, %v3963
        %4038 = vst.msk [vmem:[#allocation3 + $0xb0] sm:$0xff] %vm1790, %v3965
        %4039 = vst.msk [vmem:[#allocation3 + $0xb8] sm:$0xff] %vm1790, %v3967
        %4040 = vst.msk [vmem:[#allocation3 + $0xc0] sm:$0xff] %vm1790, %v3969
        %4041 = vst.msk [vmem:[#allocation3 + $0xc8] sm:$0xff] %vm1790, %v3971
        %4042 = vst.msk [vmem:[#allocation3 + $0xd0] sm:$0xff] %vm1790, %v3973
        %4043 = vst.msk [vmem:[#allocation3 + $0xd8] sm:$0xff] %vm1790, %v3975
        %4044 = vst.msk [vmem:[#allocation3 + $0xe0] sm:$0xff] %vm1790, %v3977
        %4045 = vst.msk [vmem:[#allocation3 + $0xe8] sm:$0xff] %vm1790, %v3979
        %4046 = vst.msk [vmem:[#allocation3 + $0xf0] sm:$0xff] %vm1790, %v3981
        %4047 = vst.msk [vmem:[#allocation3 + $0xf8] sm:$0xff] %vm1790, %v3983
        %v4048 = vld [vmem:[%s1436 + $0x9] sm:$0xff]
        %v4049 = vld [vmem:[%s1436 + $0x11] sm:$0xff]
        %v4050 = vld [vmem:[%s1436 + $0x29] sm:$0xff]
        %v4051 = vld [vmem:[%s1436 + $0x31] sm:$0xff]
        %v4052 = vld [vmem:[%s1436 + $0x49] sm:$0xff]
        %v4053 = vld [vmem:[%s1436 + $0x51] sm:$0xff]
        %v4054 = vld [vmem:[%s1436 + $0x69] sm:$0xff]
        %v4055 = vld [vmem:[%s1436 + $0x71] sm:$0xff]
        %v4056 = vld [vmem:[%s1436 + $0x89] sm:$0xff]
        %v4057 = vld [vmem:[%s1436 + $0x91] sm:$0xff]
        %v4058 = vld [vmem:[%s1436 + $0xa9] sm:$0xff]
        %v4059 = vld [vmem:[%s1436 + $0xb1] sm:$0xff]
        %v4060 = vld [vmem:[%s1436 + $0xc9] sm:$0xff]
        %v4061 = vld [vmem:[%s1436 + $0xd1] sm:$0xff]
        %v4062 = vld [vmem:[%s1436 + $0xe9] sm:$0xff]
        %v4063 = vld [vmem:[%s1436 + $0xf1] sm:$0xff]
        %v4064 = vld [vmem:[%s1436 + $0x109] sm:$0xff]
        %v4065 = vld [vmem:[%s1436 + $0x111] sm:$0xff]
        %v4066 = vld [vmem:[%s1436 + $0x129] sm:$0xff]
        %v4067 = vld [vmem:[%s1436 + $0x131] sm:$0xff]
        %v4068 = vld [vmem:[%s1436 + $0x149] sm:$0xff]
        %v4069 = vld [vmem:[%s1436 + $0x151] sm:$0xff]
        %v4070 = vld [vmem:[%s1436 + $0x169] sm:$0xff]
        %v4071 = vld [vmem:[%s1436 + $0x171] sm:$0xff]
        %v4072 = vld [vmem:[%s1436 + $0x189] sm:$0xff]
        %v4073 = vld [vmem:[%s1436 + $0x191] sm:$0xff]
        %v4074 = vld [vmem:[%s1436 + $0x1a9] sm:$0xff]
        %v4075 = vld [vmem:[%s1436 + $0x1b1] sm:$0xff]
        %v4076 = vld [vmem:[%s1436 + $0x1c9] sm:$0xff]
        %v4077 = vld [vmem:[%s1436 + $0x1d1] sm:$0xff]
        %v4078 = vld [vmem:[%s1436 + $0x1e9] sm:$0xff]
        %v4079 = vld [vmem:[%s1436 + $0x1f1] sm:$0xff]
        %4112 = vrot.lane.b32.xlu0 %v4048, 16
        %v4113 = vpop.permute.xlu0 %4112
        %4114 = vrot.lane.b32.xlu0 %v4049, 16
        %v4115 = vpop.permute.xlu0 %4114
        %4116 = vrot.lane.b32.xlu0 %v4050, 16
        %v4117 = vpop.permute.xlu0 %4116
        %4118 = vrot.lane.b32.xlu0 %v4051, 16
        %v4119 = vpop.permute.xlu0 %4118
        %4120 = vrot.lane.b32.xlu0 %v4052, 16
        %v4121 = vpop.permute.xlu0 %4120
        %4122 = vrot.lane.b32.xlu0 %v4053, 16
        %v4123 = vpop.permute.xlu0 %4122
        %4124 = vrot.lane.b32.xlu0 %v4054, 16
        %v4125 = vpop.permute.xlu0 %4124
        %4126 = vrot.lane.b32.xlu0 %v4055, 16
        %v4127 = vpop.permute.xlu0 %4126
        %4128 = vrot.lane.b32.xlu0 %v4056, 16
        %v4129 = vpop.permute.xlu0 %4128
        %4130 = vrot.lane.b32.xlu0 %v4057, 16
        %v4131 = vpop.permute.xlu0 %4130
        %4132 = vrot.lane.b32.xlu0 %v4058, 16
        %v4133 = vpop.permute.xlu0 %4132
        %4134 = vrot.lane.b32.xlu0 %v4059, 16
        %v4135 = vpop.permute.xlu0 %4134
        %4136 = vrot.lane.b32.xlu0 %v4060, 16
        %v4137 = vpop.permute.xlu0 %4136
        %4138 = vrot.lane.b32.xlu0 %v4061, 16
        %v4139 = vpop.permute.xlu0 %4138
        %4140 = vrot.lane.b32.xlu0 %v4062, 16
        %v4141 = vpop.permute.xlu0 %4140
        %4142 = vrot.lane.b32.xlu0 %v4063, 16
        %v4143 = vpop.permute.xlu0 %4142
        %4144 = vrot.lane.b32.xlu0 %v4064, 16
        %v4145 = vpop.permute.xlu0 %4144
        %4146 = vrot.lane.b32.xlu0 %v4065, 16
        %v4147 = vpop.permute.xlu0 %4146
        %4148 = vrot.lane.b32.xlu0 %v4066, 16
        %v4149 = vpop.permute.xlu0 %4148
        %4150 = vrot.lane.b32.xlu0 %v4067, 16
        %v4151 = vpop.permute.xlu0 %4150
        %4152 = vrot.lane.b32.xlu0 %v4068, 16
        %v4153 = vpop.permute.xlu0 %4152
        %4154 = vrot.lane.b32.xlu0 %v4069, 16
        %v4155 = vpop.permute.xlu0 %4154
        %4156 = vrot.lane.b32.xlu0 %v4070, 16
        %v4157 = vpop.permute.xlu0 %4156
        %4158 = vrot.lane.b32.xlu0 %v4071, 16
        %v4159 = vpop.permute.xlu0 %4158
        %4160 = vrot.lane.b32.xlu0 %v4072, 16
        %v4161 = vpop.permute.xlu0 %4160
        %4162 = vrot.lane.b32.xlu0 %v4073, 16
        %v4163 = vpop.permute.xlu0 %4162
        %4164 = vrot.lane.b32.xlu0 %v4074, 16
        %v4165 = vpop.permute.xlu0 %4164
        %4166 = vrot.lane.b32.xlu0 %v4075, 16
        %v4167 = vpop.permute.xlu0 %4166
        %4168 = vrot.lane.b32.xlu0 %v4076, 16
        %v4169 = vpop.permute.xlu0 %4168
        %4170 = vrot.lane.b32.xlu0 %v4077, 16
        %v4171 = vpop.permute.xlu0 %4170
        %4172 = vrot.lane.b32.xlu0 %v4078, 16
        %v4173 = vpop.permute.xlu0 %4172
        %4174 = vrot.lane.b32.xlu0 %v4079, 16
        %v4175 = vpop.permute.xlu0 %4174
        %4208 = vst.msk [vmem:[#allocation3] sm:$0xff] %vm1983, %v4113
        %4209 = vst.msk [vmem:[#allocation3 + $0x8] sm:$0xff] %vm1983, %v4115
        %4210 = vst.msk [vmem:[#allocation3 + $0x10] sm:$0xff] %vm1983, %v4117
        %4211 = vst.msk [vmem:[#allocation3 + $0x18] sm:$0xff] %vm1983, %v4119
        %4212 = vst.msk [vmem:[#allocation3 + $0x20] sm:$0xff] %vm1983, %v4121
        %4213 = vst.msk [vmem:[#allocation3 + $0x28] sm:$0xff] %vm1983, %v4123
        %4214 = vst.msk [vmem:[#allocation3 + $0x30] sm:$0xff] %vm1983, %v4125
        %4215 = vst.msk [vmem:[#allocation3 + $0x38] sm:$0xff] %vm1983, %v4127
        %4216 = vst.msk [vmem:[#allocation3 + $0x40] sm:$0xff] %vm1983, %v4129
        %4217 = vst.msk [vmem:[#allocation3 + $0x48] sm:$0xff] %vm1983, %v4131
        %4218 = vst.msk [vmem:[#allocation3 + $0x50] sm:$0xff] %vm1983, %v4133
        %4219 = vst.msk [vmem:[#allocation3 + $0x58] sm:$0xff] %vm1983, %v4135
        %4220 = vst.msk [vmem:[#allocation3 + $0x60] sm:$0xff] %vm1983, %v4137
        %4221 = vst.msk [vmem:[#allocation3 + $0x68] sm:$0xff] %vm1983, %v4139
        %4222 = vst.msk [vmem:[#allocation3 + $0x70] sm:$0xff] %vm1983, %v4141
        %4223 = vst.msk [vmem:[#allocation3 + $0x78] sm:$0xff] %vm1983, %v4143
        %4224 = vst.msk [vmem:[#allocation3 + $0x80] sm:$0xff] %vm1983, %v4145
        %4225 = vst.msk [vmem:[#allocation3 + $0x88] sm:$0xff] %vm1983, %v4147
        %4226 = vst.msk [vmem:[#allocation3 + $0x90] sm:$0xff] %vm1983, %v4149
        %4227 = vst.msk [vmem:[#allocation3 + $0x98] sm:$0xff] %vm1983, %v4151
        %4228 = vst.msk [vmem:[#allocation3 + $0xa0] sm:$0xff] %vm1983, %v4153
        %4229 = vst.msk [vmem:[#allocation3 + $0xa8] sm:$0xff] %vm1983, %v4155
        %4230 = vst.msk [vmem:[#allocation3 + $0xb0] sm:$0xff] %vm1983, %v4157
        %4231 = vst.msk [vmem:[#allocation3 + $0xb8] sm:$0xff] %vm1983, %v4159
        %4232 = vst.msk [vmem:[#allocation3 + $0xc0] sm:$0xff] %vm1983, %v4161
        %4233 = vst.msk [vmem:[#allocation3 + $0xc8] sm:$0xff] %vm1983, %v4163
        %4234 = vst.msk [vmem:[#allocation3 + $0xd0] sm:$0xff] %vm1983, %v4165
        %4235 = vst.msk [vmem:[#allocation3 + $0xd8] sm:$0xff] %vm1983, %v4167
        %4236 = vst.msk [vmem:[#allocation3 + $0xe0] sm:$0xff] %vm1983, %v4169
        %4237 = vst.msk [vmem:[#allocation3 + $0xe8] sm:$0xff] %vm1983, %v4171
        %4238 = vst.msk [vmem:[#allocation3 + $0xf0] sm:$0xff] %vm1983, %v4173
        %4239 = vst.msk [vmem:[#allocation3 + $0xf8] sm:$0xff] %vm1983, %v4175
        %v4240 = vld [vmem:[#allocation3] sm:$0xff]
        %v4241 = vld [vmem:[#allocation3 + $0x8] sm:$0xff]
        %v4242 = vld [vmem:[#allocation3 + $0x10] sm:$0xff]
        %v4243 = vld [vmem:[#allocation3 + $0x18] sm:$0xff]
        %v4244 = vld [vmem:[#allocation3 + $0x20] sm:$0xff]
        %v4245 = vld [vmem:[#allocation3 + $0x28] sm:$0xff]
        %v4246 = vld [vmem:[#allocation3 + $0x30] sm:$0xff]
        %v4247 = vld [vmem:[#allocation3 + $0x38] sm:$0xff]
        %v4248 = vld [vmem:[#allocation3 + $0x40] sm:$0xff]
        %v4249 = vld [vmem:[#allocation3 + $0x48] sm:$0xff]
        %v4250 = vld [vmem:[#allocation3 + $0x50] sm:$0xff]
        %v4251 = vld [vmem:[#allocation3 + $0x58] sm:$0xff]
        %v4252 = vld [vmem:[#allocation3 + $0x60] sm:$0xff]
        %v4253 = vld [vmem:[#allocation3 + $0x68] sm:$0xff]
        %v4254 = vld [vmem:[#allocation3 + $0x70] sm:$0xff]
        %v4255 = vld [vmem:[#allocation3 + $0x78] sm:$0xff]
        %v4256 = vld [vmem:[#allocation3 + $0x80] sm:$0xff]
        %v4257 = vld [vmem:[#allocation3 + $0x88] sm:$0xff]
        %v4258 = vld [vmem:[#allocation3 + $0x90] sm:$0xff]
        %v4259 = vld [vmem:[#allocation3 + $0x98] sm:$0xff]
        %v4260 = vld [vmem:[#allocation3 + $0xa0] sm:$0xff]
        %v4261 = vld [vmem:[#allocation3 + $0xa8] sm:$0xff]
        %v4262 = vld [vmem:[#allocation3 + $0xb0] sm:$0xff]
        %v4263 = vld [vmem:[#allocation3 + $0xb8] sm:$0xff]
        %v4264 = vld [vmem:[#allocation3 + $0xc0] sm:$0xff]
        %v4265 = vld [vmem:[#allocation3 + $0xc8] sm:$0xff]
        %v4266 = vld [vmem:[#allocation3 + $0xd0] sm:$0xff]
        %v4267 = vld [vmem:[#allocation3 + $0xd8] sm:$0xff]
        %v4268 = vld [vmem:[#allocation3 + $0xe0] sm:$0xff]
        %v4269 = vld [vmem:[#allocation3 + $0xe8] sm:$0xff]
        %v4270 = vld [vmem:[#allocation3 + $0xf0] sm:$0xff]
        %v4271 = vld [vmem:[#allocation3 + $0xf8] sm:$0xff]
        %v4272 = vld [vmem:[#allocation10] sm:$0xff]
        %v4273 = vld [vmem:[#allocation10 + $0x8] sm:$0xff]
        %v4274 = vld [vmem:[#allocation10 + $0x10] sm:$0x3]
        %v4275 = vld [vmem:[#allocation12] sm:$0x1]
        %v4277 = vlaneseq
        %v4278 = vshrl.u32 %v4277, 7
        %v4279 = vsub.s32 0, %v4278
        %v4280 = vrot.slane %v4275, %v4279
        %v4283 = vsel %vm2058, %v4240, 0
        %v4286 = vsel %vm2058, %v4241, 0
        %v4289 = vsel %vm2058, %v4242, 0
        %v4292 = vsel %vm2058, %v4243, 0
        %v4295 = vsel %vm2058, %v4244, 0
        %v4298 = vsel %vm2058, %v4245, 0
        %v4301 = vsel %vm2058, %v4246, 0
        %v4304 = vsel %vm2058, %v4247, 0
        %v4307 = vsel %vm2058, %v4248, 0
        %v4310 = vsel %vm2058, %v4249, 0
        %v4313 = vsel %vm2058, %v4250, 0
        %v4316 = vsel %vm2058, %v4251, 0
        %v4319 = vsel %vm2058, %v4252, 0
        %v4322 = vsel %vm2058, %v4253, 0
        %v4325 = vsel %vm2058, %v4254, 0
        %v4328 = vsel %vm2058, %v4255, 0
        %v4331 = vsel %vm2058, %v4256, 0
        %v4334 = vsel %vm2058, %v4257, 0
        %v4337 = vsel %vm2058, %v4258, 0
        %v4340 = vsel %vm2058, %v4259, 0
        %v4343 = vsel %vm2058, %v4260, 0
        %v4346 = vsel %vm2058, %v4261, 0
        %v4349 = vsel %vm2058, %v4262, 0
        %v4352 = vsel %vm2058, %v4263, 0
        %v4355 = vsel %vm2058, %v4264, 0
        %v4358 = vsel %vm2058, %v4265, 0
        %v4361 = vsel %vm2058, %v4266, 0
        %v4364 = vsel %vm2058, %v4267, 0
        %v4367 = vsel %vm2058, %v4268, 0
        %v4370 = vsel %vm2058, %v4269, 0
        %v4373 = vsel %vm2058, %v4270, 0
        %v4376 = vsel %vm2058, %v4271, 0
        %v4379 = vsel %vm2155, %v4274, 0
        %4381 = vmatprep.subr.mxu0 0.0
        %4382 = vmatpush1.msra.mxu0 %v4272
        %4383 = vmatprep.subr.mxu0 0.0
        %4384 = vmatpush1.msra.mxu0 %v4273
        %4385 = vmatprep.subr.mxu0 0.0
        %4386 = vmatpush1.msra.mxu0 %v4379
        %4387 = vmatprep.subr.mxu0 0.0
        %4388 = vmatpush1.msra.mxu0 0.0
        %4389 = vmatprep.subr.mxu0 0.0
        %4390 = vmatpush1.msra.mxu0 0.0
        %4391 = vmatprep.subr.mxu0 0.0
        %4392 = vmatpush1.msra.mxu0 0.0
        %4393 = vmatprep.subr.mxu0 0.0
        %4394 = vmatpush1.msra.mxu0 0.0
        %4395 = vmatprep.subr.mxu0 0.0
        %4396 = vmatpush1.msra.mxu0 0.0
        %4397 = vmatprep.subr.mxu0 0.0
        %4398 = vmatpush1.msra.mxu0 0.0
        %4399 = vmatprep.subr.mxu0 0.0
        %4400 = vmatpush1.msra.mxu0 0.0
        %4401 = vmatprep.subr.mxu0 0.0
        %4402 = vmatpush1.msra.mxu0 0.0
        %4403 = vmatprep.subr.mxu0 0.0
        %4404 = vmatpush1.msra.mxu0 0.0
        %4405 = vmatprep.subr.mxu0 0.0
        %4406 = vmatpush1.msra.mxu0 0.0
        %4407 = vmatprep.subr.mxu0 0.0
        %4408 = vmatpush1.msra.mxu0 0.0
        %4409 = vmatprep.subr.mxu0 0.0
        %4410 = vmatpush1.msra.mxu0 0.0
        %4411 = vmatprep.subr.mxu0 0.0
        %4412 = vmatpush1.msra.mxu0 0.0
        %4413 = vmatprep.subr.mxu0 0.0
        %4414 = vmatpush1.msra.mxu0 0.0
        %4415 = vmatprep.subr.mxu0 0.0
        %4416 = vmatpush1.msra.mxu0 0.0
        %4417 = vmatprep.subr.mxu0 0.0
        %4418 = vmatpush1.msra.mxu0 0.0
        %4419 = vmatprep.subr.mxu0 0.0
        %4420 = vmatpush1.msra.mxu0 0.0
        %4421 = vmatprep.subr.mxu0 0.0
        %4422 = vmatpush1.msra.mxu0 0.0
        %4423 = vmatprep.subr.mxu0 0.0
        %4424 = vmatpush1.msra.mxu0 0.0
        %4425 = vmatprep.subr.mxu0 0.0
        %4426 = vmatpush1.msra.mxu0 0.0
        %4427 = vmatprep.subr.mxu0 0.0
        %4428 = vmatpush1.msra.mxu0 0.0
        %4429 = vmatprep.subr.mxu0 0.0
        %4430 = vmatpush1.msra.mxu0 0.0
        %4431 = vmatprep.subr.mxu0 0.0
        %4432 = vmatpush1.msra.mxu0 0.0
        %4433 = vmatprep.subr.mxu0 0.0
        %4434 = vmatpush1.msra.mxu0 0.0
        %4435 = vmatprep.subr.mxu0 0.0
        %4436 = vmatpush1.msra.mxu0 0.0
        %4437 = vmatprep.subr.mxu0 0.0
        %4438 = vmatpush1.msra.mxu0 0.0
        %4439 = vmatprep.subr.mxu0 0.0
        %4440 = vmatpush1.msra.mxu0 0.0
        %4441 = vmatprep.subr.mxu0 0.0
        %4442 = vmatpush1.msra.mxu0 0.0
        %4443 = vmatprep.subr.mxu0 0.0
        %4444 = vmatpush1.msra.mxu0 0.0
        %4445 = vmatprep.mubr.f32.mxu0 0.0
        %4446 = vmatmul.mubr.f32.gmra.mrb[0].mxu0 %v4283
        %v4447 = vpop.f32.mrb[0].mxu0
        %v4448 = vadd.f32 %v4280, %v4447
        %v4449 = vpop.f32.mrb[0].mxu0
        %4450 = vmatprep.mubr.f32.mxu0 0.0
        %4451 = vmatmul.mubr.f32.gmra.mrb[0].mxu0 %v4286
        %v4452 = vpop.f32.mrb[0].mxu0
        %v4453 = vadd.f32 %v4280, %v4452
        %v4454 = vpop.f32.mrb[0].mxu0
        %4455 = vmatprep.mubr.f32.mxu0 0.0
        %4456 = vmatmul.mubr.f32.gmra.mrb[0].mxu0 %v4289
        %v4457 = vpop.f32.mrb[0].mxu0
        %v4458 = vadd.f32 %v4280, %v4457
        %v4459 = vpop.f32.mrb[0].mxu0
        %4460 = vmatprep.mubr.f32.mxu0 0.0
        %4461 = vmatmul.mubr.f32.gmra.mrb[0].mxu0 %v4292
        %v4462 = vpop.f32.mrb[0].mxu0
        %v4463 = vadd.f32 %v4280, %v4462
        %v4464 = vpop.f32.mrb[0].mxu0
        %4465 = vmatprep.mubr.f32.mxu0 0.0
        %4466 = vmatmul.mubr.f32.gmra.mrb[0].mxu0 %v4295
        %v4467 = vpop.f32.mrb[0].mxu0
        %v4468 = vadd.f32 %v4280, %v4467
        %v4469 = vpop.f32.mrb[0].mxu0
        %4470 = vmatprep.mubr.f32.mxu0 0.0
        %4471 = vmatmul.mubr.f32.gmra.mrb[0].mxu0 %v4298
        %v4472 = vpop.f32.mrb[0].mxu0
        %v4473 = vadd.f32 %v4280, %v4472
        %v4474 = vpop.f32.mrb[0].mxu0
        %4475 = vmatprep.mubr.f32.mxu0 0.0
        %4476 = vmatmul.mubr.f32.gmra.mrb[0].mxu0 %v4301
        %v4477 = vpop.f32.mrb[0].mxu0
        %v4478 = vadd.f32 %v4280, %v4477
        %v4479 = vpop.f32.mrb[0].mxu0
        %4480 = vmatprep.mubr.f32.mxu0 0.0
        %4481 = vmatmul.mubr.f32.gmra.mrb[0].mxu0 %v4304
        %v4482 = vpop.f32.mrb[0].mxu0
        %v4483 = vadd.f32 %v4280, %v4482
        %v4484 = vpop.f32.mrb[0].mxu0
        %4485 = vmatprep.mubr.f32.mxu0 0.0
        %4486 = vmatmul.mubr.f32.gmra.mrb[0].mxu0 %v4307
        %v4487 = vpop.f32.mrb[0].mxu0
        %v4488 = vadd.f32 %v4280, %v4487
        %v4489 = vpop.f32.mrb[0].mxu0
        %4490 = vmatprep.mubr.f32.mxu0 0.0
        %4491 = vmatmul.mubr.f32.gmra.mrb[0].mxu0 %v4310
        %v4492 = vpop.f32.mrb[0].mxu0
        %v4493 = vadd.f32 %v4280, %v4492
        %v4494 = vpop.f32.mrb[0].mxu0
        %4495 = vmatprep.mubr.f32.mxu0 0.0
        %4496 = vmatmul.mubr.f32.gmra.mrb[0].mxu0 %v4313
        %v4497 = vpop.f32.mrb[0].mxu0
        %v4498 = vadd.f32 %v4280, %v4497
        %v4499 = vpop.f32.mrb[0].mxu0
        %4500 = vmatprep.mubr.f32.mxu0 0.0
        %4501 = vmatmul.mubr.f32.gmra.mrb[0].mxu0 %v4316
        %v4502 = vpop.f32.mrb[0].mxu0
        %v4503 = vadd.f32 %v4280, %v4502
        %v4504 = vpop.f32.mrb[0].mxu0
        %4505 = vmatprep.mubr.f32.mxu0 0.0
        %4506 = vmatmul.mubr.f32.gmra.mrb[0].mxu0 %v4319
        %v4507 = vpop.f32.mrb[0].mxu0
        %v4508 = vadd.f32 %v4280, %v4507
        %v4509 = vpop.f32.mrb[0].mxu0
        %4510 = vmatprep.mubr.f32.mxu0 0.0
        %4511 = vmatmul.mubr.f32.gmra.mrb[0].mxu0 %v4322
        %v4512 = vpop.f32.mrb[0].mxu0
        %v4513 = vadd.f32 %v4280, %v4512
        %v4514 = vpop.f32.mrb[0].mxu0
        %4515 = vmatprep.mubr.f32.mxu0 0.0
        %4516 = vmatmul.mubr.f32.gmra.mrb[0].mxu0 %v4325
        %v4517 = vpop.f32.mrb[0].mxu0
        %v4518 = vadd.f32 %v4280, %v4517
        %v4519 = vpop.f32.mrb[0].mxu0
        %4520 = vmatprep.mubr.f32.mxu0 0.0
        %4521 = vmatmul.mubr.f32.gmra.mrb[0].mxu0 %v4328
        %v4522 = vpop.f32.mrb[0].mxu0
        %v4523 = vadd.f32 %v4280, %v4522
        %v4524 = vpop.f32.mrb[0].mxu0
        %4525 = vmatprep.mubr.f32.mxu0 0.0
        %4526 = vmatmul.mubr.f32.gmra.mrb[0].mxu0 %v4331
        %v4527 = vpop.f32.mrb[0].mxu0
        %v4528 = vadd.f32 %v4280, %v4527
        %v4529 = vpop.f32.mrb[0].mxu0
        %4530 = vmatprep.mubr.f32.mxu0 0.0
        %4531 = vmatmul.mubr.f32.gmra.mrb[0].mxu0 %v4334
        %v4532 = vpop.f32.mrb[0].mxu0
        %v4533 = vadd.f32 %v4280, %v4532
        %v4534 = vpop.f32.mrb[0].mxu0
        %4535 = vmatprep.mubr.f32.mxu0 0.0
        %4536 = vmatmul.mubr.f32.gmra.mrb[0].mxu0 %v4337
        %v4537 = vpop.f32.mrb[0].mxu0
        %v4538 = vadd.f32 %v4280, %v4537
        %v4539 = vpop.f32.mrb[0].mxu0
        %4540 = vmatprep.mubr.f32.mxu0 0.0
        %4541 = vmatmul.mubr.f32.gmra.mrb[0].mxu0 %v4340
        %v4542 = vpop.f32.mrb[0].mxu0
        %v4543 = vadd.f32 %v4280, %v4542
        %v4544 = vpop.f32.mrb[0].mxu0
        %4545 = vmatprep.mubr.f32.mxu0 0.0
        %4546 = vmatmul.mubr.f32.gmra.mrb[0].mxu0 %v4343
        %v4547 = vpop.f32.mrb[0].mxu0
        %v4548 = vadd.f32 %v4280, %v4547
        %v4549 = vpop.f32.mrb[0].mxu0
        %4550 = vmatprep.mubr.f32.mxu0 0.0
        %4551 = vmatmul.mubr.f32.gmra.mrb[0].mxu0 %v4346
        %v4552 = vpop.f32.mrb[0].mxu0
        %v4553 = vadd.f32 %v4280, %v4552
        %v4554 = vpop.f32.mrb[0].mxu0
        %4555 = vmatprep.mubr.f32.mxu0 0.0
        %4556 = vmatmul.mubr.f32.gmra.mrb[0].mxu0 %v4349
        %v4557 = vpop.f32.mrb[0].mxu0
        %v4558 = vadd.f32 %v4280, %v4557
        %v4559 = vpop.f32.mrb[0].mxu0
        %4560 = vmatprep.mubr.f32.mxu0 0.0
        %4561 = vmatmul.mubr.f32.gmra.mrb[0].mxu0 %v4352
        %v4562 = vpop.f32.mrb[0].mxu0
        %v4563 = vadd.f32 %v4280, %v4562
        %v4564 = vpop.f32.mrb[0].mxu0
        %4565 = vmatprep.mubr.f32.mxu0 0.0
        %4566 = vmatmul.mubr.f32.gmra.mrb[0].mxu0 %v4355
        %v4567 = vpop.f32.mrb[0].mxu0
        %v4568 = vadd.f32 %v4280, %v4567
        %v4569 = vpop.f32.mrb[0].mxu0
        %4570 = vmatprep.mubr.f32.mxu0 0.0
        %4571 = vmatmul.mubr.f32.gmra.mrb[0].mxu0 %v4358
        %v4572 = vpop.f32.mrb[0].mxu0
        %v4573 = vadd.f32 %v4280, %v4572
        %v4574 = vpop.f32.mrb[0].mxu0
        %4575 = vmatprep.mubr.f32.mxu0 0.0
        %4576 = vmatmul.mubr.f32.gmra.mrb[0].mxu0 %v4361
        %v4577 = vpop.f32.mrb[0].mxu0
        %v4578 = vadd.f32 %v4280, %v4577
        %v4579 = vpop.f32.mrb[0].mxu0
        %4580 = vmatprep.mubr.f32.mxu0 0.0
        %4581 = vmatmul.mubr.f32.gmra.mrb[0].mxu0 %v4364
        %v4582 = vpop.f32.mrb[0].mxu0
        %v4583 = vadd.f32 %v4280, %v4582
        %v4584 = vpop.f32.mrb[0].mxu0
        %4585 = vmatprep.mubr.f32.mxu0 0.0
        %4586 = vmatmul.mubr.f32.gmra.mrb[0].mxu0 %v4367
        %v4587 = vpop.f32.mrb[0].mxu0
        %v4588 = vadd.f32 %v4280, %v4587
        %v4589 = vpop.f32.mrb[0].mxu0
        %4590 = vmatprep.mubr.f32.mxu0 0.0
        %4591 = vmatmul.mubr.f32.gmra.mrb[0].mxu0 %v4370
        %v4592 = vpop.f32.mrb[0].mxu0
        %v4593 = vadd.f32 %v4280, %v4592
        %v4594 = vpop.f32.mrb[0].mxu0
        %4595 = vmatprep.mubr.f32.mxu0 0.0
        %4596 = vmatmul.mubr.f32.gmra.mrb[0].mxu0 %v4373
        %v4597 = vpop.f32.mrb[0].mxu0
        %v4598 = vadd.f32 %v4280, %v4597
        %v4599 = vpop.f32.mrb[0].mxu0
        %4600 = vmatprep.mubr.f32.mxu0 0.0
        %4601 = vmatmul.mubr.f32.gmra.mrb[0].mxu0 %v4376
        %v4602 = vpop.f32.mrb[0].mxu0
        %v4603 = vadd.f32 %v4280, %v4602
        %v4604 = vpop.f32.mrb[0].mxu0
        %4605 = vdwg.mxu0
        %v4606 = vxor.u32 %v4448, 2147483648
        %v4607 = vxor.u32 %v4453, 2147483648
        %v4608 = vxor.u32 %v4458, 2147483648
        %v4609 = vxor.u32 %v4463, 2147483648
        %v4610 = vxor.u32 %v4468, 2147483648
        %v4611 = vxor.u32 %v4473, 2147483648
        %v4612 = vxor.u32 %v4478, 2147483648
        %v4613 = vxor.u32 %v4483, 2147483648
        %v4614 = vxor.u32 %v4488, 2147483648
        %v4615 = vxor.u32 %v4493, 2147483648
        %v4616 = vxor.u32 %v4498, 2147483648
        %v4617 = vxor.u32 %v4503, 2147483648
        %v4618 = vxor.u32 %v4508, 2147483648
        %v4619 = vxor.u32 %v4513, 2147483648
        %v4620 = vxor.u32 %v4518, 2147483648
        %v4621 = vxor.u32 %v4523, 2147483648
        %v4622 = vxor.u32 %v4528, 2147483648
        %v4623 = vxor.u32 %v4533, 2147483648
        %v4624 = vxor.u32 %v4538, 2147483648
        %v4625 = vxor.u32 %v4543, 2147483648
        %v4626 = vxor.u32 %v4548, 2147483648
        %v4627 = vxor.u32 %v4553, 2147483648
        %v4628 = vxor.u32 %v4558, 2147483648
        %v4629 = vxor.u32 %v4563, 2147483648
        %v4630 = vxor.u32 %v4568, 2147483648
        %v4631 = vxor.u32 %v4573, 2147483648
        %v4632 = vxor.u32 %v4578, 2147483648
        %v4633 = vxor.u32 %v4583, 2147483648
        %v4634 = vxor.u32 %v4588, 2147483648
        %v4635 = vxor.u32 %v4593, 2147483648
        %v4636 = vxor.u32 %v4598, 2147483648
        %v4637 = vxor.u32 %v4603, 2147483648
        %v4638 = vmul.f32 %v4606, 1.442695
        %v4639 = vpow.pop %v4638
        %v4640 = vmul.f32 %v4607, 1.442695
        %v4641 = vpow.pop %v4640
        %v4642 = vmul.f32 %v4608, 1.442695
        %v4643 = vpow.pop %v4642
        %v4644 = vmul.f32 %v4609, 1.442695
        %v4645 = vpow.pop %v4644
        %v4646 = vmul.f32 %v4610, 1.442695
        %v4647 = vpow.pop %v4646
        %v4648 = vmul.f32 %v4611, 1.442695
        %v4649 = vpow.pop %v4648
        %v4650 = vmul.f32 %v4612, 1.442695
        %v4651 = vpow.pop %v4650
        %v4652 = vmul.f32 %v4613, 1.442695
        %v4653 = vpow.pop %v4652
        %v4654 = vmul.f32 %v4614, 1.442695
        %v4655 = vpow.pop %v4654
        %v4656 = vmul.f32 %v4615, 1.442695
        %v4657 = vpow.pop %v4656
        %v4658 = vmul.f32 %v4616, 1.442695
        %v4659 = vpow.pop %v4658
        %v4660 = vmul.f32 %v4617, 1.442695
        %v4661 = vpow.pop %v4660
        %v4662 = vmul.f32 %v4618, 1.442695
        %v4663 = vpow.pop %v4662
        %v4664 = vmul.f32 %v4619, 1.442695
        %v4665 = vpow.pop %v4664
        %v4666 = vmul.f32 %v4620, 1.442695
        %v4667 = vpow.pop %v4666
        %v4668 = vmul.f32 %v4621, 1.442695
        %v4669 = vpow.pop %v4668
        %v4670 = vmul.f32 %v4622, 1.442695
        %v4671 = vpow.pop %v4670
        %v4672 = vmul.f32 %v4623, 1.442695
        %v4673 = vpow.pop %v4672
        %v4674 = vmul.f32 %v4624, 1.442695
        %v4675 = vpow.pop %v4674
        %v4676 = vmul.f32 %v4625, 1.442695
        %v4677 = vpow.pop %v4676
        %v4678 = vmul.f32 %v4626, 1.442695
        %v4679 = vpow.pop %v4678
        %v4680 = vmul.f32 %v4627, 1.442695
        %v4681 = vpow.pop %v4680
        %v4682 = vmul.f32 %v4628, 1.442695
        %v4683 = vpow.pop %v4682
        %v4684 = vmul.f32 %v4629, 1.442695
        %v4685 = vpow.pop %v4684
        %v4686 = vmul.f32 %v4630, 1.442695
        %v4687 = vpow.pop %v4686
        %v4688 = vmul.f32 %v4631, 1.442695
        %v4689 = vpow.pop %v4688
        %v4690 = vmul.f32 %v4632, 1.442695
        %v4691 = vpow.pop %v4690
        %v4692 = vmul.f32 %v4633, 1.442695
        %v4693 = vpow.pop %v4692
        %v4694 = vmul.f32 %v4634, 1.442695
        %v4695 = vpow.pop %v4694
        %v4696 = vmul.f32 %v4635, 1.442695
        %v4697 = vpow.pop %v4696
        %v4698 = vmul.f32 %v4636, 1.442695
        %v4699 = vpow.pop %v4698
        %v4700 = vmul.f32 %v4637, 1.442695
        %v4701 = vpow.pop %v4700
        %v4702 = vadd.f32 %v4639, 1.0
        %v4703 = vadd.f32 %v4641, 1.0
        %v4704 = vadd.f32 %v4643, 1.0
        %v4705 = vadd.f32 %v4645, 1.0
        %v4706 = vadd.f32 %v4647, 1.0
        %v4707 = vadd.f32 %v4649, 1.0
        %v4708 = vadd.f32 %v4651, 1.0
        %v4709 = vadd.f32 %v4653, 1.0
        %v4710 = vadd.f32 %v4655, 1.0
        %v4711 = vadd.f32 %v4657, 1.0
        %v4712 = vadd.f32 %v4659, 1.0
        %v4713 = vadd.f32 %v4661, 1.0
        %v4714 = vadd.f32 %v4663, 1.0
        %v4715 = vadd.f32 %v4665, 1.0
        %v4716 = vadd.f32 %v4667, 1.0
        %v4717 = vadd.f32 %v4669, 1.0
        %v4718 = vadd.f32 %v4671, 1.0
        %v4719 = vadd.f32 %v4673, 1.0
        %v4720 = vadd.f32 %v4675, 1.0
        %v4721 = vadd.f32 %v4677, 1.0
        %v4722 = vadd.f32 %v4679, 1.0
        %v4723 = vadd.f32 %v4681, 1.0
        %v4724 = vadd.f32 %v4683, 1.0
        %v4725 = vadd.f32 %v4685, 1.0
        %v4726 = vadd.f32 %v4687, 1.0
        %v4727 = vadd.f32 %v4689, 1.0
        %v4728 = vadd.f32 %v4691, 1.0
        %v4729 = vadd.f32 %v4693, 1.0
        %v4730 = vadd.f32 %v4695, 1.0
        %v4731 = vadd.f32 %v4697, 1.0
        %v4732 = vadd.f32 %v4699, 1.0
        %v4733 = vadd.f32 %v4701, 1.0
        %v4734 = vrcp.pop %v4702
        %v4735 = vmul.f32 1.0, %v4734
        %v4736 = vrcp.pop %v4703
        %v4737 = vmul.f32 1.0, %v4736
        %v4738 = vrcp.pop %v4704
        %v4739 = vmul.f32 1.0, %v4738
        %v4740 = vrcp.pop %v4705
        %v4741 = vmul.f32 1.0, %v4740
        %v4742 = vrcp.pop %v4706
        %v4743 = vmul.f32 1.0, %v4742
        %v4744 = vrcp.pop %v4707
        %v4745 = vmul.f32 1.0, %v4744
        %v4746 = vrcp.pop %v4708
        %v4747 = vmul.f32 1.0, %v4746
        %v4748 = vrcp.pop %v4709
        %v4749 = vmul.f32 1.0, %v4748
        %v4750 = vrcp.pop %v4710
        %v4751 = vmul.f32 1.0, %v4750
        %v4752 = vrcp.pop %v4711
        %v4753 = vmul.f32 1.0, %v4752
        %v4754 = vrcp.pop %v4712
        %v4755 = vmul.f32 1.0, %v4754
        %v4756 = vrcp.pop %v4713
        %v4757 = vmul.f32 1.0, %v4756
        %v4758 = vrcp.pop %v4714
        %v4759 = vmul.f32 1.0, %v4758
        %v4760 = vrcp.pop %v4715
        %v4761 = vmul.f32 1.0, %v4760
        %v4762 = vrcp.pop %v4716
        %v4763 = vmul.f32 1.0, %v4762
        %v4764 = vrcp.pop %v4717
        %v4765 = vmul.f32 1.0, %v4764
        %v4766 = vrcp.pop %v4718
        %v4767 = vmul.f32 1.0, %v4766
        %v4768 = vrcp.pop %v4719
        %v4769 = vmul.f32 1.0, %v4768
        %v4770 = vrcp.pop %v4720
        %v4771 = vmul.f32 1.0, %v4770
        %v4772 = vrcp.pop %v4721
        %v4773 = vmul.f32 1.0, %v4772
        %v4774 = vrcp.pop %v4722
        %v4775 = vmul.f32 1.0, %v4774
        %v4776 = vrcp.pop %v4723
        %v4777 = vmul.f32 1.0, %v4776
        %v4778 = vrcp.pop %v4724
        %v4779 = vmul.f32 1.0, %v4778
        %v4780 = vrcp.pop %v4725
        %v4781 = vmul.f32 1.0, %v4780
        %v4782 = vrcp.pop %v4726
        %v4783 = vmul.f32 1.0, %v4782
        %v4784 = vrcp.pop %v4727
        %v4785 = vmul.f32 1.0, %v4784
        %v4786 = vrcp.pop %v4728
        %v4787 = vmul.f32 1.0, %v4786
        %v4788 = vrcp.pop %v4729
        %v4789 = vmul.f32 1.0, %v4788
        %v4790 = vrcp.pop %v4730
        %v4791 = vmul.f32 1.0, %v4790
        %v4792 = vrcp.pop %v4731
        %v4793 = vmul.f32 1.0, %v4792
        %v4794 = vrcp.pop %v4732
        %v4795 = vmul.f32 1.0, %v4794
        %v4796 = vrcp.pop %v4733
        %v4797 = vmul.f32 1.0, %v4796
        %v4798 = vmul.f32 %v4448, %v4735
        %v4799 = vmul.f32 %v4453, %v4737
        %v4800 = vmul.f32 %v4458, %v4739
        %v4801 = vmul.f32 %v4463, %v4741
        %v4802 = vmul.f32 %v4468, %v4743
        %v4803 = vmul.f32 %v4473, %v4745
        %v4804 = vmul.f32 %v4478, %v4747
        %v4805 = vmul.f32 %v4483, %v4749
        %v4806 = vmul.f32 %v4488, %v4751
        %v4807 = vmul.f32 %v4493, %v4753
        %v4808 = vmul.f32 %v4498, %v4755
        %v4809 = vmul.f32 %v4503, %v4757
        %v4810 = vmul.f32 %v4508, %v4759
        %v4811 = vmul.f32 %v4513, %v4761
        %v4812 = vmul.f32 %v4518, %v4763
        %v4813 = vmul.f32 %v4523, %v4765
        %v4814 = vmul.f32 %v4528, %v4767
        %v4815 = vmul.f32 %v4533, %v4769
        %v4816 = vmul.f32 %v4538, %v4771
        %v4817 = vmul.f32 %v4543, %v4773
        %v4818 = vmul.f32 %v4548, %v4775
        %v4819 = vmul.f32 %v4553, %v4777
        %v4820 = vmul.f32 %v4558, %v4779
        %v4821 = vmul.f32 %v4563, %v4781
        %v4822 = vmul.f32 %v4568, %v4783
        %v4823 = vmul.f32 %v4573, %v4785
        %v4824 = vmul.f32 %v4578, %v4787
        %v4825 = vmul.f32 %v4583, %v4789
        %v4826 = vmul.f32 %v4588, %v4791
        %v4827 = vmul.f32 %v4593, %v4793
        %v4828 = vmul.f32 %v4598, %v4795
        %v4829 = vmul.f32 %v4603, %v4797
        %4830 = vst.msk [vmem:[%s296] sm:$0xff] %vm331, %v4798
        %4831 = vst.msk [vmem:[%s296 + $0x8] sm:$0xff] %vm331, %v4799
        %4832 = vst.msk [vmem:[%s296 + $0x10] sm:$0xff] %vm331, %v4800
        %4833 = vst.msk [vmem:[%s296 + $0x18] sm:$0xff] %vm331, %v4801
        %4834 = vst.msk [vmem:[%s296 + $0x20] sm:$0xff] %vm331, %v4802
        %4835 = vst.msk [vmem:[%s296 + $0x28] sm:$0xff] %vm331, %v4803
        %4836 = vst.msk [vmem:[%s296 + $0x30] sm:$0xff] %vm331, %v4804
        %4837 = vst.msk [vmem:[%s296 + $0x38] sm:$0xff] %vm331, %v4805
        %4838 = vst.msk [vmem:[%s296 + $0x40] sm:$0xff] %vm331, %v4806
        %4839 = vst.msk [vmem:[%s296 + $0x48] sm:$0xff] %vm331, %v4807
        %4840 = vst.msk [vmem:[%s296 + $0x50] sm:$0xff] %vm331, %v4808
        %4841 = vst.msk [vmem:[%s296 + $0x58] sm:$0xff] %vm331, %v4809
        %4842 = vst.msk [vmem:[%s296 + $0x60] sm:$0xff] %vm331, %v4810
        %4843 = vst.msk [vmem:[%s296 + $0x68] sm:$0xff] %vm331, %v4811
        %4844 = vst.msk [vmem:[%s296 + $0x70] sm:$0xff] %vm331, %v4812
        %4845 = vst.msk [vmem:[%s296 + $0x78] sm:$0xff] %vm331, %v4813
        %4846 = vst.msk [vmem:[%s296 + $0x80] sm:$0xff] %vm331, %v4814
        %4847 = vst.msk [vmem:[%s296 + $0x88] sm:$0xff] %vm331, %v4815
        %4848 = vst.msk [vmem:[%s296 + $0x90] sm:$0xff] %vm331, %v4816
        %4849 = vst.msk [vmem:[%s296 + $0x98] sm:$0xff] %vm331, %v4817
        %4850 = vst.msk [vmem:[%s296 + $0xa0] sm:$0xff] %vm331, %v4818
        %4851 = vst.msk [vmem:[%s296 + $0xa8] sm:$0xff] %vm331, %v4819
        %4852 = vst.msk [vmem:[%s296 + $0xb0] sm:$0xff] %vm331, %v4820
        %4853 = vst.msk [vmem:[%s296 + $0xb8] sm:$0xff] %vm331, %v4821
        %4854 = vst.msk [vmem:[%s296 + $0xc0] sm:$0xff] %vm331, %v4822
        %4855 = vst.msk [vmem:[%s296 + $0xc8] sm:$0xff] %vm331, %v4823
        %4856 = vst.msk [vmem:[%s296 + $0xd0] sm:$0xff] %vm331, %v4824
        %4857 = vst.msk [vmem:[%s296 + $0xd8] sm:$0xff] %vm331, %v4825
        %4858 = vst.msk [vmem:[%s296 + $0xe0] sm:$0xff] %vm331, %v4826
        %4859 = vst.msk [vmem:[%s296 + $0xe8] sm:$0xff] %vm331, %v4827
        %4860 = vst.msk [vmem:[%s296 + $0xf0] sm:$0xff] %vm331, %v4828
        %4861 = vst.msk [vmem:[%s296 + $0xf8] sm:$0xff] %vm331, %v4829
        %s4862 = sand.u32 %s142, 1
        %s4863 = scalar_lea.sflag [#allocation6], %s4862
        %s4864 = sand.u32 %s142, 1
        %s4865 = smul.addr %s4864, 256
        %s4866 = scalar_lea.vmem [#allocation13], %s4865
        // Predicated region
        $region61: #{c2f_forward.4} parent=39 // pred_check
          %p4867 = pneg %p152
        $region62: #{c2f_forward.4} parent=39 // pred_check_branch
          %4869 = sbr.rel (%p4867) target = $region64
        $region63: #{c2f_forward.4} parent=39 // pred_region
          %s4870 = smul.u32 32, %s24
          %s4872 = ssub.s32 4096, 4096
          %4873 = vsyncadd %s4863, %s4872
          %s4874 = smul.addr %s4870, 128
          %s4875 = scalar_lea.hbm %s5, %s4874
          %s4876 = sshll.u32 %s4866, 4
          %s4877 = int_to_ptr.vmem [resolvable:$true] %s4876
          %4882 = dma.vmem_to_hbm [thread:$0]  %s4877, 4096, %s4875, %s4863, 128, 128, 8
        $region64: #{c2f_forward.4} parent=39 // pred_fallthru
          _
      $region40: #{c2f_forward.4} parent=5 // pred_fallthru
        _
      %p4883 = scmp.le.s32.totalorder 2, %s19
      // Predicated region
      $region65: #{c2f_forward.4} parent=5 // pred_check
        %p4884 = pneg %p4883
      $region66: #{c2f_forward.4} parent=5 // pred_check_branch
        %4886 = sbr.rel (%p4884) target = $region68
      $region67: #{c2f_forward.4} parent=5 // pred_region
        %s4887 = ssub.s32 %s19, 2
        // Predicated region
        $region69: #{c2f_forward.4} parent=67 // pred_check
          %p4888 = pneg %p158
        $region70: #{c2f_forward.4} parent=67 // pred_check_branch
          %4890 = sbr.rel (%p4888) target = $region72
        $region71: #{c2f_forward.4} parent=67 // pred_region
          %s4891 = sand.u32 %s143, 1
          %s4892 = scalar_lea.sflag [#allocation6], %s4891
          %s4893 = sand.u32 %s143, 1
          %s4894 = smul.addr %s4893, 256
          %s4895 = scalar_lea.vmem [#allocation13], %s4894
          %4896 = dma.done %s4892, 4096
        $region72: #{c2f_forward.4} parent=67 // pred_fallthru
          _
      $region68: #{c2f_forward.4} parent=5 // pred_fallthru
        _
    $region6: #{c2f_forward.4} parent=1 // loop_footer
      %s23 = sadd.s32 1, %s19
    $region7: #{c2f_forward.4} parent=1 // loop_footer_branch
      %18 = sbr.rel target = $region3
    $region8: #{c2f_forward.4} parent=1 // loop_exit
      _
    %4897 = vsyncpa [#allocation5], 1
    %s4898 = scalar_lea.sflag [#allocation5], 1
    %4899 = vsyncpa %s4898, 1
    %4900 = vsyncpa [#allocation8], 1
    %4901 = vsyncpa [#allocation11], 1
    %4902 = vsyncpa [#allocation6], 1
    %s4903 = scalar_lea.sflag [#allocation6], 1
    %4904 = vsyncpa %s4903, 1

</llo_original>
